<compile_context>
chip_gen: v6e
topology: v6e:2x2x1
jax: 0.10.0
libtpu: 0.0.40
codegen_flags: <defaults>
</compile_context>

<pallas_src>
import functools

import jax
import jax.numpy as jnp
from jax import lax
from jax.experimental import pallas as pl
from jax.experimental.pallas import tpu as pltpu

_VMEM = pl.BlockSpec(memory_space=pltpu.MemorySpace.VMEM)

# Geometry of the PyTorch Net (LeNet on a 32x32 single-channel input).
_P1 = 14             # spatial size after first 2x2 max pool
_P2 = 5              # spatial size after second 2x2 max pool
_C1, _C2 = 6, 16     # conv output channels
_K = 5               # conv kernel size
_XW = 13             # extended conv1 window width (5 + 2*(5-1))
_XT = _K * _XW       # 65 taps of the extended 5x13 window


# ------------------------------ fused kernel -------------------------------

def _lenet_kernel(patches_ref, w1_ref, b1_ref, w2_ref, b2_ref,
                  wf1_hbm, bf1_ref, wf2_ref, bf2_ref, wf3_ref, bf3_ref,
                  out_ref,
                  y_ref, p1_ref, slab2_ref, o2_ref, flat_ref,
                  wf1_vmem, wf1_sem, *, nb, r1p):
    f32, bf16 = jnp.float32, jnp.bfloat16

    # fc1 weight HBM->VMEM DMA starts now; waited just before the fc1 dot so
    # it is hidden behind all of the conv work.
    wf1_copy = pltpu.make_async_copy(wf1_hbm, wf1_vmem, wf1_sem)
    wf1_copy.start()

    # ---- conv1: ONE (4*r1p,128)x(128,128) bf16 dot -------------------------
    # Result lanes are the dj-replicated conv1 channels:
    #   lane = dj_rep*6 + c  ->  conv1 output at column 2*(v+dj_rep)+t.
    y_ref[...] = jnp.dot(patches_ref[...], w1_ref[...],
                         preferred_element_type=f32)

    # pool1 = max over the four contiguous pool-parity row blocks.
    m = jnp.maximum(
        jnp.maximum(y_ref[pl.ds(0 * r1p, r1p), :],
                    y_ref[pl.ds(1 * r1p, r1p), :]),
        jnp.maximum(y_ref[pl.ds(2 * r1p, r1p), :],
                    y_ref[pl.ds(3 * r1p, r1p), :]))
    p1_ref[pl.ds(0, r1p), :] = jnp.maximum(m + b1_ref[...], 0.0).astype(bf16)
    # Zero the shift margin so conv2's row-shifted copies never read
    # uninitialized VMEM (those rows are never gathered, but keep it clean).
    marg = (_K - 1) * _P1 * nb
    p1_ref[pl.ds(r1p, marg), :] = jnp.zeros((marg, 128), bf16)

    # ---- conv2: aligned lane-block im2col + ONE (r1p,640)x(640,128) dot -----
    for di in range(_K):
        slab2_ref[0:r1p, di * 128:(di + 1) * 128] = (
            p1_ref[pl.ds(di * _P1 * nb, r1p), :])
    o2_ref[...] = jnp.dot(slab2_ref[...], w2_ref[...],
                          preferred_element_type=f32)

    # ---- pool2 + bias + relu + flatten --------------------------------------
    # Batch-minor rows: the nb rows of a given (u,v) position are contiguous,
    # so each pool position is 4 contiguous (nb,128) reads, a max, bias+relu
    # on the tiny slab, and one 16-lane store into the fc1 input.
    flat_ref[...] = jnp.zeros((8, 512), f32)
    b2 = b2_ref[...]
    for u2 in range(_P2):
        for v2 in range(_P2):
            p = u2 * _P2 + v2
            base = (2 * u2 * _P1 + 2 * v2) * nb
            pooled = jnp.maximum(
                jnp.maximum(o2_ref[pl.ds(base, nb), :],
                            o2_ref[pl.ds(base + nb, nb), :]),
                jnp.maximum(o2_ref[pl.ds(base + _P1 * nb, nb), :],
                            o2_ref[pl.ds(base + (_P1 + 1) * nb, nb), :]))
            pooled = jnp.maximum(pooled + b2, 0.0)
            flat_ref[0:nb, p * _C2:(p + 1) * _C2] = pooled[:, 0:_C2]

    # ---- fully connected head (bf16 x bf16 MXU, f32 accumulate) -------------
    wf1_copy.wait()
    h = flat_ref[...].astype(bf16)
    h = jnp.maximum(
        jnp.dot(h, wf1_vmem[...], preferred_element_type=f32) + bf1_ref[...],
        0.0)
    h = jnp.maximum(
        jnp.dot(h.astype(bf16), wf2_ref[...], preferred_element_type=f32)
        + bf2_ref[...], 0.0)
    out_ref[...] = (
        jnp.dot(h.astype(bf16), wf3_ref[...], preferred_element_type=f32)
        + bf3_ref[...])


# ------------------------------ host-side glue ------------------------------

def _conv1_patches(x, nb, r1p):
    """Extended 5x13 im2col of the (N,1,32,32) input.

    Rows are grouped into the 4 pool1-parity blocks; within a block the row
    index is (u*14 + v)*nb + n (batch-minor).  Column di*13 + djx holds
    x[n, 2u+s+di, 2v+t+djx] (image zero-padded to width 40); the remaining
    columns up to 128 are zero.
    """
    img = x[:, 0]                                        # (nb, 32, 32)
    imgp = jnp.pad(img, ((0, 0), (0, 0), (0, 8)))        # (nb, 32, 40)
    cols = jnp.stack(
        [imgp[:, di:di + 2 * _P1, dj:dj + 2 * _P1]
         for di in range(_K) for dj in range(_XW)], axis=-1)  # (nb,28,28,65)
    cols = cols.reshape(nb, _P1, 2, _P1, 2, _XT)         # (n,u,s,v,t,tap)
    cols = cols.transpose(2, 4, 1, 3, 0, 5)              # (s,t,u,v,n,tap)
    cols = cols.reshape(4, _P1 * _P1 * nb, _XT)
    cols = jnp.pad(cols, ((0, 0), (0, r1p - _P1 * _P1 * nb), (0, 128 - _XT)))
    return cols.reshape(4 * r1p, 128).astype(jnp.bfloat16)


def prepare_params(params):
    """One-time weight layout: bf16, lane-dense padding, pre-transposes, the
    extended (dj-replicated) conv1 weights, and fc1's row permutation."""
    f32, bf16 = jnp.float32, jnp.bfloat16
    # conv1 -> (128,128): row = di*13 + djx, lane = dj_rep*6 + c,
    #          value = w1[c, di, djx - 2*dj_rep] (0 outside the 5-tap range).
    w1 = jnp.transpose(params["conv1_w"].reshape(_C1, _K, _K), (1, 2, 0))
    djx = jnp.arange(_XW)[:, None]
    rep = jnp.arange(_K)[None, :]
    dj = djx - 2 * rep                                   # (13,5)
    ok = (dj >= 0) & (dj < _K)
    w1x = w1[:, jnp.clip(dj, 0, _K - 1), :]              # (5,13,5,6)
    w1x = jnp.where(ok[None, :, :, None], w1x, 0.0).reshape(_XT, _K * _C1)
    w1m = jnp.zeros((128, 128), f32).at[:_XT, :_K * _C1].set(w1x).astype(bf16)
    b1v = jnp.zeros((1, 128), f32).at[0, :_K * _C1].set(
        jnp.tile(params["conv1_b"], _K))
    # conv2 -> (640,128): row = di*128 + dj_rep*6 + ci, col = co.
    w2 = jnp.transpose(params["conv2_w"], (2, 3, 1, 0)).reshape(
        _K, _K * _C1, _C2)
    w2m = (jnp.zeros((_K, 128, 128), f32)
           .at[:, :_K * _C1, :_C2].set(w2)
           .reshape(_K * 128, 128).astype(bf16))
    b2v = jnp.zeros((1, 128), f32).at[0, :_C2].set(params["conv2_b"])
    # fc1: rows permuted from PyTorch feature index c*25+p to ours p*16+c.
    wf1 = params["fc1_w"].T
    wf1 = wf1.reshape(_C2, 25, 400).transpose(1, 0, 2).reshape(400, 400)
    wf1m = jnp.zeros((512, 512), f32).at[:400, :400].set(wf1).astype(bf16)
    bf1 = jnp.zeros((1, 512), f32).at[0, :400].set(params["fc1_b"])
    wf2m = jnp.zeros((512, 128), f32).at[:400, :84].set(
        params["fc2_w"].T).astype(bf16)
    bf2 = jnp.zeros((1, 128), f32).at[0, :84].set(params["fc2_b"])
    wf3m = jnp.zeros((128, 128), f32).at[:84, :10].set(
        params["fc3_w"].T).astype(bf16)
    bf3 = jnp.zeros((1, 128), f32).at[0, :10].set(params["fc3_b"])
    return dict(w1=w1m, b1=b1v, w2=w2m, b2=b2v, wf1=wf1m, bf1=bf1,
                wf2=wf2m, bf2=bf2, wf3=wf3m, bf3=bf3)


def net_forward(prepped, x):
    nb = x.shape[0]
    assert nb <= 8, "fused kernel sized for small batches"
    r1 = nb * _P1 * _P1
    r1p = ((r1 + 7) // 8) * 8
    patches = _conv1_patches(x, nb, r1p)
    kernel = functools.partial(_lenet_kernel, nb=nb, r1p=r1p)
    out = pl.pallas_call(
        kernel,
        out_shape=jax.ShapeDtypeStruct((8, 128), jnp.float32),
        in_specs=([_VMEM] * 5
                  + [pl.BlockSpec(memory_space=pl.ANY)]   # fc1 weight in HBM
                  + [_VMEM] * 5),
        out_specs=_VMEM,
        scratch_shapes=[
            pltpu.VMEM((4 * r1p, 128), jnp.float32),              # conv1 pre-pool
            pltpu.VMEM((r1p + (_K - 1) * _P1 * nb, 128),
                       jnp.bfloat16),                             # p1 slab+margin
            pltpu.VMEM((r1p, _K * 128), jnp.bfloat16),            # conv2 im2col
            pltpu.VMEM((r1p, 128), jnp.float32),                  # conv2 raw out
            pltpu.VMEM((8, 512), jnp.float32),                    # fc1 input slab
            pltpu.VMEM((512, 512), jnp.bfloat16),                 # fc1 w (DMA'd)
            pltpu.SemaphoreType.DMA,
        ],
    )(patches, prepped["w1"], prepped["b1"], prepped["w2"], prepped["b2"],
      prepped["wf1"], prepped["bf1"], prepped["wf2"], prepped["bf2"],
      prepped["wf3"], prepped["bf3"])
    return out[:nb, :10]


# --------------------------------- model ------------------------------------

def init_params(key):
    ks = jax.random.split(key, 10)

    def u(k, shape, fan_in):
        bound = 1.0 / float(fan_in) ** 0.5
        return jax.random.uniform(k, shape, jnp.float32, -bound, bound)

    return dict(
        conv1_w=u(ks[0], (6, 1, 5, 5), 1 * 5 * 5),
        conv1_b=u(ks[1], (6,), 1 * 5 * 5),
        conv2_w=u(ks[2], (16, 6, 5, 5), 6 * 5 * 5),
        conv2_b=u(ks[3], (16,), 6 * 5 * 5),
        fc1_w=u(ks[4], (400, 400), 400),
        fc1_b=u(ks[5], (400,), 400),
        fc2_w=u(ks[6], (84, 400), 400),
        fc2_b=u(ks[7], (84,), 400),
        fc3_w=u(ks[8], (10, 84), 84),
        fc3_b=u(ks[9], (10,), 84),
    )


def net_reference(params, x):
    """Pure-JAX reference with identical (PyTorch) math, in f32."""
    def conv(x, w, b):
        dn = lax.conv_dimension_numbers(x.shape, w.shape,
                                        ("NCHW", "OIHW", "NCHW"))
        y = lax.conv_general_dilated(x, w, (1, 1), "VALID",
                                     dimension_numbers=dn)
        return jnp.maximum(y + b[None, :, None, None], 0.0)

    def pool(x):
        n, c, h, w = x.shape
        return jnp.max(x.reshape(n, c, h // 2, 2, w // 2, 2), axis=(3, 5))

    x = pool(conv(x, params["conv1_w"], params["conv1_b"]))
    x = pool(conv(x, params["conv2_w"], params["conv2_b"]))
    x = x.reshape(x.shape[0], -1)
    x = jnp.maximum(x @ params["fc1_w"].T + params["fc1_b"], 0.0)
    x = jnp.maximum(x @ params["fc2_w"].T + params["fc2_b"], 0.0)
    return x @ params["fc3_w"].T + params["fc3_b"]


if __name__ == "__main__":
    key = jax.random.PRNGKey(0)
    pkey, xkey = jax.random.split(key)
    params = init_params(pkey)
    # LeNet geometry: 32x32 single-channel input -> 16*5*5 = 400 flat features.
    x = jax.random.normal(xkey, (2, 1, 32, 32), dtype=jnp.float32)

    prepped = prepare_params(params)        # one-time weight padding/transpose
    out = jax.jit(net_forward)(prepped, x)
    out = jax.block_until_ready(out)

    ref = net_reference(params, x)
    assert out.shape == (2, 10), out.shape
    err = float(jnp.max(jnp.abs(out - ref)))
    # bf16 weights/activations on the MXU with f32 accumulation: loose tol.
    assert jnp.allclose(out, ref, atol=3e-2, rtol=3e-2), (
        "mismatch vs reference, max abs err=%g" % err)

    print("KERNEL_OK")
</pallas_src>

<mosaic_0001>
module attributes {stable_mosaic.version = 11 : i64} {
  func.func @_lenet_kernel(%arg0: memref<1568x128xbf16, #tpu.memory_space<vmem>>, %arg1: memref<128x128xbf16, #tpu.memory_space<vmem>>, %arg2: memref<1x128xf32, #tpu.memory_space<vmem>>, %arg3: memref<640x128xbf16, #tpu.memory_space<vmem>>, %arg4: memref<1x128xf32, #tpu.memory_space<vmem>>, %arg5: memref<512x512xbf16, #tpu.memory_space<any>>, %arg6: memref<1x512xf32, #tpu.memory_space<vmem>>, %arg7: memref<512x128xbf16, #tpu.memory_space<vmem>>, %arg8: memref<1x128xf32, #tpu.memory_space<vmem>>, %arg9: memref<128x128xbf16, #tpu.memory_space<vmem>>, %arg10: memref<1x128xf32, #tpu.memory_space<vmem>>, %arg11: memref<8x128xf32, #tpu.memory_space<vmem>>, %arg12: memref<1568x128xf32, #tpu.memory_space<vmem>>, %arg13: memref<504x128xbf16, #tpu.memory_space<vmem>>, %arg14: memref<392x640xbf16, #tpu.memory_space<vmem>>, %arg15: memref<392x128xf32, #tpu.memory_space<vmem>>, %arg16: memref<8x512xf32, #tpu.memory_space<vmem>>, %arg17: memref<512x512xbf16, #tpu.memory_space<vmem>>, %arg18: memref<!tpu.dma_semaphore, #tpu.memory_space<semaphore_mem>>) attributes {dimension_semantics = [], scalar_prefetch = 0 : i64, scratch_operands = 7 : i64, tpu.core_type = #tpu.core_type<tc>} {
    tpu.enqueue_dma source(%arg5 : memref<512x512xbf16, #tpu.memory_space<any>>) target(%arg17 : memref<512x512xbf16, #tpu.memory_space<vmem>>) target_semaphore(%arg18 : memref<!tpu.dma_semaphore, #tpu.memory_space<semaphore_mem>>)
    %c0 = arith.constant 0 : index
    %c0_0 = arith.constant 0 : index
    %0 = vector.load %arg0[%c0, %c0_0] : memref<1568x128xbf16, #tpu.memory_space<vmem>>, vector<1568x128xbf16>
    %c0_1 = arith.constant 0 : index
    %c0_2 = arith.constant 0 : index
    %1 = vector.load %arg1[%c0_1, %c0_2] : memref<128x128xbf16, #tpu.memory_space<vmem>>, vector<128x128xbf16>
    %cst = arith.constant dense<0.000000e+00> : vector<1568x128xf32>
    %2 = tpu.matmul %0, %1, %cst {dimension_numbers = #tpu.dot_dimension_numbers<[1], [0], [0], [1], [0, 0, 1, 1], [], []>} : vector<1568x128xbf16>, vector<128x128xbf16>, vector<1568x128xf32> -> vector<1568x128xf32>
    %c0_3 = arith.constant 0 : index
    %c0_4 = arith.constant 0 : index
    %3 = vector.load %arg12[%c0_3, %c0_4] : memref<1568x128xf32, #tpu.memory_space<vmem>>, vector<1568x128xf32>
    tpu.vector_store %arg12[%c0_3, %c0_4], %2 {strides = array<i32>} : memref<1568x128xf32, #tpu.memory_space<vmem>>, vector<1568x128xf32>,
    %c0_5 = arith.constant 0 : index
    %c0_6 = arith.constant 0 : index
    %4 = vector.load %arg12[%c0_5, %c0_6] : memref<1568x128xf32, #tpu.memory_space<vmem>>, vector<392x128xf32>
    %c392 = arith.constant 392 : index
    %c0_7 = arith.constant 0 : index
    %5 = vector.load %arg12[%c392, %c0_7] : memref<1568x128xf32, #tpu.memory_space<vmem>>, vector<392x128xf32>
    %6 = arith.maximumf %4, %5 : vector<392x128xf32>
    %c784 = arith.constant 784 : index
    %c0_8 = arith.constant 0 : index
    %7 = vector.load %arg12[%c784, %c0_8] : memref<1568x128xf32, #tpu.memory_space<vmem>>, vector<392x128xf32>
    %c1176 = arith.constant 1176 : index
    %c0_9 = arith.constant 0 : index
    %8 = vector.load %arg12[%c1176, %c0_9] : memref<1568x128xf32, #tpu.memory_space<vmem>>, vector<392x128xf32>
    %9 = arith.maximumf %7, %8 : vector<392x128xf32>
    %10 = arith.maximumf %6, %9 : vector<392x128xf32>
    %c0_10 = arith.constant 0 : index
    %c0_11 = arith.constant 0 : index
    %11 = vector.load %arg2[%c0_10, %c0_11] : memref<1x128xf32, #tpu.memory_space<vmem>>, vector<1x128xf32>
    %12 = vector.broadcast %11 : vector<1x128xf32> to vector<392x128xf32>
    %13 = arith.addf %10, %12 : vector<392x128xf32>
    %cst_12 = arith.constant 0.000000e+00 : f32
    %14 = vector.broadcast %cst_12 : f32 to vector<392x128xf32>
    %15 = arith.maximumf %13, %14 : vector<392x128xf32>
    %16 = arith.truncf %15 : vector<392x128xf32> to vector<392x128xbf16>
    %c0_13 = arith.constant 0 : index
    %c0_14 = arith.constant 0 : index
    %17 = vector.load %arg13[%c0_13, %c0_14] : memref<504x128xbf16, #tpu.memory_space<vmem>>, vector<392x128xbf16>
    tpu.vector_store %arg13[%c0_13, %c0_14], %16 {strides = array<i32>} : memref<504x128xbf16, #tpu.memory_space<vmem>>, vector<392x128xbf16>,
    %cst_15 = arith.constant 0.000000e+00 : bf16
    %18 = vector.broadcast %cst_15 : bf16 to vector<112x128xbf16>
    %c392_16 = arith.constant 392 : index
    %c0_17 = arith.constant 0 : index
    %19 = vector.load %arg13[%c392_16, %c0_17] : memref<504x128xbf16, #tpu.memory_space<vmem>>, vector<112x128xbf16>
    tpu.vector_store %arg13[%c392_16, %c0_17], %18 {strides = array<i32>} : memref<504x128xbf16, #tpu.memory_space<vmem>>, vector<112x128xbf16>,
    %c0_18 = arith.constant 0 : index
    %c0_19 = arith.constant 0 : index
    %20 = vector.load %arg13[%c0_18, %c0_19] : memref<504x128xbf16, #tpu.memory_space<vmem>>, vector<392x128xbf16>
    %c0_20 = arith.constant 0 : index
    %c0_21 = arith.constant 0 : index
    %21 = vector.load %arg14[%c0_20, %c0_21] : memref<392x640xbf16, #tpu.memory_space<vmem>>, vector<392x128xbf16>
    tpu.vector_store %arg14[%c0_20, %c0_21], %20 {strides = array<i32>} : memref<392x640xbf16, #tpu.memory_space<vmem>>, vector<392x128xbf16>,
    %c28 = arith.constant 28 : index
    %c0_22 = arith.constant 0 : index
    %22 = vector.load %arg13[%c28, %c0_22] : memref<504x128xbf16, #tpu.memory_space<vmem>>, vector<392x128xbf16>
    %c0_23 = arith.constant 0 : index
    %c128 = arith.constant 128 : index
    %23 = vector.load %arg14[%c0_23, %c128] : memref<392x640xbf16, #tpu.memory_space<vmem>>, vector<392x128xbf16>
    tpu.vector_store %arg14[%c0_23, %c128], %22 {strides = array<i32>} : memref<392x640xbf16, #tpu.memory_space<vmem>>, vector<392x128xbf16>,
    %c56 = arith.constant 56 : index
    %c0_24 = arith.constant 0 : index
    %24 = vector.load %arg13[%c56, %c0_24] : memref<504x128xbf16, #tpu.memory_space<vmem>>, vector<392x128xbf16>
    %c0_25 = arith.constant 0 : index
    %c256 = arith.constant 256 : index
    %25 = vector.load %arg14[%c0_25, %c256] : memref<392x640xbf16, #tpu.memory_space<vmem>>, vector<392x128xbf16>
    tpu.vector_store %arg14[%c0_25, %c256], %24 {strides = array<i32>} : memref<392x640xbf16, #tpu.memory_space<vmem>>, vector<392x128xbf16>,
    %c84 = arith.constant 84 : index
    %c0_26 = arith.constant 0 : index
    %26 = vector.load %arg13[%c84, %c0_26] : memref<504x128xbf16, #tpu.memory_space<vmem>>, vector<392x128xbf16>
    %c0_27 = arith.constant 0 : index
    %c384 = arith.constant 384 : index
    %27 = vector.load %arg14[%c0_27, %c384] : memref<392x640xbf16, #tpu.memory_space<vmem>>, vector<392x128xbf16>
    tpu.vector_store %arg14[%c0_27, %c384], %26 {strides = array<i32>} : memref<392x640xbf16, #tpu.memory_space<vmem>>, vector<392x128xbf16>,
    %c112 = arith.constant 112 : index
    %c0_28 = arith.constant 0 : index
    %28 = vector.load %arg13[%c112, %c0_28] : memref<504x128xbf16, #tpu.memory_space<vmem>>, vector<392x128xbf16>
    %c0_29 = arith.constant 0 : index
    %c512 = arith.constant 512 : index
    %29 = vector.load %arg14[%c0_29, %c512] : memref<392x640xbf16, #tpu.memory_space<vmem>>, vector<392x128xbf16>
    tpu.vector_store %arg14[%c0_29, %c512], %28 {strides = array<i32>} : memref<392x640xbf16, #tpu.memory_space<vmem>>, vector<392x128xbf16>,
    %c0_30 = arith.constant 0 : index
    %c0_31 = arith.constant 0 : index
    %30 = vector.load %arg14[%c0_30, %c0_31] : memref<392x640xbf16, #tpu.memory_space<vmem>>, vector<392x640xbf16>
    %c0_32 = arith.constant 0 : index
    %c0_33 = arith.constant 0 : index
    %31 = vector.load %arg3[%c0_32, %c0_33] : memref<640x128xbf16, #tpu.memory_space<vmem>>, vector<640x128xbf16>
    %cst_34 = arith.constant dense<0.000000e+00> : vector<392x128xf32>
    %32 = tpu.matmul %30, %31, %cst_34 {dimension_numbers = #tpu.dot_dimension_numbers<[1], [0], [0], [1], [0, 0, 1, 1], [], []>} : vector<392x640xbf16>, vector<640x128xbf16>, vector<392x128xf32> -> vector<392x128xf32>
    %c0_35 = arith.constant 0 : index
    %c0_36 = arith.constant 0 : index
    %33 = vector.load %arg15[%c0_35, %c0_36] : memref<392x128xf32, #tpu.memory_space<vmem>>, vector<392x128xf32>
    tpu.vector_store %arg15[%c0_35, %c0_36], %32 {strides = array<i32>} : memref<392x128xf32, #tpu.memory_space<vmem>>, vector<392x128xf32>,
    %cst_37 = arith.constant 0.000000e+00 : f32
    %34 = vector.broadcast %cst_37 : f32 to vector<8x512xf32>
    %c0_38 = arith.constant 0 : index
    %c0_39 = arith.constant 0 : index
    %35 = vector.load %arg16[%c0_38, %c0_39] : memref<8x512xf32, #tpu.memory_space<vmem>>, vector<8x512xf32>
    tpu.vector_store %arg16[%c0_38, %c0_39], %34 {strides = array<i32>} : memref<8x512xf32, #tpu.memory_space<vmem>>, vector<8x512xf32>,
    %c0_40 = arith.constant 0 : index
    %c0_41 = arith.constant 0 : index
    %36 = vector.load %arg4[%c0_40, %c0_41] : memref<1x128xf32, #tpu.memory_space<vmem>>, vector<1x128xf32>
    %c0_42 = arith.constant 0 : index
    %c0_43 = arith.constant 0 : index
    %37 = vector.load %arg15[%c0_42, %c0_43] : memref<392x128xf32, #tpu.memory_space<vmem>>, vector<2x128xf32>
    %c2 = arith.constant 2 : index
    %c0_44 = arith.constant 0 : index
    %38 = vector.load %arg15[%c2, %c0_44] : memref<392x128xf32, #tpu.memory_space<vmem>>, vector<2x128xf32>
    %39 = arith.maximumf %37, %38 : vector<2x128xf32>
    %c28_45 = arith.constant 28 : index
    %c0_46 = arith.constant 0 : index
    %40 = vector.load %arg15[%c28_45, %c0_46] : memref<392x128xf32, #tpu.memory_space<vmem>>, vector<2x128xf32>
    %c30 = arith.constant 30 : index
    %c0_47 = arith.constant 0 : index
    %41 = vector.load %arg15[%c30, %c0_47] : memref<392x128xf32, #tpu.memory_space<vmem>>, vector<2x128xf32>
    %42 = arith.maximumf %40, %41 : vector<2x128xf32>
    %43 = arith.maximumf %39, %42 : vector<2x128xf32>
    %44 = vector.broadcast %36 : vector<1x128xf32> to vector<2x128xf32>
    %45 = arith.addf %43, %44 : vector<2x128xf32>
    %cst_48 = arith.constant 0.000000e+00 : f32
    %46 = vector.broadcast %cst_48 : f32 to vector<2x128xf32>
    %47 = arith.maximumf %45, %46 : vector<2x128xf32>
    %48 = vector.extract_strided_slice %47 {offsets = [0, 0], sizes = [2, 16], strides = [1, 1]} : vector<2x128xf32> to vector<2x16xf32>
    %c0_49 = arith.constant 0 : index
    %c0_50 = arith.constant 0 : index
    %49 = vector.load %arg16[%c0_49, %c0_50] : memref<8x512xf32, #tpu.memory_space<vmem>>, vector<2x16xf32>
    tpu.vector_store %arg16[%c0_49, %c0_50], %48 {strides = array<i32>} : memref<8x512xf32, #tpu.memory_space<vmem>>, vector<2x16xf32>,
    %c4 = arith.constant 4 : index
    %c0_51 = arith.constant 0 : index
    %50 = vector.load %arg15[%c4, %c0_51] : memref<392x128xf32, #tpu.memory_space<vmem>>, vector<2x128xf32>
    %c6 = arith.constant 6 : index
    %c0_52 = arith.constant 0 : index
    %51 = vector.load %arg15[%c6, %c0_52] : memref<392x128xf32, #tpu.memory_space<vmem>>, vector<2x128xf32>
    %52 = arith.maximumf %50, %51 : vector<2x128xf32>
    %c32 = arith.constant 32 : index
    %c0_53 = arith.constant 0 : index
    %53 = vector.load %arg15[%c32, %c0_53] : memref<392x128xf32, #tpu.memory_space<vmem>>, vector<2x128xf32>
    %c34 = arith.constant 34 : index
    %c0_54 = arith.constant 0 : index
    %54 = vector.load %arg15[%c34, %c0_54] : memref<392x128xf32, #tpu.memory_space<vmem>>, vector<2x128xf32>
    %55 = arith.maximumf %53, %54 : vector<2x128xf32>
    %56 = arith.maximumf %52, %55 : vector<2x128xf32>
    %57 = vector.broadcast %36 : vector<1x128xf32> to vector<2x128xf32>
    %58 = arith.addf %56, %57 : vector<2x128xf32>
    %cst_55 = arith.constant 0.000000e+00 : f32
    %59 = vector.broadcast %cst_55 : f32 to vector<2x128xf32>
    %60 = arith.maximumf %58, %59 : vector<2x128xf32>
    %61 = vector.extract_strided_slice %60 {offsets = [0, 0], sizes = [2, 16], strides = [1, 1]} : vector<2x128xf32> to vector<2x16xf32>
    %c0_56 = arith.constant 0 : index
    %c16 = arith.constant 16 : index
    %62 = vector.load %arg16[%c0_56, %c16] : memref<8x512xf32, #tpu.memory_space<vmem>>, vector<2x16xf32>
    tpu.vector_store %arg16[%c0_56, %c16], %61 {strides = array<i32>} : memref<8x512xf32, #tpu.memory_space<vmem>>, vector<2x16xf32>,
    %c8 = arith.constant 8 : index
    %c0_57 = arith.constant 0 : index
    %63 = vector.load %arg15[%c8, %c0_57] : memref<392x128xf32, #tpu.memory_space<vmem>>, vector<2x128xf32>
    %c10 = arith.constant 10 : index
    %c0_58 = arith.constant 0 : index
    %64 = vector.load %arg15[%c10, %c0_58] : memref<392x128xf32, #tpu.memory_space<vmem>>, vector<2x128xf32>
    %65 = arith.maximumf %63, %64 : vector<2x128xf32>
    %c36 = arith.constant 36 : index
    %c0_59 = arith.constant 0 : index
    %66 = vector.load %arg15[%c36, %c0_59] : memref<392x128xf32, #tpu.memory_space<vmem>>, vector<2x128xf32>
    %c38 = arith.constant 38 : index
    %c0_60 = arith.constant 0 : index
    %67 = vector.load %arg15[%c38, %c0_60] : memref<392x128xf32, #tpu.memory_space<vmem>>, vector<2x128xf32>
    %68 = arith.maximumf %66, %67 : vector<2x128xf32>
    %69 = arith.maximumf %65, %68 : vector<2x128xf32>
    %70 = vector.broadcast %36 : vector<1x128xf32> to vector<2x128xf32>
    %71 = arith.addf %69, %70 : vector<2x128xf32>
    %cst_61 = arith.constant 0.000000e+00 : f32
    %72 = vector.broadcast %cst_61 : f32 to vector<2x128xf32>
    %73 = arith.maximumf %71, %72 : vector<2x128xf32>
    %74 = vector.extract_strided_slice %73 {offsets = [0, 0], sizes = [2, 16], strides = [1, 1]} : vector<2x128xf32> to vector<2x16xf32>
    %c0_62 = arith.constant 0 : index
    %c32_63 = arith.constant 32 : index
    %75 = vector.load %arg16[%c0_62, %c32_63] : memref<8x512xf32, #tpu.memory_space<vmem>>, vector<2x16xf32>
    tpu.vector_store %arg16[%c0_62, %c32_63], %74 {strides = array<i32>} : memref<8x512xf32, #tpu.memory_space<vmem>>, vector<2x16xf32>,
    %c12 = arith.constant 12 : index
    %c0_64 = arith.constant 0 : index
    %76 = vector.load %arg15[%c12, %c0_64] : memref<392x128xf32, #tpu.memory_space<vmem>>, vector<2x128xf32>
    %c14 = arith.constant 14 : index
    %c0_65 = arith.constant 0 : index
    %77 = vector.load %arg15[%c14, %c0_65] : memref<392x128xf32, #tpu.memory_space<vmem>>, vector<2x128xf32>
    %78 = arith.maximumf %76, %77 : vector<2x128xf32>
    %c40 = arith.constant 40 : index
    %c0_66 = arith.constant 0 : index
    %79 = vector.load %arg15[%c40, %c0_66] : memref<392x128xf32, #tpu.memory_space<vmem>>, vector<2x128xf32>
    %c42 = arith.constant 42 : index
    %c0_67 = arith.constant 0 : index
    %80 = vector.load %arg15[%c42, %c0_67] : memref<392x128xf32, #tpu.memory_space<vmem>>, vector<2x128xf32>
    %81 = arith.maximumf %79, %80 : vector<2x128xf32>
    %82 = arith.maximumf %78, %81 : vector<2x128xf32>
    %83 = vector.broadcast %36 : vector<1x128xf32> to vector<2x128xf32>
    %84 = arith.addf %82, %83 : vector<2x128xf32>
    %cst_68 = arith.constant 0.000000e+00 : f32
    %85 = vector.broadcast %cst_68 : f32 to vector<2x128xf32>
    %86 = arith.maximumf %84, %85 : vector<2x128xf32>
    %87 = vector.extract_strided_slice %86 {offsets = [0, 0], sizes = [2, 16], strides = [1, 1]} : vector<2x128xf32> to vector<2x16xf32>
    %c0_69 = arith.constant 0 : index
    %c48 = arith.constant 48 : index
    %88 = vector.load %arg16[%c0_69, %c48] : memref<8x512xf32, #tpu.memory_space<vmem>>, vector<2x16xf32>
    tpu.vector_store %arg16[%c0_69, %c48], %87 {strides = array<i32>} : memref<8x512xf32, #tpu.memory_space<vmem>>, vector<2x16xf32>,
    %c16_70 = arith.constant 16 : index
    %c0_71 = arith.constant 0 : index
    %89 = vector.load %arg15[%c16_70, %c0_71] : memref<392x128xf32, #tpu.memory_space<vmem>>, vector<2x128xf32>
    %c18 = arith.constant 18 : index
    %c0_72 = arith.constant 0 : index
    %90 = vector.load %arg15[%c18, %c0_72] : memref<392x128xf32, #tpu.memory_space<vmem>>, vector<2x128xf32>
    %91 = arith.maximumf %89, %90 : vector<2x128xf32>
    %c44 = arith.constant 44 : index
    %c0_73 = arith.constant 0 : index
    %92 = vector.load %arg15[%c44, %c0_73] : memref<392x128xf32, #tpu.memory_space<vmem>>, vector<2x128xf32>
    %c46 = arith.constant 46 : index
    %c0_74 = arith.constant 0 : index
    %93 = vector.load %arg15[%c46, %c0_74] : memref<392x128xf32, #tpu.memory_space<vmem>>, vector<2x128xf32>
    %94 = arith.maximumf %92, %93 : vector<2x128xf32>
    %95 = arith.maximumf %91, %94 : vector<2x128xf32>
    %96 = vector.broadcast %36 : vector<1x128xf32> to vector<2x128xf32>
    %97 = arith.addf %95, %96 : vector<2x128xf32>
    %cst_75 = arith.constant 0.000000e+00 : f32
    %98 = vector.broadcast %cst_75 : f32 to vector<2x128xf32>
    %99 = arith.maximumf %97, %98 : vector<2x128xf32>
    %100 = vector.extract_strided_slice %99 {offsets = [0, 0], sizes = [2, 16], strides = [1, 1]} : vector<2x128xf32> to vector<2x16xf32>
    %c0_76 = arith.constant 0 : index
    %c64 = arith.constant 64 : index
    %101 = vector.load %arg16[%c0_76, %c64] : memref<8x512xf32, #tpu.memory_space<vmem>>, vector<2x16xf32>
    tpu.vector_store %arg16[%c0_76, %c64], %100 {strides = array<i32>} : memref<8x512xf32, #tpu.memory_space<vmem>>, vector<2x16xf32>,
    %c56_77 = arith.constant 56 : index
    %c0_78 = arith.constant 0 : index
    %102 = vector.load %arg15[%c56_77, %c0_78] : memref<392x128xf32, #tpu.memory_space<vmem>>, vector<2x128xf32>
    %c58 = arith.constant 58 : index
    %c0_79 = arith.constant 0 : index
    %103 = vector.load %arg15[%c58, %c0_79] : memref<392x128xf32, #tpu.memory_space<vmem>>, vector<2x128xf32>
    %104 = arith.maximumf %102, %103 : vector<2x128xf32>
    %c84_80 = arith.constant 84 : index
    %c0_81 = arith.constant 0 : index
    %105 = vector.load %arg15[%c84_80, %c0_81] : memref<392x128xf32, #tpu.memory_space<vmem>>, vector<2x128xf32>
    %c86 = arith.constant 86 : index
    %c0_82 = arith.constant 0 : index
    %106 = vector.load %arg15[%c86, %c0_82] : memref<392x128xf32, #tpu.memory_space<vmem>>, vector<2x128xf32>
    %107 = arith.maximumf %105, %106 : vector<2x128xf32>
    %108 = arith.maximumf %104, %107 : vector<2x128xf32>
    %109 = vector.broadcast %36 : vector<1x128xf32> to vector<2x128xf32>
    %110 = arith.addf %108, %109 : vector<2x128xf32>
    %cst_83 = arith.constant 0.000000e+00 : f32
    %111 = vector.broadcast %cst_83 : f32 to vector<2x128xf32>
    %112 = arith.maximumf %110, %111 : vector<2x128xf32>
    %113 = vector.extract_strided_slice %112 {offsets = [0, 0], sizes = [2, 16], strides = [1, 1]} : vector<2x128xf32> to vector<2x16xf32>
    %c0_84 = arith.constant 0 : index
    %c80 = arith.constant 80 : index
    %114 = vector.load %arg16[%c0_84, %c80] : memref<8x512xf32, #tpu.memory_space<vmem>>, vector<2x16xf32>
    tpu.vector_store %arg16[%c0_84, %c80], %113 {strides = array<i32>} : memref<8x512xf32, #tpu.memory_space<vmem>>, vector<2x16xf32>,
    %c60 = arith.constant 60 : index
    %c0_85 = arith.constant 0 : index
    %115 = vector.load %arg15[%c60, %c0_85] : memref<392x128xf32, #tpu.memory_space<vmem>>, vector<2x128xf32>
    %c62 = arith.constant 62 : index
    %c0_86 = arith.constant 0 : index
    %116 = vector.load %arg15[%c62, %c0_86] : memref<392x128xf32, #tpu.memory_space<vmem>>, vector<2x128xf32>
    %117 = arith.maximumf %115, %116 : vector<2x128xf32>
    %c88 = arith.constant 88 : index
    %c0_87 = arith.constant 0 : index
    %118 = vector.load %arg15[%c88, %c0_87] : memref<392x128xf32, #tpu.memory_space<vmem>>, vector<2x128xf32>
    %c90 = arith.constant 90 : index
    %c0_88 = arith.constant 0 : index
    %119 = vector.load %arg15[%c90, %c0_88] : memref<392x128xf32, #tpu.memory_space<vmem>>, vector<2x128xf32>
    %120 = arith.maximumf %118, %119 : vector<2x128xf32>
    %121 = arith.maximumf %117, %120 : vector<2x128xf32>
    %122 = vector.broadcast %36 : vector<1x128xf32> to vector<2x128xf32>
    %123 = arith.addf %121, %122 : vector<2x128xf32>
    %cst_89 = arith.constant 0.000000e+00 : f32
    %124 = vector.broadcast %cst_89 : f32 to vector<2x128xf32>
    %125 = arith.maximumf %123, %124 : vector<2x128xf32>
    %126 = vector.extract_strided_slice %125 {offsets = [0, 0], sizes = [2, 16], strides = [1, 1]} : vector<2x128xf32> to vector<2x16xf32>
    %c0_90 = arith.constant 0 : index
    %c96 = arith.constant 96 : index
    %127 = vector.load %arg16[%c0_90, %c96] : memref<8x512xf32, #tpu.memory_space<vmem>>, vector<2x16xf32>
    tpu.vector_store %arg16[%c0_90, %c96], %126 {strides = array<i32>} : memref<8x512xf32, #tpu.memory_space<vmem>>, vector<2x16xf32>,
    %c64_91 = arith.constant 64 : index
    %c0_92 = arith.constant 0 : index
    %128 = vector.load %arg15[%c64_91, %c0_92] : memref<392x128xf32, #tpu.memory_space<vmem>>, vector<2x128xf32>
    %c66 = arith.constant 66 : index
    %c0_93 = arith.constant 0 : index
    %129 = vector.load %arg15[%c66, %c0_93] : memref<392x128xf32, #tpu.memory_space<vmem>>, vector<2x128xf32>
    %130 = arith.maximumf %128, %129 : vector<2x128xf32>
    %c92 = arith.constant 92 : index
    %c0_94 = arith.constant 0 : index
    %131 = vector.load %arg15[%c92, %c0_94] : memref<392x128xf32, #tpu.memory_space<vmem>>, vector<2x128xf32>
    %c94 = arith.constant 94 : index
    %c0_95 = arith.constant 0 : index
    %132 = vector.load %arg15[%c94, %c0_95] : memref<392x128xf32, #tpu.memory_space<vmem>>, vector<2x128xf32>
    %133 = arith.maximumf %131, %132 : vector<2x128xf32>
    %134 = arith.maximumf %130, %133 : vector<2x128xf32>
    %135 = vector.broadcast %36 : vector<1x128xf32> to vector<2x128xf32>
    %136 = arith.addf %134, %135 : vector<2x128xf32>
    %cst_96 = arith.constant 0.000000e+00 : f32
    %137 = vector.broadcast %cst_96 : f32 to vector<2x128xf32>
    %138 = arith.maximumf %136, %137 : vector<2x128xf32>
    %139 = vector.extract_strided_slice %138 {offsets = [0, 0], sizes = [2, 16], strides = [1, 1]} : vector<2x128xf32> to vector<2x16xf32>
    %c0_97 = arith.constant 0 : index
    %c112_98 = arith.constant 112 : index
    %140 = vector.load %arg16[%c0_97, %c112_98] : memref<8x512xf32, #tpu.memory_space<vmem>>, vector<2x16xf32>
    tpu.vector_store %arg16[%c0_97, %c112_98], %139 {strides = array<i32>} : memref<8x512xf32, #tpu.memory_space<vmem>>, vector<2x16xf32>,
    %c68 = arith.constant 68 : index
    %c0_99 = arith.constant 0 : index
    %141 = vector.load %arg15[%c68, %c0_99] : memref<392x128xf32, #tpu.memory_space<vmem>>, vector<2x128xf32>
    %c70 = arith.constant 70 : index
    %c0_100 = arith.constant 0 : index
    %142 = vector.load %arg15[%c70, %c0_100] : memref<392x128xf32, #tpu.memory_space<vmem>>, vector<2x128xf32>
    %143 = arith.maximumf %141, %142 : vector<2x128xf32>
    %c96_101 = arith.constant 96 : index
    %c0_102 = arith.constant 0 : index
    %144 = vector.load %arg15[%c96_101, %c0_102] : memref<392x128xf32, #tpu.memory_space<vmem>>, vector<2x128xf32>
    %c98 = arith.constant 98 : index
    %c0_103 = arith.constant 0 : index
    %145 = vector.load %arg15[%c98, %c0_103] : memref<392x128xf32, #tpu.memory_space<vmem>>, vector<2x128xf32>
    %146 = arith.maximumf %144, %145 : vector<2x128xf32>
    %147 = arith.maximumf %143, %146 : vector<2x128xf32>
    %148 = vector.broadcast %36 : vector<1x128xf32> to vector<2x128xf32>
    %149 = arith.addf %147, %148 : vector<2x128xf32>
    %cst_104 = arith.constant 0.000000e+00 : f32
    %150 = vector.broadcast %cst_104 : f32 to vector<2x128xf32>
    %151 = arith.maximumf %149, %150 : vector<2x128xf32>
    %152 = vector.extract_strided_slice %151 {offsets = [0, 0], sizes = [2, 16], strides = [1, 1]} : vector<2x128xf32> to vector<2x16xf32>
    %c0_105 = arith.constant 0 : index
    %c128_106 = arith.constant 128 : index
    %153 = vector.load %arg16[%c0_105, %c128_106] : memref<8x512xf32, #tpu.memory_space<vmem>>, vector<2x16xf32>
    tpu.vector_store %arg16[%c0_105, %c128_106], %152 {strides = array<i32>} : memref<8x512xf32, #tpu.memory_space<vmem>>, vector<2x16xf32>,
    %c72 = arith.constant 72 : index
    %c0_107 = arith.constant 0 : index
    %154 = vector.load %arg15[%c72, %c0_107] : memref<392x128xf32, #tpu.memory_space<vmem>>, vector<2x128xf32>
    %c74 = arith.constant 74 : index
    %c0_108 = arith.constant 0 : index
    %155 = vector.load %arg15[%c74, %c0_108] : memref<392x128xf32, #tpu.memory_space<vmem>>, vector<2x128xf32>
    %156 = arith.maximumf %154, %155 : vector<2x128xf32>
    %c100 = arith.constant 100 : index
    %c0_109 = arith.constant 0 : index
    %157 = vector.load %arg15[%c100, %c0_109] : memref<392x128xf32, #tpu.memory_space<vmem>>, vector<2x128xf32>
    %c102 = arith.constant 102 : index
    %c0_110 = arith.constant 0 : index
    %158 = vector.load %arg15[%c102, %c0_110] : memref<392x128xf32, #tpu.memory_space<vmem>>, vector<2x128xf32>
    %159 = arith.maximumf %157, %158 : vector<2x128xf32>
    %160 = arith.maximumf %156, %159 : vector<2x128xf32>
    %161 = vector.broadcast %36 : vector<1x128xf32> to vector<2x128xf32>
    %162 = arith.addf %160, %161 : vector<2x128xf32>
    %cst_111 = arith.constant 0.000000e+00 : f32
    %163 = vector.broadcast %cst_111 : f32 to vector<2x128xf32>
    %164 = arith.maximumf %162, %163 : vector<2x128xf32>
    %165 = vector.extract_strided_slice %164 {offsets = [0, 0], sizes = [2, 16], strides = [1, 1]} : vector<2x128xf32> to vector<2x16xf32>
    %c0_112 = arith.constant 0 : index
    %c144 = arith.constant 144 : index
    %166 = vector.load %arg16[%c0_112, %c144] : memref<8x512xf32, #tpu.memory_space<vmem>>, vector<2x16xf32>
    tpu.vector_store %arg16[%c0_112, %c144], %165 {strides = array<i32>} : memref<8x512xf32, #tpu.memory_space<vmem>>, vector<2x16xf32>,
    %c112_113 = arith.constant 112 : index
    %c0_114 = arith.constant 0 : index
    %167 = vector.load %arg15[%c112_113, %c0_114] : memref<392x128xf32, #tpu.memory_space<vmem>>, vector<2x128xf32>
    %c114 = arith.constant 114 : index
    %c0_115 = arith.constant 0 : index
    %168 = vector.load %arg15[%c114, %c0_115] : memref<392x128xf32, #tpu.memory_space<vmem>>, vector<2x128xf32>
    %169 = arith.maximumf %167, %168 : vector<2x128xf32>
    %c140 = arith.constant 140 : index
    %c0_116 = arith.constant 0 : index
    %170 = vector.load %arg15[%c140, %c0_116] : memref<392x128xf32, #tpu.memory_space<vmem>>, vector<2x128xf32>
    %c142 = arith.constant 142 : index
    %c0_117 = arith.constant 0 : index
    %171 = vector.load %arg15[%c142, %c0_117] : memref<392x128xf32, #tpu.memory_space<vmem>>, vector<2x128xf32>
    %172 = arith.maximumf %170, %171 : vector<2x128xf32>
    %173 = arith.maximumf %169, %172 : vector<2x128xf32>
    %174 = vector.broadcast %36 : vector<1x128xf32> to vector<2x128xf32>
    %175 = arith.addf %173, %174 : vector<2x128xf32>
    %cst_118 = arith.constant 0.000000e+00 : f32
    %176 = vector.broadcast %cst_118 : f32 to vector<2x128xf32>
    %177 = arith.maximumf %175, %176 : vector<2x128xf32>
    %178 = vector.extract_strided_slice %177 {offsets = [0, 0], sizes = [2, 16], strides = [1, 1]} : vector<2x128xf32> to vector<2x16xf32>
    %c0_119 = arith.constant 0 : index
    %c160 = arith.constant 160 : index
    %179 = vector.load %arg16[%c0_119, %c160] : memref<8x512xf32, #tpu.memory_space<vmem>>, vector<2x16xf32>
    tpu.vector_store %arg16[%c0_119, %c160], %178 {strides = array<i32>} : memref<8x512xf32, #tpu.memory_space<vmem>>, vector<2x16xf32>,
    %c116 = arith.constant 116 : index
    %c0_120 = arith.constant 0 : index
    %180 = vector.load %arg15[%c116, %c0_120] : memref<392x128xf32, #tpu.memory_space<vmem>>, vector<2x128xf32>
    %c118 = arith.constant 118 : index
    %c0_121 = arith.constant 0 : index
    %181 = vector.load %arg15[%c118, %c0_121] : memref<392x128xf32, #tpu.memory_space<vmem>>, vector<2x128xf32>
    %182 = arith.maximumf %180, %181 : vector<2x128xf32>
    %c144_122 = arith.constant 144 : index
    %c0_123 = arith.constant 0 : index
    %183 = vector.load %arg15[%c144_122, %c0_123] : memref<392x128xf32, #tpu.memory_space<vmem>>, vector<2x128xf32>
    %c146 = arith.constant 146 : index
    %c0_124 = arith.constant 0 : index
    %184 = vector.load %arg15[%c146, %c0_124] : memref<392x128xf32, #tpu.memory_space<vmem>>, vector<2x128xf32>
    %185 = arith.maximumf %183, %184 : vector<2x128xf32>
    %186 = arith.maximumf %182, %185 : vector<2x128xf32>
    %187 = vector.broadcast %36 : vector<1x128xf32> to vector<2x128xf32>
    %188 = arith.addf %186, %187 : vector<2x128xf32>
    %cst_125 = arith.constant 0.000000e+00 : f32
    %189 = vector.broadcast %cst_125 : f32 to vector<2x128xf32>
    %190 = arith.maximumf %188, %189 : vector<2x128xf32>
    %191 = vector.extract_strided_slice %190 {offsets = [0, 0], sizes = [2, 16], strides = [1, 1]} : vector<2x128xf32> to vector<2x16xf32>
    %c0_126 = arith.constant 0 : index
    %c176 = arith.constant 176 : index
    %192 = vector.load %arg16[%c0_126, %c176] : memref<8x512xf32, #tpu.memory_space<vmem>>, vector<2x16xf32>
    tpu.vector_store %arg16[%c0_126, %c176], %191 {strides = array<i32>} : memref<8x512xf32, #tpu.memory_space<vmem>>, vector<2x16xf32>,
    %c120 = arith.constant 120 : index
    %c0_127 = arith.constant 0 : index
    %193 = vector.load %arg15[%c120, %c0_127] : memref<392x128xf32, #tpu.memory_space<vmem>>, vector<2x128xf32>
    %c122 = arith.constant 122 : index
    %c0_128 = arith.constant 0 : index
    %194 = vector.load %arg15[%c122, %c0_128] : memref<392x128xf32, #tpu.memory_space<vmem>>, vector<2x128xf32>
    %195 = arith.maximumf %193, %194 : vector<2x128xf32>
    %c148 = arith.constant 148 : index
    %c0_129 = arith.constant 0 : index
    %196 = vector.load %arg15[%c148, %c0_129] : memref<392x128xf32, #tpu.memory_space<vmem>>, vector<2x128xf32>
    %c150 = arith.constant 150 : index
    %c0_130 = arith.constant 0 : index
    %197 = vector.load %arg15[%c150, %c0_130] : memref<392x128xf32, #tpu.memory_space<vmem>>, vector<2x128xf32>
    %198 = arith.maximumf %196, %197 : vector<2x128xf32>
    %199 = arith.maximumf %195, %198 : vector<2x128xf32>
    %200 = vector.broadcast %36 : vector<1x128xf32> to vector<2x128xf32>
    %201 = arith.addf %199, %200 : vector<2x128xf32>
    %cst_131 = arith.constant 0.000000e+00 : f32
    %202 = vector.broadcast %cst_131 : f32 to vector<2x128xf32>
    %203 = arith.maximumf %201, %202 : vector<2x128xf32>
    %204 = vector.extract_strided_slice %203 {offsets = [0, 0], sizes = [2, 16], strides = [1, 1]} : vector<2x128xf32> to vector<2x16xf32>
    %c0_132 = arith.constant 0 : index
    %c192 = arith.constant 192 : index
    %205 = vector.load %arg16[%c0_132, %c192] : memref<8x512xf32, #tpu.memory_space<vmem>>, vector<2x16xf32>
    tpu.vector_store %arg16[%c0_132, %c192], %204 {strides = array<i32>} : memref<8x512xf32, #tpu.memory_space<vmem>>, vector<2x16xf32>,
    %c124 = arith.constant 124 : index
    %c0_133 = arith.constant 0 : index
    %206 = vector.load %arg15[%c124, %c0_133] : memref<392x128xf32, #tpu.memory_space<vmem>>, vector<2x128xf32>
    %c126 = arith.constant 126 : index
    %c0_134 = arith.constant 0 : index
    %207 = vector.load %arg15[%c126, %c0_134] : memref<392x128xf32, #tpu.memory_space<vmem>>, vector<2x128xf32>
    %208 = arith.maximumf %206, %207 : vector<2x128xf32>
    %c152 = arith.constant 152 : index
    %c0_135 = arith.constant 0 : index
    %209 = vector.load %arg15[%c152, %c0_135] : memref<392x128xf32, #tpu.memory_space<vmem>>, vector<2x128xf32>
    %c154 = arith.constant 154 : index
    %c0_136 = arith.constant 0 : index
    %210 = vector.load %arg15[%c154, %c0_136] : memref<392x128xf32, #tpu.memory_space<vmem>>, vector<2x128xf32>
    %211 = arith.maximumf %209, %210 : vector<2x128xf32>
    %212 = arith.maximumf %208, %211 : vector<2x128xf32>
    %213 = vector.broadcast %36 : vector<1x128xf32> to vector<2x128xf32>
    %214 = arith.addf %212, %213 : vector<2x128xf32>
    %cst_137 = arith.constant 0.000000e+00 : f32
    %215 = vector.broadcast %cst_137 : f32 to vector<2x128xf32>
    %216 = arith.maximumf %214, %215 : vector<2x128xf32>
    %217 = vector.extract_strided_slice %216 {offsets = [0, 0], sizes = [2, 16], strides = [1, 1]} : vector<2x128xf32> to vector<2x16xf32>
    %c0_138 = arith.constant 0 : index
    %c208 = arith.constant 208 : index
    %218 = vector.load %arg16[%c0_138, %c208] : memref<8x512xf32, #tpu.memory_space<vmem>>, vector<2x16xf32>
    tpu.vector_store %arg16[%c0_138, %c208], %217 {strides = array<i32>} : memref<8x512xf32, #tpu.memory_space<vmem>>, vector<2x16xf32>,
    %c128_139 = arith.constant 128 : index
    %c0_140 = arith.constant 0 : index
    %219 = vector.load %arg15[%c128_139, %c0_140] : memref<392x128xf32, #tpu.memory_space<vmem>>, vector<2x128xf32>
    %c130 = arith.constant 130 : index
    %c0_141 = arith.constant 0 : index
    %220 = vector.load %arg15[%c130, %c0_141] : memref<392x128xf32, #tpu.memory_space<vmem>>, vector<2x128xf32>
    %221 = arith.maximumf %219, %220 : vector<2x128xf32>
    %c156 = arith.constant 156 : index
    %c0_142 = arith.constant 0 : index
    %222 = vector.load %arg15[%c156, %c0_142] : memref<392x128xf32, #tpu.memory_space<vmem>>, vector<2x128xf32>
    %c158 = arith.constant 158 : index
    %c0_143 = arith.constant 0 : index
    %223 = vector.load %arg15[%c158, %c0_143] : memref<392x128xf32, #tpu.memory_space<vmem>>, vector<2x128xf32>
    %224 = arith.maximumf %222, %223 : vector<2x128xf32>
    %225 = arith.maximumf %221, %224 : vector<2x128xf32>
    %226 = vector.broadcast %36 : vector<1x128xf32> to vector<2x128xf32>
    %227 = arith.addf %225, %226 : vector<2x128xf32>
    %cst_144 = arith.constant 0.000000e+00 : f32
    %228 = vector.broadcast %cst_144 : f32 to vector<2x128xf32>
    %229 = arith.maximumf %227, %228 : vector<2x128xf32>
    %230 = vector.extract_strided_slice %229 {offsets = [0, 0], sizes = [2, 16], strides = [1, 1]} : vector<2x128xf32> to vector<2x16xf32>
    %c0_145 = arith.constant 0 : index
    %c224 = arith.constant 224 : index
    %231 = vector.load %arg16[%c0_145, %c224] : memref<8x512xf32, #tpu.memory_space<vmem>>, vector<2x16xf32>
    tpu.vector_store %arg16[%c0_145, %c224], %230 {strides = array<i32>} : memref<8x512xf32, #tpu.memory_space<vmem>>, vector<2x16xf32>,
    %c168 = arith.constant 168 : index
    %c0_146 = arith.constant 0 : index
    %232 = vector.load %arg15[%c168, %c0_146] : memref<392x128xf32, #tpu.memory_space<vmem>>, vector<2x128xf32>
    %c170 = arith.constant 170 : index
    %c0_147 = arith.constant 0 : index
    %233 = vector.load %arg15[%c170, %c0_147] : memref<392x128xf32, #tpu.memory_space<vmem>>, vector<2x128xf32>
    %234 = arith.maximumf %232, %233 : vector<2x128xf32>
    %c196 = arith.constant 196 : index
    %c0_148 = arith.constant 0 : index
    %235 = vector.load %arg15[%c196, %c0_148] : memref<392x128xf32, #tpu.memory_space<vmem>>, vector<2x128xf32>
    %c198 = arith.constant 198 : index
    %c0_149 = arith.constant 0 : index
    %236 = vector.load %arg15[%c198, %c0_149] : memref<392x128xf32, #tpu.memory_space<vmem>>, vector<2x128xf32>
    %237 = arith.maximumf %235, %236 : vector<2x128xf32>
    %238 = arith.maximumf %234, %237 : vector<2x128xf32>
    %239 = vector.broadcast %36 : vector<1x128xf32> to vector<2x128xf32>
    %240 = arith.addf %238, %239 : vector<2x128xf32>
    %cst_150 = arith.constant 0.000000e+00 : f32
    %241 = vector.broadcast %cst_150 : f32 to vector<2x128xf32>
    %242 = arith.maximumf %240, %241 : vector<2x128xf32>
    %243 = vector.extract_strided_slice %242 {offsets = [0, 0], sizes = [2, 16], strides = [1, 1]} : vector<2x128xf32> to vector<2x16xf32>
    %c0_151 = arith.constant 0 : index
    %c240 = arith.constant 240 : index
    %244 = vector.load %arg16[%c0_151, %c240] : memref<8x512xf32, #tpu.memory_space<vmem>>, vector<2x16xf32>
    tpu.vector_store %arg16[%c0_151, %c240], %243 {strides = array<i32>} : memref<8x512xf32, #tpu.memory_space<vmem>>, vector<2x16xf32>,
    %c172 = arith.constant 172 : index
    %c0_152 = arith.constant 0 : index
    %245 = vector.load %arg15[%c172, %c0_152] : memref<392x128xf32, #tpu.memory_space<vmem>>, vector<2x128xf32>
    %c174 = arith.constant 174 : index
    %c0_153 = arith.constant 0 : index
    %246 = vector.load %arg15[%c174, %c0_153] : memref<392x128xf32, #tpu.memory_space<vmem>>, vector<2x128xf32>
    %247 = arith.maximumf %245, %246 : vector<2x128xf32>
    %c200 = arith.constant 200 : index
    %c0_154 = arith.constant 0 : index
    %248 = vector.load %arg15[%c200, %c0_154] : memref<392x128xf32, #tpu.memory_space<vmem>>, vector<2x128xf32>
    %c202 = arith.constant 202 : index
    %c0_155 = arith.constant 0 : index
    %249 = vector.load %arg15[%c202, %c0_155] : memref<392x128xf32, #tpu.memory_space<vmem>>, vector<2x128xf32>
    %250 = arith.maximumf %248, %249 : vector<2x128xf32>
    %251 = arith.maximumf %247, %250 : vector<2x128xf32>
    %252 = vector.broadcast %36 : vector<1x128xf32> to vector<2x128xf32>
    %253 = arith.addf %251, %252 : vector<2x128xf32>
    %cst_156 = arith.constant 0.000000e+00 : f32
    %254 = vector.broadcast %cst_156 : f32 to vector<2x128xf32>
    %255 = arith.maximumf %253, %254 : vector<2x128xf32>
    %256 = vector.extract_strided_slice %255 {offsets = [0, 0], sizes = [2, 16], strides = [1, 1]} : vector<2x128xf32> to vector<2x16xf32>
    %c0_157 = arith.constant 0 : index
    %c256_158 = arith.constant 256 : index
    %257 = vector.load %arg16[%c0_157, %c256_158] : memref<8x512xf32, #tpu.memory_space<vmem>>, vector<2x16xf32>
    tpu.vector_store %arg16[%c0_157, %c256_158], %256 {strides = array<i32>} : memref<8x512xf32, #tpu.memory_space<vmem>>, vector<2x16xf32>,
    %c176_159 = arith.constant 176 : index
    %c0_160 = arith.constant 0 : index
    %258 = vector.load %arg15[%c176_159, %c0_160] : memref<392x128xf32, #tpu.memory_space<vmem>>, vector<2x128xf32>
    %c178 = arith.constant 178 : index
    %c0_161 = arith.constant 0 : index
    %259 = vector.load %arg15[%c178, %c0_161] : memref<392x128xf32, #tpu.memory_space<vmem>>, vector<2x128xf32>
    %260 = arith.maximumf %258, %259 : vector<2x128xf32>
    %c204 = arith.constant 204 : index
    %c0_162 = arith.constant 0 : index
    %261 = vector.load %arg15[%c204, %c0_162] : memref<392x128xf32, #tpu.memory_space<vmem>>, vector<2x128xf32>
    %c206 = arith.constant 206 : index
    %c0_163 = arith.constant 0 : index
    %262 = vector.load %arg15[%c206, %c0_163] : memref<392x128xf32, #tpu.memory_space<vmem>>, vector<2x128xf32>
    %263 = arith.maximumf %261, %262 : vector<2x128xf32>
    %264 = arith.maximumf %260, %263 : vector<2x128xf32>
    %265 = vector.broadcast %36 : vector<1x128xf32> to vector<2x128xf32>
    %266 = arith.addf %264, %265 : vector<2x128xf32>
    %cst_164 = arith.constant 0.000000e+00 : f32
    %267 = vector.broadcast %cst_164 : f32 to vector<2x128xf32>
    %268 = arith.maximumf %266, %267 : vector<2x128xf32>
    %269 = vector.extract_strided_slice %268 {offsets = [0, 0], sizes = [2, 16], strides = [1, 1]} : vector<2x128xf32> to vector<2x16xf32>
    %c0_165 = arith.constant 0 : index
    %c272 = arith.constant 272 : index
    %270 = vector.load %arg16[%c0_165, %c272] : memref<8x512xf32, #tpu.memory_space<vmem>>, vector<2x16xf32>
    tpu.vector_store %arg16[%c0_165, %c272], %269 {strides = array<i32>} : memref<8x512xf32, #tpu.memory_space<vmem>>, vector<2x16xf32>,
    %c180 = arith.constant 180 : index
    %c0_166 = arith.constant 0 : index
    %271 = vector.load %arg15[%c180, %c0_166] : memref<392x128xf32, #tpu.memory_space<vmem>>, vector<2x128xf32>
    %c182 = arith.constant 182 : index
    %c0_167 = arith.constant 0 : index
    %272 = vector.load %arg15[%c182, %c0_167] : memref<392x128xf32, #tpu.memory_space<vmem>>, vector<2x128xf32>
    %273 = arith.maximumf %271, %272 : vector<2x128xf32>
    %c208_168 = arith.constant 208 : index
    %c0_169 = arith.constant 0 : index
    %274 = vector.load %arg15[%c208_168, %c0_169] : memref<392x128xf32, #tpu.memory_space<vmem>>, vector<2x128xf32>
    %c210 = arith.constant 210 : index
    %c0_170 = arith.constant 0 : index
    %275 = vector.load %arg15[%c210, %c0_170] : memref<392x128xf32, #tpu.memory_space<vmem>>, vector<2x128xf32>
    %276 = arith.maximumf %274, %275 : vector<2x128xf32>
    %277 = arith.maximumf %273, %276 : vector<2x128xf32>
    %278 = vector.broadcast %36 : vector<1x128xf32> to vector<2x128xf32>
    %279 = arith.addf %277, %278 : vector<2x128xf32>
    %cst_171 = arith.constant 0.000000e+00 : f32
    %280 = vector.broadcast %cst_171 : f32 to vector<2x128xf32>
    %281 = arith.maximumf %279, %280 : vector<2x128xf32>
    %282 = vector.extract_strided_slice %281 {offsets = [0, 0], sizes = [2, 16], strides = [1, 1]} : vector<2x128xf32> to vector<2x16xf32>
    %c0_172 = arith.constant 0 : index
    %c288 = arith.constant 288 : index
    %283 = vector.load %arg16[%c0_172, %c288] : memref<8x512xf32, #tpu.memory_space<vmem>>, vector<2x16xf32>
    tpu.vector_store %arg16[%c0_172, %c288], %282 {strides = array<i32>} : memref<8x512xf32, #tpu.memory_space<vmem>>, vector<2x16xf32>,
    %c184 = arith.constant 184 : index
    %c0_173 = arith.constant 0 : index
    %284 = vector.load %arg15[%c184, %c0_173] : memref<392x128xf32, #tpu.memory_space<vmem>>, vector<2x128xf32>
    %c186 = arith.constant 186 : index
    %c0_174 = arith.constant 0 : index
    %285 = vector.load %arg15[%c186, %c0_174] : memref<392x128xf32, #tpu.memory_space<vmem>>, vector<2x128xf32>
    %286 = arith.maximumf %284, %285 : vector<2x128xf32>
    %c212 = arith.constant 212 : index
    %c0_175 = arith.constant 0 : index
    %287 = vector.load %arg15[%c212, %c0_175] : memref<392x128xf32, #tpu.memory_space<vmem>>, vector<2x128xf32>
    %c214 = arith.constant 214 : index
    %c0_176 = arith.constant 0 : index
    %288 = vector.load %arg15[%c214, %c0_176] : memref<392x128xf32, #tpu.memory_space<vmem>>, vector<2x128xf32>
    %289 = arith.maximumf %287, %288 : vector<2x128xf32>
    %290 = arith.maximumf %286, %289 : vector<2x128xf32>
    %291 = vector.broadcast %36 : vector<1x128xf32> to vector<2x128xf32>
    %292 = arith.addf %290, %291 : vector<2x128xf32>
    %cst_177 = arith.constant 0.000000e+00 : f32
    %293 = vector.broadcast %cst_177 : f32 to vector<2x128xf32>
    %294 = arith.maximumf %292, %293 : vector<2x128xf32>
    %295 = vector.extract_strided_slice %294 {offsets = [0, 0], sizes = [2, 16], strides = [1, 1]} : vector<2x128xf32> to vector<2x16xf32>
    %c0_178 = arith.constant 0 : index
    %c304 = arith.constant 304 : index
    %296 = vector.load %arg16[%c0_178, %c304] : memref<8x512xf32, #tpu.memory_space<vmem>>, vector<2x16xf32>
    tpu.vector_store %arg16[%c0_178, %c304], %295 {strides = array<i32>} : memref<8x512xf32, #tpu.memory_space<vmem>>, vector<2x16xf32>,
    %c224_179 = arith.constant 224 : index
    %c0_180 = arith.constant 0 : index
    %297 = vector.load %arg15[%c224_179, %c0_180] : memref<392x128xf32, #tpu.memory_space<vmem>>, vector<2x128xf32>
    %c226 = arith.constant 226 : index
    %c0_181 = arith.constant 0 : index
    %298 = vector.load %arg15[%c226, %c0_181] : memref<392x128xf32, #tpu.memory_space<vmem>>, vector<2x128xf32>
    %299 = arith.maximumf %297, %298 : vector<2x128xf32>
    %c252 = arith.constant 252 : index
    %c0_182 = arith.constant 0 : index
    %300 = vector.load %arg15[%c252, %c0_182] : memref<392x128xf32, #tpu.memory_space<vmem>>, vector<2x128xf32>
    %c254 = arith.constant 254 : index
    %c0_183 = arith.constant 0 : index
    %301 = vector.load %arg15[%c254, %c0_183] : memref<392x128xf32, #tpu.memory_space<vmem>>, vector<2x128xf32>
    %302 = arith.maximumf %300, %301 : vector<2x128xf32>
    %303 = arith.maximumf %299, %302 : vector<2x128xf32>
    %304 = vector.broadcast %36 : vector<1x128xf32> to vector<2x128xf32>
    %305 = arith.addf %303, %304 : vector<2x128xf32>
    %cst_184 = arith.constant 0.000000e+00 : f32
    %306 = vector.broadcast %cst_184 : f32 to vector<2x128xf32>
    %307 = arith.maximumf %305, %306 : vector<2x128xf32>
    %308 = vector.extract_strided_slice %307 {offsets = [0, 0], sizes = [2, 16], strides = [1, 1]} : vector<2x128xf32> to vector<2x16xf32>
    %c0_185 = arith.constant 0 : index
    %c320 = arith.constant 320 : index
    %309 = vector.load %arg16[%c0_185, %c320] : memref<8x512xf32, #tpu.memory_space<vmem>>, vector<2x16xf32>
    tpu.vector_store %arg16[%c0_185, %c320], %308 {strides = array<i32>} : memref<8x512xf32, #tpu.memory_space<vmem>>, vector<2x16xf32>,
    %c228 = arith.constant 228 : index
    %c0_186 = arith.constant 0 : index
    %310 = vector.load %arg15[%c228, %c0_186] : memref<392x128xf32, #tpu.memory_space<vmem>>, vector<2x128xf32>
    %c230 = arith.constant 230 : index
    %c0_187 = arith.constant 0 : index
    %311 = vector.load %arg15[%c230, %c0_187] : memref<392x128xf32, #tpu.memory_space<vmem>>, vector<2x128xf32>
    %312 = arith.maximumf %310, %311 : vector<2x128xf32>
    %c256_188 = arith.constant 256 : index
    %c0_189 = arith.constant 0 : index
    %313 = vector.load %arg15[%c256_188, %c0_189] : memref<392x128xf32, #tpu.memory_space<vmem>>, vector<2x128xf32>
    %c258 = arith.constant 258 : index
    %c0_190 = arith.constant 0 : index
    %314 = vector.load %arg15[%c258, %c0_190] : memref<392x128xf32, #tpu.memory_space<vmem>>, vector<2x128xf32>
    %315 = arith.maximumf %313, %314 : vector<2x128xf32>
    %316 = arith.maximumf %312, %315 : vector<2x128xf32>
    %317 = vector.broadcast %36 : vector<1x128xf32> to vector<2x128xf32>
    %318 = arith.addf %316, %317 : vector<2x128xf32>
    %cst_191 = arith.constant 0.000000e+00 : f32
    %319 = vector.broadcast %cst_191 : f32 to vector<2x128xf32>
    %320 = arith.maximumf %318, %319 : vector<2x128xf32>
    %321 = vector.extract_strided_slice %320 {offsets = [0, 0], sizes = [2, 16], strides = [1, 1]} : vector<2x128xf32> to vector<2x16xf32>
    %c0_192 = arith.constant 0 : index
    %c336 = arith.constant 336 : index
    %322 = vector.load %arg16[%c0_192, %c336] : memref<8x512xf32, #tpu.memory_space<vmem>>, vector<2x16xf32>
    tpu.vector_store %arg16[%c0_192, %c336], %321 {strides = array<i32>} : memref<8x512xf32, #tpu.memory_space<vmem>>, vector<2x16xf32>,
    %c232 = arith.constant 232 : index
    %c0_193 = arith.constant 0 : index
    %323 = vector.load %arg15[%c232, %c0_193] : memref<392x128xf32, #tpu.memory_space<vmem>>, vector<2x128xf32>
    %c234 = arith.constant 234 : index
    %c0_194 = arith.constant 0 : index
    %324 = vector.load %arg15[%c234, %c0_194] : memref<392x128xf32, #tpu.memory_space<vmem>>, vector<2x128xf32>
    %325 = arith.maximumf %323, %324 : vector<2x128xf32>
    %c260 = arith.constant 260 : index
    %c0_195 = arith.constant 0 : index
    %326 = vector.load %arg15[%c260, %c0_195] : memref<392x128xf32, #tpu.memory_space<vmem>>, vector<2x128xf32>
    %c262 = arith.constant 262 : index
    %c0_196 = arith.constant 0 : index
    %327 = vector.load %arg15[%c262, %c0_196] : memref<392x128xf32, #tpu.memory_space<vmem>>, vector<2x128xf32>
    %328 = arith.maximumf %326, %327 : vector<2x128xf32>
    %329 = arith.maximumf %325, %328 : vector<2x128xf32>
    %330 = vector.broadcast %36 : vector<1x128xf32> to vector<2x128xf32>
    %331 = arith.addf %329, %330 : vector<2x128xf32>
    %cst_197 = arith.constant 0.000000e+00 : f32
    %332 = vector.broadcast %cst_197 : f32 to vector<2x128xf32>
    %333 = arith.maximumf %331, %332 : vector<2x128xf32>
    %334 = vector.extract_strided_slice %333 {offsets = [0, 0], sizes = [2, 16], strides = [1, 1]} : vector<2x128xf32> to vector<2x16xf32>
    %c0_198 = arith.constant 0 : index
    %c352 = arith.constant 352 : index
    %335 = vector.load %arg16[%c0_198, %c352] : memref<8x512xf32, #tpu.memory_space<vmem>>, vector<2x16xf32>
    tpu.vector_store %arg16[%c0_198, %c352], %334 {strides = array<i32>} : memref<8x512xf32, #tpu.memory_space<vmem>>, vector<2x16xf32>,
    %c236 = arith.constant 236 : index
    %c0_199 = arith.constant 0 : index
    %336 = vector.load %arg15[%c236, %c0_199] : memref<392x128xf32, #tpu.memory_space<vmem>>, vector<2x128xf32>
    %c238 = arith.constant 238 : index
    %c0_200 = arith.constant 0 : index
    %337 = vector.load %arg15[%c238, %c0_200] : memref<392x128xf32, #tpu.memory_space<vmem>>, vector<2x128xf32>
    %338 = arith.maximumf %336, %337 : vector<2x128xf32>
    %c264 = arith.constant 264 : index
    %c0_201 = arith.constant 0 : index
    %339 = vector.load %arg15[%c264, %c0_201] : memref<392x128xf32, #tpu.memory_space<vmem>>, vector<2x128xf32>
    %c266 = arith.constant 266 : index
    %c0_202 = arith.constant 0 : index
    %340 = vector.load %arg15[%c266, %c0_202] : memref<392x128xf32, #tpu.memory_space<vmem>>, vector<2x128xf32>
    %341 = arith.maximumf %339, %340 : vector<2x128xf32>
    %342 = arith.maximumf %338, %341 : vector<2x128xf32>
    %343 = vector.broadcast %36 : vector<1x128xf32> to vector<2x128xf32>
    %344 = arith.addf %342, %343 : vector<2x128xf32>
    %cst_203 = arith.constant 0.000000e+00 : f32
    %345 = vector.broadcast %cst_203 : f32 to vector<2x128xf32>
    %346 = arith.maximumf %344, %345 : vector<2x128xf32>
    %347 = vector.extract_strided_slice %346 {offsets = [0, 0], sizes = [2, 16], strides = [1, 1]} : vector<2x128xf32> to vector<2x16xf32>
    %c0_204 = arith.constant 0 : index
    %c368 = arith.constant 368 : index
    %348 = vector.load %arg16[%c0_204, %c368] : memref<8x512xf32, #tpu.memory_space<vmem>>, vector<2x16xf32>
    tpu.vector_store %arg16[%c0_204, %c368], %347 {strides = array<i32>} : memref<8x512xf32, #tpu.memory_space<vmem>>, vector<2x16xf32>,
    %c240_205 = arith.constant 240 : index
    %c0_206 = arith.constant 0 : index
    %349 = vector.load %arg15[%c240_205, %c0_206] : memref<392x128xf32, #tpu.memory_space<vmem>>, vector<2x128xf32>
    %c242 = arith.constant 242 : index
    %c0_207 = arith.constant 0 : index
    %350 = vector.load %arg15[%c242, %c0_207] : memref<392x128xf32, #tpu.memory_space<vmem>>, vector<2x128xf32>
    %351 = arith.maximumf %349, %350 : vector<2x128xf32>
    %c268 = arith.constant 268 : index
    %c0_208 = arith.constant 0 : index
    %352 = vector.load %arg15[%c268, %c0_208] : memref<392x128xf32, #tpu.memory_space<vmem>>, vector<2x128xf32>
    %c270 = arith.constant 270 : index
    %c0_209 = arith.constant 0 : index
    %353 = vector.load %arg15[%c270, %c0_209] : memref<392x128xf32, #tpu.memory_space<vmem>>, vector<2x128xf32>
    %354 = arith.maximumf %352, %353 : vector<2x128xf32>
    %355 = arith.maximumf %351, %354 : vector<2x128xf32>
    %356 = vector.broadcast %36 : vector<1x128xf32> to vector<2x128xf32>
    %357 = arith.addf %355, %356 : vector<2x128xf32>
    %cst_210 = arith.constant 0.000000e+00 : f32
    %358 = vector.broadcast %cst_210 : f32 to vector<2x128xf32>
    %359 = arith.maximumf %357, %358 : vector<2x128xf32>
    %360 = vector.extract_strided_slice %359 {offsets = [0, 0], sizes = [2, 16], strides = [1, 1]} : vector<2x128xf32> to vector<2x16xf32>
    %c0_211 = arith.constant 0 : index
    %c384_212 = arith.constant 384 : index
    %361 = vector.load %arg16[%c0_211, %c384_212] : memref<8x512xf32, #tpu.memory_space<vmem>>, vector<2x16xf32>
    tpu.vector_store %arg16[%c0_211, %c384_212], %360 {strides = array<i32>} : memref<8x512xf32, #tpu.memory_space<vmem>>, vector<2x16xf32>,
    tpu.wait_dma2 semaphore(%arg18 : memref<!tpu.dma_semaphore, #tpu.memory_space<semaphore_mem>>) src(%arg5 : memref<512x512xbf16, #tpu.memory_space<any>>) dst(%arg17 : memref<512x512xbf16, #tpu.memory_space<vmem>>)
    %c0_213 = arith.constant 0 : index
    %c0_214 = arith.constant 0 : index
    %362 = vector.load %arg16[%c0_213, %c0_214] : memref<8x512xf32, #tpu.memory_space<vmem>>, vector<8x512xf32>
    %363 = arith.truncf %362 : vector<8x512xf32> to vector<8x512xbf16>
    %c0_215 = arith.constant 0 : index
    %c0_216 = arith.constant 0 : index
    %364 = vector.load %arg17[%c0_215, %c0_216] : memref<512x512xbf16, #tpu.memory_space<vmem>>, vector<512x512xbf16>
    %cst_217 = arith.constant dense<0.000000e+00> : vector<8x512xf32>
    %365 = tpu.matmul %363, %364, %cst_217 {dimension_numbers = #tpu.dot_dimension_numbers<[1], [0], [0], [1], [0, 0, 1, 1], [], []>} : vector<8x512xbf16>, vector<512x512xbf16>, vector<8x512xf32> -> vector<8x512xf32>
    %c0_218 = arith.constant 0 : index
    %c0_219 = arith.constant 0 : index
    %366 = vector.load %arg6[%c0_218, %c0_219] : memref<1x512xf32, #tpu.memory_space<vmem>>, vector<1x512xf32>
    %367 = vector.broadcast %366 : vector<1x512xf32> to vector<8x512xf32>
    %368 = arith.addf %365, %367 : vector<8x512xf32>
    %cst_220 = arith.constant 0.000000e+00 : f32
    %369 = vector.broadcast %cst_220 : f32 to vector<8x512xf32>
    %370 = arith.maximumf %368, %369 : vector<8x512xf32>
    %371 = arith.truncf %370 : vector<8x512xf32> to vector<8x512xbf16>
    %c0_221 = arith.constant 0 : index
    %c0_222 = arith.constant 0 : index
    %372 = vector.load %arg7[%c0_221, %c0_222] : memref<512x128xbf16, #tpu.memory_space<vmem>>, vector<512x128xbf16>
    %cst_223 = arith.constant dense<0.000000e+00> : vector<8x128xf32>
    %373 = tpu.matmul %371, %372, %cst_223 {dimension_numbers = #tpu.dot_dimension_numbers<[1], [0], [0], [1], [0, 0, 1, 1], [], []>} : vector<8x512xbf16>, vector<512x128xbf16>, vector<8x128xf32> -> vector<8x128xf32>
    %c0_224 = arith.constant 0 : index
    %c0_225 = arith.constant 0 : index
    %374 = vector.load %arg8[%c0_224, %c0_225] : memref<1x128xf32, #tpu.memory_space<vmem>>, vector<1x128xf32>
    %375 = vector.broadcast %374 : vector<1x128xf32> to vector<8x128xf32>
    %376 = arith.addf %373, %375 : vector<8x128xf32>
    %cst_226 = arith.constant 0.000000e+00 : f32
    %377 = vector.broadcast %cst_226 : f32 to vector<8x128xf32>
    %378 = arith.maximumf %376, %377 : vector<8x128xf32>
    %379 = arith.truncf %378 : vector<8x128xf32> to vector<8x128xbf16>
    %c0_227 = arith.constant 0 : index
    %c0_228 = arith.constant 0 : index
    %380 = vector.load %arg9[%c0_227, %c0_228] : memref<128x128xbf16, #tpu.memory_space<vmem>>, vector<128x128xbf16>
    %cst_229 = arith.constant dense<0.000000e+00> : vector<8x128xf32>
    %381 = tpu.matmul %379, %380, %cst_229 {dimension_numbers = #tpu.dot_dimension_numbers<[1], [0], [0], [1], [0, 0, 1, 1], [], []>} : vector<8x128xbf16>, vector<128x128xbf16>, vector<8x128xf32> -> vector<8x128xf32>
    %c0_230 = arith.constant 0 : index
    %c0_231 = arith.constant 0 : index
    %382 = vector.load %arg10[%c0_230, %c0_231] : memref<1x128xf32, #tpu.memory_space<vmem>>, vector<1x128xf32>
    %383 = vector.broadcast %382 : vector<1x128xf32> to vector<8x128xf32>
    %384 = arith.addf %381, %383 : vector<8x128xf32>
    %c0_232 = arith.constant 0 : index
    %c0_233 = arith.constant 0 : index
    %385 = vector.load %arg11[%c0_232, %c0_233] : memref<8x128xf32, #tpu.memory_space<vmem>>, vector<8x128xf32>
    tpu.vector_store %arg11[%c0_232, %c0_233], %384 {strides = array<i32>} : memref<8x128xf32, #tpu.memory_space<vmem>>, vector<8x128xf32>,
    return
  }
}

</mosaic_0001>

<llo_original>
// kernel: net_forward.1
$region0: #{net_forward.1}
  #allocation0 [shape = 'u32[]', space=smem, size = 0x4, offset = 0x4, fixed_abs, tag = 'smem constant byte address 0x4 - core index']
  #allocation1 [shape = 'u32[144,128]{1,0:T(1,128)}', space=vmem, size = 0x12000, scoped, tag = 'internal scratch']
  #allocation2 [shape = 'f32[1568,128]{1,0:T(8,128)}', space=vmem, size = 0xc4000, scoped, tag = 'scratch operand']
  #allocation3 [shape = 'bf16[504,128]{1,0:T(8,128)(2,1)}', space=vmem, size = 0x1f800, scoped, tag = 'scratch operand']
  #allocation4 [shape = 'bf16[392,640]{1,0:T(8,128)(2,1)}', space=vmem, size = 0x7a800, scoped, tag = 'scratch operand']
  #allocation5 [shape = 'f32[392,128]{1,0:T(8,128)}', space=vmem, size = 0x31000, scoped, tag = 'scratch operand']
  #allocation6 [shape = 'f32[8,512]{1,0:T(8,128)}', space=vmem, size = 0x4000, scoped, tag = 'scratch operand']
  #allocation7 [shape = 'bf16[512,512]{1,0:T(8,128)(2,1)}', space=vmem, size = 0x80000, scoped, tag = 'scratch operand']
  #allocation8 [shape = 's32[1]{0}', space=sflag, size = 0x4, scoped, tag = 'scratch operand']
  #allocation9 [shape = 's32[]', space=sflag, size = 0x4, offset = 0, fixed_abs, tag = 'sflag constant byte address 0x0 - dummy sync flag']
  %s0 = inlined_call_operand.vmem [shape: bf16[1568,128], index: 0, kind: input, shape index: {}]
  %s1 = inlined_call_operand.vmem [shape: bf16[128,128], index: 1, kind: input, shape index: {}]
  %s2 = inlined_call_operand.vmem [shape: f32[1,128], index: 2, kind: input, shape index: {}]
  %s3 = inlined_call_operand.vmem [shape: bf16[640,128], index: 3, kind: input, shape index: {}]
  %s4 = inlined_call_operand.vmem [shape: f32[1,128], index: 4, kind: input, shape index: {}]
  %s5 = inlined_call_operand.vmem [shape: bf16[512,512], index: 5, kind: input, shape index: {}]
  %s6 = inlined_call_operand.vmem [shape: f32[1,512], index: 6, kind: input, shape index: {}]
  %s7 = inlined_call_operand.vmem [shape: bf16[512,128], index: 7, kind: input, shape index: {}]
  %s8 = inlined_call_operand.vmem [shape: f32[1,128], index: 8, kind: input, shape index: {}]
  %s9 = inlined_call_operand.vmem [shape: bf16[128,128], index: 9, kind: input, shape index: {}]
  %s10 = inlined_call_operand.vmem [shape: f32[1,128], index: 10, kind: input, shape index: {}]
  %s11 = inlined_call_operand.vmem [shape: f32[8,128], index: 11, kind: output, shape index: {}]
  %s12 = sld [smem:[#allocation0]]
  $region84: #{net_forward.1} parent=0
    _
  %s14 = ssub.s32 1, %s12
  %s15 = scalar_select 0, %s14, %s12
  // Predicated region
  $region2: #{net_forward.1} parent=0 // pred_check
    _
  $region3: #{net_forward.1} parent=0 // pred_check_branch
    %17 = sbr.rel (0) target = $region5
  $region4: #{net_forward.1} parent=0 // pred_region
    _
  $region5: #{net_forward.1} parent=0 // pred_fallthru
    _
  // Predicated region
  $region6: #{net_forward.1} parent=0 // pred_check
    _
  $region7: #{net_forward.1} parent=0 // pred_check_branch
    %19 = sbr.rel (0) target = $region9
  $region8: #{net_forward.1} parent=0 // pred_region
    _
  $region9: #{net_forward.1} parent=0 // pred_fallthru
    _
  // Predicated region
  $region10: #{net_forward.1} parent=0 // pred_check
    _
  $region11: #{net_forward.1} parent=0 // pred_check_branch
    %21 = sbr.rel (0) target = $region13
  $region12: #{net_forward.1} parent=0 // pred_region
    _
  $region13: #{net_forward.1} parent=0 // pred_fallthru
    _
  // Predicated region
  $region14: #{net_forward.1} parent=0 // pred_check
    _
  $region15: #{net_forward.1} parent=0 // pred_check_branch
    %23 = sbr.rel (0) target = $region17
  $region16: #{net_forward.1} parent=0 // pred_region
    _
  $region17: #{net_forward.1} parent=0 // pred_fallthru
    _
  // Predicated region
  $region18: #{net_forward.1} parent=0 // pred_check
    _
  $region19: #{net_forward.1} parent=0 // pred_check_branch
    %25 = sbr.rel (0) target = $region21
  $region20: #{net_forward.1} parent=0 // pred_region
    _
  $region21: #{net_forward.1} parent=0 // pred_fallthru
    _
  // Predicated region
  $region22: #{net_forward.1} parent=0 // pred_check
    _
  $region23: #{net_forward.1} parent=0 // pred_check_branch
    %27 = sbr.rel (0) target = $region25
  $region24: #{net_forward.1} parent=0 // pred_region
    _
  $region25: #{net_forward.1} parent=0 // pred_fallthru
    _
  // Predicated region
  $region26: #{net_forward.1} parent=0 // pred_check
    _
  $region27: #{net_forward.1} parent=0 // pred_check_branch
    %29 = sbr.rel (0) target = $region29
  $region28: #{net_forward.1} parent=0 // pred_region
    _
  $region29: #{net_forward.1} parent=0 // pred_fallthru
    _
  // Predicated region
  $region30: #{net_forward.1} parent=0 // pred_check
    _
  $region31: #{net_forward.1} parent=0 // pred_check_branch
    %31 = sbr.rel (0) target = $region33
  $region32: #{net_forward.1} parent=0 // pred_region
    _
  $region33: #{net_forward.1} parent=0 // pred_fallthru
    _
  // Predicated region
  $region34: #{net_forward.1} parent=0 // pred_check
    _
  $region35: #{net_forward.1} parent=0 // pred_check_branch
    %33 = sbr.rel (0) target = $region37
  $region36: #{net_forward.1} parent=0 // pred_region
    _
  $region37: #{net_forward.1} parent=0 // pred_fallthru
    _
  // Predicated region
  $region38: #{net_forward.1} parent=0 // pred_check
    _
  $region39: #{net_forward.1} parent=0 // pred_check_branch
    %35 = sbr.rel (0) target = $region41
  $region40: #{net_forward.1} parent=0 // pred_region
    _
  $region41: #{net_forward.1} parent=0 // pred_fallthru
    _
  %p38 = scmp.lt.u32.totalorder 1024, 8
  %p39 = pneg %p38
  // Predicated region
  $region42: #{net_forward.1} parent=0 // pred_check
    _
  $region43: #{net_forward.1} parent=0 // pred_check_branch
    %41 = sbr.rel (%p38) target = $region45
  $region44: #{net_forward.1} parent=0 // pred_region
    %s57 = sand.u32 1024, 7
    %p58 = scmp.eq.s32.totalorder %s57, 0
    // Predicated region
    $region57: #{net_forward.1} parent=44 // pred_check
      %p59 = pneg %p58
    $region58: #{net_forward.1} parent=44 // pred_check_branch
      %61 = sbr.rel (%p59) target = $region60
    $region59: #{net_forward.1} parent=44 // pred_region
      loop: start=0, step=1, limit=1
      $region61: #{net_forward.1} parent=59 // loop_pre_header
        _
      $region62: #{net_forward.1} parent=59 // loop_header
        %s63 = sphi 0, %s67
        %p64 = scmp.ge.s32.totalorder %s63, 1
        %s68 = sphi %s5, %s5
        %s69 = sphi [#allocation7], [#allocation7]
      $region63: #{net_forward.1} parent=59 // loop_header_branch
        %66 = sbr.rel (%p64) target = $region67
      $region64: #{net_forward.1} parent=59 // loop_body
        %v70 = vld [vmem:[%s68] sm:$0xff]
        %71 = vst [vmem:[%s69] sm:$0xff] %v70
        %v72 = vld [vmem:[%s68 + $0x8] sm:$0xff]
        %73 = vst [vmem:[%s69 + $0x8] sm:$0xff] %v72
        %v74 = vld [vmem:[%s68 + $0x10] sm:$0xff]
        %75 = vst [vmem:[%s69 + $0x10] sm:$0xff] %v74
        %v76 = vld [vmem:[%s68 + $0x18] sm:$0xff]
        %77 = vst [vmem:[%s69 + $0x18] sm:$0xff] %v76
        %v78 = vld [vmem:[%s68 + $0x20] sm:$0xff]
        %79 = vst [vmem:[%s69 + $0x20] sm:$0xff] %v78
        %v80 = vld [vmem:[%s68 + $0x28] sm:$0xff]
        %81 = vst [vmem:[%s69 + $0x28] sm:$0xff] %v80
        %v82 = vld [vmem:[%s68 + $0x30] sm:$0xff]
        %83 = vst [vmem:[%s69 + $0x30] sm:$0xff] %v82
        %v84 = vld [vmem:[%s68 + $0x38] sm:$0xff]
        %85 = vst [vmem:[%s69 + $0x38] sm:$0xff] %v84
        %v86 = vld [vmem:[%s68 + $0x40] sm:$0xff]
        %87 = vst [vmem:[%s69 + $0x40] sm:$0xff] %v86
        %v88 = vld [vmem:[%s68 + $0x48] sm:$0xff]
        %89 = vst [vmem:[%s69 + $0x48] sm:$0xff] %v88
        %v90 = vld [vmem:[%s68 + $0x50] sm:$0xff]
        %91 = vst [vmem:[%s69 + $0x50] sm:$0xff] %v90
        %v92 = vld [vmem:[%s68 + $0x58] sm:$0xff]
        %93 = vst [vmem:[%s69 + $0x58] sm:$0xff] %v92
        %v94 = vld [vmem:[%s68 + $0x60] sm:$0xff]
        %95 = vst [vmem:[%s69 + $0x60] sm:$0xff] %v94
        %v96 = vld [vmem:[%s68 + $0x68] sm:$0xff]
        %97 = vst [vmem:[%s69 + $0x68] sm:$0xff] %v96
        %v98 = vld [vmem:[%s68 + $0x70] sm:$0xff]
        %99 = vst [vmem:[%s69 + $0x70] sm:$0xff] %v98
        %v100 = vld [vmem:[%s68 + $0x78] sm:$0xff]
        %101 = vst [vmem:[%s69 + $0x78] sm:$0xff] %v100
        %v102 = vld [vmem:[%s68 + $0x80] sm:$0xff]
        %103 = vst [vmem:[%s69 + $0x80] sm:$0xff] %v102
        %v104 = vld [vmem:[%s68 + $0x88] sm:$0xff]
        %105 = vst [vmem:[%s69 + $0x88] sm:$0xff] %v104
        %v106 = vld [vmem:[%s68 + $0x90] sm:$0xff]
        %107 = vst [vmem:[%s69 + $0x90] sm:$0xff] %v106
        %v108 = vld [vmem:[%s68 + $0x98] sm:$0xff]
        %109 = vst [vmem:[%s69 + $0x98] sm:$0xff] %v108
        %v110 = vld [vmem:[%s68 + $0xa0] sm:$0xff]
        %111 = vst [vmem:[%s69 + $0xa0] sm:$0xff] %v110
        %v112 = vld [vmem:[%s68 + $0xa8] sm:$0xff]
        %113 = vst [vmem:[%s69 + $0xa8] sm:$0xff] %v112
        %v114 = vld [vmem:[%s68 + $0xb0] sm:$0xff]
        %115 = vst [vmem:[%s69 + $0xb0] sm:$0xff] %v114
        %v116 = vld [vmem:[%s68 + $0xb8] sm:$0xff]
        %117 = vst [vmem:[%s69 + $0xb8] sm:$0xff] %v116
        %v118 = vld [vmem:[%s68 + $0xc0] sm:$0xff]
        %119 = vst [vmem:[%s69 + $0xc0] sm:$0xff] %v118
        %v120 = vld [vmem:[%s68 + $0xc8] sm:$0xff]
        %121 = vst [vmem:[%s69 + $0xc8] sm:$0xff] %v120
        %v122 = vld [vmem:[%s68 + $0xd0] sm:$0xff]
        %123 = vst [vmem:[%s69 + $0xd0] sm:$0xff] %v122
        %v124 = vld [vmem:[%s68 + $0xd8] sm:$0xff]
        %125 = vst [vmem:[%s69 + $0xd8] sm:$0xff] %v124
        %v126 = vld [vmem:[%s68 + $0xe0] sm:$0xff]
        %127 = vst [vmem:[%s69 + $0xe0] sm:$0xff] %v126
        %v128 = vld [vmem:[%s68 + $0xe8] sm:$0xff]
        %129 = vst [vmem:[%s69 + $0xe8] sm:$0xff] %v128
        %v130 = vld [vmem:[%s68 + $0xf0] sm:$0xff]
        %131 = vst [vmem:[%s69 + $0xf0] sm:$0xff] %v130
        %v132 = vld [vmem:[%s68 + $0xf8] sm:$0xff]
        %133 = vst [vmem:[%s69 + $0xf8] sm:$0xff] %v132
        %v134 = vld [vmem:[%s68 + $0x100] sm:$0xff]
        %135 = vst [vmem:[%s69 + $0x100] sm:$0xff] %v134
        %v136 = vld [vmem:[%s68 + $0x108] sm:$0xff]
        %137 = vst [vmem:[%s69 + $0x108] sm:$0xff] %v136
        %v138 = vld [vmem:[%s68 + $0x110] sm:$0xff]
        %139 = vst [vmem:[%s69 + $0x110] sm:$0xff] %v138
        %v140 = vld [vmem:[%s68 + $0x118] sm:$0xff]
        %141 = vst [vmem:[%s69 + $0x118] sm:$0xff] %v140
        %v142 = vld [vmem:[%s68 + $0x120] sm:$0xff]
        %143 = vst [vmem:[%s69 + $0x120] sm:$0xff] %v142
        %v144 = vld [vmem:[%s68 + $0x128] sm:$0xff]
        %145 = vst [vmem:[%s69 + $0x128] sm:$0xff] %v144
        %v146 = vld [vmem:[%s68 + $0x130] sm:$0xff]
        %147 = vst [vmem:[%s69 + $0x130] sm:$0xff] %v146
        %v148 = vld [vmem:[%s68 + $0x138] sm:$0xff]
        %149 = vst [vmem:[%s69 + $0x138] sm:$0xff] %v148
        %v150 = vld [vmem:[%s68 + $0x140] sm:$0xff]
        %151 = vst [vmem:[%s69 + $0x140] sm:$0xff] %v150
        %v152 = vld [vmem:[%s68 + $0x148] sm:$0xff]
        %153 = vst [vmem:[%s69 + $0x148] sm:$0xff] %v152
        %v154 = vld [vmem:[%s68 + $0x150] sm:$0xff]
        %155 = vst [vmem:[%s69 + $0x150] sm:$0xff] %v154
        %v156 = vld [vmem:[%s68 + $0x158] sm:$0xff]
        %157 = vst [vmem:[%s69 + $0x158] sm:$0xff] %v156
        %v158 = vld [vmem:[%s68 + $0x160] sm:$0xff]
        %159 = vst [vmem:[%s69 + $0x160] sm:$0xff] %v158
        %v160 = vld [vmem:[%s68 + $0x168] sm:$0xff]
        %161 = vst [vmem:[%s69 + $0x168] sm:$0xff] %v160
        %v162 = vld [vmem:[%s68 + $0x170] sm:$0xff]
        %163 = vst [vmem:[%s69 + $0x170] sm:$0xff] %v162
        %v164 = vld [vmem:[%s68 + $0x178] sm:$0xff]
        %165 = vst [vmem:[%s69 + $0x178] sm:$0xff] %v164
        %v166 = vld [vmem:[%s68 + $0x180] sm:$0xff]
        %167 = vst [vmem:[%s69 + $0x180] sm:$0xff] %v166
        %v168 = vld [vmem:[%s68 + $0x188] sm:$0xff]
        %169 = vst [vmem:[%s69 + $0x188] sm:$0xff] %v168
        %v170 = vld [vmem:[%s68 + $0x190] sm:$0xff]
        %171 = vst [vmem:[%s69 + $0x190] sm:$0xff] %v170
        %v172 = vld [vmem:[%s68 + $0x198] sm:$0xff]
        %173 = vst [vmem:[%s69 + $0x198] sm:$0xff] %v172
        %v174 = vld [vmem:[%s68 + $0x1a0] sm:$0xff]
        %175 = vst [vmem:[%s69 + $0x1a0] sm:$0xff] %v174
        %v176 = vld [vmem:[%s68 + $0x1a8] sm:$0xff]
        %177 = vst [vmem:[%s69 + $0x1a8] sm:$0xff] %v176
        %v178 = vld [vmem:[%s68 + $0x1b0] sm:$0xff]
        %179 = vst [vmem:[%s69 + $0x1b0] sm:$0xff] %v178
        %v180 = vld [vmem:[%s68 + $0x1b8] sm:$0xff]
        %181 = vst [vmem:[%s69 + $0x1b8] sm:$0xff] %v180
        %v182 = vld [vmem:[%s68 + $0x1c0] sm:$0xff]
        %183 = vst [vmem:[%s69 + $0x1c0] sm:$0xff] %v182
        %v184 = vld [vmem:[%s68 + $0x1c8] sm:$0xff]
        %185 = vst [vmem:[%s69 + $0x1c8] sm:$0xff] %v184
        %v186 = vld [vmem:[%s68 + $0x1d0] sm:$0xff]
        %187 = vst [vmem:[%s69 + $0x1d0] sm:$0xff] %v186
        %v188 = vld [vmem:[%s68 + $0x1d8] sm:$0xff]
        %189 = vst [vmem:[%s69 + $0x1d8] sm:$0xff] %v188
        %v190 = vld [vmem:[%s68 + $0x1e0] sm:$0xff]
        %191 = vst [vmem:[%s69 + $0x1e0] sm:$0xff] %v190
        %v192 = vld [vmem:[%s68 + $0x1e8] sm:$0xff]
        %193 = vst [vmem:[%s69 + $0x1e8] sm:$0xff] %v192
        %v194 = vld [vmem:[%s68 + $0x1f0] sm:$0xff]
        %195 = vst [vmem:[%s69 + $0x1f0] sm:$0xff] %v194
        %v196 = vld [vmem:[%s68 + $0x1f8] sm:$0xff]
        %197 = vst [vmem:[%s69 + $0x1f8] sm:$0xff] %v196
        %v198 = vld [vmem:[%s68 + $0x200] sm:$0xff]
        %199 = vst [vmem:[%s69 + $0x200] sm:$0xff] %v198
        %v200 = vld [vmem:[%s68 + $0x208] sm:$0xff]
        %201 = vst [vmem:[%s69 + $0x208] sm:$0xff] %v200
        %v202 = vld [vmem:[%s68 + $0x210] sm:$0xff]
        %203 = vst [vmem:[%s69 + $0x210] sm:$0xff] %v202
        %v204 = vld [vmem:[%s68 + $0x218] sm:$0xff]
        %205 = vst [vmem:[%s69 + $0x218] sm:$0xff] %v204
        %v206 = vld [vmem:[%s68 + $0x220] sm:$0xff]
        %207 = vst [vmem:[%s69 + $0x220] sm:$0xff] %v206
        %v208 = vld [vmem:[%s68 + $0x228] sm:$0xff]
        %209 = vst [vmem:[%s69 + $0x228] sm:$0xff] %v208
        %v210 = vld [vmem:[%s68 + $0x230] sm:$0xff]
        %211 = vst [vmem:[%s69 + $0x230] sm:$0xff] %v210
        %v212 = vld [vmem:[%s68 + $0x238] sm:$0xff]
        %213 = vst [vmem:[%s69 + $0x238] sm:$0xff] %v212
        %v214 = vld [vmem:[%s68 + $0x240] sm:$0xff]
        %215 = vst [vmem:[%s69 + $0x240] sm:$0xff] %v214
        %v216 = vld [vmem:[%s68 + $0x248] sm:$0xff]
        %217 = vst [vmem:[%s69 + $0x248] sm:$0xff] %v216
        %v218 = vld [vmem:[%s68 + $0x250] sm:$0xff]
        %219 = vst [vmem:[%s69 + $0x250] sm:$0xff] %v218
        %v220 = vld [vmem:[%s68 + $0x258] sm:$0xff]
        %221 = vst [vmem:[%s69 + $0x258] sm:$0xff] %v220
        %v222 = vld [vmem:[%s68 + $0x260] sm:$0xff]
        %223 = vst [vmem:[%s69 + $0x260] sm:$0xff] %v222
        %v224 = vld [vmem:[%s68 + $0x268] sm:$0xff]
        %225 = vst [vmem:[%s69 + $0x268] sm:$0xff] %v224
        %v226 = vld [vmem:[%s68 + $0x270] sm:$0xff]
        %227 = vst [vmem:[%s69 + $0x270] sm:$0xff] %v226
        %v228 = vld [vmem:[%s68 + $0x278] sm:$0xff]
        %229 = vst [vmem:[%s69 + $0x278] sm:$0xff] %v228
        %v230 = vld [vmem:[%s68 + $0x280] sm:$0xff]
        %231 = vst [vmem:[%s69 + $0x280] sm:$0xff] %v230
        %v232 = vld [vmem:[%s68 + $0x288] sm:$0xff]
        %233 = vst [vmem:[%s69 + $0x288] sm:$0xff] %v232
        %v234 = vld [vmem:[%s68 + $0x290] sm:$0xff]
        %235 = vst [vmem:[%s69 + $0x290] sm:$0xff] %v234
        %v236 = vld [vmem:[%s68 + $0x298] sm:$0xff]
        %237 = vst [vmem:[%s69 + $0x298] sm:$0xff] %v236
        %v238 = vld [vmem:[%s68 + $0x2a0] sm:$0xff]
        %239 = vst [vmem:[%s69 + $0x2a0] sm:$0xff] %v238
        %v240 = vld [vmem:[%s68 + $0x2a8] sm:$0xff]
        %241 = vst [vmem:[%s69 + $0x2a8] sm:$0xff] %v240
        %v242 = vld [vmem:[%s68 + $0x2b0] sm:$0xff]
        %243 = vst [vmem:[%s69 + $0x2b0] sm:$0xff] %v242
        %v244 = vld [vmem:[%s68 + $0x2b8] sm:$0xff]
        %245 = vst [vmem:[%s69 + $0x2b8] sm:$0xff] %v244
        %v246 = vld [vmem:[%s68 + $0x2c0] sm:$0xff]
        %247 = vst [vmem:[%s69 + $0x2c0] sm:$0xff] %v246
        %v248 = vld [vmem:[%s68 + $0x2c8] sm:$0xff]
        %249 = vst [vmem:[%s69 + $0x2c8] sm:$0xff] %v248
        %v250 = vld [vmem:[%s68 + $0x2d0] sm:$0xff]
        %251 = vst [vmem:[%s69 + $0x2d0] sm:$0xff] %v250
        %v252 = vld [vmem:[%s68 + $0x2d8] sm:$0xff]
        %253 = vst [vmem:[%s69 + $0x2d8] sm:$0xff] %v252
        %v254 = vld [vmem:[%s68 + $0x2e0] sm:$0xff]
        %255 = vst [vmem:[%s69 + $0x2e0] sm:$0xff] %v254
        %v256 = vld [vmem:[%s68 + $0x2e8] sm:$0xff]
        %257 = vst [vmem:[%s69 + $0x2e8] sm:$0xff] %v256
        %v258 = vld [vmem:[%s68 + $0x2f0] sm:$0xff]
        %259 = vst [vmem:[%s69 + $0x2f0] sm:$0xff] %v258
        %v260 = vld [vmem:[%s68 + $0x2f8] sm:$0xff]
        %261 = vst [vmem:[%s69 + $0x2f8] sm:$0xff] %v260
        %v262 = vld [vmem:[%s68 + $0x300] sm:$0xff]
        %263 = vst [vmem:[%s69 + $0x300] sm:$0xff] %v262
        %v264 = vld [vmem:[%s68 + $0x308] sm:$0xff]
        %265 = vst [vmem:[%s69 + $0x308] sm:$0xff] %v264
        %v266 = vld [vmem:[%s68 + $0x310] sm:$0xff]
        %267 = vst [vmem:[%s69 + $0x310] sm:$0xff] %v266
        %v268 = vld [vmem:[%s68 + $0x318] sm:$0xff]
        %269 = vst [vmem:[%s69 + $0x318] sm:$0xff] %v268
        %v270 = vld [vmem:[%s68 + $0x320] sm:$0xff]
        %271 = vst [vmem:[%s69 + $0x320] sm:$0xff] %v270
        %v272 = vld [vmem:[%s68 + $0x328] sm:$0xff]
        %273 = vst [vmem:[%s69 + $0x328] sm:$0xff] %v272
        %v274 = vld [vmem:[%s68 + $0x330] sm:$0xff]
        %275 = vst [vmem:[%s69 + $0x330] sm:$0xff] %v274
        %v276 = vld [vmem:[%s68 + $0x338] sm:$0xff]
        %277 = vst [vmem:[%s69 + $0x338] sm:$0xff] %v276
        %v278 = vld [vmem:[%s68 + $0x340] sm:$0xff]
        %279 = vst [vmem:[%s69 + $0x340] sm:$0xff] %v278
        %v280 = vld [vmem:[%s68 + $0x348] sm:$0xff]
        %281 = vst [vmem:[%s69 + $0x348] sm:$0xff] %v280
        %v282 = vld [vmem:[%s68 + $0x350] sm:$0xff]
        %283 = vst [vmem:[%s69 + $0x350] sm:$0xff] %v282
        %v284 = vld [vmem:[%s68 + $0x358] sm:$0xff]
        %285 = vst [vmem:[%s69 + $0x358] sm:$0xff] %v284
        %v286 = vld [vmem:[%s68 + $0x360] sm:$0xff]
        %287 = vst [vmem:[%s69 + $0x360] sm:$0xff] %v286
        %v288 = vld [vmem:[%s68 + $0x368] sm:$0xff]
        %289 = vst [vmem:[%s69 + $0x368] sm:$0xff] %v288
        %v290 = vld [vmem:[%s68 + $0x370] sm:$0xff]
        %291 = vst [vmem:[%s69 + $0x370] sm:$0xff] %v290
        %v292 = vld [vmem:[%s68 + $0x378] sm:$0xff]
        %293 = vst [vmem:[%s69 + $0x378] sm:$0xff] %v292
        %v294 = vld [vmem:[%s68 + $0x380] sm:$0xff]
        %295 = vst [vmem:[%s69 + $0x380] sm:$0xff] %v294
        %v296 = vld [vmem:[%s68 + $0x388] sm:$0xff]
        %297 = vst [vmem:[%s69 + $0x388] sm:$0xff] %v296
        %v298 = vld [vmem:[%s68 + $0x390] sm:$0xff]
        %299 = vst [vmem:[%s69 + $0x390] sm:$0xff] %v298
        %v300 = vld [vmem:[%s68 + $0x398] sm:$0xff]
        %301 = vst [vmem:[%s69 + $0x398] sm:$0xff] %v300
        %v302 = vld [vmem:[%s68 + $0x3a0] sm:$0xff]
        %303 = vst [vmem:[%s69 + $0x3a0] sm:$0xff] %v302
        %v304 = vld [vmem:[%s68 + $0x3a8] sm:$0xff]
        %305 = vst [vmem:[%s69 + $0x3a8] sm:$0xff] %v304
        %v306 = vld [vmem:[%s68 + $0x3b0] sm:$0xff]
        %307 = vst [vmem:[%s69 + $0x3b0] sm:$0xff] %v306
        %v308 = vld [vmem:[%s68 + $0x3b8] sm:$0xff]
        %309 = vst [vmem:[%s69 + $0x3b8] sm:$0xff] %v308
        %v310 = vld [vmem:[%s68 + $0x3c0] sm:$0xff]
        %311 = vst [vmem:[%s69 + $0x3c0] sm:$0xff] %v310
        %v312 = vld [vmem:[%s68 + $0x3c8] sm:$0xff]
        %313 = vst [vmem:[%s69 + $0x3c8] sm:$0xff] %v312
        %v314 = vld [vmem:[%s68 + $0x3d0] sm:$0xff]
        %315 = vst [vmem:[%s69 + $0x3d0] sm:$0xff] %v314
        %v316 = vld [vmem:[%s68 + $0x3d8] sm:$0xff]
        %317 = vst [vmem:[%s69 + $0x3d8] sm:$0xff] %v316
        %v318 = vld [vmem:[%s68 + $0x3e0] sm:$0xff]
        %319 = vst [vmem:[%s69 + $0x3e0] sm:$0xff] %v318
        %v320 = vld [vmem:[%s68 + $0x3e8] sm:$0xff]
        %321 = vst [vmem:[%s69 + $0x3e8] sm:$0xff] %v320
        %v322 = vld [vmem:[%s68 + $0x3f0] sm:$0xff]
        %323 = vst [vmem:[%s69 + $0x3f0] sm:$0xff] %v322
        %v324 = vld [vmem:[%s68 + $0x3f8] sm:$0xff]
        %325 = vst [vmem:[%s69 + $0x3f8] sm:$0xff] %v324
      $region65: #{net_forward.1} parent=59 // loop_footer
        %s67 = sadd.s32 1, %s63
      $region66: #{net_forward.1} parent=59 // loop_footer_branch
        %62 = sbr.rel target = $region62
      $region67: #{net_forward.1} parent=59 // loop_exit
        _
    $region60: #{net_forward.1} parent=44 // pred_fallthru
      _
    %p326 = pneg %p58
    // Predicated region
    $region68: #{net_forward.1} parent=44 // pred_check
      _
    $region69: #{net_forward.1} parent=44 // pred_check_branch
      %328 = sbr.rel (%p58) target = $region71
    $region70: #{net_forward.1} parent=44 // pred_region
      %s329 = sand.u32 1024, 7
    $region71: #{net_forward.1} parent=44 // pred_fallthru
      _
  $region45: #{net_forward.1} parent=0 // pred_fallthru
    _
  // Predicated region
  $region46: #{net_forward.1} parent=0 // pred_check
    %p42 = pneg %p38
  $region47: #{net_forward.1} parent=0 // pred_check_branch
    %44 = sbr.rel (%p42) target = $region49
  $region48: #{net_forward.1} parent=0 // pred_region
    %s45 = sshll.u32 1, 1024
    %s46 = ssub.s32 %s45, 1
    loop: start=0, step=1, limit=1
    $region50: #{net_forward.1} parent=48 // loop_pre_header
      _
    $region51: #{net_forward.1} parent=48 // loop_header
      %s48 = sphi 0, %s52
      %p49 = scmp.ge.s32.totalorder %s48, 1
      %s53 = sphi %s5, %s5
      %s54 = sphi [#allocation7], [#allocation7]
    $region52: #{net_forward.1} parent=48 // loop_header_branch
      %51 = sbr.rel (%p49) target = $region56
    $region53: #{net_forward.1} parent=48 // loop_body
      %v55 = vld [vmem:[%s53] sm:%s46]
      %56 = vst [vmem:[%s54] sm:%s46] %v55
    $region54: #{net_forward.1} parent=48 // loop_footer
      %s52 = sadd.s32 1, %s48
    $region55: #{net_forward.1} parent=48 // loop_footer_branch
      %47 = sbr.rel target = $region51
    $region56: #{net_forward.1} parent=48 // loop_exit
      _
  $region49: #{net_forward.1} parent=0 // pred_fallthru
    _
  // Predicated region
  $region72: #{net_forward.1} parent=0 // pred_check
    _
  $region73: #{net_forward.1} parent=0 // pred_check_branch
    %332 = sbr.rel (0) target = $region75
  $region74: #{net_forward.1} parent=0 // pred_region
    %333 = vsyncadd [#allocation8], 16384
  $region75: #{net_forward.1} parent=0 // pred_fallthru
    _
  %v334 = vld [vmem:[%s0] sm:$0xf]
  %v335 = vld [vmem:[%s0 + $0x4] sm:$0xf]
  %v336 = vld [vmem:[%s0 + $0x8] sm:$0xf]
  %v337 = vld [vmem:[%s0 + $0xc] sm:$0xf]
  %v338 = vld [vmem:[%s0 + $0x10] sm:$0xf]
  %v339 = vld [vmem:[%s0 + $0x14] sm:$0xf]
  %v340 = vld [vmem:[%s0 + $0x18] sm:$0xf]
  %v341 = vld [vmem:[%s0 + $0x1c] sm:$0xf]
  %v342 = vld [vmem:[%s0 + $0x20] sm:$0xf]
  %v343 = vld [vmem:[%s0 + $0x24] sm:$0xf]
  %v344 = vld [vmem:[%s0 + $0x28] sm:$0xf]
  %v345 = vld [vmem:[%s0 + $0x2c] sm:$0xf]
  %v346 = vld [vmem:[%s0 + $0x30] sm:$0xf]
  %v347 = vld [vmem:[%s0 + $0x34] sm:$0xf]
  %v348 = vld [vmem:[%s0 + $0x38] sm:$0xf]
  %v349 = vld [vmem:[%s0 + $0x3c] sm:$0xf]
  %v350 = vld [vmem:[%s0 + $0x40] sm:$0xf]
  %v351 = vld [vmem:[%s0 + $0x44] sm:$0xf]
  %v352 = vld [vmem:[%s0 + $0x48] sm:$0xf]
  %v353 = vld [vmem:[%s0 + $0x4c] sm:$0xf]
  %v354 = vld [vmem:[%s0 + $0x50] sm:$0xf]
  %v355 = vld [vmem:[%s0 + $0x54] sm:$0xf]
  %v356 = vld [vmem:[%s0 + $0x58] sm:$0xf]
  %v357 = vld [vmem:[%s0 + $0x5c] sm:$0xf]
  %v358 = vld [vmem:[%s0 + $0x60] sm:$0xf]
  %v359 = vld [vmem:[%s0 + $0x64] sm:$0xf]
  %v360 = vld [vmem:[%s0 + $0x68] sm:$0xf]
  %v361 = vld [vmem:[%s0 + $0x6c] sm:$0xf]
  %v362 = vld [vmem:[%s0 + $0x70] sm:$0xf]
  %v363 = vld [vmem:[%s0 + $0x74] sm:$0xf]
  %v364 = vld [vmem:[%s0 + $0x78] sm:$0xf]
  %v365 = vld [vmem:[%s0 + $0x7c] sm:$0xf]
  %v366 = vld [vmem:[%s0 + $0x80] sm:$0xf]
  %v367 = vld [vmem:[%s0 + $0x84] sm:$0xf]
  %v368 = vld [vmem:[%s0 + $0x88] sm:$0xf]
  %v369 = vld [vmem:[%s0 + $0x8c] sm:$0xf]
  %v370 = vld [vmem:[%s0 + $0x90] sm:$0xf]
  %v371 = vld [vmem:[%s0 + $0x94] sm:$0xf]
  %v372 = vld [vmem:[%s0 + $0x98] sm:$0xf]
  %v373 = vld [vmem:[%s0 + $0x9c] sm:$0xf]
  %v374 = vld [vmem:[%s0 + $0xa0] sm:$0xf]
  %v375 = vld [vmem:[%s0 + $0xa4] sm:$0xf]
  %v376 = vld [vmem:[%s0 + $0xa8] sm:$0xf]
  %v377 = vld [vmem:[%s0 + $0xac] sm:$0xf]
  %v378 = vld [vmem:[%s0 + $0xb0] sm:$0xf]
  %v379 = vld [vmem:[%s0 + $0xb4] sm:$0xf]
  %v380 = vld [vmem:[%s0 + $0xb8] sm:$0xf]
  %v381 = vld [vmem:[%s0 + $0xbc] sm:$0xf]
  %v382 = vld [vmem:[%s0 + $0xc0] sm:$0xf]
  %v383 = vld [vmem:[%s0 + $0xc4] sm:$0xf]
  %v384 = vld [vmem:[%s0 + $0xc8] sm:$0xf]
  %v385 = vld [vmem:[%s0 + $0xcc] sm:$0xf]
  %v386 = vld [vmem:[%s0 + $0xd0] sm:$0xf]
  %v387 = vld [vmem:[%s0 + $0xd4] sm:$0xf]
  %v388 = vld [vmem:[%s0 + $0xd8] sm:$0xf]
  %v389 = vld [vmem:[%s0 + $0xdc] sm:$0xf]
  %v390 = vld [vmem:[%s0 + $0xe0] sm:$0xf]
  %v391 = vld [vmem:[%s0 + $0xe4] sm:$0xf]
  %v392 = vld [vmem:[%s0 + $0xe8] sm:$0xf]
  %v393 = vld [vmem:[%s0 + $0xec] sm:$0xf]
  %v394 = vld [vmem:[%s0 + $0xf0] sm:$0xf]
  %v395 = vld [vmem:[%s0 + $0xf4] sm:$0xf]
  %v396 = vld [vmem:[%s0 + $0xf8] sm:$0xf]
  %v397 = vld [vmem:[%s0 + $0xfc] sm:$0xf]
  %v398 = vld [vmem:[%s0 + $0x100] sm:$0xf]
  %v399 = vld [vmem:[%s0 + $0x104] sm:$0xf]
  %v400 = vld [vmem:[%s0 + $0x108] sm:$0xf]
  %v401 = vld [vmem:[%s0 + $0x10c] sm:$0xf]
  %v402 = vld [vmem:[%s0 + $0x110] sm:$0xf]
  %v403 = vld [vmem:[%s0 + $0x114] sm:$0xf]
  %v404 = vld [vmem:[%s0 + $0x118] sm:$0xf]
  %v405 = vld [vmem:[%s0 + $0x11c] sm:$0xf]
  %v406 = vld [vmem:[%s0 + $0x120] sm:$0xf]
  %v407 = vld [vmem:[%s0 + $0x124] sm:$0xf]
  %v408 = vld [vmem:[%s0 + $0x128] sm:$0xf]
  %v409 = vld [vmem:[%s0 + $0x12c] sm:$0xf]
  %v410 = vld [vmem:[%s0 + $0x130] sm:$0xf]
  %v411 = vld [vmem:[%s0 + $0x134] sm:$0xf]
  %v412 = vld [vmem:[%s0 + $0x138] sm:$0xf]
  %v413 = vld [vmem:[%s0 + $0x13c] sm:$0xf]
  %v414 = vld [vmem:[%s0 + $0x140] sm:$0xf]
  %v415 = vld [vmem:[%s0 + $0x144] sm:$0xf]
  %v416 = vld [vmem:[%s0 + $0x148] sm:$0xf]
  %v417 = vld [vmem:[%s0 + $0x14c] sm:$0xf]
  %v418 = vld [vmem:[%s0 + $0x150] sm:$0xf]
  %v419 = vld [vmem:[%s0 + $0x154] sm:$0xf]
  %v420 = vld [vmem:[%s0 + $0x158] sm:$0xf]
  %v421 = vld [vmem:[%s0 + $0x15c] sm:$0xf]
  %v422 = vld [vmem:[%s0 + $0x160] sm:$0xf]
  %v423 = vld [vmem:[%s0 + $0x164] sm:$0xf]
  %v424 = vld [vmem:[%s0 + $0x168] sm:$0xf]
  %v425 = vld [vmem:[%s0 + $0x16c] sm:$0xf]
  %v426 = vld [vmem:[%s0 + $0x170] sm:$0xf]
  %v427 = vld [vmem:[%s0 + $0x174] sm:$0xf]
  %v428 = vld [vmem:[%s0 + $0x178] sm:$0xf]
  %v429 = vld [vmem:[%s0 + $0x17c] sm:$0xf]
  %v430 = vld [vmem:[%s0 + $0x180] sm:$0xf]
  %v431 = vld [vmem:[%s0 + $0x184] sm:$0xf]
  %v432 = vld [vmem:[%s0 + $0x188] sm:$0xf]
  %v433 = vld [vmem:[%s0 + $0x18c] sm:$0xf]
  %v434 = vld [vmem:[%s0 + $0x190] sm:$0xf]
  %v435 = vld [vmem:[%s0 + $0x194] sm:$0xf]
  %v436 = vld [vmem:[%s0 + $0x198] sm:$0xf]
  %v437 = vld [vmem:[%s0 + $0x19c] sm:$0xf]
  %v438 = vld [vmem:[%s0 + $0x1a0] sm:$0xf]
  %v439 = vld [vmem:[%s0 + $0x1a4] sm:$0xf]
  %v440 = vld [vmem:[%s0 + $0x1a8] sm:$0xf]
  %v441 = vld [vmem:[%s0 + $0x1ac] sm:$0xf]
  %v442 = vld [vmem:[%s0 + $0x1b0] sm:$0xf]
  %v443 = vld [vmem:[%s0 + $0x1b4] sm:$0xf]
  %v444 = vld [vmem:[%s0 + $0x1b8] sm:$0xf]
  %v445 = vld [vmem:[%s0 + $0x1bc] sm:$0xf]
  %v446 = vld [vmem:[%s0 + $0x1c0] sm:$0xf]
  %v447 = vld [vmem:[%s0 + $0x1c4] sm:$0xf]
  %v448 = vld [vmem:[%s0 + $0x1c8] sm:$0xf]
  %v449 = vld [vmem:[%s0 + $0x1cc] sm:$0xf]
  %v450 = vld [vmem:[%s0 + $0x1d0] sm:$0xf]
  %v451 = vld [vmem:[%s0 + $0x1d4] sm:$0xf]
  %v452 = vld [vmem:[%s0 + $0x1d8] sm:$0xf]
  %v453 = vld [vmem:[%s0 + $0x1dc] sm:$0xf]
  %v454 = vld [vmem:[%s0 + $0x1e0] sm:$0xf]
  %v455 = vld [vmem:[%s0 + $0x1e4] sm:$0xf]
  %v456 = vld [vmem:[%s0 + $0x1e8] sm:$0xf]
  %v457 = vld [vmem:[%s0 + $0x1ec] sm:$0xf]
  %v458 = vld [vmem:[%s0 + $0x1f0] sm:$0xf]
  %v459 = vld [vmem:[%s0 + $0x1f4] sm:$0xf]
  %v460 = vld [vmem:[%s0 + $0x1f8] sm:$0xf]
  %v461 = vld [vmem:[%s0 + $0x1fc] sm:$0xf]
  %v462 = vld [vmem:[%s0 + $0x200] sm:$0xf]
  %v463 = vld [vmem:[%s0 + $0x204] sm:$0xf]
  %v464 = vld [vmem:[%s0 + $0x208] sm:$0xf]
  %v465 = vld [vmem:[%s0 + $0x20c] sm:$0xf]
  %v466 = vld [vmem:[%s0 + $0x210] sm:$0xf]
  %v467 = vld [vmem:[%s0 + $0x214] sm:$0xf]
  %v468 = vld [vmem:[%s0 + $0x218] sm:$0xf]
  %v469 = vld [vmem:[%s0 + $0x21c] sm:$0xf]
  %v470 = vld [vmem:[%s0 + $0x220] sm:$0xf]
  %v471 = vld [vmem:[%s0 + $0x224] sm:$0xf]
  %v472 = vld [vmem:[%s0 + $0x228] sm:$0xf]
  %v473 = vld [vmem:[%s0 + $0x22c] sm:$0xf]
  %v474 = vld [vmem:[%s0 + $0x230] sm:$0xf]
  %v475 = vld [vmem:[%s0 + $0x234] sm:$0xf]
  %v476 = vld [vmem:[%s0 + $0x238] sm:$0xf]
  %v477 = vld [vmem:[%s0 + $0x23c] sm:$0xf]
  %v478 = vld [vmem:[%s0 + $0x240] sm:$0xf]
  %v479 = vld [vmem:[%s0 + $0x244] sm:$0xf]
  %v480 = vld [vmem:[%s0 + $0x248] sm:$0xf]
  %v481 = vld [vmem:[%s0 + $0x24c] sm:$0xf]
  %v482 = vld [vmem:[%s0 + $0x250] sm:$0xf]
  %v483 = vld [vmem:[%s0 + $0x254] sm:$0xf]
  %v484 = vld [vmem:[%s0 + $0x258] sm:$0xf]
  %v485 = vld [vmem:[%s0 + $0x25c] sm:$0xf]
  %v486 = vld [vmem:[%s0 + $0x260] sm:$0xf]
  %v487 = vld [vmem:[%s0 + $0x264] sm:$0xf]
  %v488 = vld [vmem:[%s0 + $0x268] sm:$0xf]
  %v489 = vld [vmem:[%s0 + $0x26c] sm:$0xf]
  %v490 = vld [vmem:[%s0 + $0x270] sm:$0xf]
  %v491 = vld [vmem:[%s0 + $0x274] sm:$0xf]
  %v492 = vld [vmem:[%s0 + $0x278] sm:$0xf]
  %v493 = vld [vmem:[%s0 + $0x27c] sm:$0xf]
  %v494 = vld [vmem:[%s0 + $0x280] sm:$0xf]
  %v495 = vld [vmem:[%s0 + $0x284] sm:$0xf]
  %v496 = vld [vmem:[%s0 + $0x288] sm:$0xf]
  %v497 = vld [vmem:[%s0 + $0x28c] sm:$0xf]
  %v498 = vld [vmem:[%s0 + $0x290] sm:$0xf]
  %v499 = vld [vmem:[%s0 + $0x294] sm:$0xf]
  %v500 = vld [vmem:[%s0 + $0x298] sm:$0xf]
  %v501 = vld [vmem:[%s0 + $0x29c] sm:$0xf]
  %v502 = vld [vmem:[%s0 + $0x2a0] sm:$0xf]
  %v503 = vld [vmem:[%s0 + $0x2a4] sm:$0xf]
  %v504 = vld [vmem:[%s0 + $0x2a8] sm:$0xf]
  %v505 = vld [vmem:[%s0 + $0x2ac] sm:$0xf]
  %v506 = vld [vmem:[%s0 + $0x2b0] sm:$0xf]
  %v507 = vld [vmem:[%s0 + $0x2b4] sm:$0xf]
  %v508 = vld [vmem:[%s0 + $0x2b8] sm:$0xf]
  %v509 = vld [vmem:[%s0 + $0x2bc] sm:$0xf]
  %v510 = vld [vmem:[%s0 + $0x2c0] sm:$0xf]
  %v511 = vld [vmem:[%s0 + $0x2c4] sm:$0xf]
  %v512 = vld [vmem:[%s0 + $0x2c8] sm:$0xf]
  %v513 = vld [vmem:[%s0 + $0x2cc] sm:$0xf]
  %v514 = vld [vmem:[%s0 + $0x2d0] sm:$0xf]
  %v515 = vld [vmem:[%s0 + $0x2d4] sm:$0xf]
  %v516 = vld [vmem:[%s0 + $0x2d8] sm:$0xf]
  %v517 = vld [vmem:[%s0 + $0x2dc] sm:$0xf]
  %v518 = vld [vmem:[%s0 + $0x2e0] sm:$0xf]
  %v519 = vld [vmem:[%s0 + $0x2e4] sm:$0xf]
  %v520 = vld [vmem:[%s0 + $0x2e8] sm:$0xf]
  %v521 = vld [vmem:[%s0 + $0x2ec] sm:$0xf]
  %v522 = vld [vmem:[%s0 + $0x2f0] sm:$0xf]
  %v523 = vld [vmem:[%s0 + $0x2f4] sm:$0xf]
  %v524 = vld [vmem:[%s0 + $0x2f8] sm:$0xf]
  %v525 = vld [vmem:[%s0 + $0x2fc] sm:$0xf]
  %v526 = vld [vmem:[%s0 + $0x300] sm:$0xf]
  %v527 = vld [vmem:[%s0 + $0x304] sm:$0xf]
  %v528 = vld [vmem:[%s0 + $0x308] sm:$0xf]
  %v529 = vld [vmem:[%s0 + $0x30c] sm:$0xf]
  %v530 = vld [vmem:[%s1] sm:$0xf]
  %v531 = vld [vmem:[%s1 + $0x4] sm:$0xf]
  %v532 = vld [vmem:[%s1 + $0x8] sm:$0xf]
  %v533 = vld [vmem:[%s1 + $0xc] sm:$0xf]
  %v534 = vld [vmem:[%s1 + $0x10] sm:$0xf]
  %v535 = vld [vmem:[%s1 + $0x14] sm:$0xf]
  %v536 = vld [vmem:[%s1 + $0x18] sm:$0xf]
  %v537 = vld [vmem:[%s1 + $0x1c] sm:$0xf]
  %v538 = vld [vmem:[%s1 + $0x20] sm:$0xf]
  %v539 = vld [vmem:[%s1 + $0x24] sm:$0xf]
  %v540 = vld [vmem:[%s1 + $0x28] sm:$0xf]
  %v541 = vld [vmem:[%s1 + $0x2c] sm:$0xf]
  %v542 = vld [vmem:[%s1 + $0x30] sm:$0xf]
  %v543 = vld [vmem:[%s1 + $0x34] sm:$0xf]
  %v544 = vld [vmem:[%s1 + $0x38] sm:$0xf]
  %v545 = vld [vmem:[%s1 + $0x3c] sm:$0xf]
  %v742 = vunpack.c.l.b16 %v334
  %v743 = vunpack.c.l.b16 %v335
  %v744 = vunpack.c.l.b16 %v336
  %v745 = vunpack.c.l.b16 %v337
  %v746 = vunpack.c.l.b16 %v338
  %v747 = vunpack.c.l.b16 %v339
  %v748 = vunpack.c.l.b16 %v340
  %v749 = vunpack.c.l.b16 %v341
  %v750 = vunpack.c.l.b16 %v342
  %v751 = vunpack.c.l.b16 %v343
  %v752 = vunpack.c.l.b16 %v344
  %v753 = vunpack.c.l.b16 %v345
  %v754 = vunpack.c.l.b16 %v346
  %v755 = vunpack.c.l.b16 %v347
  %v756 = vunpack.c.l.b16 %v348
  %v757 = vunpack.c.l.b16 %v349
  %v758 = vunpack.c.l.b16 %v350
  %v759 = vunpack.c.l.b16 %v351
  %v760 = vunpack.c.l.b16 %v352
  %v761 = vunpack.c.l.b16 %v353
  %v762 = vunpack.c.l.b16 %v354
  %v763 = vunpack.c.l.b16 %v355
  %v764 = vunpack.c.l.b16 %v356
  %v765 = vunpack.c.l.b16 %v357
  %v766 = vunpack.c.l.b16 %v358
  %v767 = vunpack.c.l.b16 %v359
  %v768 = vunpack.c.l.b16 %v360
  %v769 = vunpack.c.l.b16 %v361
  %v770 = vunpack.c.l.b16 %v362
  %v771 = vunpack.c.l.b16 %v363
  %v772 = vunpack.c.l.b16 %v364
  %v773 = vunpack.c.l.b16 %v365
  %v774 = vunpack.c.l.b16 %v366
  %v775 = vunpack.c.l.b16 %v367
  %v776 = vunpack.c.l.b16 %v368
  %v777 = vunpack.c.l.b16 %v369
  %v778 = vunpack.c.l.b16 %v370
  %v779 = vunpack.c.l.b16 %v371
  %v780 = vunpack.c.l.b16 %v372
  %v781 = vunpack.c.l.b16 %v373
  %v782 = vunpack.c.l.b16 %v374
  %v783 = vunpack.c.l.b16 %v375
  %v784 = vunpack.c.l.b16 %v376
  %v785 = vunpack.c.l.b16 %v377
  %v786 = vunpack.c.l.b16 %v378
  %v787 = vunpack.c.l.b16 %v379
  %v788 = vunpack.c.l.b16 %v380
  %v789 = vunpack.c.l.b16 %v381
  %v790 = vunpack.c.l.b16 %v382
  %v791 = vunpack.c.l.b16 %v383
  %v792 = vunpack.c.l.b16 %v384
  %v793 = vunpack.c.l.b16 %v385
  %v794 = vunpack.c.l.b16 %v386
  %v795 = vunpack.c.l.b16 %v387
  %v796 = vunpack.c.l.b16 %v388
  %v797 = vunpack.c.l.b16 %v389
  %v798 = vunpack.c.l.b16 %v390
  %v799 = vunpack.c.l.b16 %v391
  %v800 = vunpack.c.l.b16 %v392
  %v801 = vunpack.c.l.b16 %v393
  %v802 = vunpack.c.l.b16 %v394
  %v803 = vunpack.c.l.b16 %v395
  %v804 = vunpack.c.l.b16 %v396
  %v805 = vunpack.c.l.b16 %v397
  %v806 = vunpack.c.l.b16 %v398
  %v807 = vunpack.c.l.b16 %v399
  %v808 = vunpack.c.l.b16 %v400
  %v809 = vunpack.c.l.b16 %v401
  %v810 = vunpack.c.l.b16 %v402
  %v811 = vunpack.c.l.b16 %v403
  %v812 = vunpack.c.l.b16 %v404
  %v813 = vunpack.c.l.b16 %v405
  %v814 = vunpack.c.l.b16 %v406
  %v815 = vunpack.c.l.b16 %v407
  %v816 = vunpack.c.l.b16 %v408
  %v817 = vunpack.c.l.b16 %v409
  %v818 = vunpack.c.l.b16 %v410
  %v819 = vunpack.c.l.b16 %v411
  %v820 = vunpack.c.l.b16 %v412
  %v821 = vunpack.c.l.b16 %v413
  %v822 = vunpack.c.l.b16 %v414
  %v823 = vunpack.c.l.b16 %v415
  %v824 = vunpack.c.l.b16 %v416
  %v825 = vunpack.c.l.b16 %v417
  %v826 = vunpack.c.l.b16 %v418
  %v827 = vunpack.c.l.b16 %v419
  %v828 = vunpack.c.l.b16 %v420
  %v829 = vunpack.c.l.b16 %v421
  %v830 = vunpack.c.l.b16 %v422
  %v831 = vunpack.c.l.b16 %v423
  %v832 = vunpack.c.l.b16 %v424
  %v833 = vunpack.c.l.b16 %v425
  %v834 = vunpack.c.l.b16 %v426
  %v835 = vunpack.c.l.b16 %v427
  %v836 = vunpack.c.l.b16 %v428
  %v837 = vunpack.c.l.b16 %v429
  %v838 = vunpack.c.l.b16 %v430
  %v839 = vunpack.c.l.b16 %v431
  %v840 = vunpack.c.l.b16 %v432
  %v841 = vunpack.c.l.b16 %v433
  %v842 = vunpack.c.l.b16 %v434
  %v843 = vunpack.c.l.b16 %v435
  %v844 = vunpack.c.l.b16 %v436
  %v845 = vunpack.c.l.b16 %v437
  %v846 = vunpack.c.l.b16 %v438
  %v847 = vunpack.c.l.b16 %v439
  %v848 = vunpack.c.l.b16 %v440
  %v849 = vunpack.c.l.b16 %v441
  %v850 = vunpack.c.l.b16 %v442
  %v851 = vunpack.c.l.b16 %v443
  %v852 = vunpack.c.l.b16 %v444
  %v853 = vunpack.c.l.b16 %v445
  %v854 = vunpack.c.l.b16 %v446
  %v855 = vunpack.c.l.b16 %v447
  %v856 = vunpack.c.l.b16 %v448
  %v857 = vunpack.c.l.b16 %v449
  %v858 = vunpack.c.l.b16 %v450
  %v859 = vunpack.c.l.b16 %v451
  %v860 = vunpack.c.l.b16 %v452
  %v861 = vunpack.c.l.b16 %v453
  %v862 = vunpack.c.l.b16 %v454
  %v863 = vunpack.c.l.b16 %v455
  %v864 = vunpack.c.l.b16 %v456
  %v865 = vunpack.c.l.b16 %v457
  %v866 = vunpack.c.l.b16 %v458
  %v867 = vunpack.c.l.b16 %v459
  %v868 = vunpack.c.l.b16 %v460
  %v869 = vunpack.c.l.b16 %v461
  %v870 = vunpack.c.l.b16 %v462
  %v871 = vunpack.c.l.b16 %v463
  %v872 = vunpack.c.l.b16 %v464
  %v873 = vunpack.c.l.b16 %v465
  %v874 = vunpack.c.l.b16 %v466
  %v875 = vunpack.c.l.b16 %v467
  %v876 = vunpack.c.l.b16 %v468
  %v877 = vunpack.c.l.b16 %v469
  %v878 = vunpack.c.l.b16 %v470
  %v879 = vunpack.c.l.b16 %v471
  %v880 = vunpack.c.l.b16 %v472
  %v881 = vunpack.c.l.b16 %v473
  %v882 = vunpack.c.l.b16 %v474
  %v883 = vunpack.c.l.b16 %v475
  %v884 = vunpack.c.l.b16 %v476
  %v885 = vunpack.c.l.b16 %v477
  %v886 = vunpack.c.l.b16 %v478
  %v887 = vunpack.c.l.b16 %v479
  %v888 = vunpack.c.l.b16 %v480
  %v889 = vunpack.c.l.b16 %v481
  %v890 = vunpack.c.l.b16 %v482
  %v891 = vunpack.c.l.b16 %v483
  %v892 = vunpack.c.l.b16 %v484
  %v893 = vunpack.c.l.b16 %v485
  %v894 = vunpack.c.l.b16 %v486
  %v895 = vunpack.c.l.b16 %v487
  %v896 = vunpack.c.l.b16 %v488
  %v897 = vunpack.c.l.b16 %v489
  %v898 = vunpack.c.l.b16 %v490
  %v899 = vunpack.c.l.b16 %v491
  %v900 = vunpack.c.l.b16 %v492
  %v901 = vunpack.c.l.b16 %v493
  %v902 = vunpack.c.l.b16 %v494
  %v903 = vunpack.c.l.b16 %v495
  %v904 = vunpack.c.l.b16 %v496
  %v905 = vunpack.c.l.b16 %v497
  %v906 = vunpack.c.l.b16 %v498
  %v907 = vunpack.c.l.b16 %v499
  %v908 = vunpack.c.l.b16 %v500
  %v909 = vunpack.c.l.b16 %v501
  %v910 = vunpack.c.l.b16 %v502
  %v911 = vunpack.c.l.b16 %v503
  %v912 = vunpack.c.l.b16 %v504
  %v913 = vunpack.c.l.b16 %v505
  %v914 = vunpack.c.l.b16 %v506
  %v915 = vunpack.c.l.b16 %v507
  %v916 = vunpack.c.l.b16 %v508
  %v917 = vunpack.c.l.b16 %v509
  %v918 = vunpack.c.l.b16 %v510
  %v919 = vunpack.c.l.b16 %v511
  %v920 = vunpack.c.l.b16 %v512
  %v921 = vunpack.c.l.b16 %v513
  %v922 = vunpack.c.l.b16 %v514
  %v923 = vunpack.c.l.b16 %v515
  %v924 = vunpack.c.l.b16 %v516
  %v925 = vunpack.c.l.b16 %v517
  %v926 = vunpack.c.l.b16 %v518
  %v927 = vunpack.c.l.b16 %v519
  %v928 = vunpack.c.l.b16 %v520
  %v929 = vunpack.c.l.b16 %v521
  %v930 = vunpack.c.l.b16 %v522
  %v931 = vunpack.c.l.b16 %v523
  %v932 = vunpack.c.l.b16 %v524
  %v933 = vunpack.c.l.b16 %v525
  %v934 = vunpack.c.l.b16 %v526
  %v935 = vunpack.c.l.b16 %v527
  %v936 = vunpack.c.l.b16 %v528
  %v937 = vunpack.c.l.b16 %v529
  %v938 = vpack.c.b16 %v743, %v742
  %v939 = vpack.c.b16 %v745, %v744
  %v940 = vpack.c.b16 %v747, %v746
  %v941 = vpack.c.b16 %v749, %v748
  %v942 = vpack.c.b16 %v751, %v750
  %v943 = vpack.c.b16 %v753, %v752
  %v944 = vpack.c.b16 %v755, %v754
  %v945 = vpack.c.b16 %v757, %v756
  %v946 = vpack.c.b16 %v759, %v758
  %v947 = vpack.c.b16 %v761, %v760
  %v948 = vpack.c.b16 %v763, %v762
  %v949 = vpack.c.b16 %v765, %v764
  %v950 = vpack.c.b16 %v767, %v766
  %v951 = vpack.c.b16 %v769, %v768
  %v952 = vpack.c.b16 %v771, %v770
  %v953 = vpack.c.b16 %v773, %v772
  %v954 = vpack.c.b16 %v775, %v774
  %v955 = vpack.c.b16 %v777, %v776
  %v956 = vpack.c.b16 %v779, %v778
  %v957 = vpack.c.b16 %v781, %v780
  %v958 = vpack.c.b16 %v783, %v782
  %v959 = vpack.c.b16 %v785, %v784
  %v960 = vpack.c.b16 %v787, %v786
  %v961 = vpack.c.b16 %v789, %v788
  %v962 = vpack.c.b16 %v791, %v790
  %v963 = vpack.c.b16 %v793, %v792
  %v964 = vpack.c.b16 %v795, %v794
  %v965 = vpack.c.b16 %v797, %v796
  %v966 = vpack.c.b16 %v799, %v798
  %v967 = vpack.c.b16 %v801, %v800
  %v968 = vpack.c.b16 %v803, %v802
  %v969 = vpack.c.b16 %v805, %v804
  %v970 = vpack.c.b16 %v807, %v806
  %v971 = vpack.c.b16 %v809, %v808
  %v972 = vpack.c.b16 %v811, %v810
  %v973 = vpack.c.b16 %v813, %v812
  %v974 = vpack.c.b16 %v815, %v814
  %v975 = vpack.c.b16 %v817, %v816
  %v976 = vpack.c.b16 %v819, %v818
  %v977 = vpack.c.b16 %v821, %v820
  %v978 = vpack.c.b16 %v823, %v822
  %v979 = vpack.c.b16 %v825, %v824
  %v980 = vpack.c.b16 %v827, %v826
  %v981 = vpack.c.b16 %v829, %v828
  %v982 = vpack.c.b16 %v831, %v830
  %v983 = vpack.c.b16 %v833, %v832
  %v984 = vpack.c.b16 %v835, %v834
  %v985 = vpack.c.b16 %v837, %v836
  %v986 = vpack.c.b16 %v839, %v838
  %v987 = vpack.c.b16 %v841, %v840
  %v988 = vpack.c.b16 %v843, %v842
  %v989 = vpack.c.b16 %v845, %v844
  %v990 = vpack.c.b16 %v847, %v846
  %v991 = vpack.c.b16 %v849, %v848
  %v992 = vpack.c.b16 %v851, %v850
  %v993 = vpack.c.b16 %v853, %v852
  %v994 = vpack.c.b16 %v855, %v854
  %v995 = vpack.c.b16 %v857, %v856
  %v996 = vpack.c.b16 %v859, %v858
  %v997 = vpack.c.b16 %v861, %v860
  %v998 = vpack.c.b16 %v863, %v862
  %v999 = vpack.c.b16 %v865, %v864
  %v1000 = vpack.c.b16 %v867, %v866
  %v1001 = vpack.c.b16 %v869, %v868
  %v1002 = vpack.c.b16 %v871, %v870
  %v1003 = vpack.c.b16 %v873, %v872
  %v1004 = vpack.c.b16 %v875, %v874
  %v1005 = vpack.c.b16 %v877, %v876
  %v1006 = vpack.c.b16 %v879, %v878
  %v1007 = vpack.c.b16 %v881, %v880
  %v1008 = vpack.c.b16 %v883, %v882
  %v1009 = vpack.c.b16 %v885, %v884
  %v1010 = vpack.c.b16 %v887, %v886
  %v1011 = vpack.c.b16 %v889, %v888
  %v1012 = vpack.c.b16 %v891, %v890
  %v1013 = vpack.c.b16 %v893, %v892
  %v1014 = vpack.c.b16 %v895, %v894
  %v1015 = vpack.c.b16 %v897, %v896
  %v1016 = vpack.c.b16 %v899, %v898
  %v1017 = vpack.c.b16 %v901, %v900
  %v1018 = vpack.c.b16 %v903, %v902
  %v1019 = vpack.c.b16 %v905, %v904
  %v1020 = vpack.c.b16 %v907, %v906
  %v1021 = vpack.c.b16 %v909, %v908
  %v1022 = vpack.c.b16 %v911, %v910
  %v1023 = vpack.c.b16 %v913, %v912
  %v1024 = vpack.c.b16 %v915, %v914
  %v1025 = vpack.c.b16 %v917, %v916
  %v1026 = vpack.c.b16 %v919, %v918
  %v1027 = vpack.c.b16 %v921, %v920
  %v1028 = vpack.c.b16 %v923, %v922
  %v1029 = vpack.c.b16 %v925, %v924
  %v1030 = vpack.c.b16 %v927, %v926
  %v1031 = vpack.c.b16 %v929, %v928
  %v1032 = vpack.c.b16 %v931, %v930
  %v1033 = vpack.c.b16 %v933, %v932
  %v1034 = vpack.c.b16 %v935, %v934
  %v1035 = vpack.c.b16 %v937, %v936
  %v1150 = vunpack.c.l.b16 %v530
  %v1151 = vunpack.c.l.b16 %v531
  %v1152 = vunpack.c.l.b16 %v532
  %v1153 = vunpack.c.l.b16 %v533
  %v1154 = vunpack.c.l.b16 %v534
  %v1155 = vunpack.c.l.b16 %v535
  %v1156 = vunpack.c.l.b16 %v536
  %v1157 = vunpack.c.l.b16 %v537
  %v1158 = vunpack.c.l.b16 %v538
  %v1159 = vunpack.c.l.b16 %v539
  %v1160 = vunpack.c.l.b16 %v540
  %v1161 = vunpack.c.l.b16 %v541
  %v1162 = vunpack.c.l.b16 %v542
  %v1163 = vunpack.c.l.b16 %v543
  %v1164 = vunpack.c.l.b16 %v544
  %v1165 = vunpack.c.l.b16 %v545
  %v1166 = vpack.c.b16 %v1151, %v1150
  %v1167 = vpack.c.b16 %v1153, %v1152
  %v1168 = vpack.c.b16 %v1155, %v1154
  %v1169 = vpack.c.b16 %v1157, %v1156
  %v1170 = vpack.c.b16 %v1159, %v1158
  %v1171 = vpack.c.b16 %v1161, %v1160
  %v1172 = vpack.c.b16 %v1163, %v1162
  %v1173 = vpack.c.b16 %v1165, %v1164
  %1182 = vmatprep.subr.bf16.mxu0 0
  %1183 = vmatpush1.bf16.msra.mxu0 %v1173
  %1184 = vmatprep.subr.bf16.mxu0 0
  %1185 = vmatpush1.bf16.msra.mxu0 %v1172
  %1186 = vmatprep.subr.bf16.mxu0 0
  %1187 = vmatpush1.bf16.msra.mxu0 %v1171
  %1188 = vmatprep.subr.bf16.mxu0 0
  %1189 = vmatpush1.bf16.msra.mxu0 %v1170
  %1190 = vmatprep.subr.bf16.mxu0 0
  %1191 = vmatpush1.bf16.msra.mxu0 %v1169
  %1192 = vmatprep.subr.bf16.mxu0 0
  %1193 = vmatpush1.bf16.msra.mxu0 %v1168
  %1194 = vmatprep.subr.bf16.mxu0 0
  %1195 = vmatpush1.bf16.msra.mxu0 %v1167
  %1196 = vmatprep.subr.bf16.mxu0 0
  %1197 = vmatpush1.bf16.msra.mxu0 %v1166
  %1198 = vmatprep.subr.bf16.mxu0 0
  %1199 = vmatpush2.bf16.msra.mxu0 0
  %1200 = vmatprep.subr.bf16.mxu0 0
  %1201 = vmatpush2.bf16.msra.mxu0 0
  %1202 = vmatprep.subr.bf16.mxu0 0
  %1203 = vmatpush2.bf16.msra.mxu0 0
  %1204 = vmatprep.subr.bf16.mxu0 0
  %1205 = vmatpush2.bf16.msra.mxu0 0
  %1206 = vmatprep.subr.bf16.mxu0 0
  %1207 = vmatpush2.bf16.msra.mxu0 0
  %1208 = vmatprep.subr.bf16.mxu0 0
  %1209 = vmatpush2.bf16.msra.mxu0 0
  %1210 = vmatprep.subr.bf16.mxu0 0
  %1211 = vmatpush2.bf16.msra.mxu0 0
  %1212 = vmatprep.subr.bf16.mxu0 0
  %1213 = vmatpush2.bf16.msra.mxu0 0
  %1214 = vmatprep.mubr.bf16.mxu0 0
  %1215 = vmatmul.mubr.bf16.gmra.mxu0 %v938
  %v1216 = vpop.f32.mrf.mxu0
  %v1217 = vadd.f32 0.0, %v1216
  %v1218 = vpop.f32.mrf.mxu0
  %v1219 = vpop.f32.mrf.mxu0
  %v1220 = vadd.f32 0.0, %v1219
  %v1221 = vpop.f32.mrf.mxu0
  %1222 = vmatprep.mubr.bf16.mxu0 0
  %1223 = vmatmul.mubr.bf16.gmra.mxu0 %v939
  %v1224 = vpop.f32.mrf.mxu0
  %v1225 = vadd.f32 0.0, %v1224
  %v1226 = vpop.f32.mrf.mxu0
  %v1227 = vpop.f32.mrf.mxu0
  %v1228 = vadd.f32 0.0, %v1227
  %v1229 = vpop.f32.mrf.mxu0
  %1230 = vmatprep.mubr.bf16.mxu0 0
  %1231 = vmatmul.mubr.bf16.gmra.mxu0 %v940
  %v1232 = vpop.f32.mrf.mxu0
  %v1233 = vadd.f32 0.0, %v1232
  %v1234 = vpop.f32.mrf.mxu0
  %v1235 = vpop.f32.mrf.mxu0
  %v1236 = vadd.f32 0.0, %v1235
  %v1237 = vpop.f32.mrf.mxu0
  %1238 = vmatprep.mubr.bf16.mxu0 0
  %1239 = vmatmul.mubr.bf16.gmra.mxu0 %v941
  %v1240 = vpop.f32.mrf.mxu0
  %v1241 = vadd.f32 0.0, %v1240
  %v1242 = vpop.f32.mrf.mxu0
  %v1243 = vpop.f32.mrf.mxu0
  %v1244 = vadd.f32 0.0, %v1243
  %v1245 = vpop.f32.mrf.mxu0
  %1246 = vmatprep.mubr.bf16.mxu0 0
  %1247 = vmatmul.mubr.bf16.gmra.mxu0 %v942
  %v1248 = vpop.f32.mrf.mxu0
  %v1249 = vadd.f32 0.0, %v1248
  %v1250 = vpop.f32.mrf.mxu0
  %v1251 = vpop.f32.mrf.mxu0
  %v1252 = vadd.f32 0.0, %v1251
  %v1253 = vpop.f32.mrf.mxu0
  %1254 = vmatprep.mubr.bf16.mxu0 0
  %1255 = vmatmul.mubr.bf16.gmra.mxu0 %v943
  %v1256 = vpop.f32.mrf.mxu0
  %v1257 = vadd.f32 0.0, %v1256
  %v1258 = vpop.f32.mrf.mxu0
  %v1259 = vpop.f32.mrf.mxu0
  %v1260 = vadd.f32 0.0, %v1259
  %v1261 = vpop.f32.mrf.mxu0
  %1262 = vmatprep.mubr.bf16.mxu0 0
  %1263 = vmatmul.mubr.bf16.gmra.mxu0 %v944
  %v1264 = vpop.f32.mrf.mxu0
  %v1265 = vadd.f32 0.0, %v1264
  %v1266 = vpop.f32.mrf.mxu0
  %v1267 = vpop.f32.mrf.mxu0
  %v1268 = vadd.f32 0.0, %v1267
  %v1269 = vpop.f32.mrf.mxu0
  %1270 = vmatprep.mubr.bf16.mxu0 0
  %1271 = vmatmul.mubr.bf16.gmra.mxu0 %v945
  %v1272 = vpop.f32.mrf.mxu0
  %v1273 = vadd.f32 0.0, %v1272
  %v1274 = vpop.f32.mrf.mxu0
  %v1275 = vpop.f32.mrf.mxu0
  %v1276 = vadd.f32 0.0, %v1275
  %v1277 = vpop.f32.mrf.mxu0
  %1278 = vmatprep.mubr.bf16.mxu0 0
  %1279 = vmatmul.mubr.bf16.gmra.mxu0 %v946
  %v1280 = vpop.f32.mrf.mxu0
  %v1281 = vadd.f32 0.0, %v1280
  %v1282 = vpop.f32.mrf.mxu0
  %v1283 = vpop.f32.mrf.mxu0
  %v1284 = vadd.f32 0.0, %v1283
  %v1285 = vpop.f32.mrf.mxu0
  %1286 = vmatprep.mubr.bf16.mxu0 0
  %1287 = vmatmul.mubr.bf16.gmra.mxu0 %v947
  %v1288 = vpop.f32.mrf.mxu0
  %v1289 = vadd.f32 0.0, %v1288
  %v1290 = vpop.f32.mrf.mxu0
  %v1291 = vpop.f32.mrf.mxu0
  %v1292 = vadd.f32 0.0, %v1291
  %v1293 = vpop.f32.mrf.mxu0
  %1294 = vmatprep.mubr.bf16.mxu0 0
  %1295 = vmatmul.mubr.bf16.gmra.mxu0 %v948
  %v1296 = vpop.f32.mrf.mxu0
  %v1297 = vadd.f32 0.0, %v1296
  %v1298 = vpop.f32.mrf.mxu0
  %v1299 = vpop.f32.mrf.mxu0
  %v1300 = vadd.f32 0.0, %v1299
  %v1301 = vpop.f32.mrf.mxu0
  %1302 = vmatprep.mubr.bf16.mxu0 0
  %1303 = vmatmul.mubr.bf16.gmra.mxu0 %v949
  %v1304 = vpop.f32.mrf.mxu0
  %v1305 = vadd.f32 0.0, %v1304
  %v1306 = vpop.f32.mrf.mxu0
  %v1307 = vpop.f32.mrf.mxu0
  %v1308 = vadd.f32 0.0, %v1307
  %v1309 = vpop.f32.mrf.mxu0
  %1310 = vmatprep.mubr.bf16.mxu0 0
  %1311 = vmatmul.mubr.bf16.gmra.mxu0 %v950
  %v1312 = vpop.f32.mrf.mxu0
  %v1313 = vadd.f32 0.0, %v1312
  %v1314 = vpop.f32.mrf.mxu0
  %v1315 = vpop.f32.mrf.mxu0
  %v1316 = vadd.f32 0.0, %v1315
  %v1317 = vpop.f32.mrf.mxu0
  %1318 = vmatprep.mubr.bf16.mxu0 0
  %1319 = vmatmul.mubr.bf16.gmra.mxu0 %v951
  %v1320 = vpop.f32.mrf.mxu0
  %v1321 = vadd.f32 0.0, %v1320
  %v1322 = vpop.f32.mrf.mxu0
  %v1323 = vpop.f32.mrf.mxu0
  %v1324 = vadd.f32 0.0, %v1323
  %v1325 = vpop.f32.mrf.mxu0
  %1326 = vmatprep.mubr.bf16.mxu0 0
  %1327 = vmatmul.mubr.bf16.gmra.mxu0 %v952
  %v1328 = vpop.f32.mrf.mxu0
  %v1329 = vadd.f32 0.0, %v1328
  %v1330 = vpop.f32.mrf.mxu0
  %v1331 = vpop.f32.mrf.mxu0
  %v1332 = vadd.f32 0.0, %v1331
  %v1333 = vpop.f32.mrf.mxu0
  %1334 = vmatprep.mubr.bf16.mxu0 0
  %1335 = vmatmul.mubr.bf16.gmra.mxu0 %v953
  %v1336 = vpop.f32.mrf.mxu0
  %v1337 = vadd.f32 0.0, %v1336
  %v1338 = vpop.f32.mrf.mxu0
  %v1339 = vpop.f32.mrf.mxu0
  %v1340 = vadd.f32 0.0, %v1339
  %v1341 = vpop.f32.mrf.mxu0
  %1342 = vmatprep.mubr.bf16.mxu0 0
  %1343 = vmatmul.mubr.bf16.gmra.mxu0 %v954
  %v1344 = vpop.f32.mrf.mxu0
  %v1345 = vadd.f32 0.0, %v1344
  %v1346 = vpop.f32.mrf.mxu0
  %v1347 = vpop.f32.mrf.mxu0
  %v1348 = vadd.f32 0.0, %v1347
  %v1349 = vpop.f32.mrf.mxu0
  %1350 = vmatprep.mubr.bf16.mxu0 0
  %1351 = vmatmul.mubr.bf16.gmra.mxu0 %v955
  %v1352 = vpop.f32.mrf.mxu0
  %v1353 = vadd.f32 0.0, %v1352
  %v1354 = vpop.f32.mrf.mxu0
  %v1355 = vpop.f32.mrf.mxu0
  %v1356 = vadd.f32 0.0, %v1355
  %v1357 = vpop.f32.mrf.mxu0
  %1358 = vmatprep.mubr.bf16.mxu0 0
  %1359 = vmatmul.mubr.bf16.gmra.mxu0 %v956
  %v1360 = vpop.f32.mrf.mxu0
  %v1361 = vadd.f32 0.0, %v1360
  %v1362 = vpop.f32.mrf.mxu0
  %v1363 = vpop.f32.mrf.mxu0
  %v1364 = vadd.f32 0.0, %v1363
  %v1365 = vpop.f32.mrf.mxu0
  %1366 = vmatprep.mubr.bf16.mxu0 0
  %1367 = vmatmul.mubr.bf16.gmra.mxu0 %v957
  %v1368 = vpop.f32.mrf.mxu0
  %v1369 = vadd.f32 0.0, %v1368
  %v1370 = vpop.f32.mrf.mxu0
  %v1371 = vpop.f32.mrf.mxu0
  %v1372 = vadd.f32 0.0, %v1371
  %v1373 = vpop.f32.mrf.mxu0
  %1374 = vmatprep.mubr.bf16.mxu0 0
  %1375 = vmatmul.mubr.bf16.gmra.mxu0 %v958
  %v1376 = vpop.f32.mrf.mxu0
  %v1377 = vadd.f32 0.0, %v1376
  %v1378 = vpop.f32.mrf.mxu0
  %v1379 = vpop.f32.mrf.mxu0
  %v1380 = vadd.f32 0.0, %v1379
  %v1381 = vpop.f32.mrf.mxu0
  %1382 = vmatprep.mubr.bf16.mxu0 0
  %1383 = vmatmul.mubr.bf16.gmra.mxu0 %v959
  %v1384 = vpop.f32.mrf.mxu0
  %v1385 = vadd.f32 0.0, %v1384
  %v1386 = vpop.f32.mrf.mxu0
  %v1387 = vpop.f32.mrf.mxu0
  %v1388 = vadd.f32 0.0, %v1387
  %v1389 = vpop.f32.mrf.mxu0
  %1390 = vmatprep.mubr.bf16.mxu0 0
  %1391 = vmatmul.mubr.bf16.gmra.mxu0 %v960
  %v1392 = vpop.f32.mrf.mxu0
  %v1393 = vadd.f32 0.0, %v1392
  %v1394 = vpop.f32.mrf.mxu0
  %v1395 = vpop.f32.mrf.mxu0
  %v1396 = vadd.f32 0.0, %v1395
  %v1397 = vpop.f32.mrf.mxu0
  %1398 = vmatprep.mubr.bf16.mxu0 0
  %1399 = vmatmul.mubr.bf16.gmra.mxu0 %v961
  %v1400 = vpop.f32.mrf.mxu0
  %v1401 = vadd.f32 0.0, %v1400
  %v1402 = vpop.f32.mrf.mxu0
  %v1403 = vpop.f32.mrf.mxu0
  %v1404 = vadd.f32 0.0, %v1403
  %v1405 = vpop.f32.mrf.mxu0
  %1406 = vmatprep.mubr.bf16.mxu0 0
  %1407 = vmatmul.mubr.bf16.gmra.mxu0 %v962
  %v1408 = vpop.f32.mrf.mxu0
  %v1409 = vadd.f32 0.0, %v1408
  %v1410 = vpop.f32.mrf.mxu0
  %v1411 = vpop.f32.mrf.mxu0
  %v1412 = vadd.f32 0.0, %v1411
  %v1413 = vpop.f32.mrf.mxu0
  %1414 = vmatprep.mubr.bf16.mxu0 0
  %1415 = vmatmul.mubr.bf16.gmra.mxu0 %v963
  %v1416 = vpop.f32.mrf.mxu0
  %v1417 = vadd.f32 0.0, %v1416
  %v1418 = vpop.f32.mrf.mxu0
  %v1419 = vpop.f32.mrf.mxu0
  %v1420 = vadd.f32 0.0, %v1419
  %v1421 = vpop.f32.mrf.mxu0
  %1422 = vmatprep.mubr.bf16.mxu0 0
  %1423 = vmatmul.mubr.bf16.gmra.mxu0 %v964
  %v1424 = vpop.f32.mrf.mxu0
  %v1425 = vadd.f32 0.0, %v1424
  %v1426 = vpop.f32.mrf.mxu0
  %v1427 = vpop.f32.mrf.mxu0
  %v1428 = vadd.f32 0.0, %v1427
  %v1429 = vpop.f32.mrf.mxu0
  %1430 = vmatprep.mubr.bf16.mxu0 0
  %1431 = vmatmul.mubr.bf16.gmra.mxu0 %v965
  %v1432 = vpop.f32.mrf.mxu0
  %v1433 = vadd.f32 0.0, %v1432
  %v1434 = vpop.f32.mrf.mxu0
  %v1435 = vpop.f32.mrf.mxu0
  %v1436 = vadd.f32 0.0, %v1435
  %v1437 = vpop.f32.mrf.mxu0
  %1438 = vmatprep.mubr.bf16.mxu0 0
  %1439 = vmatmul.mubr.bf16.gmra.mxu0 %v966
  %v1440 = vpop.f32.mrf.mxu0
  %v1441 = vadd.f32 0.0, %v1440
  %v1442 = vpop.f32.mrf.mxu0
  %v1443 = vpop.f32.mrf.mxu0
  %v1444 = vadd.f32 0.0, %v1443
  %v1445 = vpop.f32.mrf.mxu0
  %1446 = vmatprep.mubr.bf16.mxu0 0
  %1447 = vmatmul.mubr.bf16.gmra.mxu0 %v967
  %v1448 = vpop.f32.mrf.mxu0
  %v1449 = vadd.f32 0.0, %v1448
  %v1450 = vpop.f32.mrf.mxu0
  %v1451 = vpop.f32.mrf.mxu0
  %v1452 = vadd.f32 0.0, %v1451
  %v1453 = vpop.f32.mrf.mxu0
  %1454 = vmatprep.mubr.bf16.mxu0 0
  %1455 = vmatmul.mubr.bf16.gmra.mxu0 %v968
  %v1456 = vpop.f32.mrf.mxu0
  %v1457 = vadd.f32 0.0, %v1456
  %v1458 = vpop.f32.mrf.mxu0
  %v1459 = vpop.f32.mrf.mxu0
  %v1460 = vadd.f32 0.0, %v1459
  %v1461 = vpop.f32.mrf.mxu0
  %1462 = vmatprep.mubr.bf16.mxu0 0
  %1463 = vmatmul.mubr.bf16.gmra.mxu0 %v969
  %v1464 = vpop.f32.mrf.mxu0
  %v1465 = vadd.f32 0.0, %v1464
  %v1466 = vpop.f32.mrf.mxu0
  %v1467 = vpop.f32.mrf.mxu0
  %v1468 = vadd.f32 0.0, %v1467
  %v1469 = vpop.f32.mrf.mxu0
  %1470 = vmatprep.mubr.bf16.mxu0 0
  %1471 = vmatmul.mubr.bf16.gmra.mxu0 %v970
  %v1472 = vpop.f32.mrf.mxu0
  %v1473 = vadd.f32 0.0, %v1472
  %v1474 = vpop.f32.mrf.mxu0
  %v1475 = vpop.f32.mrf.mxu0
  %v1476 = vadd.f32 0.0, %v1475
  %v1477 = vpop.f32.mrf.mxu0
  %1478 = vmatprep.mubr.bf16.mxu0 0
  %1479 = vmatmul.mubr.bf16.gmra.mxu0 %v971
  %v1480 = vpop.f32.mrf.mxu0
  %v1481 = vadd.f32 0.0, %v1480
  %v1482 = vpop.f32.mrf.mxu0
  %v1483 = vpop.f32.mrf.mxu0
  %v1484 = vadd.f32 0.0, %v1483
  %v1485 = vpop.f32.mrf.mxu0
  %1486 = vmatprep.mubr.bf16.mxu0 0
  %1487 = vmatmul.mubr.bf16.gmra.mxu0 %v972
  %v1488 = vpop.f32.mrf.mxu0
  %v1489 = vadd.f32 0.0, %v1488
  %v1490 = vpop.f32.mrf.mxu0
  %v1491 = vpop.f32.mrf.mxu0
  %v1492 = vadd.f32 0.0, %v1491
  %v1493 = vpop.f32.mrf.mxu0
  %1494 = vmatprep.mubr.bf16.mxu0 0
  %1495 = vmatmul.mubr.bf16.gmra.mxu0 %v973
  %v1496 = vpop.f32.mrf.mxu0
  %v1497 = vadd.f32 0.0, %v1496
  %v1498 = vpop.f32.mrf.mxu0
  %v1499 = vpop.f32.mrf.mxu0
  %v1500 = vadd.f32 0.0, %v1499
  %v1501 = vpop.f32.mrf.mxu0
  %1502 = vmatprep.mubr.bf16.mxu0 0
  %1503 = vmatmul.mubr.bf16.gmra.mxu0 %v974
  %v1504 = vpop.f32.mrf.mxu0
  %v1505 = vadd.f32 0.0, %v1504
  %v1506 = vpop.f32.mrf.mxu0
  %v1507 = vpop.f32.mrf.mxu0
  %v1508 = vadd.f32 0.0, %v1507
  %v1509 = vpop.f32.mrf.mxu0
  %1510 = vmatprep.mubr.bf16.mxu0 0
  %1511 = vmatmul.mubr.bf16.gmra.mxu0 %v975
  %v1512 = vpop.f32.mrf.mxu0
  %v1513 = vadd.f32 0.0, %v1512
  %v1514 = vpop.f32.mrf.mxu0
  %v1515 = vpop.f32.mrf.mxu0
  %v1516 = vadd.f32 0.0, %v1515
  %v1517 = vpop.f32.mrf.mxu0
  %1518 = vmatprep.mubr.bf16.mxu0 0
  %1519 = vmatmul.mubr.bf16.gmra.mxu0 %v976
  %v1520 = vpop.f32.mrf.mxu0
  %v1521 = vadd.f32 0.0, %v1520
  %v1522 = vpop.f32.mrf.mxu0
  %v1523 = vpop.f32.mrf.mxu0
  %v1524 = vadd.f32 0.0, %v1523
  %v1525 = vpop.f32.mrf.mxu0
  %1526 = vmatprep.mubr.bf16.mxu0 0
  %1527 = vmatmul.mubr.bf16.gmra.mxu0 %v977
  %v1528 = vpop.f32.mrf.mxu0
  %v1529 = vadd.f32 0.0, %v1528
  %v1530 = vpop.f32.mrf.mxu0
  %v1531 = vpop.f32.mrf.mxu0
  %v1532 = vadd.f32 0.0, %v1531
  %v1533 = vpop.f32.mrf.mxu0
  %1534 = vmatprep.mubr.bf16.mxu0 0
  %1535 = vmatmul.mubr.bf16.gmra.mxu0 %v978
  %v1536 = vpop.f32.mrf.mxu0
  %v1537 = vadd.f32 0.0, %v1536
  %v1538 = vpop.f32.mrf.mxu0
  %v1539 = vpop.f32.mrf.mxu0
  %v1540 = vadd.f32 0.0, %v1539
  %v1541 = vpop.f32.mrf.mxu0
  %1542 = vmatprep.mubr.bf16.mxu0 0
  %1543 = vmatmul.mubr.bf16.gmra.mxu0 %v979
  %v1544 = vpop.f32.mrf.mxu0
  %v1545 = vadd.f32 0.0, %v1544
  %v1546 = vpop.f32.mrf.mxu0
  %v1547 = vpop.f32.mrf.mxu0
  %v1548 = vadd.f32 0.0, %v1547
  %v1549 = vpop.f32.mrf.mxu0
  %1550 = vmatprep.mubr.bf16.mxu0 0
  %1551 = vmatmul.mubr.bf16.gmra.mxu0 %v980
  %v1552 = vpop.f32.mrf.mxu0
  %v1553 = vadd.f32 0.0, %v1552
  %v1554 = vpop.f32.mrf.mxu0
  %v1555 = vpop.f32.mrf.mxu0
  %v1556 = vadd.f32 0.0, %v1555
  %v1557 = vpop.f32.mrf.mxu0
  %1558 = vmatprep.mubr.bf16.mxu0 0
  %1559 = vmatmul.mubr.bf16.gmra.mxu0 %v981
  %v1560 = vpop.f32.mrf.mxu0
  %v1561 = vadd.f32 0.0, %v1560
  %v1562 = vpop.f32.mrf.mxu0
  %v1563 = vpop.f32.mrf.mxu0
  %v1564 = vadd.f32 0.0, %v1563
  %v1565 = vpop.f32.mrf.mxu0
  %1566 = vmatprep.mubr.bf16.mxu0 0
  %1567 = vmatmul.mubr.bf16.gmra.mxu0 %v982
  %v1568 = vpop.f32.mrf.mxu0
  %v1569 = vadd.f32 0.0, %v1568
  %v1570 = vpop.f32.mrf.mxu0
  %v1571 = vpop.f32.mrf.mxu0
  %v1572 = vadd.f32 0.0, %v1571
  %v1573 = vpop.f32.mrf.mxu0
  %1574 = vmatprep.mubr.bf16.mxu0 0
  %1575 = vmatmul.mubr.bf16.gmra.mxu0 %v983
  %v1576 = vpop.f32.mrf.mxu0
  %v1577 = vadd.f32 0.0, %v1576
  %v1578 = vpop.f32.mrf.mxu0
  %v1579 = vpop.f32.mrf.mxu0
  %v1580 = vadd.f32 0.0, %v1579
  %v1581 = vpop.f32.mrf.mxu0
  %1582 = vmatprep.mubr.bf16.mxu0 0
  %1583 = vmatmul.mubr.bf16.gmra.mxu0 %v984
  %v1584 = vpop.f32.mrf.mxu0
  %v1585 = vadd.f32 0.0, %v1584
  %v1586 = vpop.f32.mrf.mxu0
  %v1587 = vpop.f32.mrf.mxu0
  %v1588 = vadd.f32 0.0, %v1587
  %v1589 = vpop.f32.mrf.mxu0
  %1590 = vmatprep.mubr.bf16.mxu0 0
  %1591 = vmatmul.mubr.bf16.gmra.mxu0 %v985
  %v1592 = vpop.f32.mrf.mxu0
  %v1593 = vadd.f32 0.0, %v1592
  %v1594 = vpop.f32.mrf.mxu0
  %v1595 = vpop.f32.mrf.mxu0
  %v1596 = vadd.f32 0.0, %v1595
  %v1597 = vpop.f32.mrf.mxu0
  %1598 = vmatprep.mubr.bf16.mxu0 0
  %1599 = vmatmul.mubr.bf16.gmra.mxu0 %v986
  %v1600 = vpop.f32.mrf.mxu0
  %v1601 = vadd.f32 0.0, %v1600
  %v1602 = vpop.f32.mrf.mxu0
  %v1603 = vpop.f32.mrf.mxu0
  %v1604 = vadd.f32 0.0, %v1603
  %v1605 = vpop.f32.mrf.mxu0
  %1606 = vmatprep.mubr.bf16.mxu0 0
  %1607 = vmatmul.mubr.bf16.gmra.mxu0 %v987
  %v1608 = vpop.f32.mrf.mxu0
  %v1609 = vadd.f32 0.0, %v1608
  %v1610 = vpop.f32.mrf.mxu0
  %v1611 = vpop.f32.mrf.mxu0
  %v1612 = vadd.f32 0.0, %v1611
  %v1613 = vpop.f32.mrf.mxu0
  %1614 = vmatprep.mubr.bf16.mxu0 0
  %1615 = vmatmul.mubr.bf16.gmra.mxu0 %v988
  %v1616 = vpop.f32.mrf.mxu0
  %v1617 = vadd.f32 0.0, %v1616
  %v1618 = vpop.f32.mrf.mxu0
  %v1619 = vpop.f32.mrf.mxu0
  %v1620 = vadd.f32 0.0, %v1619
  %v1621 = vpop.f32.mrf.mxu0
  %1622 = vmatprep.mubr.bf16.mxu0 0
  %1623 = vmatmul.mubr.bf16.gmra.mxu0 %v989
  %v1624 = vpop.f32.mrf.mxu0
  %v1625 = vadd.f32 0.0, %v1624
  %v1626 = vpop.f32.mrf.mxu0
  %v1627 = vpop.f32.mrf.mxu0
  %v1628 = vadd.f32 0.0, %v1627
  %v1629 = vpop.f32.mrf.mxu0
  %1630 = vmatprep.mubr.bf16.mxu0 0
  %1631 = vmatmul.mubr.bf16.gmra.mxu0 %v990
  %v1632 = vpop.f32.mrf.mxu0
  %v1633 = vadd.f32 0.0, %v1632
  %v1634 = vpop.f32.mrf.mxu0
  %v1635 = vpop.f32.mrf.mxu0
  %v1636 = vadd.f32 0.0, %v1635
  %v1637 = vpop.f32.mrf.mxu0
  %1638 = vmatprep.mubr.bf16.mxu0 0
  %1639 = vmatmul.mubr.bf16.gmra.mxu0 %v991
  %v1640 = vpop.f32.mrf.mxu0
  %v1641 = vadd.f32 0.0, %v1640
  %v1642 = vpop.f32.mrf.mxu0
  %v1643 = vpop.f32.mrf.mxu0
  %v1644 = vadd.f32 0.0, %v1643
  %v1645 = vpop.f32.mrf.mxu0
  %1646 = vmatprep.mubr.bf16.mxu0 0
  %1647 = vmatmul.mubr.bf16.gmra.mxu0 %v992
  %v1648 = vpop.f32.mrf.mxu0
  %v1649 = vadd.f32 0.0, %v1648
  %v1650 = vpop.f32.mrf.mxu0
  %v1651 = vpop.f32.mrf.mxu0
  %v1652 = vadd.f32 0.0, %v1651
  %v1653 = vpop.f32.mrf.mxu0
  %1654 = vmatprep.mubr.bf16.mxu0 0
  %1655 = vmatmul.mubr.bf16.gmra.mxu0 %v993
  %v1656 = vpop.f32.mrf.mxu0
  %v1657 = vadd.f32 0.0, %v1656
  %v1658 = vpop.f32.mrf.mxu0
  %v1659 = vpop.f32.mrf.mxu0
  %v1660 = vadd.f32 0.0, %v1659
  %v1661 = vpop.f32.mrf.mxu0
  %1662 = vmatprep.mubr.bf16.mxu0 0
  %1663 = vmatmul.mubr.bf16.gmra.mxu0 %v994
  %v1664 = vpop.f32.mrf.mxu0
  %v1665 = vadd.f32 0.0, %v1664
  %v1666 = vpop.f32.mrf.mxu0
  %v1667 = vpop.f32.mrf.mxu0
  %v1668 = vadd.f32 0.0, %v1667
  %v1669 = vpop.f32.mrf.mxu0
  %1670 = vmatprep.mubr.bf16.mxu0 0
  %1671 = vmatmul.mubr.bf16.gmra.mxu0 %v995
  %v1672 = vpop.f32.mrf.mxu0
  %v1673 = vadd.f32 0.0, %v1672
  %v1674 = vpop.f32.mrf.mxu0
  %v1675 = vpop.f32.mrf.mxu0
  %v1676 = vadd.f32 0.0, %v1675
  %v1677 = vpop.f32.mrf.mxu0
  %1678 = vmatprep.mubr.bf16.mxu0 0
  %1679 = vmatmul.mubr.bf16.gmra.mxu0 %v996
  %v1680 = vpop.f32.mrf.mxu0
  %v1681 = vadd.f32 0.0, %v1680
  %v1682 = vpop.f32.mrf.mxu0
  %v1683 = vpop.f32.mrf.mxu0
  %v1684 = vadd.f32 0.0, %v1683
  %v1685 = vpop.f32.mrf.mxu0
  %1686 = vmatprep.mubr.bf16.mxu0 0
  %1687 = vmatmul.mubr.bf16.gmra.mxu0 %v997
  %v1688 = vpop.f32.mrf.mxu0
  %v1689 = vadd.f32 0.0, %v1688
  %v1690 = vpop.f32.mrf.mxu0
  %v1691 = vpop.f32.mrf.mxu0
  %v1692 = vadd.f32 0.0, %v1691
  %v1693 = vpop.f32.mrf.mxu0
  %1694 = vmatprep.mubr.bf16.mxu0 0
  %1695 = vmatmul.mubr.bf16.gmra.mxu0 %v998
  %v1696 = vpop.f32.mrf.mxu0
  %v1697 = vadd.f32 0.0, %v1696
  %v1698 = vpop.f32.mrf.mxu0
  %v1699 = vpop.f32.mrf.mxu0
  %v1700 = vadd.f32 0.0, %v1699
  %v1701 = vpop.f32.mrf.mxu0
  %1702 = vmatprep.mubr.bf16.mxu0 0
  %1703 = vmatmul.mubr.bf16.gmra.mxu0 %v999
  %v1704 = vpop.f32.mrf.mxu0
  %v1705 = vadd.f32 0.0, %v1704
  %v1706 = vpop.f32.mrf.mxu0
  %v1707 = vpop.f32.mrf.mxu0
  %v1708 = vadd.f32 0.0, %v1707
  %v1709 = vpop.f32.mrf.mxu0
  %1710 = vmatprep.mubr.bf16.mxu0 0
  %1711 = vmatmul.mubr.bf16.gmra.mxu0 %v1000
  %v1712 = vpop.f32.mrf.mxu0
  %v1713 = vadd.f32 0.0, %v1712
  %v1714 = vpop.f32.mrf.mxu0
  %v1715 = vpop.f32.mrf.mxu0
  %v1716 = vadd.f32 0.0, %v1715
  %v1717 = vpop.f32.mrf.mxu0
  %1718 = vmatprep.mubr.bf16.mxu0 0
  %1719 = vmatmul.mubr.bf16.gmra.mxu0 %v1001
  %v1720 = vpop.f32.mrf.mxu0
  %v1721 = vadd.f32 0.0, %v1720
  %v1722 = vpop.f32.mrf.mxu0
  %v1723 = vpop.f32.mrf.mxu0
  %v1724 = vadd.f32 0.0, %v1723
  %v1725 = vpop.f32.mrf.mxu0
  %1726 = vmatprep.mubr.bf16.mxu0 0
  %1727 = vmatmul.mubr.bf16.gmra.mxu0 %v1002
  %v1728 = vpop.f32.mrf.mxu0
  %v1729 = vadd.f32 0.0, %v1728
  %v1730 = vpop.f32.mrf.mxu0
  %v1731 = vpop.f32.mrf.mxu0
  %v1732 = vadd.f32 0.0, %v1731
  %v1733 = vpop.f32.mrf.mxu0
  %1734 = vmatprep.mubr.bf16.mxu0 0
  %1735 = vmatmul.mubr.bf16.gmra.mxu0 %v1003
  %v1736 = vpop.f32.mrf.mxu0
  %v1737 = vadd.f32 0.0, %v1736
  %v1738 = vpop.f32.mrf.mxu0
  %v1739 = vpop.f32.mrf.mxu0
  %v1740 = vadd.f32 0.0, %v1739
  %v1741 = vpop.f32.mrf.mxu0
  %1742 = vmatprep.mubr.bf16.mxu0 0
  %1743 = vmatmul.mubr.bf16.gmra.mxu0 %v1004
  %v1744 = vpop.f32.mrf.mxu0
  %v1745 = vadd.f32 0.0, %v1744
  %v1746 = vpop.f32.mrf.mxu0
  %v1747 = vpop.f32.mrf.mxu0
  %v1748 = vadd.f32 0.0, %v1747
  %v1749 = vpop.f32.mrf.mxu0
  %1750 = vmatprep.mubr.bf16.mxu0 0
  %1751 = vmatmul.mubr.bf16.gmra.mxu0 %v1005
  %v1752 = vpop.f32.mrf.mxu0
  %v1753 = vadd.f32 0.0, %v1752
  %v1754 = vpop.f32.mrf.mxu0
  %v1755 = vpop.f32.mrf.mxu0
  %v1756 = vadd.f32 0.0, %v1755
  %v1757 = vpop.f32.mrf.mxu0
  %1758 = vmatprep.mubr.bf16.mxu0 0
  %1759 = vmatmul.mubr.bf16.gmra.mxu0 %v1006
  %v1760 = vpop.f32.mrf.mxu0
  %v1761 = vadd.f32 0.0, %v1760
  %v1762 = vpop.f32.mrf.mxu0
  %v1763 = vpop.f32.mrf.mxu0
  %v1764 = vadd.f32 0.0, %v1763
  %v1765 = vpop.f32.mrf.mxu0
  %1766 = vmatprep.mubr.bf16.mxu0 0
  %1767 = vmatmul.mubr.bf16.gmra.mxu0 %v1007
  %v1768 = vpop.f32.mrf.mxu0
  %v1769 = vadd.f32 0.0, %v1768
  %v1770 = vpop.f32.mrf.mxu0
  %v1771 = vpop.f32.mrf.mxu0
  %v1772 = vadd.f32 0.0, %v1771
  %v1773 = vpop.f32.mrf.mxu0
  %1774 = vmatprep.mubr.bf16.mxu0 0
  %1775 = vmatmul.mubr.bf16.gmra.mxu0 %v1008
  %v1776 = vpop.f32.mrf.mxu0
  %v1777 = vadd.f32 0.0, %v1776
  %v1778 = vpop.f32.mrf.mxu0
  %v1779 = vpop.f32.mrf.mxu0
  %v1780 = vadd.f32 0.0, %v1779
  %v1781 = vpop.f32.mrf.mxu0
  %1782 = vmatprep.mubr.bf16.mxu0 0
  %1783 = vmatmul.mubr.bf16.gmra.mxu0 %v1009
  %v1784 = vpop.f32.mrf.mxu0
  %v1785 = vadd.f32 0.0, %v1784
  %v1786 = vpop.f32.mrf.mxu0
  %v1787 = vpop.f32.mrf.mxu0
  %v1788 = vadd.f32 0.0, %v1787
  %v1789 = vpop.f32.mrf.mxu0
  %1790 = vmatprep.mubr.bf16.mxu0 0
  %1791 = vmatmul.mubr.bf16.gmra.mxu0 %v1010
  %v1792 = vpop.f32.mrf.mxu0
  %v1793 = vadd.f32 0.0, %v1792
  %v1794 = vpop.f32.mrf.mxu0
  %v1795 = vpop.f32.mrf.mxu0
  %v1796 = vadd.f32 0.0, %v1795
  %v1797 = vpop.f32.mrf.mxu0
  %1798 = vmatprep.mubr.bf16.mxu0 0
  %1799 = vmatmul.mubr.bf16.gmra.mxu0 %v1011
  %v1800 = vpop.f32.mrf.mxu0
  %v1801 = vadd.f32 0.0, %v1800
  %v1802 = vpop.f32.mrf.mxu0
  %v1803 = vpop.f32.mrf.mxu0
  %v1804 = vadd.f32 0.0, %v1803
  %v1805 = vpop.f32.mrf.mxu0
  %1806 = vmatprep.mubr.bf16.mxu0 0
  %1807 = vmatmul.mubr.bf16.gmra.mxu0 %v1012
  %v1808 = vpop.f32.mrf.mxu0
  %v1809 = vadd.f32 0.0, %v1808
  %v1810 = vpop.f32.mrf.mxu0
  %v1811 = vpop.f32.mrf.mxu0
  %v1812 = vadd.f32 0.0, %v1811
  %v1813 = vpop.f32.mrf.mxu0
  %1814 = vmatprep.mubr.bf16.mxu0 0
  %1815 = vmatmul.mubr.bf16.gmra.mxu0 %v1013
  %v1816 = vpop.f32.mrf.mxu0
  %v1817 = vadd.f32 0.0, %v1816
  %v1818 = vpop.f32.mrf.mxu0
  %v1819 = vpop.f32.mrf.mxu0
  %v1820 = vadd.f32 0.0, %v1819
  %v1821 = vpop.f32.mrf.mxu0
  %1822 = vmatprep.mubr.bf16.mxu0 0
  %1823 = vmatmul.mubr.bf16.gmra.mxu0 %v1014
  %v1824 = vpop.f32.mrf.mxu0
  %v1825 = vadd.f32 0.0, %v1824
  %v1826 = vpop.f32.mrf.mxu0
  %v1827 = vpop.f32.mrf.mxu0
  %v1828 = vadd.f32 0.0, %v1827
  %v1829 = vpop.f32.mrf.mxu0
  %1830 = vmatprep.mubr.bf16.mxu0 0
  %1831 = vmatmul.mubr.bf16.gmra.mxu0 %v1015
  %v1832 = vpop.f32.mrf.mxu0
  %v1833 = vadd.f32 0.0, %v1832
  %v1834 = vpop.f32.mrf.mxu0
  %v1835 = vpop.f32.mrf.mxu0
  %v1836 = vadd.f32 0.0, %v1835
  %v1837 = vpop.f32.mrf.mxu0
  %1838 = vmatprep.mubr.bf16.mxu0 0
  %1839 = vmatmul.mubr.bf16.gmra.mxu0 %v1016
  %v1840 = vpop.f32.mrf.mxu0
  %v1841 = vadd.f32 0.0, %v1840
  %v1842 = vpop.f32.mrf.mxu0
  %v1843 = vpop.f32.mrf.mxu0
  %v1844 = vadd.f32 0.0, %v1843
  %v1845 = vpop.f32.mrf.mxu0
  %1846 = vmatprep.mubr.bf16.mxu0 0
  %1847 = vmatmul.mubr.bf16.gmra.mxu0 %v1017
  %v1848 = vpop.f32.mrf.mxu0
  %v1849 = vadd.f32 0.0, %v1848
  %v1850 = vpop.f32.mrf.mxu0
  %v1851 = vpop.f32.mrf.mxu0
  %v1852 = vadd.f32 0.0, %v1851
  %v1853 = vpop.f32.mrf.mxu0
  %1854 = vmatprep.mubr.bf16.mxu0 0
  %1855 = vmatmul.mubr.bf16.gmra.mxu0 %v1018
  %v1856 = vpop.f32.mrf.mxu0
  %v1857 = vadd.f32 0.0, %v1856
  %v1858 = vpop.f32.mrf.mxu0
  %v1859 = vpop.f32.mrf.mxu0
  %v1860 = vadd.f32 0.0, %v1859
  %v1861 = vpop.f32.mrf.mxu0
  %1862 = vmatprep.mubr.bf16.mxu0 0
  %1863 = vmatmul.mubr.bf16.gmra.mxu0 %v1019
  %v1864 = vpop.f32.mrf.mxu0
  %v1865 = vadd.f32 0.0, %v1864
  %v1866 = vpop.f32.mrf.mxu0
  %v1867 = vpop.f32.mrf.mxu0
  %v1868 = vadd.f32 0.0, %v1867
  %v1869 = vpop.f32.mrf.mxu0
  %1870 = vmatprep.mubr.bf16.mxu0 0
  %1871 = vmatmul.mubr.bf16.gmra.mxu0 %v1020
  %v1872 = vpop.f32.mrf.mxu0
  %v1873 = vadd.f32 0.0, %v1872
  %v1874 = vpop.f32.mrf.mxu0
  %v1875 = vpop.f32.mrf.mxu0
  %v1876 = vadd.f32 0.0, %v1875
  %v1877 = vpop.f32.mrf.mxu0
  %1878 = vmatprep.mubr.bf16.mxu0 0
  %1879 = vmatmul.mubr.bf16.gmra.mxu0 %v1021
  %v1880 = vpop.f32.mrf.mxu0
  %v1881 = vadd.f32 0.0, %v1880
  %v1882 = vpop.f32.mrf.mxu0
  %v1883 = vpop.f32.mrf.mxu0
  %v1884 = vadd.f32 0.0, %v1883
  %v1885 = vpop.f32.mrf.mxu0
  %1886 = vmatprep.mubr.bf16.mxu0 0
  %1887 = vmatmul.mubr.bf16.gmra.mxu0 %v1022
  %v1888 = vpop.f32.mrf.mxu0
  %v1889 = vadd.f32 0.0, %v1888
  %v1890 = vpop.f32.mrf.mxu0
  %v1891 = vpop.f32.mrf.mxu0
  %v1892 = vadd.f32 0.0, %v1891
  %v1893 = vpop.f32.mrf.mxu0
  %1894 = vmatprep.mubr.bf16.mxu0 0
  %1895 = vmatmul.mubr.bf16.gmra.mxu0 %v1023
  %v1896 = vpop.f32.mrf.mxu0
  %v1897 = vadd.f32 0.0, %v1896
  %v1898 = vpop.f32.mrf.mxu0
  %v1899 = vpop.f32.mrf.mxu0
  %v1900 = vadd.f32 0.0, %v1899
  %v1901 = vpop.f32.mrf.mxu0
  %1902 = vmatprep.mubr.bf16.mxu0 0
  %1903 = vmatmul.mubr.bf16.gmra.mxu0 %v1024
  %v1904 = vpop.f32.mrf.mxu0
  %v1905 = vadd.f32 0.0, %v1904
  %v1906 = vpop.f32.mrf.mxu0
  %v1907 = vpop.f32.mrf.mxu0
  %v1908 = vadd.f32 0.0, %v1907
  %v1909 = vpop.f32.mrf.mxu0
  %1910 = vmatprep.mubr.bf16.mxu0 0
  %1911 = vmatmul.mubr.bf16.gmra.mxu0 %v1025
  %v1912 = vpop.f32.mrf.mxu0
  %v1913 = vadd.f32 0.0, %v1912
  %v1914 = vpop.f32.mrf.mxu0
  %v1915 = vpop.f32.mrf.mxu0
  %v1916 = vadd.f32 0.0, %v1915
  %v1917 = vpop.f32.mrf.mxu0
  %1918 = vmatprep.mubr.bf16.mxu0 0
  %1919 = vmatmul.mubr.bf16.gmra.mxu0 %v1026
  %v1920 = vpop.f32.mrf.mxu0
  %v1921 = vadd.f32 0.0, %v1920
  %v1922 = vpop.f32.mrf.mxu0
  %v1923 = vpop.f32.mrf.mxu0
  %v1924 = vadd.f32 0.0, %v1923
  %v1925 = vpop.f32.mrf.mxu0
  %1926 = vmatprep.mubr.bf16.mxu0 0
  %1927 = vmatmul.mubr.bf16.gmra.mxu0 %v1027
  %v1928 = vpop.f32.mrf.mxu0
  %v1929 = vadd.f32 0.0, %v1928
  %v1930 = vpop.f32.mrf.mxu0
  %v1931 = vpop.f32.mrf.mxu0
  %v1932 = vadd.f32 0.0, %v1931
  %v1933 = vpop.f32.mrf.mxu0
  %1934 = vmatprep.mubr.bf16.mxu0 0
  %1935 = vmatmul.mubr.bf16.gmra.mxu0 %v1028
  %v1936 = vpop.f32.mrf.mxu0
  %v1937 = vadd.f32 0.0, %v1936
  %v1938 = vpop.f32.mrf.mxu0
  %v1939 = vpop.f32.mrf.mxu0
  %v1940 = vadd.f32 0.0, %v1939
  %v1941 = vpop.f32.mrf.mxu0
  %1942 = vmatprep.mubr.bf16.mxu0 0
  %1943 = vmatmul.mubr.bf16.gmra.mxu0 %v1029
  %v1944 = vpop.f32.mrf.mxu0
  %v1945 = vadd.f32 0.0, %v1944
  %v1946 = vpop.f32.mrf.mxu0
  %v1947 = vpop.f32.mrf.mxu0
  %v1948 = vadd.f32 0.0, %v1947
  %v1949 = vpop.f32.mrf.mxu0
  %1950 = vmatprep.mubr.bf16.mxu0 0
  %1951 = vmatmul.mubr.bf16.gmra.mxu0 %v1030
  %v1952 = vpop.f32.mrf.mxu0
  %v1953 = vadd.f32 0.0, %v1952
  %v1954 = vpop.f32.mrf.mxu0
  %v1955 = vpop.f32.mrf.mxu0
  %v1956 = vadd.f32 0.0, %v1955
  %v1957 = vpop.f32.mrf.mxu0
  %1958 = vmatprep.mubr.bf16.mxu0 0
  %1959 = vmatmul.mubr.bf16.gmra.mxu0 %v1031
  %v1960 = vpop.f32.mrf.mxu0
  %v1961 = vadd.f32 0.0, %v1960
  %v1962 = vpop.f32.mrf.mxu0
  %v1963 = vpop.f32.mrf.mxu0
  %v1964 = vadd.f32 0.0, %v1963
  %v1965 = vpop.f32.mrf.mxu0
  %1966 = vmatprep.mubr.bf16.mxu0 0
  %1967 = vmatmul.mubr.bf16.gmra.mxu0 %v1032
  %v1968 = vpop.f32.mrf.mxu0
  %v1969 = vadd.f32 0.0, %v1968
  %v1970 = vpop.f32.mrf.mxu0
  %v1971 = vpop.f32.mrf.mxu0
  %v1972 = vadd.f32 0.0, %v1971
  %v1973 = vpop.f32.mrf.mxu0
  %1974 = vmatprep.mubr.bf16.mxu0 0
  %1975 = vmatmul.mubr.bf16.gmra.mxu0 %v1033
  %v1976 = vpop.f32.mrf.mxu0
  %v1977 = vadd.f32 0.0, %v1976
  %v1978 = vpop.f32.mrf.mxu0
  %v1979 = vpop.f32.mrf.mxu0
  %v1980 = vadd.f32 0.0, %v1979
  %v1981 = vpop.f32.mrf.mxu0
  %1982 = vmatprep.mubr.bf16.mxu0 0
  %1983 = vmatmul.mubr.bf16.gmra.mxu0 %v1034
  %v1984 = vpop.f32.mrf.mxu0
  %v1985 = vadd.f32 0.0, %v1984
  %v1986 = vpop.f32.mrf.mxu0
  %v1987 = vpop.f32.mrf.mxu0
  %v1988 = vadd.f32 0.0, %v1987
  %v1989 = vpop.f32.mrf.mxu0
  %1990 = vmatprep.mubr.bf16.mxu0 0
  %1991 = vmatmul.mubr.bf16.gmra.mxu0 %v1035
  %v1992 = vpop.f32.mrf.mxu0
  %v1993 = vadd.f32 0.0, %v1992
  %v1994 = vpop.f32.mrf.mxu0
  %v1995 = vpop.f32.mrf.mxu0
  %v1996 = vadd.f32 0.0, %v1995
  %v1997 = vpop.f32.mrf.mxu0
  %1998 = vdwg.mxu0
  %1999 = vst [vmem:[#allocation2] sm:$0xff] %v1217
  %2000 = vst [vmem:[#allocation2 + $0x8] sm:$0xff] %v1220
  %2001 = vst [vmem:[#allocation2 + $0x10] sm:$0xff] %v1225
  %2002 = vst [vmem:[#allocation2 + $0x18] sm:$0xff] %v1228
  %2003 = vst [vmem:[#allocation2 + $0x20] sm:$0xff] %v1233
  %2004 = vst [vmem:[#allocation2 + $0x28] sm:$0xff] %v1236
  %2005 = vst [vmem:[#allocation2 + $0x30] sm:$0xff] %v1241
  %2006 = vst [vmem:[#allocation2 + $0x38] sm:$0xff] %v1244
  %2007 = vst [vmem:[#allocation2 + $0x40] sm:$0xff] %v1249
  %2008 = vst [vmem:[#allocation2 + $0x48] sm:$0xff] %v1252
  %2009 = vst [vmem:[#allocation2 + $0x50] sm:$0xff] %v1257
  %2010 = vst [vmem:[#allocation2 + $0x58] sm:$0xff] %v1260
  %2011 = vst [vmem:[#allocation2 + $0x60] sm:$0xff] %v1265
  %2012 = vst [vmem:[#allocation2 + $0x68] sm:$0xff] %v1268
  %2013 = vst [vmem:[#allocation2 + $0x70] sm:$0xff] %v1273
  %2014 = vst [vmem:[#allocation2 + $0x78] sm:$0xff] %v1276
  %2015 = vst [vmem:[#allocation2 + $0x80] sm:$0xff] %v1281
  %2016 = vst [vmem:[#allocation2 + $0x88] sm:$0xff] %v1284
  %2017 = vst [vmem:[#allocation2 + $0x90] sm:$0xff] %v1289
  %2018 = vst [vmem:[#allocation2 + $0x98] sm:$0xff] %v1292
  %2019 = vst [vmem:[#allocation2 + $0xa0] sm:$0xff] %v1297
  %2020 = vst [vmem:[#allocation2 + $0xa8] sm:$0xff] %v1300
  %2021 = vst [vmem:[#allocation2 + $0xb0] sm:$0xff] %v1305
  %2022 = vst [vmem:[#allocation2 + $0xb8] sm:$0xff] %v1308
  %2023 = vst [vmem:[#allocation2 + $0xc0] sm:$0xff] %v1313
  %2024 = vst [vmem:[#allocation2 + $0xc8] sm:$0xff] %v1316
  %2025 = vst [vmem:[#allocation2 + $0xd0] sm:$0xff] %v1321
  %2026 = vst [vmem:[#allocation2 + $0xd8] sm:$0xff] %v1324
  %2027 = vst [vmem:[#allocation2 + $0xe0] sm:$0xff] %v1329
  %2028 = vst [vmem:[#allocation2 + $0xe8] sm:$0xff] %v1332
  %2029 = vst [vmem:[#allocation2 + $0xf0] sm:$0xff] %v1337
  %2030 = vst [vmem:[#allocation2 + $0xf8] sm:$0xff] %v1340
  %2031 = vst [vmem:[#allocation2 + $0x100] sm:$0xff] %v1345
  %2032 = vst [vmem:[#allocation2 + $0x108] sm:$0xff] %v1348
  %2033 = vst [vmem:[#allocation2 + $0x110] sm:$0xff] %v1353
  %2034 = vst [vmem:[#allocation2 + $0x118] sm:$0xff] %v1356
  %2035 = vst [vmem:[#allocation2 + $0x120] sm:$0xff] %v1361
  %2036 = vst [vmem:[#allocation2 + $0x128] sm:$0xff] %v1364
  %2037 = vst [vmem:[#allocation2 + $0x130] sm:$0xff] %v1369
  %2038 = vst [vmem:[#allocation2 + $0x138] sm:$0xff] %v1372
  %2039 = vst [vmem:[#allocation2 + $0x140] sm:$0xff] %v1377
  %2040 = vst [vmem:[#allocation2 + $0x148] sm:$0xff] %v1380
  %2041 = vst [vmem:[#allocation2 + $0x150] sm:$0xff] %v1385
  %2042 = vst [vmem:[#allocation2 + $0x158] sm:$0xff] %v1388
  %2043 = vst [vmem:[#allocation2 + $0x160] sm:$0xff] %v1393
  %2044 = vst [vmem:[#allocation2 + $0x168] sm:$0xff] %v1396
  %2045 = vst [vmem:[#allocation2 + $0x170] sm:$0xff] %v1401
  %2046 = vst [vmem:[#allocation2 + $0x178] sm:$0xff] %v1404
  %2047 = vst [vmem:[#allocation2 + $0x180] sm:$0xff] %v1409
  %2048 = vst [vmem:[#allocation2 + $0x188] sm:$0xff] %v1412
  %2049 = vst [vmem:[#allocation2 + $0x190] sm:$0xff] %v1417
  %2050 = vst [vmem:[#allocation2 + $0x198] sm:$0xff] %v1420
  %2051 = vst [vmem:[#allocation2 + $0x1a0] sm:$0xff] %v1425
  %2052 = vst [vmem:[#allocation2 + $0x1a8] sm:$0xff] %v1428
  %2053 = vst [vmem:[#allocation2 + $0x1b0] sm:$0xff] %v1433
  %2054 = vst [vmem:[#allocation2 + $0x1b8] sm:$0xff] %v1436
  %2055 = vst [vmem:[#allocation2 + $0x1c0] sm:$0xff] %v1441
  %2056 = vst [vmem:[#allocation2 + $0x1c8] sm:$0xff] %v1444
  %2057 = vst [vmem:[#allocation2 + $0x1d0] sm:$0xff] %v1449
  %2058 = vst [vmem:[#allocation2 + $0x1d8] sm:$0xff] %v1452
  %2059 = vst [vmem:[#allocation2 + $0x1e0] sm:$0xff] %v1457
  %2060 = vst [vmem:[#allocation2 + $0x1e8] sm:$0xff] %v1460
  %2061 = vst [vmem:[#allocation2 + $0x1f0] sm:$0xff] %v1465
  %2062 = vst [vmem:[#allocation2 + $0x1f8] sm:$0xff] %v1468
  %2063 = vst [vmem:[#allocation2 + $0x200] sm:$0xff] %v1473
  %2064 = vst [vmem:[#allocation2 + $0x208] sm:$0xff] %v1476
  %2065 = vst [vmem:[#allocation2 + $0x210] sm:$0xff] %v1481
  %2066 = vst [vmem:[#allocation2 + $0x218] sm:$0xff] %v1484
  %2067 = vst [vmem:[#allocation2 + $0x220] sm:$0xff] %v1489
  %2068 = vst [vmem:[#allocation2 + $0x228] sm:$0xff] %v1492
  %2069 = vst [vmem:[#allocation2 + $0x230] sm:$0xff] %v1497
  %2070 = vst [vmem:[#allocation2 + $0x238] sm:$0xff] %v1500
  %2071 = vst [vmem:[#allocation2 + $0x240] sm:$0xff] %v1505
  %2072 = vst [vmem:[#allocation2 + $0x248] sm:$0xff] %v1508
  %2073 = vst [vmem:[#allocation2 + $0x250] sm:$0xff] %v1513
  %2074 = vst [vmem:[#allocation2 + $0x258] sm:$0xff] %v1516
  %2075 = vst [vmem:[#allocation2 + $0x260] sm:$0xff] %v1521
  %2076 = vst [vmem:[#allocation2 + $0x268] sm:$0xff] %v1524
  %2077 = vst [vmem:[#allocation2 + $0x270] sm:$0xff] %v1529
  %2078 = vst [vmem:[#allocation2 + $0x278] sm:$0xff] %v1532
  %2079 = vst [vmem:[#allocation2 + $0x280] sm:$0xff] %v1537
  %2080 = vst [vmem:[#allocation2 + $0x288] sm:$0xff] %v1540
  %2081 = vst [vmem:[#allocation2 + $0x290] sm:$0xff] %v1545
  %2082 = vst [vmem:[#allocation2 + $0x298] sm:$0xff] %v1548
  %2083 = vst [vmem:[#allocation2 + $0x2a0] sm:$0xff] %v1553
  %2084 = vst [vmem:[#allocation2 + $0x2a8] sm:$0xff] %v1556
  %2085 = vst [vmem:[#allocation2 + $0x2b0] sm:$0xff] %v1561
  %2086 = vst [vmem:[#allocation2 + $0x2b8] sm:$0xff] %v1564
  %2087 = vst [vmem:[#allocation2 + $0x2c0] sm:$0xff] %v1569
  %2088 = vst [vmem:[#allocation2 + $0x2c8] sm:$0xff] %v1572
  %2089 = vst [vmem:[#allocation2 + $0x2d0] sm:$0xff] %v1577
  %2090 = vst [vmem:[#allocation2 + $0x2d8] sm:$0xff] %v1580
  %2091 = vst [vmem:[#allocation2 + $0x2e0] sm:$0xff] %v1585
  %2092 = vst [vmem:[#allocation2 + $0x2e8] sm:$0xff] %v1588
  %2093 = vst [vmem:[#allocation2 + $0x2f0] sm:$0xff] %v1593
  %2094 = vst [vmem:[#allocation2 + $0x2f8] sm:$0xff] %v1596
  %2095 = vst [vmem:[#allocation2 + $0x300] sm:$0xff] %v1601
  %2096 = vst [vmem:[#allocation2 + $0x308] sm:$0xff] %v1604
  %2097 = vst [vmem:[#allocation2 + $0x310] sm:$0xff] %v1609
  %2098 = vst [vmem:[#allocation2 + $0x318] sm:$0xff] %v1612
  %2099 = vst [vmem:[#allocation2 + $0x320] sm:$0xff] %v1617
  %2100 = vst [vmem:[#allocation2 + $0x328] sm:$0xff] %v1620
  %2101 = vst [vmem:[#allocation2 + $0x330] sm:$0xff] %v1625
  %2102 = vst [vmem:[#allocation2 + $0x338] sm:$0xff] %v1628
  %2103 = vst [vmem:[#allocation2 + $0x340] sm:$0xff] %v1633
  %2104 = vst [vmem:[#allocation2 + $0x348] sm:$0xff] %v1636
  %2105 = vst [vmem:[#allocation2 + $0x350] sm:$0xff] %v1641
  %2106 = vst [vmem:[#allocation2 + $0x358] sm:$0xff] %v1644
  %2107 = vst [vmem:[#allocation2 + $0x360] sm:$0xff] %v1649
  %2108 = vst [vmem:[#allocation2 + $0x368] sm:$0xff] %v1652
  %2109 = vst [vmem:[#allocation2 + $0x370] sm:$0xff] %v1657
  %2110 = vst [vmem:[#allocation2 + $0x378] sm:$0xff] %v1660
  %2111 = vst [vmem:[#allocation2 + $0x380] sm:$0xff] %v1665
  %2112 = vst [vmem:[#allocation2 + $0x388] sm:$0xff] %v1668
  %2113 = vst [vmem:[#allocation2 + $0x390] sm:$0xff] %v1673
  %2114 = vst [vmem:[#allocation2 + $0x398] sm:$0xff] %v1676
  %2115 = vst [vmem:[#allocation2 + $0x3a0] sm:$0xff] %v1681
  %2116 = vst [vmem:[#allocation2 + $0x3a8] sm:$0xff] %v1684
  %2117 = vst [vmem:[#allocation2 + $0x3b0] sm:$0xff] %v1689
  %2118 = vst [vmem:[#allocation2 + $0x3b8] sm:$0xff] %v1692
  %2119 = vst [vmem:[#allocation2 + $0x3c0] sm:$0xff] %v1697
  %2120 = vst [vmem:[#allocation2 + $0x3c8] sm:$0xff] %v1700
  %2121 = vst [vmem:[#allocation2 + $0x3d0] sm:$0xff] %v1705
  %2122 = vst [vmem:[#allocation2 + $0x3d8] sm:$0xff] %v1708
  %2123 = vst [vmem:[#allocation2 + $0x3e0] sm:$0xff] %v1713
  %2124 = vst [vmem:[#allocation2 + $0x3e8] sm:$0xff] %v1716
  %2125 = vst [vmem:[#allocation2 + $0x3f0] sm:$0xff] %v1721
  %2126 = vst [vmem:[#allocation2 + $0x3f8] sm:$0xff] %v1724
  %2127 = vst [vmem:[#allocation2 + $0x400] sm:$0xff] %v1729
  %2128 = vst [vmem:[#allocation2 + $0x408] sm:$0xff] %v1732
  %2129 = vst [vmem:[#allocation2 + $0x410] sm:$0xff] %v1737
  %2130 = vst [vmem:[#allocation2 + $0x418] sm:$0xff] %v1740
  %2131 = vst [vmem:[#allocation2 + $0x420] sm:$0xff] %v1745
  %2132 = vst [vmem:[#allocation2 + $0x428] sm:$0xff] %v1748
  %2133 = vst [vmem:[#allocation2 + $0x430] sm:$0xff] %v1753
  %2134 = vst [vmem:[#allocation2 + $0x438] sm:$0xff] %v1756
  %2135 = vst [vmem:[#allocation2 + $0x440] sm:$0xff] %v1761
  %2136 = vst [vmem:[#allocation2 + $0x448] sm:$0xff] %v1764
  %2137 = vst [vmem:[#allocation2 + $0x450] sm:$0xff] %v1769
  %2138 = vst [vmem:[#allocation2 + $0x458] sm:$0xff] %v1772
  %2139 = vst [vmem:[#allocation2 + $0x460] sm:$0xff] %v1777
  %2140 = vst [vmem:[#allocation2 + $0x468] sm:$0xff] %v1780
  %2141 = vst [vmem:[#allocation2 + $0x470] sm:$0xff] %v1785
  %2142 = vst [vmem:[#allocation2 + $0x478] sm:$0xff] %v1788
  %2143 = vst [vmem:[#allocation2 + $0x480] sm:$0xff] %v1793
  %2144 = vst [vmem:[#allocation2 + $0x488] sm:$0xff] %v1796
  %2145 = vst [vmem:[#allocation2 + $0x490] sm:$0xff] %v1801
  %2146 = vst [vmem:[#allocation2 + $0x498] sm:$0xff] %v1804
  %2147 = vst [vmem:[#allocation2 + $0x4a0] sm:$0xff] %v1809
  %2148 = vst [vmem:[#allocation2 + $0x4a8] sm:$0xff] %v1812
  %2149 = vst [vmem:[#allocation2 + $0x4b0] sm:$0xff] %v1817
  %2150 = vst [vmem:[#allocation2 + $0x4b8] sm:$0xff] %v1820
  %2151 = vst [vmem:[#allocation2 + $0x4c0] sm:$0xff] %v1825
  %2152 = vst [vmem:[#allocation2 + $0x4c8] sm:$0xff] %v1828
  %2153 = vst [vmem:[#allocation2 + $0x4d0] sm:$0xff] %v1833
  %2154 = vst [vmem:[#allocation2 + $0x4d8] sm:$0xff] %v1836
  %2155 = vst [vmem:[#allocation2 + $0x4e0] sm:$0xff] %v1841
  %2156 = vst [vmem:[#allocation2 + $0x4e8] sm:$0xff] %v1844
  %2157 = vst [vmem:[#allocation2 + $0x4f0] sm:$0xff] %v1849
  %2158 = vst [vmem:[#allocation2 + $0x4f8] sm:$0xff] %v1852
  %2159 = vst [vmem:[#allocation2 + $0x500] sm:$0xff] %v1857
  %2160 = vst [vmem:[#allocation2 + $0x508] sm:$0xff] %v1860
  %2161 = vst [vmem:[#allocation2 + $0x510] sm:$0xff] %v1865
  %2162 = vst [vmem:[#allocation2 + $0x518] sm:$0xff] %v1868
  %2163 = vst [vmem:[#allocation2 + $0x520] sm:$0xff] %v1873
  %2164 = vst [vmem:[#allocation2 + $0x528] sm:$0xff] %v1876
  %2165 = vst [vmem:[#allocation2 + $0x530] sm:$0xff] %v1881
  %2166 = vst [vmem:[#allocation2 + $0x538] sm:$0xff] %v1884
  %2167 = vst [vmem:[#allocation2 + $0x540] sm:$0xff] %v1889
  %2168 = vst [vmem:[#allocation2 + $0x548] sm:$0xff] %v1892
  %2169 = vst [vmem:[#allocation2 + $0x550] sm:$0xff] %v1897
  %2170 = vst [vmem:[#allocation2 + $0x558] sm:$0xff] %v1900
  %2171 = vst [vmem:[#allocation2 + $0x560] sm:$0xff] %v1905
  %2172 = vst [vmem:[#allocation2 + $0x568] sm:$0xff] %v1908
  %2173 = vst [vmem:[#allocation2 + $0x570] sm:$0xff] %v1913
  %2174 = vst [vmem:[#allocation2 + $0x578] sm:$0xff] %v1916
  %2175 = vst [vmem:[#allocation2 + $0x580] sm:$0xff] %v1921
  %2176 = vst [vmem:[#allocation2 + $0x588] sm:$0xff] %v1924
  %2177 = vst [vmem:[#allocation2 + $0x590] sm:$0xff] %v1929
  %2178 = vst [vmem:[#allocation2 + $0x598] sm:$0xff] %v1932
  %2179 = vst [vmem:[#allocation2 + $0x5a0] sm:$0xff] %v1937
  %2180 = vst [vmem:[#allocation2 + $0x5a8] sm:$0xff] %v1940
  %2181 = vst [vmem:[#allocation2 + $0x5b0] sm:$0xff] %v1945
  %2182 = vst [vmem:[#allocation2 + $0x5b8] sm:$0xff] %v1948
  %2183 = vst [vmem:[#allocation2 + $0x5c0] sm:$0xff] %v1953
  %2184 = vst [vmem:[#allocation2 + $0x5c8] sm:$0xff] %v1956
  %2185 = vst [vmem:[#allocation2 + $0x5d0] sm:$0xff] %v1961
  %2186 = vst [vmem:[#allocation2 + $0x5d8] sm:$0xff] %v1964
  %2187 = vst [vmem:[#allocation2 + $0x5e0] sm:$0xff] %v1969
  %2188 = vst [vmem:[#allocation2 + $0x5e8] sm:$0xff] %v1972
  %2189 = vst [vmem:[#allocation2 + $0x5f0] sm:$0xff] %v1977
  %2190 = vst [vmem:[#allocation2 + $0x5f8] sm:$0xff] %v1980
  %2191 = vst [vmem:[#allocation2 + $0x600] sm:$0xff] %v1985
  %2192 = vst [vmem:[#allocation2 + $0x608] sm:$0xff] %v1988
  %2193 = vst [vmem:[#allocation2 + $0x610] sm:$0xff] %v1993
  %2194 = vst [vmem:[#allocation2 + $0x618] sm:$0xff] %v1996
  %v2195 = vld [vmem:[#allocation2] sm:$0xff]
  %v2196 = vld [vmem:[#allocation2 + $0x8] sm:$0xff]
  %v2197 = vld [vmem:[#allocation2 + $0x10] sm:$0xff]
  %v2198 = vld [vmem:[#allocation2 + $0x18] sm:$0xff]
  %v2199 = vld [vmem:[#allocation2 + $0x20] sm:$0xff]
  %v2200 = vld [vmem:[#allocation2 + $0x28] sm:$0xff]
  %v2201 = vld [vmem:[#allocation2 + $0x30] sm:$0xff]
  %v2202 = vld [vmem:[#allocation2 + $0x38] sm:$0xff]
  %v2203 = vld [vmem:[#allocation2 + $0x40] sm:$0xff]
  %v2204 = vld [vmem:[#allocation2 + $0x48] sm:$0xff]
  %v2205 = vld [vmem:[#allocation2 + $0x50] sm:$0xff]
  %v2206 = vld [vmem:[#allocation2 + $0x58] sm:$0xff]
  %v2207 = vld [vmem:[#allocation2 + $0x60] sm:$0xff]
  %v2208 = vld [vmem:[#allocation2 + $0x68] sm:$0xff]
  %v2209 = vld [vmem:[#allocation2 + $0x70] sm:$0xff]
  %v2210 = vld [vmem:[#allocation2 + $0x78] sm:$0xff]
  %v2211 = vld [vmem:[#allocation2 + $0x80] sm:$0xff]
  %v2212 = vld [vmem:[#allocation2 + $0x88] sm:$0xff]
  %v2213 = vld [vmem:[#allocation2 + $0x90] sm:$0xff]
  %v2214 = vld [vmem:[#allocation2 + $0x98] sm:$0xff]
  %v2215 = vld [vmem:[#allocation2 + $0xa0] sm:$0xff]
  %v2216 = vld [vmem:[#allocation2 + $0xa8] sm:$0xff]
  %v2217 = vld [vmem:[#allocation2 + $0xb0] sm:$0xff]
  %v2218 = vld [vmem:[#allocation2 + $0xb8] sm:$0xff]
  %v2219 = vld [vmem:[#allocation2 + $0xc0] sm:$0xff]
  %v2220 = vld [vmem:[#allocation2 + $0xc8] sm:$0xff]
  %v2221 = vld [vmem:[#allocation2 + $0xd0] sm:$0xff]
  %v2222 = vld [vmem:[#allocation2 + $0xd8] sm:$0xff]
  %v2223 = vld [vmem:[#allocation2 + $0xe0] sm:$0xff]
  %v2224 = vld [vmem:[#allocation2 + $0xe8] sm:$0xff]
  %v2225 = vld [vmem:[#allocation2 + $0xf0] sm:$0xff]
  %v2226 = vld [vmem:[#allocation2 + $0xf8] sm:$0xff]
  %v2227 = vld [vmem:[#allocation2 + $0x100] sm:$0xff]
  %v2228 = vld [vmem:[#allocation2 + $0x108] sm:$0xff]
  %v2229 = vld [vmem:[#allocation2 + $0x110] sm:$0xff]
  %v2230 = vld [vmem:[#allocation2 + $0x118] sm:$0xff]
  %v2231 = vld [vmem:[#allocation2 + $0x120] sm:$0xff]
  %v2232 = vld [vmem:[#allocation2 + $0x128] sm:$0xff]
  %v2233 = vld [vmem:[#allocation2 + $0x130] sm:$0xff]
  %v2234 = vld [vmem:[#allocation2 + $0x138] sm:$0xff]
  %v2235 = vld [vmem:[#allocation2 + $0x140] sm:$0xff]
  %v2236 = vld [vmem:[#allocation2 + $0x148] sm:$0xff]
  %v2237 = vld [vmem:[#allocation2 + $0x150] sm:$0xff]
  %v2238 = vld [vmem:[#allocation2 + $0x158] sm:$0xff]
  %v2239 = vld [vmem:[#allocation2 + $0x160] sm:$0xff]
  %v2240 = vld [vmem:[#allocation2 + $0x168] sm:$0xff]
  %v2241 = vld [vmem:[#allocation2 + $0x170] sm:$0xff]
  %v2242 = vld [vmem:[#allocation2 + $0x178] sm:$0xff]
  %v2243 = vld [vmem:[#allocation2 + $0x180] sm:$0xff]
  %v2244 = vld [vmem:[#allocation2 + $0x188] sm:$0xff]
  %v2245 = vld [vmem:[#allocation2 + $0x190] sm:$0xff]
  %v2246 = vld [vmem:[#allocation2 + $0x198] sm:$0xff]
  %v2247 = vld [vmem:[#allocation2 + $0x1a0] sm:$0xff]
  %v2248 = vld [vmem:[#allocation2 + $0x1a8] sm:$0xff]
  %v2249 = vld [vmem:[#allocation2 + $0x1b0] sm:$0xff]
  %v2250 = vld [vmem:[#allocation2 + $0x1b8] sm:$0xff]
  %v2251 = vld [vmem:[#allocation2 + $0x1c0] sm:$0xff]
  %v2252 = vld [vmem:[#allocation2 + $0x1c8] sm:$0xff]
  %v2253 = vld [vmem:[#allocation2 + $0x1d0] sm:$0xff]
  %v2254 = vld [vmem:[#allocation2 + $0x1d8] sm:$0xff]
  %v2255 = vld [vmem:[#allocation2 + $0x1e0] sm:$0xff]
  %v2256 = vld [vmem:[#allocation2 + $0x1e8] sm:$0xff]
  %v2257 = vld [vmem:[#allocation2 + $0x1f0] sm:$0xff]
  %v2258 = vld [vmem:[#allocation2 + $0x1f8] sm:$0xff]
  %v2259 = vld [vmem:[#allocation2 + $0x200] sm:$0xff]
  %v2260 = vld [vmem:[#allocation2 + $0x208] sm:$0xff]
  %v2261 = vld [vmem:[#allocation2 + $0x210] sm:$0xff]
  %v2262 = vld [vmem:[#allocation2 + $0x218] sm:$0xff]
  %v2263 = vld [vmem:[#allocation2 + $0x220] sm:$0xff]
  %v2264 = vld [vmem:[#allocation2 + $0x228] sm:$0xff]
  %v2265 = vld [vmem:[#allocation2 + $0x230] sm:$0xff]
  %v2266 = vld [vmem:[#allocation2 + $0x238] sm:$0xff]
  %v2267 = vld [vmem:[#allocation2 + $0x240] sm:$0xff]
  %v2268 = vld [vmem:[#allocation2 + $0x248] sm:$0xff]
  %v2269 = vld [vmem:[#allocation2 + $0x250] sm:$0xff]
  %v2270 = vld [vmem:[#allocation2 + $0x258] sm:$0xff]
  %v2271 = vld [vmem:[#allocation2 + $0x260] sm:$0xff]
  %v2272 = vld [vmem:[#allocation2 + $0x268] sm:$0xff]
  %v2273 = vld [vmem:[#allocation2 + $0x270] sm:$0xff]
  %v2274 = vld [vmem:[#allocation2 + $0x278] sm:$0xff]
  %v2275 = vld [vmem:[#allocation2 + $0x280] sm:$0xff]
  %v2276 = vld [vmem:[#allocation2 + $0x288] sm:$0xff]
  %v2277 = vld [vmem:[#allocation2 + $0x290] sm:$0xff]
  %v2278 = vld [vmem:[#allocation2 + $0x298] sm:$0xff]
  %v2279 = vld [vmem:[#allocation2 + $0x2a0] sm:$0xff]
  %v2280 = vld [vmem:[#allocation2 + $0x2a8] sm:$0xff]
  %v2281 = vld [vmem:[#allocation2 + $0x2b0] sm:$0xff]
  %v2282 = vld [vmem:[#allocation2 + $0x2b8] sm:$0xff]
  %v2283 = vld [vmem:[#allocation2 + $0x2c0] sm:$0xff]
  %v2284 = vld [vmem:[#allocation2 + $0x2c8] sm:$0xff]
  %v2285 = vld [vmem:[#allocation2 + $0x2d0] sm:$0xff]
  %v2286 = vld [vmem:[#allocation2 + $0x2d8] sm:$0xff]
  %v2287 = vld [vmem:[#allocation2 + $0x2e0] sm:$0xff]
  %v2288 = vld [vmem:[#allocation2 + $0x2e8] sm:$0xff]
  %v2289 = vld [vmem:[#allocation2 + $0x2f0] sm:$0xff]
  %v2290 = vld [vmem:[#allocation2 + $0x2f8] sm:$0xff]
  %v2291 = vld [vmem:[#allocation2 + $0x300] sm:$0xff]
  %v2292 = vld [vmem:[#allocation2 + $0x308] sm:$0xff]
  %v2293 = vmax.f32 %v2195, %v2244
  %v2294 = vmax.f32 %v2196, %v2245
  %v2295 = vmax.f32 %v2197, %v2246
  %v2296 = vmax.f32 %v2198, %v2247
  %v2297 = vmax.f32 %v2199, %v2248
  %v2298 = vmax.f32 %v2200, %v2249
  %v2299 = vmax.f32 %v2201, %v2250
  %v2300 = vmax.f32 %v2202, %v2251
  %v2301 = vmax.f32 %v2203, %v2252
  %v2302 = vmax.f32 %v2204, %v2253
  %v2303 = vmax.f32 %v2205, %v2254
  %v2304 = vmax.f32 %v2206, %v2255
  %v2305 = vmax.f32 %v2207, %v2256
  %v2306 = vmax.f32 %v2208, %v2257
  %v2307 = vmax.f32 %v2209, %v2258
  %v2308 = vmax.f32 %v2210, %v2259
  %v2309 = vmax.f32 %v2211, %v2260
  %v2310 = vmax.f32 %v2212, %v2261
  %v2311 = vmax.f32 %v2213, %v2262
  %v2312 = vmax.f32 %v2214, %v2263
  %v2313 = vmax.f32 %v2215, %v2264
  %v2314 = vmax.f32 %v2216, %v2265
  %v2315 = vmax.f32 %v2217, %v2266
  %v2316 = vmax.f32 %v2218, %v2267
  %v2317 = vmax.f32 %v2219, %v2268
  %v2318 = vmax.f32 %v2220, %v2269
  %v2319 = vmax.f32 %v2221, %v2270
  %v2320 = vmax.f32 %v2222, %v2271
  %v2321 = vmax.f32 %v2223, %v2272
  %v2322 = vmax.f32 %v2224, %v2273
  %v2323 = vmax.f32 %v2225, %v2274
  %v2324 = vmax.f32 %v2226, %v2275
  %v2325 = vmax.f32 %v2227, %v2276
  %v2326 = vmax.f32 %v2228, %v2277
  %v2327 = vmax.f32 %v2229, %v2278
  %v2328 = vmax.f32 %v2230, %v2279
  %v2329 = vmax.f32 %v2231, %v2280
  %v2330 = vmax.f32 %v2232, %v2281
  %v2331 = vmax.f32 %v2233, %v2282
  %v2332 = vmax.f32 %v2234, %v2283
  %v2333 = vmax.f32 %v2235, %v2284
  %v2334 = vmax.f32 %v2236, %v2285
  %v2335 = vmax.f32 %v2237, %v2286
  %v2336 = vmax.f32 %v2238, %v2287
  %v2337 = vmax.f32 %v2239, %v2288
  %v2338 = vmax.f32 %v2240, %v2289
  %v2339 = vmax.f32 %v2241, %v2290
  %v2340 = vmax.f32 %v2242, %v2291
  %v2341 = vmax.f32 %v2243, %v2292
  %v2342 = vld [vmem:[#allocation2 + $0x310] sm:$0xff]
  %v2343 = vld [vmem:[#allocation2 + $0x318] sm:$0xff]
  %v2344 = vld [vmem:[#allocation2 + $0x320] sm:$0xff]
  %v2345 = vld [vmem:[#allocation2 + $0x328] sm:$0xff]
  %v2346 = vld [vmem:[#allocation2 + $0x330] sm:$0xff]
  %v2347 = vld [vmem:[#allocation2 + $0x338] sm:$0xff]
  %v2348 = vld [vmem:[#allocation2 + $0x340] sm:$0xff]
  %v2349 = vld [vmem:[#allocation2 + $0x348] sm:$0xff]
  %v2350 = vld [vmem:[#allocation2 + $0x350] sm:$0xff]
  %v2351 = vld [vmem:[#allocation2 + $0x358] sm:$0xff]
  %v2352 = vld [vmem:[#allocation2 + $0x360] sm:$0xff]
  %v2353 = vld [vmem:[#allocation2 + $0x368] sm:$0xff]
  %v2354 = vld [vmem:[#allocation2 + $0x370] sm:$0xff]
  %v2355 = vld [vmem:[#allocation2 + $0x378] sm:$0xff]
  %v2356 = vld [vmem:[#allocation2 + $0x380] sm:$0xff]
  %v2357 = vld [vmem:[#allocation2 + $0x388] sm:$0xff]
  %v2358 = vld [vmem:[#allocation2 + $0x390] sm:$0xff]
  %v2359 = vld [vmem:[#allocation2 + $0x398] sm:$0xff]
  %v2360 = vld [vmem:[#allocation2 + $0x3a0] sm:$0xff]
  %v2361 = vld [vmem:[#allocation2 + $0x3a8] sm:$0xff]
  %v2362 = vld [vmem:[#allocation2 + $0x3b0] sm:$0xff]
  %v2363 = vld [vmem:[#allocation2 + $0x3b8] sm:$0xff]
  %v2364 = vld [vmem:[#allocation2 + $0x3c0] sm:$0xff]
  %v2365 = vld [vmem:[#allocation2 + $0x3c8] sm:$0xff]
  %v2366 = vld [vmem:[#allocation2 + $0x3d0] sm:$0xff]
  %v2367 = vld [vmem:[#allocation2 + $0x3d8] sm:$0xff]
  %v2368 = vld [vmem:[#allocation2 + $0x3e0] sm:$0xff]
  %v2369 = vld [vmem:[#allocation2 + $0x3e8] sm:$0xff]
  %v2370 = vld [vmem:[#allocation2 + $0x3f0] sm:$0xff]
  %v2371 = vld [vmem:[#allocation2 + $0x3f8] sm:$0xff]
  %v2372 = vld [vmem:[#allocation2 + $0x400] sm:$0xff]
  %v2373 = vld [vmem:[#allocation2 + $0x408] sm:$0xff]
  %v2374 = vld [vmem:[#allocation2 + $0x410] sm:$0xff]
  %v2375 = vld [vmem:[#allocation2 + $0x418] sm:$0xff]
  %v2376 = vld [vmem:[#allocation2 + $0x420] sm:$0xff]
  %v2377 = vld [vmem:[#allocation2 + $0x428] sm:$0xff]
  %v2378 = vld [vmem:[#allocation2 + $0x430] sm:$0xff]
  %v2379 = vld [vmem:[#allocation2 + $0x438] sm:$0xff]
  %v2380 = vld [vmem:[#allocation2 + $0x440] sm:$0xff]
  %v2381 = vld [vmem:[#allocation2 + $0x448] sm:$0xff]
  %v2382 = vld [vmem:[#allocation2 + $0x450] sm:$0xff]
  %v2383 = vld [vmem:[#allocation2 + $0x458] sm:$0xff]
  %v2384 = vld [vmem:[#allocation2 + $0x460] sm:$0xff]
  %v2385 = vld [vmem:[#allocation2 + $0x468] sm:$0xff]
  %v2386 = vld [vmem:[#allocation2 + $0x470] sm:$0xff]
  %v2387 = vld [vmem:[#allocation2 + $0x478] sm:$0xff]
  %v2388 = vld [vmem:[#allocation2 + $0x480] sm:$0xff]
  %v2389 = vld [vmem:[#allocation2 + $0x488] sm:$0xff]
  %v2390 = vld [vmem:[#allocation2 + $0x490] sm:$0xff]
  %v2391 = vld [vmem:[#allocation2 + $0x498] sm:$0xff]
  %v2392 = vld [vmem:[#allocation2 + $0x4a0] sm:$0xff]
  %v2393 = vld [vmem:[#allocation2 + $0x4a8] sm:$0xff]
  %v2394 = vld [vmem:[#allocation2 + $0x4b0] sm:$0xff]
  %v2395 = vld [vmem:[#allocation2 + $0x4b8] sm:$0xff]
  %v2396 = vld [vmem:[#allocation2 + $0x4c0] sm:$0xff]
  %v2397 = vld [vmem:[#allocation2 + $0x4c8] sm:$0xff]
  %v2398 = vld [vmem:[#allocation2 + $0x4d0] sm:$0xff]
  %v2399 = vld [vmem:[#allocation2 + $0x4d8] sm:$0xff]
  %v2400 = vld [vmem:[#allocation2 + $0x4e0] sm:$0xff]
  %v2401 = vld [vmem:[#allocation2 + $0x4e8] sm:$0xff]
  %v2402 = vld [vmem:[#allocation2 + $0x4f0] sm:$0xff]
  %v2403 = vld [vmem:[#allocation2 + $0x4f8] sm:$0xff]
  %v2404 = vld [vmem:[#allocation2 + $0x500] sm:$0xff]
  %v2405 = vld [vmem:[#allocation2 + $0x508] sm:$0xff]
  %v2406 = vld [vmem:[#allocation2 + $0x510] sm:$0xff]
  %v2407 = vld [vmem:[#allocation2 + $0x518] sm:$0xff]
  %v2408 = vld [vmem:[#allocation2 + $0x520] sm:$0xff]
  %v2409 = vld [vmem:[#allocation2 + $0x528] sm:$0xff]
  %v2410 = vld [vmem:[#allocation2 + $0x530] sm:$0xff]
  %v2411 = vld [vmem:[#allocation2 + $0x538] sm:$0xff]
  %v2412 = vld [vmem:[#allocation2 + $0x540] sm:$0xff]
  %v2413 = vld [vmem:[#allocation2 + $0x548] sm:$0xff]
  %v2414 = vld [vmem:[#allocation2 + $0x550] sm:$0xff]
  %v2415 = vld [vmem:[#allocation2 + $0x558] sm:$0xff]
  %v2416 = vld [vmem:[#allocation2 + $0x560] sm:$0xff]
  %v2417 = vld [vmem:[#allocation2 + $0x568] sm:$0xff]
  %v2418 = vld [vmem:[#allocation2 + $0x570] sm:$0xff]
  %v2419 = vld [vmem:[#allocation2 + $0x578] sm:$0xff]
  %v2420 = vld [vmem:[#allocation2 + $0x580] sm:$0xff]
  %v2421 = vld [vmem:[#allocation2 + $0x588] sm:$0xff]
  %v2422 = vld [vmem:[#allocation2 + $0x590] sm:$0xff]
  %v2423 = vld [vmem:[#allocation2 + $0x598] sm:$0xff]
  %v2424 = vld [vmem:[#allocation2 + $0x5a0] sm:$0xff]
  %v2425 = vld [vmem:[#allocation2 + $0x5a8] sm:$0xff]
  %v2426 = vld [vmem:[#allocation2 + $0x5b0] sm:$0xff]
  %v2427 = vld [vmem:[#allocation2 + $0x5b8] sm:$0xff]
  %v2428 = vld [vmem:[#allocation2 + $0x5c0] sm:$0xff]
  %v2429 = vld [vmem:[#allocation2 + $0x5c8] sm:$0xff]
  %v2430 = vld [vmem:[#allocation2 + $0x5d0] sm:$0xff]
  %v2431 = vld [vmem:[#allocation2 + $0x5d8] sm:$0xff]
  %v2432 = vld [vmem:[#allocation2 + $0x5e0] sm:$0xff]
  %v2433 = vld [vmem:[#allocation2 + $0x5e8] sm:$0xff]
  %v2434 = vld [vmem:[#allocation2 + $0x5f0] sm:$0xff]
  %v2435 = vld [vmem:[#allocation2 + $0x5f8] sm:$0xff]
  %v2436 = vld [vmem:[#allocation2 + $0x600] sm:$0xff]
  %v2437 = vld [vmem:[#allocation2 + $0x608] sm:$0xff]
  %v2438 = vld [vmem:[#allocation2 + $0x610] sm:$0xff]
  %v2439 = vld [vmem:[#allocation2 + $0x618] sm:$0xff]
  %v2440 = vmax.f32 %v2342, %v2391
  %v2441 = vmax.f32 %v2343, %v2392
  %v2442 = vmax.f32 %v2344, %v2393
  %v2443 = vmax.f32 %v2345, %v2394
  %v2444 = vmax.f32 %v2346, %v2395
  %v2445 = vmax.f32 %v2347, %v2396
  %v2446 = vmax.f32 %v2348, %v2397
  %v2447 = vmax.f32 %v2349, %v2398
  %v2448 = vmax.f32 %v2350, %v2399
  %v2449 = vmax.f32 %v2351, %v2400
  %v2450 = vmax.f32 %v2352, %v2401
  %v2451 = vmax.f32 %v2353, %v2402
  %v2452 = vmax.f32 %v2354, %v2403
  %v2453 = vmax.f32 %v2355, %v2404
  %v2454 = vmax.f32 %v2356, %v2405
  %v2455 = vmax.f32 %v2357, %v2406
  %v2456 = vmax.f32 %v2358, %v2407
  %v2457 = vmax.f32 %v2359, %v2408
  %v2458 = vmax.f32 %v2360, %v2409
  %v2459 = vmax.f32 %v2361, %v2410
  %v2460 = vmax.f32 %v2362, %v2411
  %v2461 = vmax.f32 %v2363, %v2412
  %v2462 = vmax.f32 %v2364, %v2413
  %v2463 = vmax.f32 %v2365, %v2414
  %v2464 = vmax.f32 %v2366, %v2415
  %v2465 = vmax.f32 %v2367, %v2416
  %v2466 = vmax.f32 %v2368, %v2417
  %v2467 = vmax.f32 %v2369, %v2418
  %v2468 = vmax.f32 %v2370, %v2419
  %v2469 = vmax.f32 %v2371, %v2420
  %v2470 = vmax.f32 %v2372, %v2421
  %v2471 = vmax.f32 %v2373, %v2422
  %v2472 = vmax.f32 %v2374, %v2423
  %v2473 = vmax.f32 %v2375, %v2424
  %v2474 = vmax.f32 %v2376, %v2425
  %v2475 = vmax.f32 %v2377, %v2426
  %v2476 = vmax.f32 %v2378, %v2427
  %v2477 = vmax.f32 %v2379, %v2428
  %v2478 = vmax.f32 %v2380, %v2429
  %v2479 = vmax.f32 %v2381, %v2430
  %v2480 = vmax.f32 %v2382, %v2431
  %v2481 = vmax.f32 %v2383, %v2432
  %v2482 = vmax.f32 %v2384, %v2433
  %v2483 = vmax.f32 %v2385, %v2434
  %v2484 = vmax.f32 %v2386, %v2435
  %v2485 = vmax.f32 %v2387, %v2436
  %v2486 = vmax.f32 %v2388, %v2437
  %v2487 = vmax.f32 %v2389, %v2438
  %v2488 = vmax.f32 %v2390, %v2439
  %v2489 = vmax.f32 %v2293, %v2440
  %v2490 = vmax.f32 %v2294, %v2441
  %v2491 = vmax.f32 %v2295, %v2442
  %v2492 = vmax.f32 %v2296, %v2443
  %v2493 = vmax.f32 %v2297, %v2444
  %v2494 = vmax.f32 %v2298, %v2445
  %v2495 = vmax.f32 %v2299, %v2446
  %v2496 = vmax.f32 %v2300, %v2447
  %v2497 = vmax.f32 %v2301, %v2448
  %v2498 = vmax.f32 %v2302, %v2449
  %v2499 = vmax.f32 %v2303, %v2450
  %v2500 = vmax.f32 %v2304, %v2451
  %v2501 = vmax.f32 %v2305, %v2452
  %v2502 = vmax.f32 %v2306, %v2453
  %v2503 = vmax.f32 %v2307, %v2454
  %v2504 = vmax.f32 %v2308, %v2455
  %v2505 = vmax.f32 %v2309, %v2456
  %v2506 = vmax.f32 %v2310, %v2457
  %v2507 = vmax.f32 %v2311, %v2458
  %v2508 = vmax.f32 %v2312, %v2459
  %v2509 = vmax.f32 %v2313, %v2460
  %v2510 = vmax.f32 %v2314, %v2461
  %v2511 = vmax.f32 %v2315, %v2462
  %v2512 = vmax.f32 %v2316, %v2463
  %v2513 = vmax.f32 %v2317, %v2464
  %v2514 = vmax.f32 %v2318, %v2465
  %v2515 = vmax.f32 %v2319, %v2466
  %v2516 = vmax.f32 %v2320, %v2467
  %v2517 = vmax.f32 %v2321, %v2468
  %v2518 = vmax.f32 %v2322, %v2469
  %v2519 = vmax.f32 %v2323, %v2470
  %v2520 = vmax.f32 %v2324, %v2471
  %v2521 = vmax.f32 %v2325, %v2472
  %v2522 = vmax.f32 %v2326, %v2473
  %v2523 = vmax.f32 %v2327, %v2474
  %v2524 = vmax.f32 %v2328, %v2475
  %v2525 = vmax.f32 %v2329, %v2476
  %v2526 = vmax.f32 %v2330, %v2477
  %v2527 = vmax.f32 %v2331, %v2478
  %v2528 = vmax.f32 %v2332, %v2479
  %v2529 = vmax.f32 %v2333, %v2480
  %v2530 = vmax.f32 %v2334, %v2481
  %v2531 = vmax.f32 %v2335, %v2482
  %v2532 = vmax.f32 %v2336, %v2483
  %v2533 = vmax.f32 %v2337, %v2484
  %v2534 = vmax.f32 %v2338, %v2485
  %v2535 = vmax.f32 %v2339, %v2486
  %v2536 = vmax.f32 %v2340, %v2487
  %v2537 = vmax.f32 %v2341, %v2488
  %v2538 = vld [vmem:[%s2] sm:$0x1]
  %v2540 = vlaneseq
  %v2541 = vshrl.u32 %v2540, 7
  %v2542 = vsub.s32 0, %v2541
  %v2543 = vrot.slane %v2538, %v2542
  %v2545 = vadd.f32 %v2489, %v2543
  %v2546 = vadd.f32 %v2490, %v2543
  %v2547 = vadd.f32 %v2491, %v2543
  %v2548 = vadd.f32 %v2492, %v2543
  %v2549 = vadd.f32 %v2493, %v2543
  %v2550 = vadd.f32 %v2494, %v2543
  %v2551 = vadd.f32 %v2495, %v2543
  %v2552 = vadd.f32 %v2496, %v2543
  %v2553 = vadd.f32 %v2497, %v2543
  %v2554 = vadd.f32 %v2498, %v2543
  %v2555 = vadd.f32 %v2499, %v2543
  %v2556 = vadd.f32 %v2500, %v2543
  %v2557 = vadd.f32 %v2501, %v2543
  %v2558 = vadd.f32 %v2502, %v2543
  %v2559 = vadd.f32 %v2503, %v2543
  %v2560 = vadd.f32 %v2504, %v2543
  %v2561 = vadd.f32 %v2505, %v2543
  %v2562 = vadd.f32 %v2506, %v2543
  %v2563 = vadd.f32 %v2507, %v2543
  %v2564 = vadd.f32 %v2508, %v2543
  %v2565 = vadd.f32 %v2509, %v2543
  %v2566 = vadd.f32 %v2510, %v2543
  %v2567 = vadd.f32 %v2511, %v2543
  %v2568 = vadd.f32 %v2512, %v2543
  %v2569 = vadd.f32 %v2513, %v2543
  %v2570 = vadd.f32 %v2514, %v2543
  %v2571 = vadd.f32 %v2515, %v2543
  %v2572 = vadd.f32 %v2516, %v2543
  %v2573 = vadd.f32 %v2517, %v2543
  %v2574 = vadd.f32 %v2518, %v2543
  %v2575 = vadd.f32 %v2519, %v2543
  %v2576 = vadd.f32 %v2520, %v2543
  %v2577 = vadd.f32 %v2521, %v2543
  %v2578 = vadd.f32 %v2522, %v2543
  %v2579 = vadd.f32 %v2523, %v2543
  %v2580 = vadd.f32 %v2524, %v2543
  %v2581 = vadd.f32 %v2525, %v2543
  %v2582 = vadd.f32 %v2526, %v2543
  %v2583 = vadd.f32 %v2527, %v2543
  %v2584 = vadd.f32 %v2528, %v2543
  %v2585 = vadd.f32 %v2529, %v2543
  %v2586 = vadd.f32 %v2530, %v2543
  %v2587 = vadd.f32 %v2531, %v2543
  %v2588 = vadd.f32 %v2532, %v2543
  %v2589 = vadd.f32 %v2533, %v2543
  %v2590 = vadd.f32 %v2534, %v2543
  %v2591 = vadd.f32 %v2535, %v2543
  %v2592 = vadd.f32 %v2536, %v2543
  %v2593 = vadd.f32 %v2537, %v2543
  %v2594 = vmax.f32 %v2545, 0.0
  %v2595 = vmax.f32 %v2546, 0.0
  %v2596 = vmax.f32 %v2547, 0.0
  %v2597 = vmax.f32 %v2548, 0.0
  %v2598 = vmax.f32 %v2549, 0.0
  %v2599 = vmax.f32 %v2550, 0.0
  %v2600 = vmax.f32 %v2551, 0.0
  %v2601 = vmax.f32 %v2552, 0.0
  %v2602 = vmax.f32 %v2553, 0.0
  %v2603 = vmax.f32 %v2554, 0.0
  %v2604 = vmax.f32 %v2555, 0.0
  %v2605 = vmax.f32 %v2556, 0.0
  %v2606 = vmax.f32 %v2557, 0.0
  %v2607 = vmax.f32 %v2558, 0.0
  %v2608 = vmax.f32 %v2559, 0.0
  %v2609 = vmax.f32 %v2560, 0.0
  %v2610 = vmax.f32 %v2561, 0.0
  %v2611 = vmax.f32 %v2562, 0.0
  %v2612 = vmax.f32 %v2563, 0.0
  %v2613 = vmax.f32 %v2564, 0.0
  %v2614 = vmax.f32 %v2565, 0.0
  %v2615 = vmax.f32 %v2566, 0.0
  %v2616 = vmax.f32 %v2567, 0.0
  %v2617 = vmax.f32 %v2568, 0.0
  %v2618 = vmax.f32 %v2569, 0.0
  %v2619 = vmax.f32 %v2570, 0.0
  %v2620 = vmax.f32 %v2571, 0.0
  %v2621 = vmax.f32 %v2572, 0.0
  %v2622 = vmax.f32 %v2573, 0.0
  %v2623 = vmax.f32 %v2574, 0.0
  %v2624 = vmax.f32 %v2575, 0.0
  %v2625 = vmax.f32 %v2576, 0.0
  %v2626 = vmax.f32 %v2577, 0.0
  %v2627 = vmax.f32 %v2578, 0.0
  %v2628 = vmax.f32 %v2579, 0.0
  %v2629 = vmax.f32 %v2580, 0.0
  %v2630 = vmax.f32 %v2581, 0.0
  %v2631 = vmax.f32 %v2582, 0.0
  %v2632 = vmax.f32 %v2583, 0.0
  %v2633 = vmax.f32 %v2584, 0.0
  %v2634 = vmax.f32 %v2585, 0.0
  %v2635 = vmax.f32 %v2586, 0.0
  %v2636 = vmax.f32 %v2587, 0.0
  %v2637 = vmax.f32 %v2588, 0.0
  %v2638 = vmax.f32 %v2589, 0.0
  %v2639 = vmax.f32 %v2590, 0.0
  %v2640 = vmax.f32 %v2591, 0.0
  %v2641 = vmax.f32 %v2592, 0.0
  %v2642 = vmax.f32 %v2593, 0.0
  %v2643 = vpack.c.bf16 %v2595, %v2594
  %v2644 = vpack.c.bf16 %v2597, %v2596
  %v2645 = vpack.c.bf16 %v2599, %v2598
  %v2646 = vpack.c.bf16 %v2601, %v2600
  %v2647 = vpack.c.bf16 %v2603, %v2602
  %v2648 = vpack.c.bf16 %v2605, %v2604
  %v2649 = vpack.c.bf16 %v2607, %v2606
  %v2650 = vpack.c.bf16 %v2609, %v2608
  %v2651 = vpack.c.bf16 %v2611, %v2610
  %v2652 = vpack.c.bf16 %v2613, %v2612
  %v2653 = vpack.c.bf16 %v2615, %v2614
  %v2654 = vpack.c.bf16 %v2617, %v2616
  %v2655 = vpack.c.bf16 %v2619, %v2618
  %v2656 = vpack.c.bf16 %v2621, %v2620
  %v2657 = vpack.c.bf16 %v2623, %v2622
  %v2658 = vpack.c.bf16 %v2625, %v2624
  %v2659 = vpack.c.bf16 %v2627, %v2626
  %v2660 = vpack.c.bf16 %v2629, %v2628
  %v2661 = vpack.c.bf16 %v2631, %v2630
  %v2662 = vpack.c.bf16 %v2633, %v2632
  %v2663 = vpack.c.bf16 %v2635, %v2634
  %v2664 = vpack.c.bf16 %v2637, %v2636
  %v2665 = vpack.c.bf16 %v2639, %v2638
  %v2666 = vpack.c.bf16 %v2641, %v2640
  %v2667 = vpack.c.bf16 %v2642, %v2642
  %v2693 = vunpack.c.l.b16 %v2643
  %v2694 = vunpack.c.h.b16 %v2643
  %v2695 = vunpack.c.l.b16 %v2644
  %v2696 = vunpack.c.h.b16 %v2644
  %v2697 = vunpack.c.l.b16 %v2645
  %v2698 = vunpack.c.h.b16 %v2645
  %v2699 = vunpack.c.l.b16 %v2646
  %v2700 = vunpack.c.h.b16 %v2646
  %v2701 = vunpack.c.l.b16 %v2647
  %v2702 = vunpack.c.h.b16 %v2647
  %v2703 = vunpack.c.l.b16 %v2648
  %v2704 = vunpack.c.h.b16 %v2648
  %v2705 = vunpack.c.l.b16 %v2649
  %v2706 = vunpack.c.h.b16 %v2649
  %v2707 = vunpack.c.l.b16 %v2650
  %v2708 = vunpack.c.h.b16 %v2650
  %v2709 = vunpack.c.l.b16 %v2651
  %v2710 = vunpack.c.h.b16 %v2651
  %v2711 = vunpack.c.l.b16 %v2652
  %v2712 = vunpack.c.h.b16 %v2652
  %v2713 = vunpack.c.l.b16 %v2653
  %v2714 = vunpack.c.h.b16 %v2653
  %v2715 = vunpack.c.l.b16 %v2654
  %v2716 = vunpack.c.h.b16 %v2654
  %v2717 = vunpack.c.l.b16 %v2655
  %v2718 = vunpack.c.h.b16 %v2655
  %v2719 = vunpack.c.l.b16 %v2656
  %v2720 = vunpack.c.h.b16 %v2656
  %v2721 = vunpack.c.l.b16 %v2657
  %v2722 = vunpack.c.h.b16 %v2657
  %v2723 = vunpack.c.l.b16 %v2658
  %v2724 = vunpack.c.h.b16 %v2658
  %v2725 = vunpack.c.l.b16 %v2659
  %v2726 = vunpack.c.h.b16 %v2659
  %v2727 = vunpack.c.l.b16 %v2660
  %v2728 = vunpack.c.h.b16 %v2660
  %v2729 = vunpack.c.l.b16 %v2661
  %v2730 = vunpack.c.h.b16 %v2661
  %v2731 = vunpack.c.l.b16 %v2662
  %v2732 = vunpack.c.h.b16 %v2662
  %v2733 = vunpack.c.l.b16 %v2663
  %v2734 = vunpack.c.h.b16 %v2663
  %v2735 = vunpack.c.l.b16 %v2664
  %v2736 = vunpack.c.h.b16 %v2664
  %v2737 = vunpack.c.l.b16 %v2665
  %v2738 = vunpack.c.h.b16 %v2665
  %v2739 = vunpack.c.l.b16 %v2666
  %v2740 = vunpack.c.h.b16 %v2666
  %v2741 = vunpack.c.l.b16 %v2667
  %v2742 = vpack.c.b16 %v2693, %v2693
  %v2743 = vpack.c.b16 %v2694, %v2694
  %v2744 = vpack.c.b16 %v2695, %v2695
  %v2745 = vpack.c.b16 %v2696, %v2696
  %v2746 = vpack.c.b16 %v2697, %v2697
  %v2747 = vpack.c.b16 %v2698, %v2698
  %v2748 = vpack.c.b16 %v2699, %v2699
  %v2749 = vpack.c.b16 %v2700, %v2700
  %v2750 = vpack.c.b16 %v2701, %v2701
  %v2751 = vpack.c.b16 %v2702, %v2702
  %v2752 = vpack.c.b16 %v2703, %v2703
  %v2753 = vpack.c.b16 %v2704, %v2704
  %v2754 = vpack.c.b16 %v2705, %v2705
  %v2755 = vpack.c.b16 %v2706, %v2706
  %v2756 = vpack.c.b16 %v2707, %v2707
  %v2757 = vpack.c.b16 %v2708, %v2708
  %v2758 = vpack.c.b16 %v2709, %v2709
  %v2759 = vpack.c.b16 %v2710, %v2710
  %v2760 = vpack.c.b16 %v2711, %v2711
  %v2761 = vpack.c.b16 %v2712, %v2712
  %v2762 = vpack.c.b16 %v2713, %v2713
  %v2763 = vpack.c.b16 %v2714, %v2714
  %v2764 = vpack.c.b16 %v2715, %v2715
  %v2765 = vpack.c.b16 %v2716, %v2716
  %v2766 = vpack.c.b16 %v2717, %v2717
  %v2767 = vpack.c.b16 %v2718, %v2718
  %v2768 = vpack.c.b16 %v2719, %v2719
  %v2769 = vpack.c.b16 %v2720, %v2720
  %v2770 = vpack.c.b16 %v2721, %v2721
  %v2771 = vpack.c.b16 %v2722, %v2722
  %v2772 = vpack.c.b16 %v2723, %v2723
  %v2773 = vpack.c.b16 %v2724, %v2724
  %v2774 = vpack.c.b16 %v2725, %v2725
  %v2775 = vpack.c.b16 %v2726, %v2726
  %v2776 = vpack.c.b16 %v2727, %v2727
  %v2777 = vpack.c.b16 %v2728, %v2728
  %v2778 = vpack.c.b16 %v2729, %v2729
  %v2779 = vpack.c.b16 %v2730, %v2730
  %v2780 = vpack.c.b16 %v2731, %v2731
  %v2781 = vpack.c.b16 %v2732, %v2732
  %v2782 = vpack.c.b16 %v2733, %v2733
  %v2783 = vpack.c.b16 %v2734, %v2734
  %v2784 = vpack.c.b16 %v2735, %v2735
  %v2785 = vpack.c.b16 %v2736, %v2736
  %v2786 = vpack.c.b16 %v2737, %v2737
  %v2787 = vpack.c.b16 %v2738, %v2738
  %v2788 = vpack.c.b16 %v2739, %v2739
  %v2789 = vpack.c.b16 %v2740, %v2740
  %v2790 = vpack.c.b16 %v2741, %v2741
  %2840 = vst [vmem:[#allocation3] sm:$0xf] %v2742
  %2841 = vst [vmem:[#allocation3 + $0x4] sm:$0xf] %v2743
  %2842 = vst [vmem:[#allocation3 + $0x8] sm:$0xf] %v2744
  %2843 = vst [vmem:[#allocation3 + $0xc] sm:$0xf] %v2745
  %2844 = vst [vmem:[#allocation3 + $0x10] sm:$0xf] %v2746
  %2845 = vst [vmem:[#allocation3 + $0x14] sm:$0xf] %v2747
  %2846 = vst [vmem:[#allocation3 + $0x18] sm:$0xf] %v2748
  %2847 = vst [vmem:[#allocation3 + $0x1c] sm:$0xf] %v2749
  %2848 = vst [vmem:[#allocation3 + $0x20] sm:$0xf] %v2750
  %2849 = vst [vmem:[#allocation3 + $0x24] sm:$0xf] %v2751
  %2850 = vst [vmem:[#allocation3 + $0x28] sm:$0xf] %v2752
  %2851 = vst [vmem:[#allocation3 + $0x2c] sm:$0xf] %v2753
  %2852 = vst [vmem:[#allocation3 + $0x30] sm:$0xf] %v2754
  %2853 = vst [vmem:[#allocation3 + $0x34] sm:$0xf] %v2755
  %2854 = vst [vmem:[#allocation3 + $0x38] sm:$0xf] %v2756
  %2855 = vst [vmem:[#allocation3 + $0x3c] sm:$0xf] %v2757
  %2856 = vst [vmem:[#allocation3 + $0x40] sm:$0xf] %v2758
  %2857 = vst [vmem:[#allocation3 + $0x44] sm:$0xf] %v2759
  %2858 = vst [vmem:[#allocation3 + $0x48] sm:$0xf] %v2760
  %2859 = vst [vmem:[#allocation3 + $0x4c] sm:$0xf] %v2761
  %2860 = vst [vmem:[#allocation3 + $0x50] sm:$0xf] %v2762
  %2861 = vst [vmem:[#allocation3 + $0x54] sm:$0xf] %v2763
  %2862 = vst [vmem:[#allocation3 + $0x58] sm:$0xf] %v2764
  %2863 = vst [vmem:[#allocation3 + $0x5c] sm:$0xf] %v2765
  %2864 = vst [vmem:[#allocation3 + $0x60] sm:$0xf] %v2766
  %2865 = vst [vmem:[#allocation3 + $0x64] sm:$0xf] %v2767
  %2866 = vst [vmem:[#allocation3 + $0x68] sm:$0xf] %v2768
  %2867 = vst [vmem:[#allocation3 + $0x6c] sm:$0xf] %v2769
  %2868 = vst [vmem:[#allocation3 + $0x70] sm:$0xf] %v2770
  %2869 = vst [vmem:[#allocation3 + $0x74] sm:$0xf] %v2771
  %2870 = vst [vmem:[#allocation3 + $0x78] sm:$0xf] %v2772
  %2871 = vst [vmem:[#allocation3 + $0x7c] sm:$0xf] %v2773
  %2872 = vst [vmem:[#allocation3 + $0x80] sm:$0xf] %v2774
  %2873 = vst [vmem:[#allocation3 + $0x84] sm:$0xf] %v2775
  %2874 = vst [vmem:[#allocation3 + $0x88] sm:$0xf] %v2776
  %2875 = vst [vmem:[#allocation3 + $0x8c] sm:$0xf] %v2777
  %2876 = vst [vmem:[#allocation3 + $0x90] sm:$0xf] %v2778
  %2877 = vst [vmem:[#allocation3 + $0x94] sm:$0xf] %v2779
  %2878 = vst [vmem:[#allocation3 + $0x98] sm:$0xf] %v2780
  %2879 = vst [vmem:[#allocation3 + $0x9c] sm:$0xf] %v2781
  %2880 = vst [vmem:[#allocation3 + $0xa0] sm:$0xf] %v2782
  %2881 = vst [vmem:[#allocation3 + $0xa4] sm:$0xf] %v2783
  %2882 = vst [vmem:[#allocation3 + $0xa8] sm:$0xf] %v2784
  %2883 = vst [vmem:[#allocation3 + $0xac] sm:$0xf] %v2785
  %2884 = vst [vmem:[#allocation3 + $0xb0] sm:$0xf] %v2786
  %2885 = vst [vmem:[#allocation3 + $0xb4] sm:$0xf] %v2787
  %2886 = vst [vmem:[#allocation3 + $0xb8] sm:$0xf] %v2788
  %2887 = vst [vmem:[#allocation3 + $0xbc] sm:$0xf] %v2789
  %2888 = vst [vmem:[#allocation3 + $0xc0] sm:$0xf] %v2790
  %2889 = vst [vmem:[#allocation3 + $0xc4] sm:$0xf] 0
  %2890 = vst [vmem:[#allocation3 + $0xc8] sm:$0xf] 0
  %2891 = vst [vmem:[#allocation3 + $0xcc] sm:$0xf] 0
  %2892 = vst [vmem:[#allocation3 + $0xd0] sm:$0xf] 0
  %2893 = vst [vmem:[#allocation3 + $0xd4] sm:$0xf] 0
  %2894 = vst [vmem:[#allocation3 + $0xd8] sm:$0xf] 0
  %2895 = vst [vmem:[#allocation3 + $0xdc] sm:$0xf] 0
  %2896 = vst [vmem:[#allocation3 + $0xe0] sm:$0xf] 0
  %2897 = vst [vmem:[#allocation3 + $0xe4] sm:$0xf] 0
  %2898 = vst [vmem:[#allocation3 + $0xe8] sm:$0xf] 0
  %2899 = vst [vmem:[#allocation3 + $0xec] sm:$0xf] 0
  %2900 = vst [vmem:[#allocation3 + $0xf0] sm:$0xf] 0
  %2901 = vst [vmem:[#allocation3 + $0xf4] sm:$0xf] 0
  %2902 = vst [vmem:[#allocation3 + $0xf8] sm:$0xf] 0
  %v2903 = vld [vmem:[#allocation3] sm:$0xf]
  %v2904 = vld [vmem:[#allocation3 + $0x4] sm:$0xf]
  %v2905 = vld [vmem:[#allocation3 + $0x8] sm:$0xf]
  %v2906 = vld [vmem:[#allocation3 + $0xc] sm:$0xf]
  %v2907 = vld [vmem:[#allocation3 + $0x10] sm:$0xf]
  %v2908 = vld [vmem:[#allocation3 + $0x14] sm:$0xf]
  %v2909 = vld [vmem:[#allocation3 + $0x18] sm:$0xf]
  %v2910 = vld [vmem:[#allocation3 + $0x1c] sm:$0xf]
  %v2911 = vld [vmem:[#allocation3 + $0x20] sm:$0xf]
  %v2912 = vld [vmem:[#allocation3 + $0x24] sm:$0xf]
  %v2913 = vld [vmem:[#allocation3 + $0x28] sm:$0xf]
  %v2914 = vld [vmem:[#allocation3 + $0x2c] sm:$0xf]
  %v2915 = vld [vmem:[#allocation3 + $0x30] sm:$0xf]
  %v2916 = vld [vmem:[#allocation3 + $0x34] sm:$0xf]
  %v2917 = vld [vmem:[#allocation3 + $0x38] sm:$0xf]
  %v2918 = vld [vmem:[#allocation3 + $0x3c] sm:$0xf]
  %v2919 = vld [vmem:[#allocation3 + $0x40] sm:$0xf]
  %v2920 = vld [vmem:[#allocation3 + $0x44] sm:$0xf]
  %v2921 = vld [vmem:[#allocation3 + $0x48] sm:$0xf]
  %v2922 = vld [vmem:[#allocation3 + $0x4c] sm:$0xf]
  %v2923 = vld [vmem:[#allocation3 + $0x50] sm:$0xf]
  %v2924 = vld [vmem:[#allocation3 + $0x54] sm:$0xf]
  %v2925 = vld [vmem:[#allocation3 + $0x58] sm:$0xf]
  %v2926 = vld [vmem:[#allocation3 + $0x5c] sm:$0xf]
  %v2927 = vld [vmem:[#allocation3 + $0x60] sm:$0xf]
  %v2928 = vld [vmem:[#allocation3 + $0x64] sm:$0xf]
  %v2929 = vld [vmem:[#allocation3 + $0x68] sm:$0xf]
  %v2930 = vld [vmem:[#allocation3 + $0x6c] sm:$0xf]
  %v2931 = vld [vmem:[#allocation3 + $0x70] sm:$0xf]
  %v2932 = vld [vmem:[#allocation3 + $0x74] sm:$0xf]
  %v2933 = vld [vmem:[#allocation3 + $0x78] sm:$0xf]
  %v2934 = vld [vmem:[#allocation3 + $0x7c] sm:$0xf]
  %v2935 = vld [vmem:[#allocation3 + $0x80] sm:$0xf]
  %v2936 = vld [vmem:[#allocation3 + $0x84] sm:$0xf]
  %v2937 = vld [vmem:[#allocation3 + $0x88] sm:$0xf]
  %v2938 = vld [vmem:[#allocation3 + $0x8c] sm:$0xf]
  %v2939 = vld [vmem:[#allocation3 + $0x90] sm:$0xf]
  %v2940 = vld [vmem:[#allocation3 + $0x94] sm:$0xf]
  %v2941 = vld [vmem:[#allocation3 + $0x98] sm:$0xf]
  %v2942 = vld [vmem:[#allocation3 + $0x9c] sm:$0xf]
  %v2943 = vld [vmem:[#allocation3 + $0xa0] sm:$0xf]
  %v2944 = vld [vmem:[#allocation3 + $0xa4] sm:$0xf]
  %v2945 = vld [vmem:[#allocation3 + $0xa8] sm:$0xf]
  %v2946 = vld [vmem:[#allocation3 + $0xac] sm:$0xf]
  %v2947 = vld [vmem:[#allocation3 + $0xb0] sm:$0xf]
  %v2948 = vld [vmem:[#allocation3 + $0xb4] sm:$0xf]
  %v2949 = vld [vmem:[#allocation3 + $0xb8] sm:$0xf]
  %v2950 = vld [vmem:[#allocation3 + $0xbc] sm:$0xf]
  %v2951 = vld [vmem:[#allocation3 + $0xc0] sm:$0xf]
  %2952 = vst [vmem:[#allocation4] sm:$0xf] %v2903
  %2953 = vst [vmem:[#allocation4 + $0x14] sm:$0xf] %v2904
  %2954 = vst [vmem:[#allocation4 + $0x28] sm:$0xf] %v2905
  %2955 = vst [vmem:[#allocation4 + $0x3c] sm:$0xf] %v2906
  %2956 = vst [vmem:[#allocation4 + $0x50] sm:$0xf] %v2907
  %2957 = vst [vmem:[#allocation4 + $0x64] sm:$0xf] %v2908
  %2958 = vst [vmem:[#allocation4 + $0x78] sm:$0xf] %v2909
  %2959 = vst [vmem:[#allocation4 + $0x8c] sm:$0xf] %v2910
  %2960 = vst [vmem:[#allocation4 + $0xa0] sm:$0xf] %v2911
  %2961 = vst [vmem:[#allocation4 + $0xb4] sm:$0xf] %v2912
  %2962 = vst [vmem:[#allocation4 + $0xc8] sm:$0xf] %v2913
  %2963 = vst [vmem:[#allocation4 + $0xdc] sm:$0xf] %v2914
  %2964 = vst [vmem:[#allocation4 + $0xf0] sm:$0xf] %v2915
  %2965 = vst [vmem:[#allocation4 + $0x104] sm:$0xf] %v2916
  %2966 = vst [vmem:[#allocation4 + $0x118] sm:$0xf] %v2917
  %2967 = vst [vmem:[#allocation4 + $0x12c] sm:$0xf] %v2918
  %2968 = vst [vmem:[#allocation4 + $0x140] sm:$0xf] %v2919
  %2969 = vst [vmem:[#allocation4 + $0x154] sm:$0xf] %v2920
  %2970 = vst [vmem:[#allocation4 + $0x168] sm:$0xf] %v2921
  %2971 = vst [vmem:[#allocation4 + $0x17c] sm:$0xf] %v2922
  %2972 = vst [vmem:[#allocation4 + $0x190] sm:$0xf] %v2923
  %2973 = vst [vmem:[#allocation4 + $0x1a4] sm:$0xf] %v2924
  %2974 = vst [vmem:[#allocation4 + $0x1b8] sm:$0xf] %v2925
  %2975 = vst [vmem:[#allocation4 + $0x1cc] sm:$0xf] %v2926
  %2976 = vst [vmem:[#allocation4 + $0x1e0] sm:$0xf] %v2927
  %2977 = vst [vmem:[#allocation4 + $0x1f4] sm:$0xf] %v2928
  %2978 = vst [vmem:[#allocation4 + $0x208] sm:$0xf] %v2929
  %2979 = vst [vmem:[#allocation4 + $0x21c] sm:$0xf] %v2930
  %2980 = vst [vmem:[#allocation4 + $0x230] sm:$0xf] %v2931
  %2981 = vst [vmem:[#allocation4 + $0x244] sm:$0xf] %v2932
  %2982 = vst [vmem:[#allocation4 + $0x258] sm:$0xf] %v2933
  %2983 = vst [vmem:[#allocation4 + $0x26c] sm:$0xf] %v2934
  %2984 = vst [vmem:[#allocation4 + $0x280] sm:$0xf] %v2935
  %2985 = vst [vmem:[#allocation4 + $0x294] sm:$0xf] %v2936
  %2986 = vst [vmem:[#allocation4 + $0x2a8] sm:$0xf] %v2937
  %2987 = vst [vmem:[#allocation4 + $0x2bc] sm:$0xf] %v2938
  %2988 = vst [vmem:[#allocation4 + $0x2d0] sm:$0xf] %v2939
  %2989 = vst [vmem:[#allocation4 + $0x2e4] sm:$0xf] %v2940
  %2990 = vst [vmem:[#allocation4 + $0x2f8] sm:$0xf] %v2941
  %2991 = vst [vmem:[#allocation4 + $0x30c] sm:$0xf] %v2942
  %2992 = vst [vmem:[#allocation4 + $0x320] sm:$0xf] %v2943
  %2993 = vst [vmem:[#allocation4 + $0x334] sm:$0xf] %v2944
  %2994 = vst [vmem:[#allocation4 + $0x348] sm:$0xf] %v2945
  %2995 = vst [vmem:[#allocation4 + $0x35c] sm:$0xf] %v2946
  %2996 = vst [vmem:[#allocation4 + $0x370] sm:$0xf] %v2947
  %2997 = vst [vmem:[#allocation4 + $0x384] sm:$0xf] %v2948
  %2998 = vst [vmem:[#allocation4 + $0x398] sm:$0xf] %v2949
  %2999 = vst [vmem:[#allocation4 + $0x3ac] sm:$0xf] %v2950
  %3000 = vst [vmem:[#allocation4 + $0x3c0] sm:$0xf] %v2951
  %v3001 = vld [vmem:[#allocation3 + $0xc] sm:$0xc]
  %v3002 = vld [vmem:[#allocation3 + $0x10] sm:$0xf]
  %v3003 = vld [vmem:[#allocation3 + $0x14] sm:$0xf]
  %v3004 = vld [vmem:[#allocation3 + $0x18] sm:$0xf]
  %v3005 = vld [vmem:[#allocation3 + $0x1c] sm:$0xf]
  %v3006 = vld [vmem:[#allocation3 + $0x20] sm:$0xf]
  %v3007 = vld [vmem:[#allocation3 + $0x24] sm:$0xf]
  %v3008 = vld [vmem:[#allocation3 + $0x28] sm:$0xf]
  %v3009 = vld [vmem:[#allocation3 + $0x2c] sm:$0xf]
  %v3010 = vld [vmem:[#allocation3 + $0x30] sm:$0xf]
  %v3011 = vld [vmem:[#allocation3 + $0x34] sm:$0xf]
  %v3012 = vld [vmem:[#allocation3 + $0x38] sm:$0xf]
  %v3013 = vld [vmem:[#allocation3 + $0x3c] sm:$0xf]
  %v3014 = vld [vmem:[#allocation3 + $0x40] sm:$0xf]
  %v3015 = vld [vmem:[#allocation3 + $0x44] sm:$0xf]
  %v3016 = vld [vmem:[#allocation3 + $0x48] sm:$0xf]
  %v3017 = vld [vmem:[#allocation3 + $0x4c] sm:$0xf]
  %v3018 = vld [vmem:[#allocation3 + $0x50] sm:$0xf]
  %v3019 = vld [vmem:[#allocation3 + $0x54] sm:$0xf]
  %v3020 = vld [vmem:[#allocation3 + $0x58] sm:$0xf]
  %v3021 = vld [vmem:[#allocation3 + $0x5c] sm:$0xf]
  %v3022 = vld [vmem:[#allocation3 + $0x60] sm:$0xf]
  %v3023 = vld [vmem:[#allocation3 + $0x64] sm:$0xf]
  %v3024 = vld [vmem:[#allocation3 + $0x68] sm:$0xf]
  %v3025 = vld [vmem:[#allocation3 + $0x6c] sm:$0xf]
  %v3026 = vld [vmem:[#allocation3 + $0x70] sm:$0xf]
  %v3027 = vld [vmem:[#allocation3 + $0x74] sm:$0xf]
  %v3028 = vld [vmem:[#allocation3 + $0x78] sm:$0xf]
  %v3029 = vld [vmem:[#allocation3 + $0x7c] sm:$0xf]
  %v3030 = vld [vmem:[#allocation3 + $0x80] sm:$0xf]
  %v3031 = vld [vmem:[#allocation3 + $0x84] sm:$0xf]
  %v3032 = vld [vmem:[#allocation3 + $0x88] sm:$0xf]
  %v3033 = vld [vmem:[#allocation3 + $0x8c] sm:$0xf]
  %v3034 = vld [vmem:[#allocation3 + $0x90] sm:$0xf]
  %v3035 = vld [vmem:[#allocation3 + $0x94] sm:$0xf]
  %v3036 = vld [vmem:[#allocation3 + $0x98] sm:$0xf]
  %v3037 = vld [vmem:[#allocation3 + $0x9c] sm:$0xf]
  %v3038 = vld [vmem:[#allocation3 + $0xa0] sm:$0xf]
  %v3039 = vld [vmem:[#allocation3 + $0xa4] sm:$0xf]
  %v3040 = vld [vmem:[#allocation3 + $0xa8] sm:$0xf]
  %v3041 = vld [vmem:[#allocation3 + $0xac] sm:$0xf]
  %v3042 = vld [vmem:[#allocation3 + $0xb0] sm:$0xf]
  %v3043 = vld [vmem:[#allocation3 + $0xb4] sm:$0xf]
  %v3044 = vld [vmem:[#allocation3 + $0xb8] sm:$0xf]
  %v3045 = vld [vmem:[#allocation3 + $0xbc] sm:$0xf]
  %v3046 = vld [vmem:[#allocation3 + $0xc0] sm:$0xf]
  %v3047 = vld [vmem:[#allocation3 + $0xc4] sm:$0xf]
  %v3048 = vld [vmem:[#allocation3 + $0xc8] sm:$0xf]
  %v3049 = vld [vmem:[#allocation3 + $0xcc] sm:$0xf]
  %v3050 = vld [vmem:[#allocation3 + $0xd0] sm:$0x3]
  %vm3101 = vcmask 1041408
  %vm3102 = vcmask 1045508
  %vm3103 = vmor %vm3101, %vm3102
  %v3104 = vrot.slane %v3001, 6
  %v3105 = vrot.slane %v3104, 4
  %v3106 = vrot.slane %v3002, 6
  %v3107 = vsel %vm3103, %v3105, %v3106
  %v3108 = vrot.slane %v3106, 4
  %v3109 = vrot.slane %v3003, 6
  %v3110 = vsel %vm3103, %v3108, %v3109
  %v3111 = vrot.slane %v3109, 4
  %v3112 = vrot.slane %v3004, 6
  %v3113 = vsel %vm3103, %v3111, %v3112
  %v3114 = vrot.slane %v3112, 4
  %v3115 = vrot.slane %v3005, 6
  %v3116 = vsel %vm3103, %v3114, %v3115
  %v3117 = vrot.slane %v3115, 4
  %v3118 = vrot.slane %v3006, 6
  %v3119 = vsel %vm3103, %v3117, %v3118
  %v3120 = vrot.slane %v3118, 4
  %v3121 = vrot.slane %v3007, 6
  %v3122 = vsel %vm3103, %v3120, %v3121
  %v3123 = vrot.slane %v3121, 4
  %v3124 = vrot.slane %v3008, 6
  %v3125 = vsel %vm3103, %v3123, %v3124
  %v3126 = vrot.slane %v3124, 4
  %v3127 = vrot.slane %v3009, 6
  %v3128 = vsel %vm3103, %v3126, %v3127
  %v3129 = vrot.slane %v3127, 4
  %v3130 = vrot.slane %v3010, 6
  %v3131 = vsel %vm3103, %v3129, %v3130
  %v3132 = vrot.slane %v3130, 4
  %v3133 = vrot.slane %v3011, 6
  %v3134 = vsel %vm3103, %v3132, %v3133
  %v3135 = vrot.slane %v3133, 4
  %v3136 = vrot.slane %v3012, 6
  %v3137 = vsel %vm3103, %v3135, %v3136
  %v3138 = vrot.slane %v3136, 4
  %v3139 = vrot.slane %v3013, 6
  %v3140 = vsel %vm3103, %v3138, %v3139
  %v3141 = vrot.slane %v3139, 4
  %v3142 = vrot.slane %v3014, 6
  %v3143 = vsel %vm3103, %v3141, %v3142
  %v3144 = vrot.slane %v3142, 4
  %v3145 = vrot.slane %v3015, 6
  %v3146 = vsel %vm3103, %v3144, %v3145
  %v3147 = vrot.slane %v3145, 4
  %v3148 = vrot.slane %v3016, 6
  %v3149 = vsel %vm3103, %v3147, %v3148
  %v3150 = vrot.slane %v3148, 4
  %v3151 = vrot.slane %v3017, 6
  %v3152 = vsel %vm3103, %v3150, %v3151
  %v3153 = vrot.slane %v3151, 4
  %v3154 = vrot.slane %v3018, 6
  %v3155 = vsel %vm3103, %v3153, %v3154
  %v3156 = vrot.slane %v3154, 4
  %v3157 = vrot.slane %v3019, 6
  %v3158 = vsel %vm3103, %v3156, %v3157
  %v3159 = vrot.slane %v3157, 4
  %v3160 = vrot.slane %v3020, 6
  %v3161 = vsel %vm3103, %v3159, %v3160
  %v3162 = vrot.slane %v3160, 4
  %v3163 = vrot.slane %v3021, 6
  %v3164 = vsel %vm3103, %v3162, %v3163
  %v3165 = vrot.slane %v3163, 4
  %v3166 = vrot.slane %v3022, 6
  %v3167 = vsel %vm3103, %v3165, %v3166
  %v3168 = vrot.slane %v3166, 4
  %v3169 = vrot.slane %v3023, 6
  %v3170 = vsel %vm3103, %v3168, %v3169
  %v3171 = vrot.slane %v3169, 4
  %v3172 = vrot.slane %v3024, 6
  %v3173 = vsel %vm3103, %v3171, %v3172
  %v3174 = vrot.slane %v3172, 4
  %v3175 = vrot.slane %v3025, 6
  %v3176 = vsel %vm3103, %v3174, %v3175
  %v3177 = vrot.slane %v3175, 4
  %v3178 = vrot.slane %v3026, 6
  %v3179 = vsel %vm3103, %v3177, %v3178
  %v3180 = vrot.slane %v3178, 4
  %v3181 = vrot.slane %v3027, 6
  %v3182 = vsel %vm3103, %v3180, %v3181
  %v3183 = vrot.slane %v3181, 4
  %v3184 = vrot.slane %v3028, 6
  %v3185 = vsel %vm3103, %v3183, %v3184
  %v3186 = vrot.slane %v3184, 4
  %v3187 = vrot.slane %v3029, 6
  %v3188 = vsel %vm3103, %v3186, %v3187
  %v3189 = vrot.slane %v3187, 4
  %v3190 = vrot.slane %v3030, 6
  %v3191 = vsel %vm3103, %v3189, %v3190
  %v3192 = vrot.slane %v3190, 4
  %v3193 = vrot.slane %v3031, 6
  %v3194 = vsel %vm3103, %v3192, %v3193
  %v3195 = vrot.slane %v3193, 4
  %v3196 = vrot.slane %v3032, 6
  %v3197 = vsel %vm3103, %v3195, %v3196
  %v3198 = vrot.slane %v3196, 4
  %v3199 = vrot.slane %v3033, 6
  %v3200 = vsel %vm3103, %v3198, %v3199
  %v3201 = vrot.slane %v3199, 4
  %v3202 = vrot.slane %v3034, 6
  %v3203 = vsel %vm3103, %v3201, %v3202
  %v3204 = vrot.slane %v3202, 4
  %v3205 = vrot.slane %v3035, 6
  %v3206 = vsel %vm3103, %v3204, %v3205
  %v3207 = vrot.slane %v3205, 4
  %v3208 = vrot.slane %v3036, 6
  %v3209 = vsel %vm3103, %v3207, %v3208
  %v3210 = vrot.slane %v3208, 4
  %v3211 = vrot.slane %v3037, 6
  %v3212 = vsel %vm3103, %v3210, %v3211
  %v3213 = vrot.slane %v3211, 4
  %v3214 = vrot.slane %v3038, 6
  %v3215 = vsel %vm3103, %v3213, %v3214
  %v3216 = vrot.slane %v3214, 4
  %v3217 = vrot.slane %v3039, 6
  %v3218 = vsel %vm3103, %v3216, %v3217
  %v3219 = vrot.slane %v3217, 4
  %v3220 = vrot.slane %v3040, 6
  %v3221 = vsel %vm3103, %v3219, %v3220
  %v3222 = vrot.slane %v3220, 4
  %v3223 = vrot.slane %v3041, 6
  %v3224 = vsel %vm3103, %v3222, %v3223
  %v3225 = vrot.slane %v3223, 4
  %v3226 = vrot.slane %v3042, 6
  %v3227 = vsel %vm3103, %v3225, %v3226
  %v3228 = vrot.slane %v3226, 4
  %v3229 = vrot.slane %v3043, 6
  %v3230 = vsel %vm3103, %v3228, %v3229
  %v3231 = vrot.slane %v3229, 4
  %v3232 = vrot.slane %v3044, 6
  %v3233 = vsel %vm3103, %v3231, %v3232
  %v3234 = vrot.slane %v3232, 4
  %v3235 = vrot.slane %v3045, 6
  %v3236 = vsel %vm3103, %v3234, %v3235
  %v3237 = vrot.slane %v3235, 4
  %v3238 = vrot.slane %v3046, 6
  %v3239 = vsel %vm3103, %v3237, %v3238
  %v3240 = vrot.slane %v3238, 4
  %v3241 = vrot.slane %v3047, 6
  %v3242 = vsel %vm3103, %v3240, %v3241
  %v3243 = vrot.slane %v3241, 4
  %v3244 = vrot.slane %v3048, 6
  %v3245 = vsel %vm3103, %v3243, %v3244
  %v3246 = vrot.slane %v3244, 4
  %v3247 = vrot.slane %v3049, 6
  %v3248 = vsel %vm3103, %v3246, %v3247
  %v3249 = vrot.slane %v3247, 4
  %v3250 = vrot.slane %v3050, 6
  %v3251 = vsel %vm3103, %v3249, %v3250
  %3301 = vst [vmem:[#allocation4 + $0x4] sm:$0xf] %v3107
  %3302 = vst [vmem:[#allocation4 + $0x18] sm:$0xf] %v3110
  %3303 = vst [vmem:[#allocation4 + $0x2c] sm:$0xf] %v3113
  %3304 = vst [vmem:[#allocation4 + $0x40] sm:$0xf] %v3116
  %3305 = vst [vmem:[#allocation4 + $0x54] sm:$0xf] %v3119
  %3306 = vst [vmem:[#allocation4 + $0x68] sm:$0xf] %v3122
  %3307 = vst [vmem:[#allocation4 + $0x7c] sm:$0xf] %v3125
  %3308 = vst [vmem:[#allocation4 + $0x90] sm:$0xf] %v3128
  %3309 = vst [vmem:[#allocation4 + $0xa4] sm:$0xf] %v3131
  %3310 = vst [vmem:[#allocation4 + $0xb8] sm:$0xf] %v3134
  %3311 = vst [vmem:[#allocation4 + $0xcc] sm:$0xf] %v3137
  %3312 = vst [vmem:[#allocation4 + $0xe0] sm:$0xf] %v3140
  %3313 = vst [vmem:[#allocation4 + $0xf4] sm:$0xf] %v3143
  %3314 = vst [vmem:[#allocation4 + $0x108] sm:$0xf] %v3146
  %3315 = vst [vmem:[#allocation4 + $0x11c] sm:$0xf] %v3149
  %3316 = vst [vmem:[#allocation4 + $0x130] sm:$0xf] %v3152
  %3317 = vst [vmem:[#allocation4 + $0x144] sm:$0xf] %v3155
  %3318 = vst [vmem:[#allocation4 + $0x158] sm:$0xf] %v3158
  %3319 = vst [vmem:[#allocation4 + $0x16c] sm:$0xf] %v3161
  %3320 = vst [vmem:[#allocation4 + $0x180] sm:$0xf] %v3164
  %3321 = vst [vmem:[#allocation4 + $0x194] sm:$0xf] %v3167
  %3322 = vst [vmem:[#allocation4 + $0x1a8] sm:$0xf] %v3170
  %3323 = vst [vmem:[#allocation4 + $0x1bc] sm:$0xf] %v3173
  %3324 = vst [vmem:[#allocation4 + $0x1d0] sm:$0xf] %v3176
  %3325 = vst [vmem:[#allocation4 + $0x1e4] sm:$0xf] %v3179
  %3326 = vst [vmem:[#allocation4 + $0x1f8] sm:$0xf] %v3182
  %3327 = vst [vmem:[#allocation4 + $0x20c] sm:$0xf] %v3185
  %3328 = vst [vmem:[#allocation4 + $0x220] sm:$0xf] %v3188
  %3329 = vst [vmem:[#allocation4 + $0x234] sm:$0xf] %v3191
  %3330 = vst [vmem:[#allocation4 + $0x248] sm:$0xf] %v3194
  %3331 = vst [vmem:[#allocation4 + $0x25c] sm:$0xf] %v3197
  %3332 = vst [vmem:[#allocation4 + $0x270] sm:$0xf] %v3200
  %3333 = vst [vmem:[#allocation4 + $0x284] sm:$0xf] %v3203
  %3334 = vst [vmem:[#allocation4 + $0x298] sm:$0xf] %v3206
  %3335 = vst [vmem:[#allocation4 + $0x2ac] sm:$0xf] %v3209
  %3336 = vst [vmem:[#allocation4 + $0x2c0] sm:$0xf] %v3212
  %3337 = vst [vmem:[#allocation4 + $0x2d4] sm:$0xf] %v3215
  %3338 = vst [vmem:[#allocation4 + $0x2e8] sm:$0xf] %v3218
  %3339 = vst [vmem:[#allocation4 + $0x2fc] sm:$0xf] %v3221
  %3340 = vst [vmem:[#allocation4 + $0x310] sm:$0xf] %v3224
  %3341 = vst [vmem:[#allocation4 + $0x324] sm:$0xf] %v3227
  %3342 = vst [vmem:[#allocation4 + $0x338] sm:$0xf] %v3230
  %3343 = vst [vmem:[#allocation4 + $0x34c] sm:$0xf] %v3233
  %3344 = vst [vmem:[#allocation4 + $0x360] sm:$0xf] %v3236
  %3345 = vst [vmem:[#allocation4 + $0x374] sm:$0xf] %v3239
  %3346 = vst [vmem:[#allocation4 + $0x388] sm:$0xf] %v3242
  %3347 = vst [vmem:[#allocation4 + $0x39c] sm:$0xf] %v3245
  %3348 = vst [vmem:[#allocation4 + $0x3b0] sm:$0xf] %v3248
  %3349 = vst [vmem:[#allocation4 + $0x3c4] sm:$0xf] %v3251
  %v3350 = vld [vmem:[#allocation3 + $0x1c] sm:$0xf]
  %v3351 = vld [vmem:[#allocation3 + $0x20] sm:$0xf]
  %v3352 = vld [vmem:[#allocation3 + $0x24] sm:$0xf]
  %v3353 = vld [vmem:[#allocation3 + $0x28] sm:$0xf]
  %v3354 = vld [vmem:[#allocation3 + $0x2c] sm:$0xf]
  %v3355 = vld [vmem:[#allocation3 + $0x30] sm:$0xf]
  %v3356 = vld [vmem:[#allocation3 + $0x34] sm:$0xf]
  %v3357 = vld [vmem:[#allocation3 + $0x38] sm:$0xf]
  %v3358 = vld [vmem:[#allocation3 + $0x3c] sm:$0xf]
  %v3359 = vld [vmem:[#allocation3 + $0x40] sm:$0xf]
  %v3360 = vld [vmem:[#allocation3 + $0x44] sm:$0xf]
  %v3361 = vld [vmem:[#allocation3 + $0x48] sm:$0xf]
  %v3362 = vld [vmem:[#allocation3 + $0x4c] sm:$0xf]
  %v3363 = vld [vmem:[#allocation3 + $0x50] sm:$0xf]
  %v3364 = vld [vmem:[#allocation3 + $0x54] sm:$0xf]
  %v3365 = vld [vmem:[#allocation3 + $0x58] sm:$0xf]
  %v3366 = vld [vmem:[#allocation3 + $0x5c] sm:$0xf]
  %v3367 = vld [vmem:[#allocation3 + $0x60] sm:$0xf]
  %v3368 = vld [vmem:[#allocation3 + $0x64] sm:$0xf]
  %v3369 = vld [vmem:[#allocation3 + $0x68] sm:$0xf]
  %v3370 = vld [vmem:[#allocation3 + $0x6c] sm:$0xf]
  %v3371 = vld [vmem:[#allocation3 + $0x70] sm:$0xf]
  %v3372 = vld [vmem:[#allocation3 + $0x74] sm:$0xf]
  %v3373 = vld [vmem:[#allocation3 + $0x78] sm:$0xf]
  %v3374 = vld [vmem:[#allocation3 + $0x7c] sm:$0xf]
  %v3375 = vld [vmem:[#allocation3 + $0x80] sm:$0xf]
  %v3376 = vld [vmem:[#allocation3 + $0x84] sm:$0xf]
  %v3377 = vld [vmem:[#allocation3 + $0x88] sm:$0xf]
  %v3378 = vld [vmem:[#allocation3 + $0x8c] sm:$0xf]
  %v3379 = vld [vmem:[#allocation3 + $0x90] sm:$0xf]
  %v3380 = vld [vmem:[#allocation3 + $0x94] sm:$0xf]
  %v3381 = vld [vmem:[#allocation3 + $0x98] sm:$0xf]
  %v3382 = vld [vmem:[#allocation3 + $0x9c] sm:$0xf]
  %v3383 = vld [vmem:[#allocation3 + $0xa0] sm:$0xf]
  %v3384 = vld [vmem:[#allocation3 + $0xa4] sm:$0xf]
  %v3385 = vld [vmem:[#allocation3 + $0xa8] sm:$0xf]
  %v3386 = vld [vmem:[#allocation3 + $0xac] sm:$0xf]
  %v3387 = vld [vmem:[#allocation3 + $0xb0] sm:$0xf]
  %v3388 = vld [vmem:[#allocation3 + $0xb4] sm:$0xf]
  %v3389 = vld [vmem:[#allocation3 + $0xb8] sm:$0xf]
  %v3390 = vld [vmem:[#allocation3 + $0xbc] sm:$0xf]
  %v3391 = vld [vmem:[#allocation3 + $0xc0] sm:$0xf]
  %v3392 = vld [vmem:[#allocation3 + $0xc4] sm:$0xf]
  %v3393 = vld [vmem:[#allocation3 + $0xc8] sm:$0xf]
  %v3394 = vld [vmem:[#allocation3 + $0xcc] sm:$0xf]
  %v3395 = vld [vmem:[#allocation3 + $0xd0] sm:$0xf]
  %v3396 = vld [vmem:[#allocation3 + $0xd4] sm:$0xf]
  %v3397 = vld [vmem:[#allocation3 + $0xd8] sm:$0xf]
  %v3398 = vld [vmem:[#allocation3 + $0xdc] sm:$0xf]
  %3399 = vst [vmem:[#allocation4 + $0x8] sm:$0xf] %v3350
  %3400 = vst [vmem:[#allocation4 + $0x1c] sm:$0xf] %v3351
  %3401 = vst [vmem:[#allocation4 + $0x30] sm:$0xf] %v3352
  %3402 = vst [vmem:[#allocation4 + $0x44] sm:$0xf] %v3353
  %3403 = vst [vmem:[#allocation4 + $0x58] sm:$0xf] %v3354
  %3404 = vst [vmem:[#allocation4 + $0x6c] sm:$0xf] %v3355
  %3405 = vst [vmem:[#allocation4 + $0x80] sm:$0xf] %v3356
  %3406 = vst [vmem:[#allocation4 + $0x94] sm:$0xf] %v3357
  %3407 = vst [vmem:[#allocation4 + $0xa8] sm:$0xf] %v3358
  %3408 = vst [vmem:[#allocation4 + $0xbc] sm:$0xf] %v3359
  %3409 = vst [vmem:[#allocation4 + $0xd0] sm:$0xf] %v3360
  %3410 = vst [vmem:[#allocation4 + $0xe4] sm:$0xf] %v3361
  %3411 = vst [vmem:[#allocation4 + $0xf8] sm:$0xf] %v3362
  %3412 = vst [vmem:[#allocation4 + $0x10c] sm:$0xf] %v3363
  %3413 = vst [vmem:[#allocation4 + $0x120] sm:$0xf] %v3364
  %3414 = vst [vmem:[#allocation4 + $0x134] sm:$0xf] %v3365
  %3415 = vst [vmem:[#allocation4 + $0x148] sm:$0xf] %v3366
  %3416 = vst [vmem:[#allocation4 + $0x15c] sm:$0xf] %v3367
  %3417 = vst [vmem:[#allocation4 + $0x170] sm:$0xf] %v3368
  %3418 = vst [vmem:[#allocation4 + $0x184] sm:$0xf] %v3369
  %3419 = vst [vmem:[#allocation4 + $0x198] sm:$0xf] %v3370
  %3420 = vst [vmem:[#allocation4 + $0x1ac] sm:$0xf] %v3371
  %3421 = vst [vmem:[#allocation4 + $0x1c0] sm:$0xf] %v3372
  %3422 = vst [vmem:[#allocation4 + $0x1d4] sm:$0xf] %v3373
  %3423 = vst [vmem:[#allocation4 + $0x1e8] sm:$0xf] %v3374
  %3424 = vst [vmem:[#allocation4 + $0x1fc] sm:$0xf] %v3375
  %3425 = vst [vmem:[#allocation4 + $0x210] sm:$0xf] %v3376
  %3426 = vst [vmem:[#allocation4 + $0x224] sm:$0xf] %v3377
  %3427 = vst [vmem:[#allocation4 + $0x238] sm:$0xf] %v3378
  %3428 = vst [vmem:[#allocation4 + $0x24c] sm:$0xf] %v3379
  %3429 = vst [vmem:[#allocation4 + $0x260] sm:$0xf] %v3380
  %3430 = vst [vmem:[#allocation4 + $0x274] sm:$0xf] %v3381
  %3431 = vst [vmem:[#allocation4 + $0x288] sm:$0xf] %v3382
  %3432 = vst [vmem:[#allocation4 + $0x29c] sm:$0xf] %v3383
  %3433 = vst [vmem:[#allocation4 + $0x2b0] sm:$0xf] %v3384
  %3434 = vst [vmem:[#allocation4 + $0x2c4] sm:$0xf] %v3385
  %3435 = vst [vmem:[#allocation4 + $0x2d8] sm:$0xf] %v3386
  %3436 = vst [vmem:[#allocation4 + $0x2ec] sm:$0xf] %v3387
  %3437 = vst [vmem:[#allocation4 + $0x300] sm:$0xf] %v3388
  %3438 = vst [vmem:[#allocation4 + $0x314] sm:$0xf] %v3389
  %3439 = vst [vmem:[#allocation4 + $0x328] sm:$0xf] %v3390
  %3440 = vst [vmem:[#allocation4 + $0x33c] sm:$0xf] %v3391
  %3441 = vst [vmem:[#allocation4 + $0x350] sm:$0xf] %v3392
  %3442 = vst [vmem:[#allocation4 + $0x364] sm:$0xf] %v3393
  %3443 = vst [vmem:[#allocation4 + $0x378] sm:$0xf] %v3394
  %3444 = vst [vmem:[#allocation4 + $0x38c] sm:$0xf] %v3395
  %3445 = vst [vmem:[#allocation4 + $0x3a0] sm:$0xf] %v3396
  %3446 = vst [vmem:[#allocation4 + $0x3b4] sm:$0xf] %v3397
  %3447 = vst [vmem:[#allocation4 + $0x3c8] sm:$0xf] %v3398
  %v3448 = vld [vmem:[#allocation3 + $0x28] sm:$0xc]
  %v3449 = vld [vmem:[#allocation3 + $0x2c] sm:$0xf]
  %v3450 = vld [vmem:[#allocation3 + $0x30] sm:$0xf]
  %v3451 = vld [vmem:[#allocation3 + $0x34] sm:$0xf]
  %v3452 = vld [vmem:[#allocation3 + $0x38] sm:$0xf]
  %v3453 = vld [vmem:[#allocation3 + $0x3c] sm:$0xf]
  %v3454 = vld [vmem:[#allocation3 + $0x40] sm:$0xf]
  %v3455 = vld [vmem:[#allocation3 + $0x44] sm:$0xf]
  %v3456 = vld [vmem:[#allocation3 + $0x48] sm:$0xf]
  %v3457 = vld [vmem:[#allocation3 + $0x4c] sm:$0xf]
  %v3458 = vld [vmem:[#allocation3 + $0x50] sm:$0xf]
  %v3459 = vld [vmem:[#allocation3 + $0x54] sm:$0xf]
  %v3460 = vld [vmem:[#allocation3 + $0x58] sm:$0xf]
  %v3461 = vld [vmem:[#allocation3 + $0x5c] sm:$0xf]
  %v3462 = vld [vmem:[#allocation3 + $0x60] sm:$0xf]
  %v3463 = vld [vmem:[#allocation3 + $0x64] sm:$0xf]
  %v3464 = vld [vmem:[#allocation3 + $0x68] sm:$0xf]
  %v3465 = vld [vmem:[#allocation3 + $0x6c] sm:$0xf]
  %v3466 = vld [vmem:[#allocation3 + $0x70] sm:$0xf]
  %v3467 = vld [vmem:[#allocation3 + $0x74] sm:$0xf]
  %v3468 = vld [vmem:[#allocation3 + $0x78] sm:$0xf]
  %v3469 = vld [vmem:[#allocation3 + $0x7c] sm:$0xf]
  %v3470 = vld [vmem:[#allocation3 + $0x80] sm:$0xf]
  %v3471 = vld [vmem:[#allocation3 + $0x84] sm:$0xf]
  %v3472 = vld [vmem:[#allocation3 + $0x88] sm:$0xf]
  %v3473 = vld [vmem:[#allocation3 + $0x8c] sm:$0xf]
  %v3474 = vld [vmem:[#allocation3 + $0x90] sm:$0xf]
  %v3475 = vld [vmem:[#allocation3 + $0x94] sm:$0xf]
  %v3476 = vld [vmem:[#allocation3 + $0x98] sm:$0xf]
  %v3477 = vld [vmem:[#allocation3 + $0x9c] sm:$0xf]
  %v3478 = vld [vmem:[#allocation3 + $0xa0] sm:$0xf]
  %v3479 = vld [vmem:[#allocation3 + $0xa4] sm:$0xf]
  %v3480 = vld [vmem:[#allocation3 + $0xa8] sm:$0xf]
  %v3481 = vld [vmem:[#allocation3 + $0xac] sm:$0xf]
  %v3482 = vld [vmem:[#allocation3 + $0xb0] sm:$0xf]
  %v3483 = vld [vmem:[#allocation3 + $0xb4] sm:$0xf]
  %v3484 = vld [vmem:[#allocation3 + $0xb8] sm:$0xf]
  %v3485 = vld [vmem:[#allocation3 + $0xbc] sm:$0xf]
  %v3486 = vld [vmem:[#allocation3 + $0xc0] sm:$0xf]
  %v3487 = vld [vmem:[#allocation3 + $0xc4] sm:$0xf]
  %v3488 = vld [vmem:[#allocation3 + $0xc8] sm:$0xf]
  %v3489 = vld [vmem:[#allocation3 + $0xcc] sm:$0xf]
  %v3490 = vld [vmem:[#allocation3 + $0xd0] sm:$0xf]
  %v3491 = vld [vmem:[#allocation3 + $0xd4] sm:$0xf]
  %v3492 = vld [vmem:[#allocation3 + $0xd8] sm:$0xf]
  %v3493 = vld [vmem:[#allocation3 + $0xdc] sm:$0xf]
  %v3494 = vld [vmem:[#allocation3 + $0xe0] sm:$0xf]
  %v3495 = vld [vmem:[#allocation3 + $0xe4] sm:$0xf]
  %v3496 = vld [vmem:[#allocation3 + $0xe8] sm:$0xf]
  %v3497 = vld [vmem:[#allocation3 + $0xec] sm:$0x3]
  %v3548 = vrot.slane %v3448, 6
  %v3549 = vrot.slane %v3548, 4
  %v3550 = vrot.slane %v3449, 6
  %v3551 = vsel %vm3103, %v3549, %v3550
  %v3552 = vrot.slane %v3550, 4
  %v3553 = vrot.slane %v3450, 6
  %v3554 = vsel %vm3103, %v3552, %v3553
  %v3555 = vrot.slane %v3553, 4
  %v3556 = vrot.slane %v3451, 6
  %v3557 = vsel %vm3103, %v3555, %v3556
  %v3558 = vrot.slane %v3556, 4
  %v3559 = vrot.slane %v3452, 6
  %v3560 = vsel %vm3103, %v3558, %v3559
  %v3561 = vrot.slane %v3559, 4
  %v3562 = vrot.slane %v3453, 6
  %v3563 = vsel %vm3103, %v3561, %v3562
  %v3564 = vrot.slane %v3562, 4
  %v3565 = vrot.slane %v3454, 6
  %v3566 = vsel %vm3103, %v3564, %v3565
  %v3567 = vrot.slane %v3565, 4
  %v3568 = vrot.slane %v3455, 6
  %v3569 = vsel %vm3103, %v3567, %v3568
  %v3570 = vrot.slane %v3568, 4
  %v3571 = vrot.slane %v3456, 6
  %v3572 = vsel %vm3103, %v3570, %v3571
  %v3573 = vrot.slane %v3571, 4
  %v3574 = vrot.slane %v3457, 6
  %v3575 = vsel %vm3103, %v3573, %v3574
  %v3576 = vrot.slane %v3574, 4
  %v3577 = vrot.slane %v3458, 6
  %v3578 = vsel %vm3103, %v3576, %v3577
  %v3579 = vrot.slane %v3577, 4
  %v3580 = vrot.slane %v3459, 6
  %v3581 = vsel %vm3103, %v3579, %v3580
  %v3582 = vrot.slane %v3580, 4
  %v3583 = vrot.slane %v3460, 6
  %v3584 = vsel %vm3103, %v3582, %v3583
  %v3585 = vrot.slane %v3583, 4
  %v3586 = vrot.slane %v3461, 6
  %v3587 = vsel %vm3103, %v3585, %v3586
  %v3588 = vrot.slane %v3586, 4
  %v3589 = vrot.slane %v3462, 6
  %v3590 = vsel %vm3103, %v3588, %v3589
  %v3591 = vrot.slane %v3589, 4
  %v3592 = vrot.slane %v3463, 6
  %v3593 = vsel %vm3103, %v3591, %v3592
  %v3594 = vrot.slane %v3592, 4
  %v3595 = vrot.slane %v3464, 6
  %v3596 = vsel %vm3103, %v3594, %v3595
  %v3597 = vrot.slane %v3595, 4
  %v3598 = vrot.slane %v3465, 6
  %v3599 = vsel %vm3103, %v3597, %v3598
  %v3600 = vrot.slane %v3598, 4
  %v3601 = vrot.slane %v3466, 6
  %v3602 = vsel %vm3103, %v3600, %v3601
  %v3603 = vrot.slane %v3601, 4
  %v3604 = vrot.slane %v3467, 6
  %v3605 = vsel %vm3103, %v3603, %v3604
  %v3606 = vrot.slane %v3604, 4
  %v3607 = vrot.slane %v3468, 6
  %v3608 = vsel %vm3103, %v3606, %v3607
  %v3609 = vrot.slane %v3607, 4
  %v3610 = vrot.slane %v3469, 6
  %v3611 = vsel %vm3103, %v3609, %v3610
  %v3612 = vrot.slane %v3610, 4
  %v3613 = vrot.slane %v3470, 6
  %v3614 = vsel %vm3103, %v3612, %v3613
  %v3615 = vrot.slane %v3613, 4
  %v3616 = vrot.slane %v3471, 6
  %v3617 = vsel %vm3103, %v3615, %v3616
  %v3618 = vrot.slane %v3616, 4
  %v3619 = vrot.slane %v3472, 6
  %v3620 = vsel %vm3103, %v3618, %v3619
  %v3621 = vrot.slane %v3619, 4
  %v3622 = vrot.slane %v3473, 6
  %v3623 = vsel %vm3103, %v3621, %v3622
  %v3624 = vrot.slane %v3622, 4
  %v3625 = vrot.slane %v3474, 6
  %v3626 = vsel %vm3103, %v3624, %v3625
  %v3627 = vrot.slane %v3625, 4
  %v3628 = vrot.slane %v3475, 6
  %v3629 = vsel %vm3103, %v3627, %v3628
  %v3630 = vrot.slane %v3628, 4
  %v3631 = vrot.slane %v3476, 6
  %v3632 = vsel %vm3103, %v3630, %v3631
  %v3633 = vrot.slane %v3631, 4
  %v3634 = vrot.slane %v3477, 6
  %v3635 = vsel %vm3103, %v3633, %v3634
  %v3636 = vrot.slane %v3634, 4
  %v3637 = vrot.slane %v3478, 6
  %v3638 = vsel %vm3103, %v3636, %v3637
  %v3639 = vrot.slane %v3637, 4
  %v3640 = vrot.slane %v3479, 6
  %v3641 = vsel %vm3103, %v3639, %v3640
  %v3642 = vrot.slane %v3640, 4
  %v3643 = vrot.slane %v3480, 6
  %v3644 = vsel %vm3103, %v3642, %v3643
  %v3645 = vrot.slane %v3643, 4
  %v3646 = vrot.slane %v3481, 6
  %v3647 = vsel %vm3103, %v3645, %v3646
  %v3648 = vrot.slane %v3646, 4
  %v3649 = vrot.slane %v3482, 6
  %v3650 = vsel %vm3103, %v3648, %v3649
  %v3651 = vrot.slane %v3649, 4
  %v3652 = vrot.slane %v3483, 6
  %v3653 = vsel %vm3103, %v3651, %v3652
  %v3654 = vrot.slane %v3652, 4
  %v3655 = vrot.slane %v3484, 6
  %v3656 = vsel %vm3103, %v3654, %v3655
  %v3657 = vrot.slane %v3655, 4
  %v3658 = vrot.slane %v3485, 6
  %v3659 = vsel %vm3103, %v3657, %v3658
  %v3660 = vrot.slane %v3658, 4
  %v3661 = vrot.slane %v3486, 6
  %v3662 = vsel %vm3103, %v3660, %v3661
  %v3663 = vrot.slane %v3661, 4
  %v3664 = vrot.slane %v3487, 6
  %v3665 = vsel %vm3103, %v3663, %v3664
  %v3666 = vrot.slane %v3664, 4
  %v3667 = vrot.slane %v3488, 6
  %v3668 = vsel %vm3103, %v3666, %v3667
  %v3669 = vrot.slane %v3667, 4
  %v3670 = vrot.slane %v3489, 6
  %v3671 = vsel %vm3103, %v3669, %v3670
  %v3672 = vrot.slane %v3670, 4
  %v3673 = vrot.slane %v3490, 6
  %v3674 = vsel %vm3103, %v3672, %v3673
  %v3675 = vrot.slane %v3673, 4
  %v3676 = vrot.slane %v3491, 6
  %v3677 = vsel %vm3103, %v3675, %v3676
  %v3678 = vrot.slane %v3676, 4
  %v3679 = vrot.slane %v3492, 6
  %v3680 = vsel %vm3103, %v3678, %v3679
  %v3681 = vrot.slane %v3679, 4
  %v3682 = vrot.slane %v3493, 6
  %v3683 = vsel %vm3103, %v3681, %v3682
  %v3684 = vrot.slane %v3682, 4
  %v3685 = vrot.slane %v3494, 6
  %v3686 = vsel %vm3103, %v3684, %v3685
  %v3687 = vrot.slane %v3685, 4
  %v3688 = vrot.slane %v3495, 6
  %v3689 = vsel %vm3103, %v3687, %v3688
  %v3690 = vrot.slane %v3688, 4
  %v3691 = vrot.slane %v3496, 6
  %v3692 = vsel %vm3103, %v3690, %v3691
  %v3693 = vrot.slane %v3691, 4
  %v3694 = vrot.slane %v3497, 6
  %v3695 = vsel %vm3103, %v3693, %v3694
  %3745 = vst [vmem:[#allocation4 + $0xc] sm:$0xf] %v3551
  %3746 = vst [vmem:[#allocation4 + $0x20] sm:$0xf] %v3554
  %3747 = vst [vmem:[#allocation4 + $0x34] sm:$0xf] %v3557
  %3748 = vst [vmem:[#allocation4 + $0x48] sm:$0xf] %v3560
  %3749 = vst [vmem:[#allocation4 + $0x5c] sm:$0xf] %v3563
  %3750 = vst [vmem:[#allocation4 + $0x70] sm:$0xf] %v3566
  %3751 = vst [vmem:[#allocation4 + $0x84] sm:$0xf] %v3569
  %3752 = vst [vmem:[#allocation4 + $0x98] sm:$0xf] %v3572
  %3753 = vst [vmem:[#allocation4 + $0xac] sm:$0xf] %v3575
  %3754 = vst [vmem:[#allocation4 + $0xc0] sm:$0xf] %v3578
  %3755 = vst [vmem:[#allocation4 + $0xd4] sm:$0xf] %v3581
  %3756 = vst [vmem:[#allocation4 + $0xe8] sm:$0xf] %v3584
  %3757 = vst [vmem:[#allocation4 + $0xfc] sm:$0xf] %v3587
  %3758 = vst [vmem:[#allocation4 + $0x110] sm:$0xf] %v3590
  %3759 = vst [vmem:[#allocation4 + $0x124] sm:$0xf] %v3593
  %3760 = vst [vmem:[#allocation4 + $0x138] sm:$0xf] %v3596
  %3761 = vst [vmem:[#allocation4 + $0x14c] sm:$0xf] %v3599
  %3762 = vst [vmem:[#allocation4 + $0x160] sm:$0xf] %v3602
  %3763 = vst [vmem:[#allocation4 + $0x174] sm:$0xf] %v3605
  %3764 = vst [vmem:[#allocation4 + $0x188] sm:$0xf] %v3608
  %3765 = vst [vmem:[#allocation4 + $0x19c] sm:$0xf] %v3611
  %3766 = vst [vmem:[#allocation4 + $0x1b0] sm:$0xf] %v3614
  %3767 = vst [vmem:[#allocation4 + $0x1c4] sm:$0xf] %v3617
  %3768 = vst [vmem:[#allocation4 + $0x1d8] sm:$0xf] %v3620
  %3769 = vst [vmem:[#allocation4 + $0x1ec] sm:$0xf] %v3623
  %3770 = vst [vmem:[#allocation4 + $0x200] sm:$0xf] %v3626
  %3771 = vst [vmem:[#allocation4 + $0x214] sm:$0xf] %v3629
  %3772 = vst [vmem:[#allocation4 + $0x228] sm:$0xf] %v3632
  %3773 = vst [vmem:[#allocation4 + $0x23c] sm:$0xf] %v3635
  %3774 = vst [vmem:[#allocation4 + $0x250] sm:$0xf] %v3638
  %3775 = vst [vmem:[#allocation4 + $0x264] sm:$0xf] %v3641
  %3776 = vst [vmem:[#allocation4 + $0x278] sm:$0xf] %v3644
  %3777 = vst [vmem:[#allocation4 + $0x28c] sm:$0xf] %v3647
  %3778 = vst [vmem:[#allocation4 + $0x2a0] sm:$0xf] %v3650
  %3779 = vst [vmem:[#allocation4 + $0x2b4] sm:$0xf] %v3653
  %3780 = vst [vmem:[#allocation4 + $0x2c8] sm:$0xf] %v3656
  %3781 = vst [vmem:[#allocation4 + $0x2dc] sm:$0xf] %v3659
  %3782 = vst [vmem:[#allocation4 + $0x2f0] sm:$0xf] %v3662
  %3783 = vst [vmem:[#allocation4 + $0x304] sm:$0xf] %v3665
  %3784 = vst [vmem:[#allocation4 + $0x318] sm:$0xf] %v3668
  %3785 = vst [vmem:[#allocation4 + $0x32c] sm:$0xf] %v3671
  %3786 = vst [vmem:[#allocation4 + $0x340] sm:$0xf] %v3674
  %3787 = vst [vmem:[#allocation4 + $0x354] sm:$0xf] %v3677
  %3788 = vst [vmem:[#allocation4 + $0x368] sm:$0xf] %v3680
  %3789 = vst [vmem:[#allocation4 + $0x37c] sm:$0xf] %v3683
  %3790 = vst [vmem:[#allocation4 + $0x390] sm:$0xf] %v3686
  %3791 = vst [vmem:[#allocation4 + $0x3a4] sm:$0xf] %v3689
  %3792 = vst [vmem:[#allocation4 + $0x3b8] sm:$0xf] %v3692
  %3793 = vst [vmem:[#allocation4 + $0x3cc] sm:$0xf] %v3695
  %v3794 = vld [vmem:[#allocation3 + $0x38] sm:$0xf]
  %v3795 = vld [vmem:[#allocation3 + $0x3c] sm:$0xf]
  %v3796 = vld [vmem:[#allocation3 + $0x40] sm:$0xf]
  %v3797 = vld [vmem:[#allocation3 + $0x44] sm:$0xf]
  %v3798 = vld [vmem:[#allocation3 + $0x48] sm:$0xf]
  %v3799 = vld [vmem:[#allocation3 + $0x4c] sm:$0xf]
  %v3800 = vld [vmem:[#allocation3 + $0x50] sm:$0xf]
  %v3801 = vld [vmem:[#allocation3 + $0x54] sm:$0xf]
  %v3802 = vld [vmem:[#allocation3 + $0x58] sm:$0xf]
  %v3803 = vld [vmem:[#allocation3 + $0x5c] sm:$0xf]
  %v3804 = vld [vmem:[#allocation3 + $0x60] sm:$0xf]
  %v3805 = vld [vmem:[#allocation3 + $0x64] sm:$0xf]
  %v3806 = vld [vmem:[#allocation3 + $0x68] sm:$0xf]
  %v3807 = vld [vmem:[#allocation3 + $0x6c] sm:$0xf]
  %v3808 = vld [vmem:[#allocation3 + $0x70] sm:$0xf]
  %v3809 = vld [vmem:[#allocation3 + $0x74] sm:$0xf]
  %v3810 = vld [vmem:[#allocation3 + $0x78] sm:$0xf]
  %v3811 = vld [vmem:[#allocation3 + $0x7c] sm:$0xf]
  %v3812 = vld [vmem:[#allocation3 + $0x80] sm:$0xf]
  %v3813 = vld [vmem:[#allocation3 + $0x84] sm:$0xf]
  %v3814 = vld [vmem:[#allocation3 + $0x88] sm:$0xf]
  %v3815 = vld [vmem:[#allocation3 + $0x8c] sm:$0xf]
  %v3816 = vld [vmem:[#allocation3 + $0x90] sm:$0xf]
  %v3817 = vld [vmem:[#allocation3 + $0x94] sm:$0xf]
  %v3818 = vld [vmem:[#allocation3 + $0x98] sm:$0xf]
  %v3819 = vld [vmem:[#allocation3 + $0x9c] sm:$0xf]
  %v3820 = vld [vmem:[#allocation3 + $0xa0] sm:$0xf]
  %v3821 = vld [vmem:[#allocation3 + $0xa4] sm:$0xf]
  %v3822 = vld [vmem:[#allocation3 + $0xa8] sm:$0xf]
  %v3823 = vld [vmem:[#allocation3 + $0xac] sm:$0xf]
  %v3824 = vld [vmem:[#allocation3 + $0xb0] sm:$0xf]
  %v3825 = vld [vmem:[#allocation3 + $0xb4] sm:$0xf]
  %v3826 = vld [vmem:[#allocation3 + $0xb8] sm:$0xf]
  %v3827 = vld [vmem:[#allocation3 + $0xbc] sm:$0xf]
  %v3828 = vld [vmem:[#allocation3 + $0xc0] sm:$0xf]
  %v3829 = vld [vmem:[#allocation3 + $0xc4] sm:$0xf]
  %v3830 = vld [vmem:[#allocation3 + $0xc8] sm:$0xf]
  %v3831 = vld [vmem:[#allocation3 + $0xcc] sm:$0xf]
  %v3832 = vld [vmem:[#allocation3 + $0xd0] sm:$0xf]
  %v3833 = vld [vmem:[#allocation3 + $0xd4] sm:$0xf]
  %v3834 = vld [vmem:[#allocation3 + $0xd8] sm:$0xf]
  %v3835 = vld [vmem:[#allocation3 + $0xdc] sm:$0xf]
  %v3836 = vld [vmem:[#allocation3 + $0xe0] sm:$0xf]
  %v3837 = vld [vmem:[#allocation3 + $0xe4] sm:$0xf]
  %v3838 = vld [vmem:[#allocation3 + $0xe8] sm:$0xf]
  %v3839 = vld [vmem:[#allocation3 + $0xec] sm:$0xf]
  %v3840 = vld [vmem:[#allocation3 + $0xf0] sm:$0xf]
  %v3841 = vld [vmem:[#allocation3 + $0xf4] sm:$0xf]
  %v3842 = vld [vmem:[#allocation3 + $0xf8] sm:$0xf]
  %3843 = vst [vmem:[#allocation4 + $0x10] sm:$0xf] %v3794
  %3844 = vst [vmem:[#allocation4 + $0x24] sm:$0xf] %v3795
  %3845 = vst [vmem:[#allocation4 + $0x38] sm:$0xf] %v3796
  %3846 = vst [vmem:[#allocation4 + $0x4c] sm:$0xf] %v3797
  %3847 = vst [vmem:[#allocation4 + $0x60] sm:$0xf] %v3798
  %3848 = vst [vmem:[#allocation4 + $0x74] sm:$0xf] %v3799
  %3849 = vst [vmem:[#allocation4 + $0x88] sm:$0xf] %v3800
  %3850 = vst [vmem:[#allocation4 + $0x9c] sm:$0xf] %v3801
  %3851 = vst [vmem:[#allocation4 + $0xb0] sm:$0xf] %v3802
  %3852 = vst [vmem:[#allocation4 + $0xc4] sm:$0xf] %v3803
  %3853 = vst [vmem:[#allocation4 + $0xd8] sm:$0xf] %v3804
  %3854 = vst [vmem:[#allocation4 + $0xec] sm:$0xf] %v3805
  %3855 = vst [vmem:[#allocation4 + $0x100] sm:$0xf] %v3806
  %3856 = vst [vmem:[#allocation4 + $0x114] sm:$0xf] %v3807
  %3857 = vst [vmem:[#allocation4 + $0x128] sm:$0xf] %v3808
  %3858 = vst [vmem:[#allocation4 + $0x13c] sm:$0xf] %v3809
  %3859 = vst [vmem:[#allocation4 + $0x150] sm:$0xf] %v3810
  %3860 = vst [vmem:[#allocation4 + $0x164] sm:$0xf] %v3811
  %3861 = vst [vmem:[#allocation4 + $0x178] sm:$0xf] %v3812
  %3862 = vst [vmem:[#allocation4 + $0x18c] sm:$0xf] %v3813
  %3863 = vst [vmem:[#allocation4 + $0x1a0] sm:$0xf] %v3814
  %3864 = vst [vmem:[#allocation4 + $0x1b4] sm:$0xf] %v3815
  %3865 = vst [vmem:[#allocation4 + $0x1c8] sm:$0xf] %v3816
  %3866 = vst [vmem:[#allocation4 + $0x1dc] sm:$0xf] %v3817
  %3867 = vst [vmem:[#allocation4 + $0x1f0] sm:$0xf] %v3818
  %3868 = vst [vmem:[#allocation4 + $0x204] sm:$0xf] %v3819
  %3869 = vst [vmem:[#allocation4 + $0x218] sm:$0xf] %v3820
  %3870 = vst [vmem:[#allocation4 + $0x22c] sm:$0xf] %v3821
  %3871 = vst [vmem:[#allocation4 + $0x240] sm:$0xf] %v3822
  %3872 = vst [vmem:[#allocation4 + $0x254] sm:$0xf] %v3823
  %3873 = vst [vmem:[#allocation4 + $0x268] sm:$0xf] %v3824
  %3874 = vst [vmem:[#allocation4 + $0x27c] sm:$0xf] %v3825
  %3875 = vst [vmem:[#allocation4 + $0x290] sm:$0xf] %v3826
  %3876 = vst [vmem:[#allocation4 + $0x2a4] sm:$0xf] %v3827
  %3877 = vst [vmem:[#allocation4 + $0x2b8] sm:$0xf] %v3828
  %3878 = vst [vmem:[#allocation4 + $0x2cc] sm:$0xf] %v3829
  %3879 = vst [vmem:[#allocation4 + $0x2e0] sm:$0xf] %v3830
  %3880 = vst [vmem:[#allocation4 + $0x2f4] sm:$0xf] %v3831
  %3881 = vst [vmem:[#allocation4 + $0x308] sm:$0xf] %v3832
  %3882 = vst [vmem:[#allocation4 + $0x31c] sm:$0xf] %v3833
  %3883 = vst [vmem:[#allocation4 + $0x330] sm:$0xf] %v3834
  %3884 = vst [vmem:[#allocation4 + $0x344] sm:$0xf] %v3835
  %3885 = vst [vmem:[#allocation4 + $0x358] sm:$0xf] %v3836
  %3886 = vst [vmem:[#allocation4 + $0x36c] sm:$0xf] %v3837
  %3887 = vst [vmem:[#allocation4 + $0x380] sm:$0xf] %v3838
  %3888 = vst [vmem:[#allocation4 + $0x394] sm:$0xf] %v3839
  %3889 = vst [vmem:[#allocation4 + $0x3a8] sm:$0xf] %v3840
  %3890 = vst [vmem:[#allocation4 + $0x3bc] sm:$0xf] %v3841
  %3891 = vst [vmem:[#allocation4 + $0x3d0] sm:$0xf] %v3842
  %v3892 = vld [vmem:[#allocation4] sm:$0xff]
  %v3893 = vld [vmem:[#allocation4 + $0x8] sm:$0xff]
  %v3894 = vld [vmem:[#allocation4 + $0x10] sm:$0xf]
  %v3895 = vld [vmem:[#allocation4 + $0x14] sm:$0xff]
  %v3896 = vld [vmem:[#allocation4 + $0x1c] sm:$0xff]
  %v3897 = vld [vmem:[#allocation4 + $0x24] sm:$0xf]
  %v3898 = vld [vmem:[#allocation4 + $0x28] sm:$0xff]
  %v3899 = vld [vmem:[#allocation4 + $0x30] sm:$0xff]
  %v3900 = vld [vmem:[#allocation4 + $0x38] sm:$0xf]
  %v3901 = vld [vmem:[#allocation4 + $0x3c] sm:$0xff]
  %v3902 = vld [vmem:[#allocation4 + $0x44] sm:$0xff]
  %v3903 = vld [vmem:[#allocation4 + $0x4c] sm:$0xf]
  %v3904 = vld [vmem:[#allocation4 + $0x50] sm:$0xff]
  %v3905 = vld [vmem:[#allocation4 + $0x58] sm:$0xff]
  %v3906 = vld [vmem:[#allocation4 + $0x60] sm:$0xf]
  %v3907 = vld [vmem:[#allocation4 + $0x64] sm:$0xff]
  %v3908 = vld [vmem:[#allocation4 + $0x6c] sm:$0xff]
  %v3909 = vld [vmem:[#allocation4 + $0x74] sm:$0xf]
  %v3910 = vld [vmem:[#allocation4 + $0x78] sm:$0xff]
  %v3911 = vld [vmem:[#allocation4 + $0x80] sm:$0xff]
  %v3912 = vld [vmem:[#allocation4 + $0x88] sm:$0xf]
  %v3913 = vld [vmem:[#allocation4 + $0x8c] sm:$0xff]
  %v3914 = vld [vmem:[#allocation4 + $0x94] sm:$0xff]
  %v3915 = vld [vmem:[#allocation4 + $0x9c] sm:$0xf]
  %v3916 = vld [vmem:[#allocation4 + $0xa0] sm:$0xff]
  %v3917 = vld [vmem:[#allocation4 + $0xa8] sm:$0xff]
  %v3918 = vld [vmem:[#allocation4 + $0xb0] sm:$0xf]
  %v3919 = vld [vmem:[#allocation4 + $0xb4] sm:$0xff]
  %v3920 = vld [vmem:[#allocation4 + $0xbc] sm:$0xff]
  %v3921 = vld [vmem:[#allocation4 + $0xc4] sm:$0xf]
  %v3922 = vld [vmem:[#allocation4 + $0xc8] sm:$0xff]
  %v3923 = vld [vmem:[#allocation4 + $0xd0] sm:$0xff]
  %v3924 = vld [vmem:[#allocation4 + $0xd8] sm:$0xf]
  %v3925 = vld [vmem:[#allocation4 + $0xdc] sm:$0xff]
  %v3926 = vld [vmem:[#allocation4 + $0xe4] sm:$0xff]
  %v3927 = vld [vmem:[#allocation4 + $0xec] sm:$0xf]
  %v3928 = vld [vmem:[#allocation4 + $0xf0] sm:$0xff]
  %v3929 = vld [vmem:[#allocation4 + $0xf8] sm:$0xff]
  %v3930 = vld [vmem:[#allocation4 + $0x100] sm:$0xf]
  %v3931 = vld [vmem:[#allocation4 + $0x104] sm:$0xff]
  %v3932 = vld [vmem:[#allocation4 + $0x10c] sm:$0xff]
  %v3933 = vld [vmem:[#allocation4 + $0x114] sm:$0xf]
  %v3934 = vld [vmem:[#allocation4 + $0x118] sm:$0xff]
  %v3935 = vld [vmem:[#allocation4 + $0x120] sm:$0xff]
  %v3936 = vld [vmem:[#allocation4 + $0x128] sm:$0xf]
  %v3937 = vld [vmem:[#allocation4 + $0x12c] sm:$0xff]
  %v3938 = vld [vmem:[#allocation4 + $0x134] sm:$0xff]
  %v3939 = vld [vmem:[#allocation4 + $0x13c] sm:$0xf]
  %v3940 = vld [vmem:[#allocation4 + $0x140] sm:$0xff]
  %v3941 = vld [vmem:[#allocation4 + $0x148] sm:$0xff]
  %v3942 = vld [vmem:[#allocation4 + $0x150] sm:$0xf]
  %v3943 = vld [vmem:[#allocation4 + $0x154] sm:$0xff]
  %v3944 = vld [vmem:[#allocation4 + $0x15c] sm:$0xff]
  %v3945 = vld [vmem:[#allocation4 + $0x164] sm:$0xf]
  %v3946 = vld [vmem:[#allocation4 + $0x168] sm:$0xff]
  %v3947 = vld [vmem:[#allocation4 + $0x170] sm:$0xff]
  %v3948 = vld [vmem:[#allocation4 + $0x178] sm:$0xf]
  %v3949 = vld [vmem:[#allocation4 + $0x17c] sm:$0xff]
  %v3950 = vld [vmem:[#allocation4 + $0x184] sm:$0xff]
  %v3951 = vld [vmem:[#allocation4 + $0x18c] sm:$0xf]
  %v3952 = vld [vmem:[#allocation4 + $0x190] sm:$0xff]
  %v3953 = vld [vmem:[#allocation4 + $0x198] sm:$0xff]
  %v3954 = vld [vmem:[#allocation4 + $0x1a0] sm:$0xf]
  %v3955 = vld [vmem:[#allocation4 + $0x1a4] sm:$0xff]
  %v3956 = vld [vmem:[#allocation4 + $0x1ac] sm:$0xff]
  %v3957 = vld [vmem:[#allocation4 + $0x1b4] sm:$0xf]
  %v3958 = vld [vmem:[#allocation4 + $0x1b8] sm:$0xff]
  %v3959 = vld [vmem:[#allocation4 + $0x1c0] sm:$0xff]
  %v3960 = vld [vmem:[#allocation4 + $0x1c8] sm:$0xf]
  %v3961 = vld [vmem:[#allocation4 + $0x1cc] sm:$0xff]
  %v3962 = vld [vmem:[#allocation4 + $0x1d4] sm:$0xff]
  %v3963 = vld [vmem:[#allocation4 + $0x1dc] sm:$0xf]
  %v3964 = vld [vmem:[#allocation4 + $0x1e0] sm:$0xff]
  %v3965 = vld [vmem:[#allocation4 + $0x1e8] sm:$0xff]
  %v3966 = vld [vmem:[#allocation4 + $0x1f0] sm:$0xf]
  %v3967 = vld [vmem:[#allocation4 + $0x1f4] sm:$0xff]
  %v3968 = vld [vmem:[#allocation4 + $0x1fc] sm:$0xff]
  %v3969 = vld [vmem:[#allocation4 + $0x204] sm:$0xf]
  %v3970 = vld [vmem:[#allocation4 + $0x208] sm:$0xff]
  %v3971 = vld [vmem:[#allocation4 + $0x210] sm:$0xff]
  %v3972 = vld [vmem:[#allocation4 + $0x218] sm:$0xf]
  %v3973 = vld [vmem:[#allocation4 + $0x21c] sm:$0xff]
  %v3974 = vld [vmem:[#allocation4 + $0x224] sm:$0xff]
  %v3975 = vld [vmem:[#allocation4 + $0x22c] sm:$0xf]
  %v3976 = vld [vmem:[#allocation4 + $0x230] sm:$0xff]
  %v3977 = vld [vmem:[#allocation4 + $0x238] sm:$0xff]
  %v3978 = vld [vmem:[#allocation4 + $0x240] sm:$0xf]
  %v3979 = vld [vmem:[#allocation4 + $0x244] sm:$0xff]
  %v3980 = vld [vmem:[#allocation4 + $0x24c] sm:$0xff]
  %v3981 = vld [vmem:[#allocation4 + $0x254] sm:$0xf]
  %v3982 = vld [vmem:[#allocation4 + $0x258] sm:$0xff]
  %v3983 = vld [vmem:[#allocation4 + $0x260] sm:$0xff]
  %v3984 = vld [vmem:[#allocation4 + $0x268] sm:$0xf]
  %v3985 = vld [vmem:[#allocation4 + $0x26c] sm:$0xff]
  %v3986 = vld [vmem:[#allocation4 + $0x274] sm:$0xff]
  %v3987 = vld [vmem:[#allocation4 + $0x27c] sm:$0xf]
  %v3988 = vld [vmem:[#allocation4 + $0x280] sm:$0xff]
  %v3989 = vld [vmem:[#allocation4 + $0x288] sm:$0xff]
  %v3990 = vld [vmem:[#allocation4 + $0x290] sm:$0xf]
  %v3991 = vld [vmem:[#allocation4 + $0x294] sm:$0xff]
  %v3992 = vld [vmem:[#allocation4 + $0x29c] sm:$0xff]
  %v3993 = vld [vmem:[#allocation4 + $0x2a4] sm:$0xf]
  %v3994 = vld [vmem:[#allocation4 + $0x2a8] sm:$0xff]
  %v3995 = vld [vmem:[#allocation4 + $0x2b0] sm:$0xff]
  %v3996 = vld [vmem:[#allocation4 + $0x2b8] sm:$0xf]
  %v3997 = vld [vmem:[#allocation4 + $0x2bc] sm:$0xff]
  %v3998 = vld [vmem:[#allocation4 + $0x2c4] sm:$0xff]
  %v3999 = vld [vmem:[#allocation4 + $0x2cc] sm:$0xf]
  %v4000 = vld [vmem:[#allocation4 + $0x2d0] sm:$0xff]
  %v4001 = vld [vmem:[#allocation4 + $0x2d8] sm:$0xff]
  %v4002 = vld [vmem:[#allocation4 + $0x2e0] sm:$0xf]
  %v4003 = vld [vmem:[#allocation4 + $0x2e4] sm:$0xff]
  %v4004 = vld [vmem:[#allocation4 + $0x2ec] sm:$0xff]
  %v4005 = vld [vmem:[#allocation4 + $0x2f4] sm:$0xf]
  %v4006 = vld [vmem:[#allocation4 + $0x2f8] sm:$0xff]
  %v4007 = vld [vmem:[#allocation4 + $0x300] sm:$0xff]
  %v4008 = vld [vmem:[#allocation4 + $0x308] sm:$0xf]
  %v4009 = vld [vmem:[#allocation4 + $0x30c] sm:$0xff]
  %v4010 = vld [vmem:[#allocation4 + $0x314] sm:$0xff]
  %v4011 = vld [vmem:[#allocation4 + $0x31c] sm:$0xf]
  %v4012 = vld [vmem:[#allocation4 + $0x320] sm:$0xff]
  %v4013 = vld [vmem:[#allocation4 + $0x328] sm:$0xff]
  %v4014 = vld [vmem:[#allocation4 + $0x330] sm:$0xf]
  %v4015 = vld [vmem:[#allocation4 + $0x334] sm:$0xff]
  %v4016 = vld [vmem:[#allocation4 + $0x33c] sm:$0xff]
  %v4017 = vld [vmem:[#allocation4 + $0x344] sm:$0xf]
  %v4018 = vld [vmem:[#allocation4 + $0x348] sm:$0xff]
  %v4019 = vld [vmem:[#allocation4 + $0x350] sm:$0xff]
  %v4020 = vld [vmem:[#allocation4 + $0x358] sm:$0xf]
  %v4021 = vld [vmem:[#allocation4 + $0x35c] sm:$0xff]
  %v4022 = vld [vmem:[#allocation4 + $0x364] sm:$0xff]
  %v4023 = vld [vmem:[#allocation4 + $0x36c] sm:$0xf]
  %v4024 = vld [vmem:[#allocation4 + $0x370] sm:$0xff]
  %v4025 = vld [vmem:[#allocation4 + $0x378] sm:$0xff]
  %v4026 = vld [vmem:[#allocation4 + $0x380] sm:$0xf]
  %v4027 = vld [vmem:[#allocation4 + $0x384] sm:$0xff]
  %v4028 = vld [vmem:[#allocation4 + $0x38c] sm:$0xff]
  %v4029 = vld [vmem:[#allocation4 + $0x394] sm:$0xf]
  %v4030 = vld [vmem:[#allocation4 + $0x398] sm:$0xff]
  %v4031 = vld [vmem:[#allocation4 + $0x3a0] sm:$0xff]
  %v4032 = vld [vmem:[#allocation4 + $0x3a8] sm:$0xf]
  %v4033 = vld [vmem:[#allocation4 + $0x3ac] sm:$0xff]
  %v4034 = vld [vmem:[#allocation4 + $0x3b4] sm:$0xff]
  %v4035 = vld [vmem:[#allocation4 + $0x3bc] sm:$0xf]
  %v4036 = vld [vmem:[#allocation4 + $0x3c0] sm:$0xff]
  %v4037 = vld [vmem:[#allocation4 + $0x3c8] sm:$0xff]
  %v4038 = vld [vmem:[#allocation4 + $0x3d0] sm:$0xf]
  %v4039 = vld [vmem:[%s3] sm:$0xf]
  %v4040 = vld [vmem:[%s3 + $0x4] sm:$0xf]
  %v4041 = vld [vmem:[%s3 + $0x8] sm:$0xf]
  %v4042 = vld [vmem:[%s3 + $0xc] sm:$0xf]
  %v4043 = vld [vmem:[%s3 + $0x10] sm:$0xf]
  %v4044 = vld [vmem:[%s3 + $0x14] sm:$0xf]
  %v4045 = vld [vmem:[%s3 + $0x18] sm:$0xf]
  %v4046 = vld [vmem:[%s3 + $0x1c] sm:$0xf]
  %v4047 = vld [vmem:[%s3 + $0x20] sm:$0xf]
  %v4048 = vld [vmem:[%s3 + $0x24] sm:$0xf]
  %v4049 = vld [vmem:[%s3 + $0x28] sm:$0xf]
  %v4050 = vld [vmem:[%s3 + $0x2c] sm:$0xf]
  %v4051 = vld [vmem:[%s3 + $0x30] sm:$0xf]
  %v4052 = vld [vmem:[%s3 + $0x34] sm:$0xf]
  %v4053 = vld [vmem:[%s3 + $0x38] sm:$0xf]
  %v4054 = vld [vmem:[%s3 + $0x3c] sm:$0xf]
  %v4055 = vld [vmem:[%s3 + $0x40] sm:$0xf]
  %v4056 = vld [vmem:[%s3 + $0x44] sm:$0xf]
  %v4057 = vld [vmem:[%s3 + $0x48] sm:$0xf]
  %v4058 = vld [vmem:[%s3 + $0x4c] sm:$0xf]
  %v4059 = vld [vmem:[%s3 + $0x50] sm:$0xf]
  %v4060 = vld [vmem:[%s3 + $0x54] sm:$0xf]
  %v4061 = vld [vmem:[%s3 + $0x58] sm:$0xf]
  %v4062 = vld [vmem:[%s3 + $0x5c] sm:$0xf]
  %v4063 = vld [vmem:[%s3 + $0x60] sm:$0xf]
  %v4064 = vld [vmem:[%s3 + $0x64] sm:$0xf]
  %v4065 = vld [vmem:[%s3 + $0x68] sm:$0xf]
  %v4066 = vld [vmem:[%s3 + $0x6c] sm:$0xf]
  %v4067 = vld [vmem:[%s3 + $0x70] sm:$0xf]
  %v4068 = vld [vmem:[%s3 + $0x74] sm:$0xf]
  %v4069 = vld [vmem:[%s3 + $0x78] sm:$0xf]
  %v4070 = vld [vmem:[%s3 + $0x7c] sm:$0xf]
  %v4071 = vld [vmem:[%s3 + $0x80] sm:$0xf]
  %v4072 = vld [vmem:[%s3 + $0x84] sm:$0xf]
  %v4073 = vld [vmem:[%s3 + $0x88] sm:$0xf]
  %v4074 = vld [vmem:[%s3 + $0x8c] sm:$0xf]
  %v4075 = vld [vmem:[%s3 + $0x90] sm:$0xf]
  %v4076 = vld [vmem:[%s3 + $0x94] sm:$0xf]
  %v4077 = vld [vmem:[%s3 + $0x98] sm:$0xf]
  %v4078 = vld [vmem:[%s3 + $0x9c] sm:$0xf]
  %v4079 = vld [vmem:[%s3 + $0xa0] sm:$0xf]
  %v4080 = vld [vmem:[%s3 + $0xa4] sm:$0xf]
  %v4081 = vld [vmem:[%s3 + $0xa8] sm:$0xf]
  %v4082 = vld [vmem:[%s3 + $0xac] sm:$0xf]
  %v4083 = vld [vmem:[%s3 + $0xb0] sm:$0xf]
  %v4084 = vld [vmem:[%s3 + $0xb4] sm:$0xf]
  %v4085 = vld [vmem:[%s3 + $0xb8] sm:$0xf]
  %v4086 = vld [vmem:[%s3 + $0xbc] sm:$0xf]
  %v4087 = vld [vmem:[%s3 + $0xc0] sm:$0xf]
  %v4088 = vld [vmem:[%s3 + $0xc4] sm:$0xf]
  %v4089 = vld [vmem:[%s3 + $0xc8] sm:$0xf]
  %v4090 = vld [vmem:[%s3 + $0xcc] sm:$0xf]
  %v4091 = vld [vmem:[%s3 + $0xd0] sm:$0xf]
  %v4092 = vld [vmem:[%s3 + $0xd4] sm:$0xf]
  %v4093 = vld [vmem:[%s3 + $0xd8] sm:$0xf]
  %v4094 = vld [vmem:[%s3 + $0xdc] sm:$0xf]
  %v4095 = vld [vmem:[%s3 + $0xe0] sm:$0xf]
  %v4096 = vld [vmem:[%s3 + $0xe4] sm:$0xf]
  %v4097 = vld [vmem:[%s3 + $0xe8] sm:$0xf]
  %v4098 = vld [vmem:[%s3 + $0xec] sm:$0xf]
  %v4099 = vld [vmem:[%s3 + $0xf0] sm:$0xf]
  %v4100 = vld [vmem:[%s3 + $0xf4] sm:$0xf]
  %v4101 = vld [vmem:[%s3 + $0xf8] sm:$0xf]
  %v4102 = vld [vmem:[%s3 + $0xfc] sm:$0xf]
  %v4103 = vld [vmem:[%s3 + $0x100] sm:$0xf]
  %v4104 = vld [vmem:[%s3 + $0x104] sm:$0xf]
  %v4105 = vld [vmem:[%s3 + $0x108] sm:$0xf]
  %v4106 = vld [vmem:[%s3 + $0x10c] sm:$0xf]
  %v4107 = vld [vmem:[%s3 + $0x110] sm:$0xf]
  %v4108 = vld [vmem:[%s3 + $0x114] sm:$0xf]
  %v4109 = vld [vmem:[%s3 + $0x118] sm:$0xf]
  %v4110 = vld [vmem:[%s3 + $0x11c] sm:$0xf]
  %v4111 = vld [vmem:[%s3 + $0x120] sm:$0xf]
  %v4112 = vld [vmem:[%s3 + $0x124] sm:$0xf]
  %v4113 = vld [vmem:[%s3 + $0x128] sm:$0xf]
  %v4114 = vld [vmem:[%s3 + $0x12c] sm:$0xf]
  %v4115 = vld [vmem:[%s3 + $0x130] sm:$0xf]
  %v4116 = vld [vmem:[%s3 + $0x134] sm:$0xf]
  %v4117 = vld [vmem:[%s3 + $0x138] sm:$0xf]
  %v4118 = vld [vmem:[%s3 + $0x13c] sm:$0xf]
  %v4266 = vunpack.c.l.b16 %v3892
  %v4267 = vunpack.c.h.b16 %v3892
  %v4268 = vunpack.c.l.b16 %v3893
  %v4269 = vunpack.c.h.b16 %v3893
  %v4270 = vunpack.c.l.b16 %v3894
  %v4271 = vunpack.c.l.b16 %v3895
  %v4272 = vunpack.c.h.b16 %v3895
  %v4273 = vunpack.c.l.b16 %v3896
  %v4274 = vunpack.c.h.b16 %v3896
  %v4275 = vunpack.c.l.b16 %v3897
  %v4276 = vunpack.c.l.b16 %v3898
  %v4277 = vunpack.c.h.b16 %v3898
  %v4278 = vunpack.c.l.b16 %v3899
  %v4279 = vunpack.c.h.b16 %v3899
  %v4280 = vunpack.c.l.b16 %v3900
  %v4281 = vunpack.c.l.b16 %v3901
  %v4282 = vunpack.c.h.b16 %v3901
  %v4283 = vunpack.c.l.b16 %v3902
  %v4284 = vunpack.c.h.b16 %v3902
  %v4285 = vunpack.c.l.b16 %v3903
  %v4286 = vunpack.c.l.b16 %v3904
  %v4287 = vunpack.c.h.b16 %v3904
  %v4288 = vunpack.c.l.b16 %v3905
  %v4289 = vunpack.c.h.b16 %v3905
  %v4290 = vunpack.c.l.b16 %v3906
  %v4291 = vunpack.c.l.b16 %v3907
  %v4292 = vunpack.c.h.b16 %v3907
  %v4293 = vunpack.c.l.b16 %v3908
  %v4294 = vunpack.c.h.b16 %v3908
  %v4295 = vunpack.c.l.b16 %v3909
  %v4296 = vunpack.c.l.b16 %v3910
  %v4297 = vunpack.c.h.b16 %v3910
  %v4298 = vunpack.c.l.b16 %v3911
  %v4299 = vunpack.c.h.b16 %v3911
  %v4300 = vunpack.c.l.b16 %v3912
  %v4301 = vunpack.c.l.b16 %v3913
  %v4302 = vunpack.c.h.b16 %v3913
  %v4303 = vunpack.c.l.b16 %v3914
  %v4304 = vunpack.c.h.b16 %v3914
  %v4305 = vunpack.c.l.b16 %v3915
  %v4306 = vunpack.c.l.b16 %v3916
  %v4307 = vunpack.c.h.b16 %v3916
  %v4308 = vunpack.c.l.b16 %v3917
  %v4309 = vunpack.c.h.b16 %v3917
  %v4310 = vunpack.c.l.b16 %v3918
  %v4311 = vunpack.c.l.b16 %v3919
  %v4312 = vunpack.c.h.b16 %v3919
  %v4313 = vunpack.c.l.b16 %v3920
  %v4314 = vunpack.c.h.b16 %v3920
  %v4315 = vunpack.c.l.b16 %v3921
  %v4316 = vunpack.c.l.b16 %v3922
  %v4317 = vunpack.c.h.b16 %v3922
  %v4318 = vunpack.c.l.b16 %v3923
  %v4319 = vunpack.c.h.b16 %v3923
  %v4320 = vunpack.c.l.b16 %v3924
  %v4321 = vunpack.c.l.b16 %v3925
  %v4322 = vunpack.c.h.b16 %v3925
  %v4323 = vunpack.c.l.b16 %v3926
  %v4324 = vunpack.c.h.b16 %v3926
  %v4325 = vunpack.c.l.b16 %v3927
  %v4326 = vunpack.c.l.b16 %v3928
  %v4327 = vunpack.c.h.b16 %v3928
  %v4328 = vunpack.c.l.b16 %v3929
  %v4329 = vunpack.c.h.b16 %v3929
  %v4330 = vunpack.c.l.b16 %v3930
  %v4331 = vunpack.c.l.b16 %v3931
  %v4332 = vunpack.c.h.b16 %v3931
  %v4333 = vunpack.c.l.b16 %v3932
  %v4334 = vunpack.c.h.b16 %v3932
  %v4335 = vunpack.c.l.b16 %v3933
  %v4336 = vunpack.c.l.b16 %v3934
  %v4337 = vunpack.c.h.b16 %v3934
  %v4338 = vunpack.c.l.b16 %v3935
  %v4339 = vunpack.c.h.b16 %v3935
  %v4340 = vunpack.c.l.b16 %v3936
  %v4341 = vunpack.c.l.b16 %v3937
  %v4342 = vunpack.c.h.b16 %v3937
  %v4343 = vunpack.c.l.b16 %v3938
  %v4344 = vunpack.c.h.b16 %v3938
  %v4345 = vunpack.c.l.b16 %v3939
  %v4346 = vunpack.c.l.b16 %v3940
  %v4347 = vunpack.c.h.b16 %v3940
  %v4348 = vunpack.c.l.b16 %v3941
  %v4349 = vunpack.c.h.b16 %v3941
  %v4350 = vunpack.c.l.b16 %v3942
  %v4351 = vunpack.c.l.b16 %v3943
  %v4352 = vunpack.c.h.b16 %v3943
  %v4353 = vunpack.c.l.b16 %v3944
  %v4354 = vunpack.c.h.b16 %v3944
  %v4355 = vunpack.c.l.b16 %v3945
  %v4356 = vunpack.c.l.b16 %v3946
  %v4357 = vunpack.c.h.b16 %v3946
  %v4358 = vunpack.c.l.b16 %v3947
  %v4359 = vunpack.c.h.b16 %v3947
  %v4360 = vunpack.c.l.b16 %v3948
  %v4361 = vunpack.c.l.b16 %v3949
  %v4362 = vunpack.c.h.b16 %v3949
  %v4363 = vunpack.c.l.b16 %v3950
  %v4364 = vunpack.c.h.b16 %v3950
  %v4365 = vunpack.c.l.b16 %v3951
  %v4366 = vunpack.c.l.b16 %v3952
  %v4367 = vunpack.c.h.b16 %v3952
  %v4368 = vunpack.c.l.b16 %v3953
  %v4369 = vunpack.c.h.b16 %v3953
  %v4370 = vunpack.c.l.b16 %v3954
  %v4371 = vunpack.c.l.b16 %v3955
  %v4372 = vunpack.c.h.b16 %v3955
  %v4373 = vunpack.c.l.b16 %v3956
  %v4374 = vunpack.c.h.b16 %v3956
  %v4375 = vunpack.c.l.b16 %v3957
  %v4376 = vunpack.c.l.b16 %v3958
  %v4377 = vunpack.c.h.b16 %v3958
  %v4378 = vunpack.c.l.b16 %v3959
  %v4379 = vunpack.c.h.b16 %v3959
  %v4380 = vunpack.c.l.b16 %v3960
  %v4381 = vunpack.c.l.b16 %v3961
  %v4382 = vunpack.c.h.b16 %v3961
  %v4383 = vunpack.c.l.b16 %v3962
  %v4384 = vunpack.c.h.b16 %v3962
  %v4385 = vunpack.c.l.b16 %v3963
  %v4386 = vunpack.c.l.b16 %v3964
  %v4387 = vunpack.c.h.b16 %v3964
  %v4388 = vunpack.c.l.b16 %v3965
  %v4389 = vunpack.c.h.b16 %v3965
  %v4390 = vunpack.c.l.b16 %v3966
  %v4391 = vunpack.c.l.b16 %v3967
  %v4392 = vunpack.c.h.b16 %v3967
  %v4393 = vunpack.c.l.b16 %v3968
  %v4394 = vunpack.c.h.b16 %v3968
  %v4395 = vunpack.c.l.b16 %v3969
  %v4396 = vunpack.c.l.b16 %v3970
  %v4397 = vunpack.c.h.b16 %v3970
  %v4398 = vunpack.c.l.b16 %v3971
  %v4399 = vunpack.c.h.b16 %v3971
  %v4400 = vunpack.c.l.b16 %v3972
  %v4401 = vunpack.c.l.b16 %v3973
  %v4402 = vunpack.c.h.b16 %v3973
  %v4403 = vunpack.c.l.b16 %v3974
  %v4404 = vunpack.c.h.b16 %v3974
  %v4405 = vunpack.c.l.b16 %v3975
  %v4406 = vunpack.c.l.b16 %v3976
  %v4407 = vunpack.c.h.b16 %v3976
  %v4408 = vunpack.c.l.b16 %v3977
  %v4409 = vunpack.c.h.b16 %v3977
  %v4410 = vunpack.c.l.b16 %v3978
  %v4411 = vunpack.c.l.b16 %v3979
  %v4412 = vunpack.c.h.b16 %v3979
  %v4413 = vunpack.c.l.b16 %v3980
  %v4414 = vunpack.c.h.b16 %v3980
  %v4415 = vunpack.c.l.b16 %v3981
  %v4416 = vunpack.c.l.b16 %v3982
  %v4417 = vunpack.c.h.b16 %v3982
  %v4418 = vunpack.c.l.b16 %v3983
  %v4419 = vunpack.c.h.b16 %v3983
  %v4420 = vunpack.c.l.b16 %v3984
  %v4421 = vunpack.c.l.b16 %v3985
  %v4422 = vunpack.c.h.b16 %v3985
  %v4423 = vunpack.c.l.b16 %v3986
  %v4424 = vunpack.c.h.b16 %v3986
  %v4425 = vunpack.c.l.b16 %v3987
  %v4426 = vunpack.c.l.b16 %v3988
  %v4427 = vunpack.c.h.b16 %v3988
  %v4428 = vunpack.c.l.b16 %v3989
  %v4429 = vunpack.c.h.b16 %v3989
  %v4430 = vunpack.c.l.b16 %v3990
  %v4431 = vunpack.c.l.b16 %v3991
  %v4432 = vunpack.c.h.b16 %v3991
  %v4433 = vunpack.c.l.b16 %v3992
  %v4434 = vunpack.c.h.b16 %v3992
  %v4435 = vunpack.c.l.b16 %v3993
  %v4436 = vunpack.c.l.b16 %v3994
  %v4437 = vunpack.c.h.b16 %v3994
  %v4438 = vunpack.c.l.b16 %v3995
  %v4439 = vunpack.c.h.b16 %v3995
  %v4440 = vunpack.c.l.b16 %v3996
  %v4441 = vunpack.c.l.b16 %v3997
  %v4442 = vunpack.c.h.b16 %v3997
  %v4443 = vunpack.c.l.b16 %v3998
  %v4444 = vunpack.c.h.b16 %v3998
  %v4445 = vunpack.c.l.b16 %v3999
  %v4446 = vunpack.c.l.b16 %v4000
  %v4447 = vunpack.c.h.b16 %v4000
  %v4448 = vunpack.c.l.b16 %v4001
  %v4449 = vunpack.c.h.b16 %v4001
  %v4450 = vunpack.c.l.b16 %v4002
  %v4451 = vunpack.c.l.b16 %v4003
  %v4452 = vunpack.c.h.b16 %v4003
  %v4453 = vunpack.c.l.b16 %v4004
  %v4454 = vunpack.c.h.b16 %v4004
  %v4455 = vunpack.c.l.b16 %v4005
  %v4456 = vunpack.c.l.b16 %v4006
  %v4457 = vunpack.c.h.b16 %v4006
  %v4458 = vunpack.c.l.b16 %v4007
  %v4459 = vunpack.c.h.b16 %v4007
  %v4460 = vunpack.c.l.b16 %v4008
  %v4461 = vunpack.c.l.b16 %v4009
  %v4462 = vunpack.c.h.b16 %v4009
  %v4463 = vunpack.c.l.b16 %v4010
  %v4464 = vunpack.c.h.b16 %v4010
  %v4465 = vunpack.c.l.b16 %v4011
  %v4466 = vunpack.c.l.b16 %v4012
  %v4467 = vunpack.c.h.b16 %v4012
  %v4468 = vunpack.c.l.b16 %v4013
  %v4469 = vunpack.c.h.b16 %v4013
  %v4470 = vunpack.c.l.b16 %v4014
  %v4471 = vunpack.c.l.b16 %v4015
  %v4472 = vunpack.c.h.b16 %v4015
  %v4473 = vunpack.c.l.b16 %v4016
  %v4474 = vunpack.c.h.b16 %v4016
  %v4475 = vunpack.c.l.b16 %v4017
  %v4476 = vunpack.c.l.b16 %v4018
  %v4477 = vunpack.c.h.b16 %v4018
  %v4478 = vunpack.c.l.b16 %v4019
  %v4479 = vunpack.c.h.b16 %v4019
  %v4480 = vunpack.c.l.b16 %v4020
  %v4481 = vunpack.c.l.b16 %v4021
  %v4482 = vunpack.c.h.b16 %v4021
  %v4483 = vunpack.c.l.b16 %v4022
  %v4484 = vunpack.c.h.b16 %v4022
  %v4485 = vunpack.c.l.b16 %v4023
  %v4486 = vunpack.c.l.b16 %v4024
  %v4487 = vunpack.c.h.b16 %v4024
  %v4488 = vunpack.c.l.b16 %v4025
  %v4489 = vunpack.c.h.b16 %v4025
  %v4490 = vunpack.c.l.b16 %v4026
  %v4491 = vunpack.c.l.b16 %v4027
  %v4492 = vunpack.c.h.b16 %v4027
  %v4493 = vunpack.c.l.b16 %v4028
  %v4494 = vunpack.c.h.b16 %v4028
  %v4495 = vunpack.c.l.b16 %v4029
  %v4496 = vunpack.c.l.b16 %v4030
  %v4497 = vunpack.c.h.b16 %v4030
  %v4498 = vunpack.c.l.b16 %v4031
  %v4499 = vunpack.c.h.b16 %v4031
  %v4500 = vunpack.c.l.b16 %v4032
  %v4501 = vunpack.c.l.b16 %v4033
  %v4502 = vunpack.c.h.b16 %v4033
  %v4503 = vunpack.c.l.b16 %v4034
  %v4504 = vunpack.c.h.b16 %v4034
  %v4505 = vunpack.c.l.b16 %v4035
  %v4506 = vunpack.c.l.b16 %v4036
  %v4507 = vunpack.c.h.b16 %v4036
  %v4508 = vunpack.c.l.b16 %v4037
  %v4509 = vunpack.c.h.b16 %v4037
  %v4510 = vunpack.c.l.b16 %v4038
  %v4511 = vpack.c.b16 %v4271, %v4266
  %v4512 = vpack.c.b16 %v4272, %v4267
  %v4513 = vpack.c.b16 %v4273, %v4268
  %v4514 = vpack.c.b16 %v4274, %v4269
  %v4515 = vpack.c.b16 %v4275, %v4270
  %v4516 = vpack.c.b16 %v4281, %v4276
  %v4517 = vpack.c.b16 %v4282, %v4277
  %v4518 = vpack.c.b16 %v4283, %v4278
  %v4519 = vpack.c.b16 %v4284, %v4279
  %v4520 = vpack.c.b16 %v4285, %v4280
  %v4521 = vpack.c.b16 %v4291, %v4286
  %v4522 = vpack.c.b16 %v4292, %v4287
  %v4523 = vpack.c.b16 %v4293, %v4288
  %v4524 = vpack.c.b16 %v4294, %v4289
  %v4525 = vpack.c.b16 %v4295, %v4290
  %v4526 = vpack.c.b16 %v4301, %v4296
  %v4527 = vpack.c.b16 %v4302, %v4297
  %v4528 = vpack.c.b16 %v4303, %v4298
  %v4529 = vpack.c.b16 %v4304, %v4299
  %v4530 = vpack.c.b16 %v4305, %v4300
  %v4531 = vpack.c.b16 %v4311, %v4306
  %v4532 = vpack.c.b16 %v4312, %v4307
  %v4533 = vpack.c.b16 %v4313, %v4308
  %v4534 = vpack.c.b16 %v4314, %v4309
  %v4535 = vpack.c.b16 %v4315, %v4310
  %v4536 = vpack.c.b16 %v4321, %v4316
  %v4537 = vpack.c.b16 %v4322, %v4317
  %v4538 = vpack.c.b16 %v4323, %v4318
  %v4539 = vpack.c.b16 %v4324, %v4319
  %v4540 = vpack.c.b16 %v4325, %v4320
  %v4541 = vpack.c.b16 %v4331, %v4326
  %v4542 = vpack.c.b16 %v4332, %v4327
  %v4543 = vpack.c.b16 %v4333, %v4328
  %v4544 = vpack.c.b16 %v4334, %v4329
  %v4545 = vpack.c.b16 %v4335, %v4330
  %v4546 = vpack.c.b16 %v4341, %v4336
  %v4547 = vpack.c.b16 %v4342, %v4337
  %v4548 = vpack.c.b16 %v4343, %v4338
  %v4549 = vpack.c.b16 %v4344, %v4339
  %v4550 = vpack.c.b16 %v4345, %v4340
  %v4551 = vpack.c.b16 %v4351, %v4346
  %v4552 = vpack.c.b16 %v4352, %v4347
  %v4553 = vpack.c.b16 %v4353, %v4348
  %v4554 = vpack.c.b16 %v4354, %v4349
  %v4555 = vpack.c.b16 %v4355, %v4350
  %v4556 = vpack.c.b16 %v4361, %v4356
  %v4557 = vpack.c.b16 %v4362, %v4357
  %v4558 = vpack.c.b16 %v4363, %v4358
  %v4559 = vpack.c.b16 %v4364, %v4359
  %v4560 = vpack.c.b16 %v4365, %v4360
  %v4561 = vpack.c.b16 %v4371, %v4366
  %v4562 = vpack.c.b16 %v4372, %v4367
  %v4563 = vpack.c.b16 %v4373, %v4368
  %v4564 = vpack.c.b16 %v4374, %v4369
  %v4565 = vpack.c.b16 %v4375, %v4370
  %v4566 = vpack.c.b16 %v4381, %v4376
  %v4567 = vpack.c.b16 %v4382, %v4377
  %v4568 = vpack.c.b16 %v4383, %v4378
  %v4569 = vpack.c.b16 %v4384, %v4379
  %v4570 = vpack.c.b16 %v4385, %v4380
  %v4571 = vpack.c.b16 %v4391, %v4386
  %v4572 = vpack.c.b16 %v4392, %v4387
  %v4573 = vpack.c.b16 %v4393, %v4388
  %v4574 = vpack.c.b16 %v4394, %v4389
  %v4575 = vpack.c.b16 %v4395, %v4390
  %v4576 = vpack.c.b16 %v4401, %v4396
  %v4577 = vpack.c.b16 %v4402, %v4397
  %v4578 = vpack.c.b16 %v4403, %v4398
  %v4579 = vpack.c.b16 %v4404, %v4399
  %v4580 = vpack.c.b16 %v4405, %v4400
  %v4581 = vpack.c.b16 %v4411, %v4406
  %v4582 = vpack.c.b16 %v4412, %v4407
  %v4583 = vpack.c.b16 %v4413, %v4408
  %v4584 = vpack.c.b16 %v4414, %v4409
  %v4585 = vpack.c.b16 %v4415, %v4410
  %v4586 = vpack.c.b16 %v4421, %v4416
  %v4587 = vpack.c.b16 %v4422, %v4417
  %v4588 = vpack.c.b16 %v4423, %v4418
  %v4589 = vpack.c.b16 %v4424, %v4419
  %v4590 = vpack.c.b16 %v4425, %v4420
  %v4591 = vpack.c.b16 %v4431, %v4426
  %v4592 = vpack.c.b16 %v4432, %v4427
  %v4593 = vpack.c.b16 %v4433, %v4428
  %v4594 = vpack.c.b16 %v4434, %v4429
  %v4595 = vpack.c.b16 %v4435, %v4430
  %v4596 = vpack.c.b16 %v4441, %v4436
  %v4597 = vpack.c.b16 %v4442, %v4437
  %v4598 = vpack.c.b16 %v4443, %v4438
  %v4599 = vpack.c.b16 %v4444, %v4439
  %v4600 = vpack.c.b16 %v4445, %v4440
  %v4601 = vpack.c.b16 %v4451, %v4446
  %v4602 = vpack.c.b16 %v4452, %v4447
  %v4603 = vpack.c.b16 %v4453, %v4448
  %v4604 = vpack.c.b16 %v4454, %v4449
  %v4605 = vpack.c.b16 %v4455, %v4450
  %v4606 = vpack.c.b16 %v4461, %v4456
  %v4607 = vpack.c.b16 %v4462, %v4457
  %v4608 = vpack.c.b16 %v4463, %v4458
  %v4609 = vpack.c.b16 %v4464, %v4459
  %v4610 = vpack.c.b16 %v4465, %v4460
  %v4611 = vpack.c.b16 %v4471, %v4466
  %v4612 = vpack.c.b16 %v4472, %v4467
  %v4613 = vpack.c.b16 %v4473, %v4468
  %v4614 = vpack.c.b16 %v4474, %v4469
  %v4615 = vpack.c.b16 %v4475, %v4470
  %v4616 = vpack.c.b16 %v4481, %v4476
  %v4617 = vpack.c.b16 %v4482, %v4477
  %v4618 = vpack.c.b16 %v4483, %v4478
  %v4619 = vpack.c.b16 %v4484, %v4479
  %v4620 = vpack.c.b16 %v4485, %v4480
  %v4621 = vpack.c.b16 %v4491, %v4486
  %v4622 = vpack.c.b16 %v4492, %v4487
  %v4623 = vpack.c.b16 %v4493, %v4488
  %v4624 = vpack.c.b16 %v4494, %v4489
  %v4625 = vpack.c.b16 %v4495, %v4490
  %v4626 = vpack.c.b16 %v4501, %v4496
  %v4627 = vpack.c.b16 %v4502, %v4497
  %v4628 = vpack.c.b16 %v4503, %v4498
  %v4629 = vpack.c.b16 %v4504, %v4499
  %v4630 = vpack.c.b16 %v4505, %v4500
  %v4631 = vpack.c.b16 %v4506, %v4506
  %v4632 = vpack.c.b16 %v4507, %v4507
  %v4633 = vpack.c.b16 %v4508, %v4508
  %v4634 = vpack.c.b16 %v4509, %v4509
  %v4635 = vpack.c.b16 %v4510, %v4510
  %v4841 = vunpack.c.l.b16 %v4039
  %v4842 = vunpack.c.l.b16 %v4040
  %v4843 = vunpack.c.l.b16 %v4041
  %v4844 = vunpack.c.l.b16 %v4042
  %v4845 = vunpack.c.l.b16 %v4043
  %v4846 = vunpack.c.l.b16 %v4044
  %v4847 = vunpack.c.l.b16 %v4045
  %v4848 = vunpack.c.l.b16 %v4046
  %v4849 = vunpack.c.l.b16 %v4047
  %v4850 = vunpack.c.l.b16 %v4048
  %v4851 = vunpack.c.l.b16 %v4049
  %v4852 = vunpack.c.l.b16 %v4050
  %v4853 = vunpack.c.l.b16 %v4051
  %v4854 = vunpack.c.l.b16 %v4052
  %v4855 = vunpack.c.l.b16 %v4053
  %v4856 = vunpack.c.l.b16 %v4054
  %v4857 = vunpack.c.l.b16 %v4055
  %v4858 = vunpack.c.l.b16 %v4056
  %v4859 = vunpack.c.l.b16 %v4057
  %v4860 = vunpack.c.l.b16 %v4058
  %v4861 = vunpack.c.l.b16 %v4059
  %v4862 = vunpack.c.l.b16 %v4060
  %v4863 = vunpack.c.l.b16 %v4061
  %v4864 = vunpack.c.l.b16 %v4062
  %v4865 = vunpack.c.l.b16 %v4063
  %v4866 = vunpack.c.l.b16 %v4064
  %v4867 = vunpack.c.l.b16 %v4065
  %v4868 = vunpack.c.l.b16 %v4066
  %v4869 = vunpack.c.l.b16 %v4067
  %v4870 = vunpack.c.l.b16 %v4068
  %v4871 = vunpack.c.l.b16 %v4069
  %v4872 = vunpack.c.l.b16 %v4070
  %v4873 = vunpack.c.l.b16 %v4071
  %v4874 = vunpack.c.l.b16 %v4072
  %v4875 = vunpack.c.l.b16 %v4073
  %v4876 = vunpack.c.l.b16 %v4074
  %v4877 = vunpack.c.l.b16 %v4075
  %v4878 = vunpack.c.l.b16 %v4076
  %v4879 = vunpack.c.l.b16 %v4077
  %v4880 = vunpack.c.l.b16 %v4078
  %v4881 = vunpack.c.l.b16 %v4079
  %v4882 = vunpack.c.l.b16 %v4080
  %v4883 = vunpack.c.l.b16 %v4081
  %v4884 = vunpack.c.l.b16 %v4082
  %v4885 = vunpack.c.l.b16 %v4083
  %v4886 = vunpack.c.l.b16 %v4084
  %v4887 = vunpack.c.l.b16 %v4085
  %v4888 = vunpack.c.l.b16 %v4086
  %v4889 = vunpack.c.l.b16 %v4087
  %v4890 = vunpack.c.l.b16 %v4088
  %v4891 = vunpack.c.l.b16 %v4089
  %v4892 = vunpack.c.l.b16 %v4090
  %v4893 = vunpack.c.l.b16 %v4091
  %v4894 = vunpack.c.l.b16 %v4092
  %v4895 = vunpack.c.l.b16 %v4093
  %v4896 = vunpack.c.l.b16 %v4094
  %v4897 = vunpack.c.l.b16 %v4095
  %v4898 = vunpack.c.l.b16 %v4096
  %v4899 = vunpack.c.l.b16 %v4097
  %v4900 = vunpack.c.l.b16 %v4098
  %v4901 = vunpack.c.l.b16 %v4099
  %v4902 = vunpack.c.l.b16 %v4100
  %v4903 = vunpack.c.l.b16 %v4101
  %v4904 = vunpack.c.l.b16 %v4102
  %v4905 = vunpack.c.l.b16 %v4103
  %v4906 = vunpack.c.l.b16 %v4104
  %v4907 = vunpack.c.l.b16 %v4105
  %v4908 = vunpack.c.l.b16 %v4106
  %v4909 = vunpack.c.l.b16 %v4107
  %v4910 = vunpack.c.l.b16 %v4108
  %v4911 = vunpack.c.l.b16 %v4109
  %v4912 = vunpack.c.l.b16 %v4110
  %v4913 = vunpack.c.l.b16 %v4111
  %v4914 = vunpack.c.l.b16 %v4112
  %v4915 = vunpack.c.l.b16 %v4113
  %v4916 = vunpack.c.l.b16 %v4114
  %v4917 = vunpack.c.l.b16 %v4115
  %v4918 = vunpack.c.l.b16 %v4116
  %v4919 = vunpack.c.l.b16 %v4117
  %v4920 = vunpack.c.l.b16 %v4118
  %v4921 = vpack.c.b16 %v4842, %v4841
  %v4922 = vpack.c.b16 %v4844, %v4843
  %v4923 = vpack.c.b16 %v4846, %v4845
  %v4924 = vpack.c.b16 %v4848, %v4847
  %v4925 = vpack.c.b16 %v4850, %v4849
  %v4926 = vpack.c.b16 %v4852, %v4851
  %v4927 = vpack.c.b16 %v4854, %v4853
  %v4928 = vpack.c.b16 %v4856, %v4855
  %v4929 = vpack.c.b16 %v4858, %v4857
  %v4930 = vpack.c.b16 %v4860, %v4859
  %v4931 = vpack.c.b16 %v4862, %v4861
  %v4932 = vpack.c.b16 %v4864, %v4863
  %v4933 = vpack.c.b16 %v4866, %v4865
  %v4934 = vpack.c.b16 %v4868, %v4867
  %v4935 = vpack.c.b16 %v4870, %v4869
  %v4936 = vpack.c.b16 %v4872, %v4871
  %v4937 = vpack.c.b16 %v4874, %v4873
  %v4938 = vpack.c.b16 %v4876, %v4875
  %v4939 = vpack.c.b16 %v4878, %v4877
  %v4940 = vpack.c.b16 %v4880, %v4879
  %v4941 = vpack.c.b16 %v4882, %v4881
  %v4942 = vpack.c.b16 %v4884, %v4883
  %v4943 = vpack.c.b16 %v4886, %v4885
  %v4944 = vpack.c.b16 %v4888, %v4887
  %v4945 = vpack.c.b16 %v4890, %v4889
  %v4946 = vpack.c.b16 %v4892, %v4891
  %v4947 = vpack.c.b16 %v4894, %v4893
  %v4948 = vpack.c.b16 %v4896, %v4895
  %v4949 = vpack.c.b16 %v4898, %v4897
  %v4950 = vpack.c.b16 %v4900, %v4899
  %v4951 = vpack.c.b16 %v4902, %v4901
  %v4952 = vpack.c.b16 %v4904, %v4903
  %v4953 = vpack.c.b16 %v4906, %v4905
  %v4954 = vpack.c.b16 %v4908, %v4907
  %v4955 = vpack.c.b16 %v4910, %v4909
  %v4956 = vpack.c.b16 %v4912, %v4911
  %v4957 = vpack.c.b16 %v4914, %v4913
  %v4958 = vpack.c.b16 %v4916, %v4915
  %v4959 = vpack.c.b16 %v4918, %v4917
  %v4960 = vpack.c.b16 %v4920, %v4919
  %5001 = vmatprep.subr.bf16.mxu0 0
  %5002 = vmatpush1.bf16.msra.mxu0 %v4928
  %5003 = vmatprep.subr.bf16.mxu0 0
  %5004 = vmatpush1.bf16.msra.mxu0 %v4927
  %5005 = vmatprep.subr.bf16.mxu0 0
  %5006 = vmatpush1.bf16.msra.mxu0 %v4926
  %5007 = vmatprep.subr.bf16.mxu0 0
  %5008 = vmatpush1.bf16.msra.mxu0 %v4925
  %5009 = vmatprep.subr.bf16.mxu0 0
  %5010 = vmatpush1.bf16.msra.mxu0 %v4924
  %5011 = vmatprep.subr.bf16.mxu0 0
  %5012 = vmatpush1.bf16.msra.mxu0 %v4923
  %5013 = vmatprep.subr.bf16.mxu0 0
  %5014 = vmatpush1.bf16.msra.mxu0 %v4922
  %5015 = vmatprep.subr.bf16.mxu0 0
  %5016 = vmatpush1.bf16.msra.mxu0 %v4921
  %5017 = vmatprep.subr.bf16.mxu0 0
  %5018 = vmatpush2.bf16.msra.mxu0 %v4936
  %5019 = vmatprep.subr.bf16.mxu0 0
  %5020 = vmatpush2.bf16.msra.mxu0 %v4935
  %5021 = vmatprep.subr.bf16.mxu0 0
  %5022 = vmatpush2.bf16.msra.mxu0 %v4934
  %5023 = vmatprep.subr.bf16.mxu0 0
  %5024 = vmatpush2.bf16.msra.mxu0 %v4933
  %5025 = vmatprep.subr.bf16.mxu0 0
  %5026 = vmatpush2.bf16.msra.mxu0 %v4932
  %5027 = vmatprep.subr.bf16.mxu0 0
  %5028 = vmatpush2.bf16.msra.mxu0 %v4931
  %5029 = vmatprep.subr.bf16.mxu0 0
  %5030 = vmatpush2.bf16.msra.mxu0 %v4930
  %5031 = vmatprep.subr.bf16.mxu0 0
  %5032 = vmatpush2.bf16.msra.mxu0 %v4929
  %5033 = vmatprep.mubr.bf16.mxu0 %v4512
  %5034 = vmatmul.mubr.bf16.gmra.mxu0 %v4511
  %v5035 = vpop.f32.mrf.mxu0
  %v5036 = vadd.f32 0.0, %v5035
  %v5037 = vpop.f32.mrf.mxu0
  %v5038 = vpop.f32.mrf.mxu0
  %v5039 = vadd.f32 0.0, %v5038
  %v5040 = vpop.f32.mrf.mxu0
  %5041 = vmatprep.mubr.bf16.mxu0 %v4517
  %5042 = vmatmul.mubr.bf16.gmra.mxu0 %v4516
  %v5043 = vpop.f32.mrf.mxu0
  %v5044 = vadd.f32 0.0, %v5043
  %v5045 = vpop.f32.mrf.mxu0
  %v5046 = vpop.f32.mrf.mxu0
  %v5047 = vadd.f32 0.0, %v5046
  %v5048 = vpop.f32.mrf.mxu0
  %5049 = vmatprep.mubr.bf16.mxu0 %v4522
  %5050 = vmatmul.mubr.bf16.gmra.mxu0 %v4521
  %v5051 = vpop.f32.mrf.mxu0
  %v5052 = vadd.f32 0.0, %v5051
  %v5053 = vpop.f32.mrf.mxu0
  %v5054 = vpop.f32.mrf.mxu0
  %v5055 = vadd.f32 0.0, %v5054
  %v5056 = vpop.f32.mrf.mxu0
  %5057 = vmatprep.mubr.bf16.mxu0 %v4527
  %5058 = vmatmul.mubr.bf16.gmra.mxu0 %v4526
  %v5059 = vpop.f32.mrf.mxu0
  %v5060 = vadd.f32 0.0, %v5059
  %v5061 = vpop.f32.mrf.mxu0
  %v5062 = vpop.f32.mrf.mxu0
  %v5063 = vadd.f32 0.0, %v5062
  %v5064 = vpop.f32.mrf.mxu0
  %5065 = vmatprep.mubr.bf16.mxu0 %v4532
  %5066 = vmatmul.mubr.bf16.gmra.mxu0 %v4531
  %v5067 = vpop.f32.mrf.mxu0
  %v5068 = vadd.f32 0.0, %v5067
  %v5069 = vpop.f32.mrf.mxu0
  %v5070 = vpop.f32.mrf.mxu0
  %v5071 = vadd.f32 0.0, %v5070
  %v5072 = vpop.f32.mrf.mxu0
  %5073 = vmatprep.mubr.bf16.mxu0 %v4537
  %5074 = vmatmul.mubr.bf16.gmra.mxu0 %v4536
  %v5075 = vpop.f32.mrf.mxu0
  %v5076 = vadd.f32 0.0, %v5075
  %v5077 = vpop.f32.mrf.mxu0
  %v5078 = vpop.f32.mrf.mxu0
  %v5079 = vadd.f32 0.0, %v5078
  %v5080 = vpop.f32.mrf.mxu0
  %5081 = vmatprep.mubr.bf16.mxu0 %v4542
  %5082 = vmatmul.mubr.bf16.gmra.mxu0 %v4541
  %v5083 = vpop.f32.mrf.mxu0
  %v5084 = vadd.f32 0.0, %v5083
  %v5085 = vpop.f32.mrf.mxu0
  %v5086 = vpop.f32.mrf.mxu0
  %v5087 = vadd.f32 0.0, %v5086
  %v5088 = vpop.f32.mrf.mxu0
  %5089 = vmatprep.mubr.bf16.mxu0 %v4547
  %5090 = vmatmul.mubr.bf16.gmra.mxu0 %v4546
  %v5091 = vpop.f32.mrf.mxu0
  %v5092 = vadd.f32 0.0, %v5091
  %v5093 = vpop.f32.mrf.mxu0
  %v5094 = vpop.f32.mrf.mxu0
  %v5095 = vadd.f32 0.0, %v5094
  %v5096 = vpop.f32.mrf.mxu0
  %5097 = vmatprep.mubr.bf16.mxu0 %v4552
  %5098 = vmatmul.mubr.bf16.gmra.mxu0 %v4551
  %v5099 = vpop.f32.mrf.mxu0
  %v5100 = vadd.f32 0.0, %v5099
  %v5101 = vpop.f32.mrf.mxu0
  %v5102 = vpop.f32.mrf.mxu0
  %v5103 = vadd.f32 0.0, %v5102
  %v5104 = vpop.f32.mrf.mxu0
  %5105 = vmatprep.mubr.bf16.mxu0 %v4557
  %5106 = vmatmul.mubr.bf16.gmra.mxu0 %v4556
  %v5107 = vpop.f32.mrf.mxu0
  %v5108 = vadd.f32 0.0, %v5107
  %v5109 = vpop.f32.mrf.mxu0
  %v5110 = vpop.f32.mrf.mxu0
  %v5111 = vadd.f32 0.0, %v5110
  %v5112 = vpop.f32.mrf.mxu0
  %5113 = vmatprep.mubr.bf16.mxu0 %v4562
  %5114 = vmatmul.mubr.bf16.gmra.mxu0 %v4561
  %v5115 = vpop.f32.mrf.mxu0
  %v5116 = vadd.f32 0.0, %v5115
  %v5117 = vpop.f32.mrf.mxu0
  %v5118 = vpop.f32.mrf.mxu0
  %v5119 = vadd.f32 0.0, %v5118
  %v5120 = vpop.f32.mrf.mxu0
  %5121 = vmatprep.mubr.bf16.mxu0 %v4567
  %5122 = vmatmul.mubr.bf16.gmra.mxu0 %v4566
  %v5123 = vpop.f32.mrf.mxu0
  %v5124 = vadd.f32 0.0, %v5123
  %v5125 = vpop.f32.mrf.mxu0
  %v5126 = vpop.f32.mrf.mxu0
  %v5127 = vadd.f32 0.0, %v5126
  %v5128 = vpop.f32.mrf.mxu0
  %5129 = vmatprep.mubr.bf16.mxu0 %v4572
  %5130 = vmatmul.mubr.bf16.gmra.mxu0 %v4571
  %v5131 = vpop.f32.mrf.mxu0
  %v5132 = vadd.f32 0.0, %v5131
  %v5133 = vpop.f32.mrf.mxu0
  %v5134 = vpop.f32.mrf.mxu0
  %v5135 = vadd.f32 0.0, %v5134
  %v5136 = vpop.f32.mrf.mxu0
  %5137 = vmatprep.mubr.bf16.mxu0 %v4577
  %5138 = vmatmul.mubr.bf16.gmra.mxu0 %v4576
  %v5139 = vpop.f32.mrf.mxu0
  %v5140 = vadd.f32 0.0, %v5139
  %v5141 = vpop.f32.mrf.mxu0
  %v5142 = vpop.f32.mrf.mxu0
  %v5143 = vadd.f32 0.0, %v5142
  %v5144 = vpop.f32.mrf.mxu0
  %5145 = vmatprep.mubr.bf16.mxu0 %v4582
  %5146 = vmatmul.mubr.bf16.gmra.mxu0 %v4581
  %v5147 = vpop.f32.mrf.mxu0
  %v5148 = vadd.f32 0.0, %v5147
  %v5149 = vpop.f32.mrf.mxu0
  %v5150 = vpop.f32.mrf.mxu0
  %v5151 = vadd.f32 0.0, %v5150
  %v5152 = vpop.f32.mrf.mxu0
  %5153 = vmatprep.mubr.bf16.mxu0 %v4587
  %5154 = vmatmul.mubr.bf16.gmra.mxu0 %v4586
  %v5155 = vpop.f32.mrf.mxu0
  %v5156 = vadd.f32 0.0, %v5155
  %v5157 = vpop.f32.mrf.mxu0
  %v5158 = vpop.f32.mrf.mxu0
  %v5159 = vadd.f32 0.0, %v5158
  %v5160 = vpop.f32.mrf.mxu0
  %5161 = vmatprep.mubr.bf16.mxu0 %v4592
  %5162 = vmatmul.mubr.bf16.gmra.mxu0 %v4591
  %v5163 = vpop.f32.mrf.mxu0
  %v5164 = vadd.f32 0.0, %v5163
  %v5165 = vpop.f32.mrf.mxu0
  %v5166 = vpop.f32.mrf.mxu0
  %v5167 = vadd.f32 0.0, %v5166
  %v5168 = vpop.f32.mrf.mxu0
  %5169 = vmatprep.mubr.bf16.mxu0 %v4597
  %5170 = vmatmul.mubr.bf16.gmra.mxu0 %v4596
  %v5171 = vpop.f32.mrf.mxu0
  %v5172 = vadd.f32 0.0, %v5171
  %v5173 = vpop.f32.mrf.mxu0
  %v5174 = vpop.f32.mrf.mxu0
  %v5175 = vadd.f32 0.0, %v5174
  %v5176 = vpop.f32.mrf.mxu0
  %5177 = vmatprep.mubr.bf16.mxu0 %v4602
  %5178 = vmatmul.mubr.bf16.gmra.mxu0 %v4601
  %v5179 = vpop.f32.mrf.mxu0
  %v5180 = vadd.f32 0.0, %v5179
  %v5181 = vpop.f32.mrf.mxu0
  %v5182 = vpop.f32.mrf.mxu0
  %v5183 = vadd.f32 0.0, %v5182
  %v5184 = vpop.f32.mrf.mxu0
  %5185 = vmatprep.mubr.bf16.mxu0 %v4607
  %5186 = vmatmul.mubr.bf16.gmra.mxu0 %v4606
  %v5187 = vpop.f32.mrf.mxu0
  %v5188 = vadd.f32 0.0, %v5187
  %v5189 = vpop.f32.mrf.mxu0
  %v5190 = vpop.f32.mrf.mxu0
  %v5191 = vadd.f32 0.0, %v5190
  %v5192 = vpop.f32.mrf.mxu0
  %5193 = vmatprep.mubr.bf16.mxu0 %v4612
  %5194 = vmatmul.mubr.bf16.gmra.mxu0 %v4611
  %v5195 = vpop.f32.mrf.mxu0
  %v5196 = vadd.f32 0.0, %v5195
  %v5197 = vpop.f32.mrf.mxu0
  %v5198 = vpop.f32.mrf.mxu0
  %v5199 = vadd.f32 0.0, %v5198
  %v5200 = vpop.f32.mrf.mxu0
  %5201 = vmatprep.mubr.bf16.mxu0 %v4617
  %5202 = vmatmul.mubr.bf16.gmra.mxu0 %v4616
  %v5203 = vpop.f32.mrf.mxu0
  %v5204 = vadd.f32 0.0, %v5203
  %v5205 = vpop.f32.mrf.mxu0
  %v5206 = vpop.f32.mrf.mxu0
  %v5207 = vadd.f32 0.0, %v5206
  %v5208 = vpop.f32.mrf.mxu0
  %5209 = vmatprep.mubr.bf16.mxu0 %v4622
  %5210 = vmatmul.mubr.bf16.gmra.mxu0 %v4621
  %v5211 = vpop.f32.mrf.mxu0
  %v5212 = vadd.f32 0.0, %v5211
  %v5213 = vpop.f32.mrf.mxu0
  %v5214 = vpop.f32.mrf.mxu0
  %v5215 = vadd.f32 0.0, %v5214
  %v5216 = vpop.f32.mrf.mxu0
  %5217 = vmatprep.mubr.bf16.mxu0 %v4627
  %5218 = vmatmul.mubr.bf16.gmra.mxu0 %v4626
  %v5219 = vpop.f32.mrf.mxu0
  %v5220 = vadd.f32 0.0, %v5219
  %v5221 = vpop.f32.mrf.mxu0
  %v5222 = vpop.f32.mrf.mxu0
  %v5223 = vadd.f32 0.0, %v5222
  %v5224 = vpop.f32.mrf.mxu0
  %5225 = vmatprep.mubr.bf16.mxu0 %v4632
  %5226 = vmatmul.mubr.bf16.gmra.mxu0 %v4631
  %v5227 = vpop.f32.mrf.mxu0
  %v5228 = vadd.f32 0.0, %v5227
  %v5229 = vpop.f32.mrf.mxu0
  %v5230 = vpop.f32.mrf.mxu0
  %v5231 = vpop.f32.mrf.mxu0
  %5232 = vdwg.mxu0
  %5233 = vmatprep.subr.bf16.mxu0 0
  %5234 = vmatpush1.bf16.msra.mxu0 %v4944
  %5235 = vmatprep.subr.bf16.mxu0 0
  %5236 = vmatpush1.bf16.msra.mxu0 %v4943
  %5237 = vmatprep.subr.bf16.mxu0 0
  %5238 = vmatpush1.bf16.msra.mxu0 %v4942
  %5239 = vmatprep.subr.bf16.mxu0 0
  %5240 = vmatpush1.bf16.msra.mxu0 %v4941
  %5241 = vmatprep.subr.bf16.mxu0 0
  %5242 = vmatpush1.bf16.msra.mxu0 %v4940
  %5243 = vmatprep.subr.bf16.mxu0 0
  %5244 = vmatpush1.bf16.msra.mxu0 %v4939
  %5245 = vmatprep.subr.bf16.mxu0 0
  %5246 = vmatpush1.bf16.msra.mxu0 %v4938
  %5247 = vmatprep.subr.bf16.mxu0 0
  %5248 = vmatpush1.bf16.msra.mxu0 %v4937
  %5249 = vmatprep.subr.bf16.mxu0 0
  %5250 = vmatpush2.bf16.msra.mxu0 %v4952
  %5251 = vmatprep.subr.bf16.mxu0 0
  %5252 = vmatpush2.bf16.msra.mxu0 %v4951
  %5253 = vmatprep.subr.bf16.mxu0 0
  %5254 = vmatpush2.bf16.msra.mxu0 %v4950
  %5255 = vmatprep.subr.bf16.mxu0 0
  %5256 = vmatpush2.bf16.msra.mxu0 %v4949
  %5257 = vmatprep.subr.bf16.mxu0 0
  %5258 = vmatpush2.bf16.msra.mxu0 %v4948
  %5259 = vmatprep.subr.bf16.mxu0 0
  %5260 = vmatpush2.bf16.msra.mxu0 %v4947
  %5261 = vmatprep.subr.bf16.mxu0 0
  %5262 = vmatpush2.bf16.msra.mxu0 %v4946
  %5263 = vmatprep.subr.bf16.mxu0 0
  %5264 = vmatpush2.bf16.msra.mxu0 %v4945
  %5265 = vmatprep.mubr.bf16.mxu0 %v4514
  %5266 = vmatmul.mubr.bf16.gmra.mxu0 %v4513
  %v5267 = vpop.f32.mrf.mxu0
  %v5268 = vadd.f32 %v5036, %v5267
  %v5269 = vpop.f32.mrf.mxu0
  %v5270 = vpop.f32.mrf.mxu0
  %v5271 = vadd.f32 %v5039, %v5270
  %v5272 = vpop.f32.mrf.mxu0
  %5273 = vmatprep.mubr.bf16.mxu0 %v4519
  %5274 = vmatmul.mubr.bf16.gmra.mxu0 %v4518
  %v5275 = vpop.f32.mrf.mxu0
  %v5276 = vadd.f32 %v5044, %v5275
  %v5277 = vpop.f32.mrf.mxu0
  %v5278 = vpop.f32.mrf.mxu0
  %v5279 = vadd.f32 %v5047, %v5278
  %v5280 = vpop.f32.mrf.mxu0
  %5281 = vmatprep.mubr.bf16.mxu0 %v4524
  %5282 = vmatmul.mubr.bf16.gmra.mxu0 %v4523
  %v5283 = vpop.f32.mrf.mxu0
  %v5284 = vadd.f32 %v5052, %v5283
  %v5285 = vpop.f32.mrf.mxu0
  %v5286 = vpop.f32.mrf.mxu0
  %v5287 = vadd.f32 %v5055, %v5286
  %v5288 = vpop.f32.mrf.mxu0
  %5289 = vmatprep.mubr.bf16.mxu0 %v4529
  %5290 = vmatmul.mubr.bf16.gmra.mxu0 %v4528
  %v5291 = vpop.f32.mrf.mxu0
  %v5292 = vadd.f32 %v5060, %v5291
  %v5293 = vpop.f32.mrf.mxu0
  %v5294 = vpop.f32.mrf.mxu0
  %v5295 = vadd.f32 %v5063, %v5294
  %v5296 = vpop.f32.mrf.mxu0
  %5297 = vmatprep.mubr.bf16.mxu0 %v4534
  %5298 = vmatmul.mubr.bf16.gmra.mxu0 %v4533
  %v5299 = vpop.f32.mrf.mxu0
  %v5300 = vadd.f32 %v5068, %v5299
  %v5301 = vpop.f32.mrf.mxu0
  %v5302 = vpop.f32.mrf.mxu0
  %v5303 = vadd.f32 %v5071, %v5302
  %v5304 = vpop.f32.mrf.mxu0
  %5305 = vmatprep.mubr.bf16.mxu0 %v4539
  %5306 = vmatmul.mubr.bf16.gmra.mxu0 %v4538
  %v5307 = vpop.f32.mrf.mxu0
  %v5308 = vadd.f32 %v5076, %v5307
  %v5309 = vpop.f32.mrf.mxu0
  %v5310 = vpop.f32.mrf.mxu0
  %v5311 = vadd.f32 %v5079, %v5310
  %v5312 = vpop.f32.mrf.mxu0
  %5313 = vmatprep.mubr.bf16.mxu0 %v4544
  %5314 = vmatmul.mubr.bf16.gmra.mxu0 %v4543
  %v5315 = vpop.f32.mrf.mxu0
  %v5316 = vadd.f32 %v5084, %v5315
  %v5317 = vpop.f32.mrf.mxu0
  %v5318 = vpop.f32.mrf.mxu0
  %v5319 = vadd.f32 %v5087, %v5318
  %v5320 = vpop.f32.mrf.mxu0
  %5321 = vmatprep.mubr.bf16.mxu0 %v4549
  %5322 = vmatmul.mubr.bf16.gmra.mxu0 %v4548
  %v5323 = vpop.f32.mrf.mxu0
  %v5324 = vadd.f32 %v5092, %v5323
  %v5325 = vpop.f32.mrf.mxu0
  %v5326 = vpop.f32.mrf.mxu0
  %v5327 = vadd.f32 %v5095, %v5326
  %v5328 = vpop.f32.mrf.mxu0
  %5329 = vmatprep.mubr.bf16.mxu0 %v4554
  %5330 = vmatmul.mubr.bf16.gmra.mxu0 %v4553
  %v5331 = vpop.f32.mrf.mxu0
  %v5332 = vadd.f32 %v5100, %v5331
  %v5333 = vpop.f32.mrf.mxu0
  %v5334 = vpop.f32.mrf.mxu0
  %v5335 = vadd.f32 %v5103, %v5334
  %v5336 = vpop.f32.mrf.mxu0
  %5337 = vmatprep.mubr.bf16.mxu0 %v4559
  %5338 = vmatmul.mubr.bf16.gmra.mxu0 %v4558
  %v5339 = vpop.f32.mrf.mxu0
  %v5340 = vadd.f32 %v5108, %v5339
  %v5341 = vpop.f32.mrf.mxu0
  %v5342 = vpop.f32.mrf.mxu0
  %v5343 = vadd.f32 %v5111, %v5342
  %v5344 = vpop.f32.mrf.mxu0
  %5345 = vmatprep.mubr.bf16.mxu0 %v4564
  %5346 = vmatmul.mubr.bf16.gmra.mxu0 %v4563
  %v5347 = vpop.f32.mrf.mxu0
  %v5348 = vadd.f32 %v5116, %v5347
  %v5349 = vpop.f32.mrf.mxu0
  %v5350 = vpop.f32.mrf.mxu0
  %v5351 = vadd.f32 %v5119, %v5350
  %v5352 = vpop.f32.mrf.mxu0
  %5353 = vmatprep.mubr.bf16.mxu0 %v4569
  %5354 = vmatmul.mubr.bf16.gmra.mxu0 %v4568
  %v5355 = vpop.f32.mrf.mxu0
  %v5356 = vadd.f32 %v5124, %v5355
  %v5357 = vpop.f32.mrf.mxu0
  %v5358 = vpop.f32.mrf.mxu0
  %v5359 = vadd.f32 %v5127, %v5358
  %v5360 = vpop.f32.mrf.mxu0
  %5361 = vmatprep.mubr.bf16.mxu0 %v4574
  %5362 = vmatmul.mubr.bf16.gmra.mxu0 %v4573
  %v5363 = vpop.f32.mrf.mxu0
  %v5364 = vadd.f32 %v5132, %v5363
  %v5365 = vpop.f32.mrf.mxu0
  %v5366 = vpop.f32.mrf.mxu0
  %v5367 = vadd.f32 %v5135, %v5366
  %v5368 = vpop.f32.mrf.mxu0
  %5369 = vmatprep.mubr.bf16.mxu0 %v4579
  %5370 = vmatmul.mubr.bf16.gmra.mxu0 %v4578
  %v5371 = vpop.f32.mrf.mxu0
  %v5372 = vadd.f32 %v5140, %v5371
  %v5373 = vpop.f32.mrf.mxu0
  %v5374 = vpop.f32.mrf.mxu0
  %v5375 = vadd.f32 %v5143, %v5374
  %v5376 = vpop.f32.mrf.mxu0
  %5377 = vmatprep.mubr.bf16.mxu0 %v4584
  %5378 = vmatmul.mubr.bf16.gmra.mxu0 %v4583
  %v5379 = vpop.f32.mrf.mxu0
  %v5380 = vadd.f32 %v5148, %v5379
  %v5381 = vpop.f32.mrf.mxu0
  %v5382 = vpop.f32.mrf.mxu0
  %v5383 = vadd.f32 %v5151, %v5382
  %v5384 = vpop.f32.mrf.mxu0
  %5385 = vmatprep.mubr.bf16.mxu0 %v4589
  %5386 = vmatmul.mubr.bf16.gmra.mxu0 %v4588
  %v5387 = vpop.f32.mrf.mxu0
  %v5388 = vadd.f32 %v5156, %v5387
  %v5389 = vpop.f32.mrf.mxu0
  %v5390 = vpop.f32.mrf.mxu0
  %v5391 = vadd.f32 %v5159, %v5390
  %v5392 = vpop.f32.mrf.mxu0
  %5393 = vmatprep.mubr.bf16.mxu0 %v4594
  %5394 = vmatmul.mubr.bf16.gmra.mxu0 %v4593
  %v5395 = vpop.f32.mrf.mxu0
  %v5396 = vadd.f32 %v5164, %v5395
  %v5397 = vpop.f32.mrf.mxu0
  %v5398 = vpop.f32.mrf.mxu0
  %v5399 = vadd.f32 %v5167, %v5398
  %v5400 = vpop.f32.mrf.mxu0
  %5401 = vmatprep.mubr.bf16.mxu0 %v4599
  %5402 = vmatmul.mubr.bf16.gmra.mxu0 %v4598
  %v5403 = vpop.f32.mrf.mxu0
  %v5404 = vadd.f32 %v5172, %v5403
  %v5405 = vpop.f32.mrf.mxu0
  %v5406 = vpop.f32.mrf.mxu0
  %v5407 = vadd.f32 %v5175, %v5406
  %v5408 = vpop.f32.mrf.mxu0
  %5409 = vmatprep.mubr.bf16.mxu0 %v4604
  %5410 = vmatmul.mubr.bf16.gmra.mxu0 %v4603
  %v5411 = vpop.f32.mrf.mxu0
  %v5412 = vadd.f32 %v5180, %v5411
  %v5413 = vpop.f32.mrf.mxu0
  %v5414 = vpop.f32.mrf.mxu0
  %v5415 = vadd.f32 %v5183, %v5414
  %v5416 = vpop.f32.mrf.mxu0
  %5417 = vmatprep.mubr.bf16.mxu0 %v4609
  %5418 = vmatmul.mubr.bf16.gmra.mxu0 %v4608
  %v5419 = vpop.f32.mrf.mxu0
  %v5420 = vadd.f32 %v5188, %v5419
  %v5421 = vpop.f32.mrf.mxu0
  %v5422 = vpop.f32.mrf.mxu0
  %v5423 = vadd.f32 %v5191, %v5422
  %v5424 = vpop.f32.mrf.mxu0
  %5425 = vmatprep.mubr.bf16.mxu0 %v4614
  %5426 = vmatmul.mubr.bf16.gmra.mxu0 %v4613
  %v5427 = vpop.f32.mrf.mxu0
  %v5428 = vadd.f32 %v5196, %v5427
  %v5429 = vpop.f32.mrf.mxu0
  %v5430 = vpop.f32.mrf.mxu0
  %v5431 = vadd.f32 %v5199, %v5430
  %v5432 = vpop.f32.mrf.mxu0
  %5433 = vmatprep.mubr.bf16.mxu0 %v4619
  %5434 = vmatmul.mubr.bf16.gmra.mxu0 %v4618
  %v5435 = vpop.f32.mrf.mxu0
  %v5436 = vadd.f32 %v5204, %v5435
  %v5437 = vpop.f32.mrf.mxu0
  %v5438 = vpop.f32.mrf.mxu0
  %v5439 = vadd.f32 %v5207, %v5438
  %v5440 = vpop.f32.mrf.mxu0
  %5441 = vmatprep.mubr.bf16.mxu0 %v4624
  %5442 = vmatmul.mubr.bf16.gmra.mxu0 %v4623
  %v5443 = vpop.f32.mrf.mxu0
  %v5444 = vadd.f32 %v5212, %v5443
  %v5445 = vpop.f32.mrf.mxu0
  %v5446 = vpop.f32.mrf.mxu0
  %v5447 = vadd.f32 %v5215, %v5446
  %v5448 = vpop.f32.mrf.mxu0
  %5449 = vmatprep.mubr.bf16.mxu0 %v4629
  %5450 = vmatmul.mubr.bf16.gmra.mxu0 %v4628
  %v5451 = vpop.f32.mrf.mxu0
  %v5452 = vadd.f32 %v5220, %v5451
  %v5453 = vpop.f32.mrf.mxu0
  %v5454 = vpop.f32.mrf.mxu0
  %v5455 = vadd.f32 %v5223, %v5454
  %v5456 = vpop.f32.mrf.mxu0
  %5457 = vmatprep.mubr.bf16.mxu0 %v4634
  %5458 = vmatmul.mubr.bf16.gmra.mxu0 %v4633
  %v5459 = vpop.f32.mrf.mxu0
  %v5460 = vadd.f32 %v5228, %v5459
  %v5461 = vpop.f32.mrf.mxu0
  %v5462 = vpop.f32.mrf.mxu0
  %v5463 = vpop.f32.mrf.mxu0
  %5464 = vdwg.mxu0
  %5465 = vmatprep.subr.bf16.mxu0 0
  %5466 = vmatpush1.bf16.msra.mxu0 %v4960
  %5467 = vmatprep.subr.bf16.mxu0 0
  %5468 = vmatpush1.bf16.msra.mxu0 %v4959
  %5469 = vmatprep.subr.bf16.mxu0 0
  %5470 = vmatpush1.bf16.msra.mxu0 %v4958
  %5471 = vmatprep.subr.bf16.mxu0 0
  %5472 = vmatpush1.bf16.msra.mxu0 %v4957
  %5473 = vmatprep.subr.bf16.mxu0 0
  %5474 = vmatpush1.bf16.msra.mxu0 %v4956
  %5475 = vmatprep.subr.bf16.mxu0 0
  %5476 = vmatpush1.bf16.msra.mxu0 %v4955
  %5477 = vmatprep.subr.bf16.mxu0 0
  %5478 = vmatpush1.bf16.msra.mxu0 %v4954
  %5479 = vmatprep.subr.bf16.mxu0 0
  %5480 = vmatpush1.bf16.msra.mxu0 %v4953
  %5481 = vmatprep.subr.bf16.mxu0 0
  %5482 = vmatpush2.bf16.msra.mxu0 0
  %5483 = vmatprep.subr.bf16.mxu0 0
  %5484 = vmatpush2.bf16.msra.mxu0 0
  %5485 = vmatprep.subr.bf16.mxu0 0
  %5486 = vmatpush2.bf16.msra.mxu0 0
  %5487 = vmatprep.subr.bf16.mxu0 0
  %5488 = vmatpush2.bf16.msra.mxu0 0
  %5489 = vmatprep.subr.bf16.mxu0 0
  %5490 = vmatpush2.bf16.msra.mxu0 0
  %5491 = vmatprep.subr.bf16.mxu0 0
  %5492 = vmatpush2.bf16.msra.mxu0 0
  %5493 = vmatprep.subr.bf16.mxu0 0
  %5494 = vmatpush2.bf16.msra.mxu0 0
  %5495 = vmatprep.subr.bf16.mxu0 0
  %5496 = vmatpush2.bf16.msra.mxu0 0
  %5497 = vmatprep.mubr.bf16.mxu0 0
  %5498 = vmatmul.mubr.bf16.gmra.mxu0 %v4515
  %v5499 = vpop.f32.mrf.mxu0
  %v5500 = vadd.f32 %v5268, %v5499
  %v5501 = vpop.f32.mrf.mxu0
  %v5502 = vpop.f32.mrf.mxu0
  %v5503 = vadd.f32 %v5271, %v5502
  %v5504 = vpop.f32.mrf.mxu0
  %5505 = vmatprep.mubr.bf16.mxu0 0
  %5506 = vmatmul.mubr.bf16.gmra.mxu0 %v4520
  %v5507 = vpop.f32.mrf.mxu0
  %v5508 = vadd.f32 %v5276, %v5507
  %v5509 = vpop.f32.mrf.mxu0
  %v5510 = vpop.f32.mrf.mxu0
  %v5511 = vadd.f32 %v5279, %v5510
  %v5512 = vpop.f32.mrf.mxu0
  %5513 = vmatprep.mubr.bf16.mxu0 0
  %5514 = vmatmul.mubr.bf16.gmra.mxu0 %v4525
  %v5515 = vpop.f32.mrf.mxu0
  %v5516 = vadd.f32 %v5284, %v5515
  %v5517 = vpop.f32.mrf.mxu0
  %v5518 = vpop.f32.mrf.mxu0
  %v5519 = vadd.f32 %v5287, %v5518
  %v5520 = vpop.f32.mrf.mxu0
  %5521 = vmatprep.mubr.bf16.mxu0 0
  %5522 = vmatmul.mubr.bf16.gmra.mxu0 %v4530
  %v5523 = vpop.f32.mrf.mxu0
  %v5524 = vadd.f32 %v5292, %v5523
  %v5525 = vpop.f32.mrf.mxu0
  %v5526 = vpop.f32.mrf.mxu0
  %v5527 = vadd.f32 %v5295, %v5526
  %v5528 = vpop.f32.mrf.mxu0
  %5529 = vmatprep.mubr.bf16.mxu0 0
  %5530 = vmatmul.mubr.bf16.gmra.mxu0 %v4535
  %v5531 = vpop.f32.mrf.mxu0
  %v5532 = vadd.f32 %v5300, %v5531
  %v5533 = vpop.f32.mrf.mxu0
  %v5534 = vpop.f32.mrf.mxu0
  %v5535 = vadd.f32 %v5303, %v5534
  %v5536 = vpop.f32.mrf.mxu0
  %5537 = vmatprep.mubr.bf16.mxu0 0
  %5538 = vmatmul.mubr.bf16.gmra.mxu0 %v4540
  %v5539 = vpop.f32.mrf.mxu0
  %v5540 = vadd.f32 %v5308, %v5539
  %v5541 = vpop.f32.mrf.mxu0
  %v5542 = vpop.f32.mrf.mxu0
  %v5543 = vadd.f32 %v5311, %v5542
  %v5544 = vpop.f32.mrf.mxu0
  %5545 = vmatprep.mubr.bf16.mxu0 0
  %5546 = vmatmul.mubr.bf16.gmra.mxu0 %v4545
  %v5547 = vpop.f32.mrf.mxu0
  %v5548 = vadd.f32 %v5316, %v5547
  %v5549 = vpop.f32.mrf.mxu0
  %v5550 = vpop.f32.mrf.mxu0
  %v5551 = vadd.f32 %v5319, %v5550
  %v5552 = vpop.f32.mrf.mxu0
  %5553 = vmatprep.mubr.bf16.mxu0 0
  %5554 = vmatmul.mubr.bf16.gmra.mxu0 %v4550
  %v5555 = vpop.f32.mrf.mxu0
  %v5556 = vadd.f32 %v5324, %v5555
  %v5557 = vpop.f32.mrf.mxu0
  %v5558 = vpop.f32.mrf.mxu0
  %v5559 = vadd.f32 %v5327, %v5558
  %v5560 = vpop.f32.mrf.mxu0
  %5561 = vmatprep.mubr.bf16.mxu0 0
  %5562 = vmatmul.mubr.bf16.gmra.mxu0 %v4555
  %v5563 = vpop.f32.mrf.mxu0
  %v5564 = vadd.f32 %v5332, %v5563
  %v5565 = vpop.f32.mrf.mxu0
  %v5566 = vpop.f32.mrf.mxu0
  %v5567 = vadd.f32 %v5335, %v5566
  %v5568 = vpop.f32.mrf.mxu0
  %5569 = vmatprep.mubr.bf16.mxu0 0
  %5570 = vmatmul.mubr.bf16.gmra.mxu0 %v4560
  %v5571 = vpop.f32.mrf.mxu0
  %v5572 = vadd.f32 %v5340, %v5571
  %v5573 = vpop.f32.mrf.mxu0
  %v5574 = vpop.f32.mrf.mxu0
  %v5575 = vadd.f32 %v5343, %v5574
  %v5576 = vpop.f32.mrf.mxu0
  %5577 = vmatprep.mubr.bf16.mxu0 0
  %5578 = vmatmul.mubr.bf16.gmra.mxu0 %v4565
  %v5579 = vpop.f32.mrf.mxu0
  %v5580 = vadd.f32 %v5348, %v5579
  %v5581 = vpop.f32.mrf.mxu0
  %v5582 = vpop.f32.mrf.mxu0
  %v5583 = vadd.f32 %v5351, %v5582
  %v5584 = vpop.f32.mrf.mxu0
  %5585 = vmatprep.mubr.bf16.mxu0 0
  %5586 = vmatmul.mubr.bf16.gmra.mxu0 %v4570
  %v5587 = vpop.f32.mrf.mxu0
  %v5588 = vadd.f32 %v5356, %v5587
  %v5589 = vpop.f32.mrf.mxu0
  %v5590 = vpop.f32.mrf.mxu0
  %v5591 = vadd.f32 %v5359, %v5590
  %v5592 = vpop.f32.mrf.mxu0
  %5593 = vmatprep.mubr.bf16.mxu0 0
  %5594 = vmatmul.mubr.bf16.gmra.mxu0 %v4575
  %v5595 = vpop.f32.mrf.mxu0
  %v5596 = vadd.f32 %v5364, %v5595
  %v5597 = vpop.f32.mrf.mxu0
  %v5598 = vpop.f32.mrf.mxu0
  %v5599 = vadd.f32 %v5367, %v5598
  %v5600 = vpop.f32.mrf.mxu0
  %5601 = vmatprep.mubr.bf16.mxu0 0
  %5602 = vmatmul.mubr.bf16.gmra.mxu0 %v4580
  %v5603 = vpop.f32.mrf.mxu0
  %v5604 = vadd.f32 %v5372, %v5603
  %v5605 = vpop.f32.mrf.mxu0
  %v5606 = vpop.f32.mrf.mxu0
  %v5607 = vadd.f32 %v5375, %v5606
  %v5608 = vpop.f32.mrf.mxu0
  %5609 = vmatprep.mubr.bf16.mxu0 0
  %5610 = vmatmul.mubr.bf16.gmra.mxu0 %v4585
  %v5611 = vpop.f32.mrf.mxu0
  %v5612 = vadd.f32 %v5380, %v5611
  %v5613 = vpop.f32.mrf.mxu0
  %v5614 = vpop.f32.mrf.mxu0
  %v5615 = vadd.f32 %v5383, %v5614
  %v5616 = vpop.f32.mrf.mxu0
  %5617 = vmatprep.mubr.bf16.mxu0 0
  %5618 = vmatmul.mubr.bf16.gmra.mxu0 %v4590
  %v5619 = vpop.f32.mrf.mxu0
  %v5620 = vadd.f32 %v5388, %v5619
  %v5621 = vpop.f32.mrf.mxu0
  %v5622 = vpop.f32.mrf.mxu0
  %v5623 = vadd.f32 %v5391, %v5622
  %v5624 = vpop.f32.mrf.mxu0
  %5625 = vmatprep.mubr.bf16.mxu0 0
  %5626 = vmatmul.mubr.bf16.gmra.mxu0 %v4595
  %v5627 = vpop.f32.mrf.mxu0
  %v5628 = vadd.f32 %v5396, %v5627
  %v5629 = vpop.f32.mrf.mxu0
  %v5630 = vpop.f32.mrf.mxu0
  %v5631 = vadd.f32 %v5399, %v5630
  %v5632 = vpop.f32.mrf.mxu0
  %5633 = vmatprep.mubr.bf16.mxu0 0
  %5634 = vmatmul.mubr.bf16.gmra.mxu0 %v4600
  %v5635 = vpop.f32.mrf.mxu0
  %v5636 = vadd.f32 %v5404, %v5635
  %v5637 = vpop.f32.mrf.mxu0
  %v5638 = vpop.f32.mrf.mxu0
  %v5639 = vadd.f32 %v5407, %v5638
  %v5640 = vpop.f32.mrf.mxu0
  %5641 = vmatprep.mubr.bf16.mxu0 0
  %5642 = vmatmul.mubr.bf16.gmra.mxu0 %v4605
  %v5643 = vpop.f32.mrf.mxu0
  %v5644 = vadd.f32 %v5412, %v5643
  %v5645 = vpop.f32.mrf.mxu0
  %v5646 = vpop.f32.mrf.mxu0
  %v5647 = vadd.f32 %v5415, %v5646
  %v5648 = vpop.f32.mrf.mxu0
  %5649 = vmatprep.mubr.bf16.mxu0 0
  %5650 = vmatmul.mubr.bf16.gmra.mxu0 %v4610
  %v5651 = vpop.f32.mrf.mxu0
  %v5652 = vadd.f32 %v5420, %v5651
  %v5653 = vpop.f32.mrf.mxu0
  %v5654 = vpop.f32.mrf.mxu0
  %v5655 = vadd.f32 %v5423, %v5654
  %v5656 = vpop.f32.mrf.mxu0
  %5657 = vmatprep.mubr.bf16.mxu0 0
  %5658 = vmatmul.mubr.bf16.gmra.mxu0 %v4615
  %v5659 = vpop.f32.mrf.mxu0
  %v5660 = vadd.f32 %v5428, %v5659
  %v5661 = vpop.f32.mrf.mxu0
  %v5662 = vpop.f32.mrf.mxu0
  %v5663 = vadd.f32 %v5431, %v5662
  %v5664 = vpop.f32.mrf.mxu0
  %5665 = vmatprep.mubr.bf16.mxu0 0
  %5666 = vmatmul.mubr.bf16.gmra.mxu0 %v4620
  %v5667 = vpop.f32.mrf.mxu0
  %v5668 = vadd.f32 %v5436, %v5667
  %v5669 = vpop.f32.mrf.mxu0
  %v5670 = vpop.f32.mrf.mxu0
  %v5671 = vadd.f32 %v5439, %v5670
  %v5672 = vpop.f32.mrf.mxu0
  %5673 = vmatprep.mubr.bf16.mxu0 0
  %5674 = vmatmul.mubr.bf16.gmra.mxu0 %v4625
  %v5675 = vpop.f32.mrf.mxu0
  %v5676 = vadd.f32 %v5444, %v5675
  %v5677 = vpop.f32.mrf.mxu0
  %v5678 = vpop.f32.mrf.mxu0
  %v5679 = vadd.f32 %v5447, %v5678
  %v5680 = vpop.f32.mrf.mxu0
  %5681 = vmatprep.mubr.bf16.mxu0 0
  %5682 = vmatmul.mubr.bf16.gmra.mxu0 %v4630
  %v5683 = vpop.f32.mrf.mxu0
  %v5684 = vadd.f32 %v5452, %v5683
  %v5685 = vpop.f32.mrf.mxu0
  %v5686 = vpop.f32.mrf.mxu0
  %v5687 = vadd.f32 %v5455, %v5686
  %v5688 = vpop.f32.mrf.mxu0
  %5689 = vmatprep.mubr.bf16.mxu0 0
  %5690 = vmatmul.mubr.bf16.gmra.mxu0 %v4635
  %v5691 = vpop.f32.mrf.mxu0
  %v5692 = vadd.f32 %v5460, %v5691
  %v5693 = vpop.f32.mrf.mxu0
  %v5694 = vpop.f32.mrf.mxu0
  %v5695 = vpop.f32.mrf.mxu0
  %5696 = vdwg.mxu0
  %5697 = vst [vmem:[#allocation5] sm:$0xff] %v5500
  %5698 = vst [vmem:[#allocation5 + $0x8] sm:$0xff] %v5503
  %5699 = vst [vmem:[#allocation5 + $0x10] sm:$0xff] %v5508
  %5700 = vst [vmem:[#allocation5 + $0x18] sm:$0xff] %v5511
  %5701 = vst [vmem:[#allocation5 + $0x20] sm:$0xff] %v5516
  %5702 = vst [vmem:[#allocation5 + $0x28] sm:$0xff] %v5519
  %5703 = vst [vmem:[#allocation5 + $0x30] sm:$0xff] %v5524
  %5704 = vst [vmem:[#allocation5 + $0x38] sm:$0xff] %v5527
  %5705 = vst [vmem:[#allocation5 + $0x40] sm:$0xff] %v5532
  %5706 = vst [vmem:[#allocation5 + $0x48] sm:$0xff] %v5535
  %5707 = vst [vmem:[#allocation5 + $0x50] sm:$0xff] %v5540
  %5708 = vst [vmem:[#allocation5 + $0x58] sm:$0xff] %v5543
  %5709 = vst [vmem:[#allocation5 + $0x60] sm:$0xff] %v5548
  %5710 = vst [vmem:[#allocation5 + $0x68] sm:$0xff] %v5551
  %5711 = vst [vmem:[#allocation5 + $0x70] sm:$0xff] %v5556
  %5712 = vst [vmem:[#allocation5 + $0x78] sm:$0xff] %v5559
  %5713 = vst [vmem:[#allocation5 + $0x80] sm:$0xff] %v5564
  %5714 = vst [vmem:[#allocation5 + $0x88] sm:$0xff] %v5567
  %5715 = vst [vmem:[#allocation5 + $0x90] sm:$0xff] %v5572
  %5716 = vst [vmem:[#allocation5 + $0x98] sm:$0xff] %v5575
  %5717 = vst [vmem:[#allocation5 + $0xa0] sm:$0xff] %v5580
  %5718 = vst [vmem:[#allocation5 + $0xa8] sm:$0xff] %v5583
  %5719 = vst [vmem:[#allocation5 + $0xb0] sm:$0xff] %v5588
  %5720 = vst [vmem:[#allocation5 + $0xb8] sm:$0xff] %v5591
  %5721 = vst [vmem:[#allocation5 + $0xc0] sm:$0xff] %v5596
  %5722 = vst [vmem:[#allocation5 + $0xc8] sm:$0xff] %v5599
  %5723 = vst [vmem:[#allocation5 + $0xd0] sm:$0xff] %v5604
  %5724 = vst [vmem:[#allocation5 + $0xd8] sm:$0xff] %v5607
  %5725 = vst [vmem:[#allocation5 + $0xe0] sm:$0xff] %v5612
  %5726 = vst [vmem:[#allocation5 + $0xe8] sm:$0xff] %v5615
  %5727 = vst [vmem:[#allocation5 + $0xf0] sm:$0xff] %v5620
  %5728 = vst [vmem:[#allocation5 + $0xf8] sm:$0xff] %v5623
  %5729 = vst [vmem:[#allocation5 + $0x100] sm:$0xff] %v5628
  %5730 = vst [vmem:[#allocation5 + $0x108] sm:$0xff] %v5631
  %5731 = vst [vmem:[#allocation5 + $0x110] sm:$0xff] %v5636
  %5732 = vst [vmem:[#allocation5 + $0x118] sm:$0xff] %v5639
  %5733 = vst [vmem:[#allocation5 + $0x120] sm:$0xff] %v5644
  %5734 = vst [vmem:[#allocation5 + $0x128] sm:$0xff] %v5647
  %5735 = vst [vmem:[#allocation5 + $0x130] sm:$0xff] %v5652
  %5736 = vst [vmem:[#allocation5 + $0x138] sm:$0xff] %v5655
  %5737 = vst [vmem:[#allocation5 + $0x140] sm:$0xff] %v5660
  %5738 = vst [vmem:[#allocation5 + $0x148] sm:$0xff] %v5663
  %5739 = vst [vmem:[#allocation5 + $0x150] sm:$0xff] %v5668
  %5740 = vst [vmem:[#allocation5 + $0x158] sm:$0xff] %v5671
  %5741 = vst [vmem:[#allocation5 + $0x160] sm:$0xff] %v5676
  %5742 = vst [vmem:[#allocation5 + $0x168] sm:$0xff] %v5679
  %5743 = vst [vmem:[#allocation5 + $0x170] sm:$0xff] %v5684
  %5744 = vst [vmem:[#allocation5 + $0x178] sm:$0xff] %v5687
  %5745 = vst [vmem:[#allocation5 + $0x180] sm:$0xff] %v5692
  %5746 = vst [vmem:[#allocation6] sm:$0xff] 0.0
  %5747 = vst [vmem:[#allocation6 + $0x8] sm:$0xff] 0.0
  %5748 = vst [vmem:[#allocation6 + $0x10] sm:$0xff] 0.0
  %5749 = vst [vmem:[#allocation6 + $0x18] sm:$0xff] 0.0
  %v5750 = vld [vmem:[%s4] sm:$0x1]
  %v5751 = vld [vmem:[#allocation5] sm:$0x3]
  %v5752 = vld [vmem:[#allocation5 + $0x2] sm:$0x3]
  %v5753 = vmax.f32 %v5751, %v5752
  %v5754 = vld [vmem:[#allocation5 + $0x1c] sm:$0x3]
  %v5755 = vld [vmem:[#allocation5 + $0x1e] sm:$0x3]
  %v5756 = vmax.f32 %v5754, %v5755
  %v5757 = vmax.f32 %v5753, %v5756
  %v5759 = vlaneseq
  %v5760 = vshrl.u32 %v5759, 7
  %v5761 = vsub.s32 0, %v5760
  %v5762 = vrot.slane %v5750, %v5761
  %v5764 = vadd.f32 %v5757, %v5762
  %v5765 = vmax.f32 %v5764, 0.0
  %vm5766 = vcmask 123904
  %5767 = vst.msk [vmem:[#allocation6] sm:$0x3] %vm5766, %v5765
  %v5768 = vld [vmem:[#allocation5 + $0x4] sm:$0x3]
  %v5769 = vld [vmem:[#allocation5 + $0x6] sm:$0x3]
  %v5770 = vmax.f32 %v5768, %v5769
  %v5771 = vld [vmem:[#allocation5 + $0x20] sm:$0x3]
  %v5772 = vld [vmem:[#allocation5 + $0x22] sm:$0x3]
  %v5773 = vmax.f32 %v5771, %v5772
  %v5774 = vmax.f32 %v5770, %v5773
  %v5775 = vadd.f32 %v5774, %v5762
  %v5776 = vmax.f32 %v5775, 0.0
  %5778 = vrot.lane.b32.xlu0 %v5776, 16
  %v5779 = vpop.permute.xlu0 %5778
  %vm5781 = vcmask 255104
  %5782 = vst.msk [vmem:[#allocation6] sm:$0x3] %vm5781, %v5779
  %v5783 = vld [vmem:[#allocation5 + $0x8] sm:$0x3]
  %v5784 = vld [vmem:[#allocation5 + $0xa] sm:$0x3]
  %v5785 = vmax.f32 %v5783, %v5784
  %v5786 = vld [vmem:[#allocation5 + $0x24] sm:$0x3]
  %v5787 = vld [vmem:[#allocation5 + $0x26] sm:$0x3]
  %v5788 = vmax.f32 %v5786, %v5787
  %v5789 = vmax.f32 %v5785, %v5788
  %v5790 = vadd.f32 %v5789, %v5762
  %v5791 = vmax.f32 %v5790, 0.0
  %5793 = vrot.lane.b32.xlu0 %v5791, 32
  %v5794 = vpop.permute.xlu0 %5793
  %vm5796 = vcmask 386304
  %5797 = vst.msk [vmem:[#allocation6] sm:$0x3] %vm5796, %v5794
  %v5798 = vld [vmem:[#allocation5 + $0xc] sm:$0x3]
  %v5799 = vld [vmem:[#allocation5 + $0xe] sm:$0x3]
  %v5800 = vmax.f32 %v5798, %v5799
  %v5801 = vld [vmem:[#allocation5 + $0x28] sm:$0x3]
  %v5802 = vld [vmem:[#allocation5 + $0x2a] sm:$0x3]
  %v5803 = vmax.f32 %v5801, %v5802
  %v5804 = vmax.f32 %v5800, %v5803
  %v5805 = vadd.f32 %v5804, %v5762
  %v5806 = vmax.f32 %v5805, 0.0
  %5808 = vrot.lane.b32.xlu0 %v5806, 48
  %v5809 = vpop.permute.xlu0 %5808
  %vm5811 = vcmask 517504
  %5812 = vst.msk [vmem:[#allocation6] sm:$0x3] %vm5811, %v5809
  %v5813 = vld [vmem:[#allocation5 + $0x10] sm:$0x3]
  %v5814 = vld [vmem:[#allocation5 + $0x12] sm:$0x3]
  %v5815 = vmax.f32 %v5813, %v5814
  %v5816 = vld [vmem:[#allocation5 + $0x2c] sm:$0x3]
  %v5817 = vld [vmem:[#allocation5 + $0x2e] sm:$0x3]
  %v5818 = vmax.f32 %v5816, %v5817
  %v5819 = vmax.f32 %v5815, %v5818
  %v5820 = vadd.f32 %v5819, %v5762
  %v5821 = vmax.f32 %v5820, 0.0
  %5823 = vrot.lane.b32.xlu0 %v5821, 64
  %v5824 = vpop.permute.xlu0 %5823
  %vm5826 = vcmask 648704
  %5827 = vst.msk [vmem:[#allocation6] sm:$0x3] %vm5826, %v5824
  %v5828 = vld [vmem:[#allocation5 + $0x38] sm:$0x3]
  %v5829 = vld [vmem:[#allocation5 + $0x3a] sm:$0x3]
  %v5830 = vmax.f32 %v5828, %v5829
  %v5831 = vld [vmem:[#allocation5 + $0x54] sm:$0x3]
  %v5832 = vld [vmem:[#allocation5 + $0x56] sm:$0x3]
  %v5833 = vmax.f32 %v5831, %v5832
  %v5834 = vmax.f32 %v5830, %v5833
  %v5835 = vadd.f32 %v5834, %v5762
  %v5836 = vmax.f32 %v5835, 0.0
  %5838 = vrot.lane.b32.xlu0 %v5836, 80
  %v5839 = vpop.permute.xlu0 %5838
  %vm5841 = vcmask 779904
  %5842 = vst.msk [vmem:[#allocation6] sm:$0x3] %vm5841, %v5839
  %v5843 = vld [vmem:[#allocation5 + $0x3c] sm:$0x3]
  %v5844 = vld [vmem:[#allocation5 + $0x3e] sm:$0x3]
  %v5845 = vmax.f32 %v5843, %v5844
  %v5846 = vld [vmem:[#allocation5 + $0x58] sm:$0x3]
  %v5847 = vld [vmem:[#allocation5 + $0x5a] sm:$0x3]
  %v5848 = vmax.f32 %v5846, %v5847
  %v5849 = vmax.f32 %v5845, %v5848
  %v5850 = vadd.f32 %v5849, %v5762
  %v5851 = vmax.f32 %v5850, 0.0
  %5853 = vrot.lane.b32.xlu0 %v5851, 96
  %v5854 = vpop.permute.xlu0 %5853
  %vm5856 = vcmask 911104
  %5857 = vst.msk [vmem:[#allocation6] sm:$0x3] %vm5856, %v5854
  %v5858 = vld [vmem:[#allocation5 + $0x40] sm:$0x3]
  %v5859 = vld [vmem:[#allocation5 + $0x42] sm:$0x3]
  %v5860 = vmax.f32 %v5858, %v5859
  %v5861 = vld [vmem:[#allocation5 + $0x5c] sm:$0x3]
  %v5862 = vld [vmem:[#allocation5 + $0x5e] sm:$0x3]
  %v5863 = vmax.f32 %v5861, %v5862
  %v5864 = vmax.f32 %v5860, %v5863
  %v5865 = vadd.f32 %v5864, %v5762
  %v5866 = vmax.f32 %v5865, 0.0
  %5868 = vrot.lane.b32.xlu0 %v5866, 112
  %v5869 = vpop.permute.xlu0 %5868
  %vm5871 = vcmask 1042304
  %5872 = vst.msk [vmem:[#allocation6] sm:$0x3] %vm5871, %v5869
  %v5873 = vld [vmem:[#allocation5 + $0x44] sm:$0x3]
  %v5874 = vld [vmem:[#allocation5 + $0x46] sm:$0x3]
  %v5875 = vmax.f32 %v5873, %v5874
  %v5876 = vld [vmem:[#allocation5 + $0x60] sm:$0x3]
  %v5877 = vld [vmem:[#allocation5 + $0x62] sm:$0x3]
  %v5878 = vmax.f32 %v5876, %v5877
  %v5879 = vmax.f32 %v5875, %v5878
  %v5880 = vadd.f32 %v5879, %v5762
  %v5881 = vmax.f32 %v5880, 0.0
  %5882 = vst.msk [vmem:[#allocation6 + $0x8] sm:$0x3] %vm5766, %v5881
  %v5883 = vld [vmem:[#allocation5 + $0x48] sm:$0x3]
  %v5884 = vld [vmem:[#allocation5 + $0x4a] sm:$0x3]
  %v5885 = vmax.f32 %v5883, %v5884
  %v5886 = vld [vmem:[#allocation5 + $0x64] sm:$0x3]
  %v5887 = vld [vmem:[#allocation5 + $0x66] sm:$0x3]
  %v5888 = vmax.f32 %v5886, %v5887
  %v5889 = vmax.f32 %v5885, %v5888
  %v5890 = vadd.f32 %v5889, %v5762
  %v5891 = vmax.f32 %v5890, 0.0
  %5893 = vrot.lane.b32.xlu0 %v5891, 16
  %v5894 = vpop.permute.xlu0 %5893
  %5896 = vst.msk [vmem:[#allocation6 + $0x8] sm:$0x3] %vm5781, %v5894
  %v5897 = vld [vmem:[#allocation5 + $0x70] sm:$0x3]
  %v5898 = vld [vmem:[#allocation5 + $0x72] sm:$0x3]
  %v5899 = vmax.f32 %v5897, %v5898
  %v5900 = vld [vmem:[#allocation5 + $0x8c] sm:$0x3]
  %v5901 = vld [vmem:[#allocation5 + $0x8e] sm:$0x3]
  %v5902 = vmax.f32 %v5900, %v5901
  %v5903 = vmax.f32 %v5899, %v5902
  %v5904 = vadd.f32 %v5903, %v5762
  %v5905 = vmax.f32 %v5904, 0.0
  %5907 = vrot.lane.b32.xlu0 %v5905, 32
  %v5908 = vpop.permute.xlu0 %5907
  %5910 = vst.msk [vmem:[#allocation6 + $0x8] sm:$0x3] %vm5796, %v5908
  %v5911 = vld [vmem:[#allocation5 + $0x74] sm:$0x3]
  %v5912 = vld [vmem:[#allocation5 + $0x76] sm:$0x3]
  %v5913 = vmax.f32 %v5911, %v5912
  %v5914 = vld [vmem:[#allocation5 + $0x90] sm:$0x3]
  %v5915 = vld [vmem:[#allocation5 + $0x92] sm:$0x3]
  %v5916 = vmax.f32 %v5914, %v5915
  %v5917 = vmax.f32 %v5913, %v5916
  %v5918 = vadd.f32 %v5917, %v5762
  %v5919 = vmax.f32 %v5918, 0.0
  %5921 = vrot.lane.b32.xlu0 %v5919, 48
  %v5922 = vpop.permute.xlu0 %5921
  %5924 = vst.msk [vmem:[#allocation6 + $0x8] sm:$0x3] %vm5811, %v5922
  %v5925 = vld [vmem:[#allocation5 + $0x78] sm:$0x3]
  %v5926 = vld [vmem:[#allocation5 + $0x7a] sm:$0x3]
  %v5927 = vmax.f32 %v5925, %v5926
  %v5928 = vld [vmem:[#allocation5 + $0x94] sm:$0x3]
  %v5929 = vld [vmem:[#allocation5 + $0x96] sm:$0x3]
  %v5930 = vmax.f32 %v5928, %v5929
  %v5931 = vmax.f32 %v5927, %v5930
  %v5932 = vadd.f32 %v5931, %v5762
  %v5933 = vmax.f32 %v5932, 0.0
  %5935 = vrot.lane.b32.xlu0 %v5933, 64
  %v5936 = vpop.permute.xlu0 %5935
  %5938 = vst.msk [vmem:[#allocation6 + $0x8] sm:$0x3] %vm5826, %v5936
  %v5939 = vld [vmem:[#allocation5 + $0x7c] sm:$0x3]
  %v5940 = vld [vmem:[#allocation5 + $0x7e] sm:$0x3]
  %v5941 = vmax.f32 %v5939, %v5940
  %v5942 = vld [vmem:[#allocation5 + $0x98] sm:$0x3]
  %v5943 = vld [vmem:[#allocation5 + $0x9a] sm:$0x3]
  %v5944 = vmax.f32 %v5942, %v5943
  %v5945 = vmax.f32 %v5941, %v5944
  %v5946 = vadd.f32 %v5945, %v5762
  %v5947 = vmax.f32 %v5946, 0.0
  %5949 = vrot.lane.b32.xlu0 %v5947, 80
  %v5950 = vpop.permute.xlu0 %5949
  %5952 = vst.msk [vmem:[#allocation6 + $0x8] sm:$0x3] %vm5841, %v5950
  %v5953 = vld [vmem:[#allocation5 + $0x80] sm:$0x3]
  %v5954 = vld [vmem:[#allocation5 + $0x82] sm:$0x3]
  %v5955 = vmax.f32 %v5953, %v5954
  %v5956 = vld [vmem:[#allocation5 + $0x9c] sm:$0x3]
  %v5957 = vld [vmem:[#allocation5 + $0x9e] sm:$0x3]
  %v5958 = vmax.f32 %v5956, %v5957
  %v5959 = vmax.f32 %v5955, %v5958
  %v5960 = vadd.f32 %v5959, %v5762
  %v5961 = vmax.f32 %v5960, 0.0
  %5963 = vrot.lane.b32.xlu0 %v5961, 96
  %v5964 = vpop.permute.xlu0 %5963
  %5966 = vst.msk [vmem:[#allocation6 + $0x8] sm:$0x3] %vm5856, %v5964
  %v5967 = vld [vmem:[#allocation5 + $0xa8] sm:$0x3]
  %v5968 = vld [vmem:[#allocation5 + $0xaa] sm:$0x3]
  %v5969 = vmax.f32 %v5967, %v5968
  %v5970 = vld [vmem:[#allocation5 + $0xc4] sm:$0x3]
  %v5971 = vld [vmem:[#allocation5 + $0xc6] sm:$0x3]
  %v5972 = vmax.f32 %v5970, %v5971
  %v5973 = vmax.f32 %v5969, %v5972
  %v5974 = vadd.f32 %v5973, %v5762
  %v5975 = vmax.f32 %v5974, 0.0
  %5977 = vrot.lane.b32.xlu0 %v5975, 112
  %v5978 = vpop.permute.xlu0 %5977
  %5980 = vst.msk [vmem:[#allocation6 + $0x8] sm:$0x3] %vm5871, %v5978
  %v5981 = vld [vmem:[#allocation5 + $0xac] sm:$0x3]
  %v5982 = vld [vmem:[#allocation5 + $0xae] sm:$0x3]
  %v5983 = vmax.f32 %v5981, %v5982
  %v5984 = vld [vmem:[#allocation5 + $0xc8] sm:$0x3]
  %v5985 = vld [vmem:[#allocation5 + $0xca] sm:$0x3]
  %v5986 = vmax.f32 %v5984, %v5985
  %v5987 = vmax.f32 %v5983, %v5986
  %v5988 = vadd.f32 %v5987, %v5762
  %v5989 = vmax.f32 %v5988, 0.0
  %5990 = vst.msk [vmem:[#allocation6 + $0x10] sm:$0x3] %vm5766, %v5989
  %v5991 = vld [vmem:[#allocation5 + $0xb0] sm:$0x3]
  %v5992 = vld [vmem:[#allocation5 + $0xb2] sm:$0x3]
  %v5993 = vmax.f32 %v5991, %v5992
  %v5994 = vld [vmem:[#allocation5 + $0xcc] sm:$0x3]
  %v5995 = vld [vmem:[#allocation5 + $0xce] sm:$0x3]
  %v5996 = vmax.f32 %v5994, %v5995
  %v5997 = vmax.f32 %v5993, %v5996
  %v5998 = vadd.f32 %v5997, %v5762
  %v5999 = vmax.f32 %v5998, 0.0
  %6001 = vrot.lane.b32.xlu0 %v5999, 16
  %v6002 = vpop.permute.xlu0 %6001
  %6004 = vst.msk [vmem:[#allocation6 + $0x10] sm:$0x3] %vm5781, %v6002
  %v6005 = vld [vmem:[#allocation5 + $0xb4] sm:$0x3]
  %v6006 = vld [vmem:[#allocation5 + $0xb6] sm:$0x3]
  %v6007 = vmax.f32 %v6005, %v6006
  %v6008 = vld [vmem:[#allocation5 + $0xd0] sm:$0x3]
  %v6009 = vld [vmem:[#allocation5 + $0xd2] sm:$0x3]
  %v6010 = vmax.f32 %v6008, %v6009
  %v6011 = vmax.f32 %v6007, %v6010
  %v6012 = vadd.f32 %v6011, %v5762
  %v6013 = vmax.f32 %v6012, 0.0
  %6015 = vrot.lane.b32.xlu0 %v6013, 32
  %v6016 = vpop.permute.xlu0 %6015
  %6018 = vst.msk [vmem:[#allocation6 + $0x10] sm:$0x3] %vm5796, %v6016
  %v6019 = vld [vmem:[#allocation5 + $0xb8] sm:$0x3]
  %v6020 = vld [vmem:[#allocation5 + $0xba] sm:$0x3]
  %v6021 = vmax.f32 %v6019, %v6020
  %v6022 = vld [vmem:[#allocation5 + $0xd4] sm:$0x3]
  %v6023 = vld [vmem:[#allocation5 + $0xd6] sm:$0x3]
  %v6024 = vmax.f32 %v6022, %v6023
  %v6025 = vmax.f32 %v6021, %v6024
  %v6026 = vadd.f32 %v6025, %v5762
  %v6027 = vmax.f32 %v6026, 0.0
  %6029 = vrot.lane.b32.xlu0 %v6027, 48
  %v6030 = vpop.permute.xlu0 %6029
  %6032 = vst.msk [vmem:[#allocation6 + $0x10] sm:$0x3] %vm5811, %v6030
  %v6033 = vld [vmem:[#allocation5 + $0xe0] sm:$0x3]
  %v6034 = vld [vmem:[#allocation5 + $0xe2] sm:$0x3]
  %v6035 = vmax.f32 %v6033, %v6034
  %v6036 = vld [vmem:[#allocation5 + $0xfc] sm:$0x3]
  %v6037 = vld [vmem:[#allocation5 + $0xfe] sm:$0x3]
  %v6038 = vmax.f32 %v6036, %v6037
  %v6039 = vmax.f32 %v6035, %v6038
  %v6040 = vadd.f32 %v6039, %v5762
  %v6041 = vmax.f32 %v6040, 0.0
  %6043 = vrot.lane.b32.xlu0 %v6041, 64
  %v6044 = vpop.permute.xlu0 %6043
  %6046 = vst.msk [vmem:[#allocation6 + $0x10] sm:$0x3] %vm5826, %v6044
  %v6047 = vld [vmem:[#allocation5 + $0xe4] sm:$0x3]
  %v6048 = vld [vmem:[#allocation5 + $0xe6] sm:$0x3]
  %v6049 = vmax.f32 %v6047, %v6048
  %v6050 = vld [vmem:[#allocation5 + $0x100] sm:$0x3]
  %v6051 = vld [vmem:[#allocation5 + $0x102] sm:$0x3]
  %v6052 = vmax.f32 %v6050, %v6051
  %v6053 = vmax.f32 %v6049, %v6052
  %v6054 = vadd.f32 %v6053, %v5762
  %v6055 = vmax.f32 %v6054, 0.0
  %6057 = vrot.lane.b32.xlu0 %v6055, 80
  %v6058 = vpop.permute.xlu0 %6057
  %6060 = vst.msk [vmem:[#allocation6 + $0x10] sm:$0x3] %vm5841, %v6058
  %v6061 = vld [vmem:[#allocation5 + $0xe8] sm:$0x3]
  %v6062 = vld [vmem:[#allocation5 + $0xea] sm:$0x3]
  %v6063 = vmax.f32 %v6061, %v6062
  %v6064 = vld [vmem:[#allocation5 + $0x104] sm:$0x3]
  %v6065 = vld [vmem:[#allocation5 + $0x106] sm:$0x3]
  %v6066 = vmax.f32 %v6064, %v6065
  %v6067 = vmax.f32 %v6063, %v6066
  %v6068 = vadd.f32 %v6067, %v5762
  %v6069 = vmax.f32 %v6068, 0.0
  %6071 = vrot.lane.b32.xlu0 %v6069, 96
  %v6072 = vpop.permute.xlu0 %6071
  %6074 = vst.msk [vmem:[#allocation6 + $0x10] sm:$0x3] %vm5856, %v6072
  %v6075 = vld [vmem:[#allocation5 + $0xec] sm:$0x3]
  %v6076 = vld [vmem:[#allocation5 + $0xee] sm:$0x3]
  %v6077 = vmax.f32 %v6075, %v6076
  %v6078 = vld [vmem:[#allocation5 + $0x108] sm:$0x3]
  %v6079 = vld [vmem:[#allocation5 + $0x10a] sm:$0x3]
  %v6080 = vmax.f32 %v6078, %v6079
  %v6081 = vmax.f32 %v6077, %v6080
  %v6082 = vadd.f32 %v6081, %v5762
  %v6083 = vmax.f32 %v6082, 0.0
  %6085 = vrot.lane.b32.xlu0 %v6083, 112
  %v6086 = vpop.permute.xlu0 %6085
  %6088 = vst.msk [vmem:[#allocation6 + $0x10] sm:$0x3] %vm5871, %v6086
  %v6089 = vld [vmem:[#allocation5 + $0xf0] sm:$0x3]
  %v6090 = vld [vmem:[#allocation5 + $0xf2] sm:$0x3]
  %v6091 = vmax.f32 %v6089, %v6090
  %v6092 = vld [vmem:[#allocation5 + $0x10c] sm:$0x3]
  %v6093 = vld [vmem:[#allocation5 + $0x10e] sm:$0x3]
  %v6094 = vmax.f32 %v6092, %v6093
  %v6095 = vmax.f32 %v6091, %v6094
  %v6096 = vadd.f32 %v6095, %v5762
  %v6097 = vmax.f32 %v6096, 0.0
  %6098 = vst.msk [vmem:[#allocation6 + $0x18] sm:$0x3] %vm5766, %v6097
  %s6099 = smul.u32 4, 64
  %s6100 = smul.u32 %s6099, 4
  %s6101 = sshll.u32 %s6100, 4
  %6102 = dma.done [#allocation8], %s6101
  %v6103 = vld [vmem:[#allocation6] sm:$0xff]
  %v6104 = vld [vmem:[#allocation6 + $0x8] sm:$0xff]
  %v6105 = vld [vmem:[#allocation6 + $0x10] sm:$0xff]
  %v6106 = vld [vmem:[#allocation6 + $0x18] sm:$0xff]
  %v6107 = vpack.c.bf16 %v6103, %v6103
  %v6108 = vpack.c.bf16 %v6104, %v6104
  %v6109 = vpack.c.bf16 %v6105, %v6105
  %v6110 = vpack.c.bf16 %v6106, %v6106
  %v6111 = vld [vmem:[#allocation7] sm:$0xff]
  %v6112 = vld [vmem:[#allocation7 + $0x8] sm:$0xff]
  %v6113 = vld [vmem:[#allocation7 + $0x10] sm:$0xff]
  %v6114 = vld [vmem:[#allocation7 + $0x18] sm:$0xff]
  %v6115 = vld [vmem:[#allocation7 + $0x20] sm:$0xff]
  %v6116 = vld [vmem:[#allocation7 + $0x28] sm:$0xff]
  %v6117 = vld [vmem:[#allocation7 + $0x30] sm:$0xff]
  %v6118 = vld [vmem:[#allocation7 + $0x38] sm:$0xff]
  %v6119 = vld [vmem:[#allocation7 + $0x40] sm:$0xff]
  %v6120 = vld [vmem:[#allocation7 + $0x48] sm:$0xff]
  %v6121 = vld [vmem:[#allocation7 + $0x50] sm:$0xff]
  %v6122 = vld [vmem:[#allocation7 + $0x58] sm:$0xff]
  %v6123 = vld [vmem:[#allocation7 + $0x60] sm:$0xff]
  %v6124 = vld [vmem:[#allocation7 + $0x68] sm:$0xff]
  %v6125 = vld [vmem:[#allocation7 + $0x70] sm:$0xff]
  %v6126 = vld [vmem:[#allocation7 + $0x78] sm:$0xff]
  %v6127 = vld [vmem:[#allocation7 + $0x80] sm:$0xff]
  %v6128 = vld [vmem:[#allocation7 + $0x88] sm:$0xff]
  %v6129 = vld [vmem:[#allocation7 + $0x90] sm:$0xff]
  %v6130 = vld [vmem:[#allocation7 + $0x98] sm:$0xff]
  %v6131 = vld [vmem:[#allocation7 + $0xa0] sm:$0xff]
  %v6132 = vld [vmem:[#allocation7 + $0xa8] sm:$0xff]
  %v6133 = vld [vmem:[#allocation7 + $0xb0] sm:$0xff]
  %v6134 = vld [vmem:[#allocation7 + $0xb8] sm:$0xff]
  %v6135 = vld [vmem:[#allocation7 + $0xc0] sm:$0xff]
  %v6136 = vld [vmem:[#allocation7 + $0xc8] sm:$0xff]
  %v6137 = vld [vmem:[#allocation7 + $0xd0] sm:$0xff]
  %v6138 = vld [vmem:[#allocation7 + $0xd8] sm:$0xff]
  %v6139 = vld [vmem:[#allocation7 + $0xe0] sm:$0xff]
  %v6140 = vld [vmem:[#allocation7 + $0xe8] sm:$0xff]
  %v6141 = vld [vmem:[#allocation7 + $0xf0] sm:$0xff]
  %v6142 = vld [vmem:[#allocation7 + $0xf8] sm:$0xff]
  %v6143 = vld [vmem:[#allocation7 + $0x100] sm:$0xff]
  %v6144 = vld [vmem:[#allocation7 + $0x108] sm:$0xff]
  %v6145 = vld [vmem:[#allocation7 + $0x110] sm:$0xff]
  %v6146 = vld [vmem:[#allocation7 + $0x118] sm:$0xff]
  %v6147 = vld [vmem:[#allocation7 + $0x120] sm:$0xff]
  %v6148 = vld [vmem:[#allocation7 + $0x128] sm:$0xff]
  %v6149 = vld [vmem:[#allocation7 + $0x130] sm:$0xff]
  %v6150 = vld [vmem:[#allocation7 + $0x138] sm:$0xff]
  %v6151 = vld [vmem:[#allocation7 + $0x140] sm:$0xff]
  %v6152 = vld [vmem:[#allocation7 + $0x148] sm:$0xff]
  %v6153 = vld [vmem:[#allocation7 + $0x150] sm:$0xff]
  %v6154 = vld [vmem:[#allocation7 + $0x158] sm:$0xff]
  %v6155 = vld [vmem:[#allocation7 + $0x160] sm:$0xff]
  %v6156 = vld [vmem:[#allocation7 + $0x168] sm:$0xff]
  %v6157 = vld [vmem:[#allocation7 + $0x170] sm:$0xff]
  %v6158 = vld [vmem:[#allocation7 + $0x178] sm:$0xff]
  %v6159 = vld [vmem:[#allocation7 + $0x180] sm:$0xff]
  %v6160 = vld [vmem:[#allocation7 + $0x188] sm:$0xff]
  %v6161 = vld [vmem:[#allocation7 + $0x190] sm:$0xff]
  %v6162 = vld [vmem:[#allocation7 + $0x198] sm:$0xff]
  %v6163 = vld [vmem:[#allocation7 + $0x1a0] sm:$0xff]
  %v6164 = vld [vmem:[#allocation7 + $0x1a8] sm:$0xff]
  %v6165 = vld [vmem:[#allocation7 + $0x1b0] sm:$0xff]
  %v6166 = vld [vmem:[#allocation7 + $0x1b8] sm:$0xff]
  %v6167 = vld [vmem:[#allocation7 + $0x1c0] sm:$0xff]
  %v6168 = vld [vmem:[#allocation7 + $0x1c8] sm:$0xff]
  %v6169 = vld [vmem:[#allocation7 + $0x1d0] sm:$0xff]
  %v6170 = vld [vmem:[#allocation7 + $0x1d8] sm:$0xff]
  %v6171 = vld [vmem:[#allocation7 + $0x1e0] sm:$0xff]
  %v6172 = vld [vmem:[#allocation7 + $0x1e8] sm:$0xff]
  %v6173 = vld [vmem:[#allocation7 + $0x1f0] sm:$0xff]
  %v6174 = vld [vmem:[#allocation7 + $0x1f8] sm:$0xff]
  %v6175 = vld [vmem:[#allocation7 + $0x200] sm:$0xff]
  %v6176 = vld [vmem:[#allocation7 + $0x208] sm:$0xff]
  %v6177 = vld [vmem:[#allocation7 + $0x210] sm:$0xff]
  %v6178 = vld [vmem:[#allocation7 + $0x218] sm:$0xff]
  %v6179 = vld [vmem:[#allocation7 + $0x220] sm:$0xff]
  %v6180 = vld [vmem:[#allocation7 + $0x228] sm:$0xff]
  %v6181 = vld [vmem:[#allocation7 + $0x230] sm:$0xff]
  %v6182 = vld [vmem:[#allocation7 + $0x238] sm:$0xff]
  %v6183 = vld [vmem:[#allocation7 + $0x240] sm:$0xff]
  %v6184 = vld [vmem:[#allocation7 + $0x248] sm:$0xff]
  %v6185 = vld [vmem:[#allocation7 + $0x250] sm:$0xff]
  %v6186 = vld [vmem:[#allocation7 + $0x258] sm:$0xff]
  %v6187 = vld [vmem:[#allocation7 + $0x260] sm:$0xff]
  %v6188 = vld [vmem:[#allocation7 + $0x268] sm:$0xff]
  %v6189 = vld [vmem:[#allocation7 + $0x270] sm:$0xff]
  %v6190 = vld [vmem:[#allocation7 + $0x278] sm:$0xff]
  %v6191 = vld [vmem:[#allocation7 + $0x280] sm:$0xff]
  %v6192 = vld [vmem:[#allocation7 + $0x288] sm:$0xff]
  %v6193 = vld [vmem:[#allocation7 + $0x290] sm:$0xff]
  %v6194 = vld [vmem:[#allocation7 + $0x298] sm:$0xff]
  %v6195 = vld [vmem:[#allocation7 + $0x2a0] sm:$0xff]
  %v6196 = vld [vmem:[#allocation7 + $0x2a8] sm:$0xff]
  %v6197 = vld [vmem:[#allocation7 + $0x2b0] sm:$0xff]
  %v6198 = vld [vmem:[#allocation7 + $0x2b8] sm:$0xff]
  %v6199 = vld [vmem:[#allocation7 + $0x2c0] sm:$0xff]
  %v6200 = vld [vmem:[#allocation7 + $0x2c8] sm:$0xff]
  %v6201 = vld [vmem:[#allocation7 + $0x2d0] sm:$0xff]
  %v6202 = vld [vmem:[#allocation7 + $0x2d8] sm:$0xff]
  %v6203 = vld [vmem:[#allocation7 + $0x2e0] sm:$0xff]
  %v6204 = vld [vmem:[#allocation7 + $0x2e8] sm:$0xff]
  %v6205 = vld [vmem:[#allocation7 + $0x2f0] sm:$0xff]
  %v6206 = vld [vmem:[#allocation7 + $0x2f8] sm:$0xff]
  %v6207 = vld [vmem:[#allocation7 + $0x300] sm:$0xff]
  %v6208 = vld [vmem:[#allocation7 + $0x308] sm:$0xff]
  %v6209 = vld [vmem:[#allocation7 + $0x310] sm:$0xff]
  %v6210 = vld [vmem:[#allocation7 + $0x318] sm:$0xff]
  %v6211 = vld [vmem:[#allocation7 + $0x320] sm:$0xff]
  %v6212 = vld [vmem:[#allocation7 + $0x328] sm:$0xff]
  %v6213 = vld [vmem:[#allocation7 + $0x330] sm:$0xff]
  %v6214 = vld [vmem:[#allocation7 + $0x338] sm:$0xff]
  %v6215 = vld [vmem:[#allocation7 + $0x340] sm:$0xff]
  %v6216 = vld [vmem:[#allocation7 + $0x348] sm:$0xff]
  %v6217 = vld [vmem:[#allocation7 + $0x350] sm:$0xff]
  %v6218 = vld [vmem:[#allocation7 + $0x358] sm:$0xff]
  %v6219 = vld [vmem:[#allocation7 + $0x360] sm:$0xff]
  %v6220 = vld [vmem:[#allocation7 + $0x368] sm:$0xff]
  %v6221 = vld [vmem:[#allocation7 + $0x370] sm:$0xff]
  %v6222 = vld [vmem:[#allocation7 + $0x378] sm:$0xff]
  %v6223 = vld [vmem:[#allocation7 + $0x380] sm:$0xff]
  %v6224 = vld [vmem:[#allocation7 + $0x388] sm:$0xff]
  %v6225 = vld [vmem:[#allocation7 + $0x390] sm:$0xff]
  %v6226 = vld [vmem:[#allocation7 + $0x398] sm:$0xff]
  %v6227 = vld [vmem:[#allocation7 + $0x3a0] sm:$0xff]
  %v6228 = vld [vmem:[#allocation7 + $0x3a8] sm:$0xff]
  %v6229 = vld [vmem:[#allocation7 + $0x3b0] sm:$0xff]
  %v6230 = vld [vmem:[#allocation7 + $0x3b8] sm:$0xff]
  %v6231 = vld [vmem:[#allocation7 + $0x3c0] sm:$0xff]
  %v6232 = vld [vmem:[#allocation7 + $0x3c8] sm:$0xff]
  %v6233 = vld [vmem:[#allocation7 + $0x3d0] sm:$0xff]
  %v6234 = vld [vmem:[#allocation7 + $0x3d8] sm:$0xff]
  %v6235 = vld [vmem:[#allocation7 + $0x3e0] sm:$0xff]
  %v6236 = vld [vmem:[#allocation7 + $0x3e8] sm:$0xff]
  %v6237 = vld [vmem:[#allocation7 + $0x3f0] sm:$0xff]
  %v6238 = vld [vmem:[#allocation7 + $0x3f8] sm:$0xff]
  %v6239 = vld [vmem:[%s6] sm:$0xf]
  %v6241 = vlaneseq
  %v6242 = vshrl.u32 %v6241, 7
  %v6243 = vsub.s32 0, %v6242
  %v6244 = vrot.slane %v6239, %v6243
  %v6245 = vlaneseq
  %v6246 = vshrl.u32 %v6245, 7
  %v6247 = vsub.s32 1, %v6246
  %v6248 = vrot.slane %v6239, %v6247
  %v6249 = vlaneseq
  %v6250 = vshrl.u32 %v6249, 7
  %v6251 = vsub.s32 2, %v6250
  %v6252 = vrot.slane %v6239, %v6251
  %v6253 = vlaneseq
  %v6254 = vshrl.u32 %v6253, 7
  %v6255 = vsub.s32 3, %v6254
  %v6256 = vrot.slane %v6239, %v6255
  %v6389 = vunpack.c.l.b16 %v6111
  %v6390 = vunpack.c.h.b16 %v6111
  %v6391 = vunpack.c.l.b16 %v6112
  %v6392 = vunpack.c.h.b16 %v6112
  %v6393 = vunpack.c.l.b16 %v6113
  %v6394 = vunpack.c.h.b16 %v6113
  %v6395 = vunpack.c.l.b16 %v6114
  %v6396 = vunpack.c.h.b16 %v6114
  %v6397 = vunpack.c.l.b16 %v6115
  %v6398 = vunpack.c.h.b16 %v6115
  %v6399 = vunpack.c.l.b16 %v6116
  %v6400 = vunpack.c.h.b16 %v6116
  %v6401 = vunpack.c.l.b16 %v6117
  %v6402 = vunpack.c.h.b16 %v6117
  %v6403 = vunpack.c.l.b16 %v6118
  %v6404 = vunpack.c.h.b16 %v6118
  %v6405 = vunpack.c.l.b16 %v6119
  %v6406 = vunpack.c.h.b16 %v6119
  %v6407 = vunpack.c.l.b16 %v6120
  %v6408 = vunpack.c.h.b16 %v6120
  %v6409 = vunpack.c.l.b16 %v6121
  %v6410 = vunpack.c.h.b16 %v6121
  %v6411 = vunpack.c.l.b16 %v6122
  %v6412 = vunpack.c.h.b16 %v6122
  %v6413 = vunpack.c.l.b16 %v6123
  %v6414 = vunpack.c.h.b16 %v6123
  %v6415 = vunpack.c.l.b16 %v6124
  %v6416 = vunpack.c.h.b16 %v6124
  %v6417 = vunpack.c.l.b16 %v6125
  %v6418 = vunpack.c.h.b16 %v6125
  %v6419 = vunpack.c.l.b16 %v6126
  %v6420 = vunpack.c.h.b16 %v6126
  %v6421 = vunpack.c.l.b16 %v6127
  %v6422 = vunpack.c.h.b16 %v6127
  %v6423 = vunpack.c.l.b16 %v6128
  %v6424 = vunpack.c.h.b16 %v6128
  %v6425 = vunpack.c.l.b16 %v6129
  %v6426 = vunpack.c.h.b16 %v6129
  %v6427 = vunpack.c.l.b16 %v6130
  %v6428 = vunpack.c.h.b16 %v6130
  %v6429 = vunpack.c.l.b16 %v6131
  %v6430 = vunpack.c.h.b16 %v6131
  %v6431 = vunpack.c.l.b16 %v6132
  %v6432 = vunpack.c.h.b16 %v6132
  %v6433 = vunpack.c.l.b16 %v6133
  %v6434 = vunpack.c.h.b16 %v6133
  %v6435 = vunpack.c.l.b16 %v6134
  %v6436 = vunpack.c.h.b16 %v6134
  %v6437 = vunpack.c.l.b16 %v6135
  %v6438 = vunpack.c.h.b16 %v6135
  %v6439 = vunpack.c.l.b16 %v6136
  %v6440 = vunpack.c.h.b16 %v6136
  %v6441 = vunpack.c.l.b16 %v6137
  %v6442 = vunpack.c.h.b16 %v6137
  %v6443 = vunpack.c.l.b16 %v6138
  %v6444 = vunpack.c.h.b16 %v6138
  %v6445 = vunpack.c.l.b16 %v6139
  %v6446 = vunpack.c.h.b16 %v6139
  %v6447 = vunpack.c.l.b16 %v6140
  %v6448 = vunpack.c.h.b16 %v6140
  %v6449 = vunpack.c.l.b16 %v6141
  %v6450 = vunpack.c.h.b16 %v6141
  %v6451 = vunpack.c.l.b16 %v6142
  %v6452 = vunpack.c.h.b16 %v6142
  %v6453 = vunpack.c.l.b16 %v6143
  %v6454 = vunpack.c.h.b16 %v6143
  %v6455 = vunpack.c.l.b16 %v6144
  %v6456 = vunpack.c.h.b16 %v6144
  %v6457 = vunpack.c.l.b16 %v6145
  %v6458 = vunpack.c.h.b16 %v6145
  %v6459 = vunpack.c.l.b16 %v6146
  %v6460 = vunpack.c.h.b16 %v6146
  %v6461 = vunpack.c.l.b16 %v6147
  %v6462 = vunpack.c.h.b16 %v6147
  %v6463 = vunpack.c.l.b16 %v6148
  %v6464 = vunpack.c.h.b16 %v6148
  %v6465 = vunpack.c.l.b16 %v6149
  %v6466 = vunpack.c.h.b16 %v6149
  %v6467 = vunpack.c.l.b16 %v6150
  %v6468 = vunpack.c.h.b16 %v6150
  %v6469 = vunpack.c.l.b16 %v6151
  %v6470 = vunpack.c.h.b16 %v6151
  %v6471 = vunpack.c.l.b16 %v6152
  %v6472 = vunpack.c.h.b16 %v6152
  %v6473 = vunpack.c.l.b16 %v6153
  %v6474 = vunpack.c.h.b16 %v6153
  %v6475 = vunpack.c.l.b16 %v6154
  %v6476 = vunpack.c.h.b16 %v6154
  %v6477 = vunpack.c.l.b16 %v6155
  %v6478 = vunpack.c.h.b16 %v6155
  %v6479 = vunpack.c.l.b16 %v6156
  %v6480 = vunpack.c.h.b16 %v6156
  %v6481 = vunpack.c.l.b16 %v6157
  %v6482 = vunpack.c.h.b16 %v6157
  %v6483 = vunpack.c.l.b16 %v6158
  %v6484 = vunpack.c.h.b16 %v6158
  %v6485 = vunpack.c.l.b16 %v6159
  %v6486 = vunpack.c.h.b16 %v6159
  %v6487 = vunpack.c.l.b16 %v6160
  %v6488 = vunpack.c.h.b16 %v6160
  %v6489 = vunpack.c.l.b16 %v6161
  %v6490 = vunpack.c.h.b16 %v6161
  %v6491 = vunpack.c.l.b16 %v6162
  %v6492 = vunpack.c.h.b16 %v6162
  %v6493 = vunpack.c.l.b16 %v6163
  %v6494 = vunpack.c.h.b16 %v6163
  %v6495 = vunpack.c.l.b16 %v6164
  %v6496 = vunpack.c.h.b16 %v6164
  %v6497 = vunpack.c.l.b16 %v6165
  %v6498 = vunpack.c.h.b16 %v6165
  %v6499 = vunpack.c.l.b16 %v6166
  %v6500 = vunpack.c.h.b16 %v6166
  %v6501 = vunpack.c.l.b16 %v6167
  %v6502 = vunpack.c.h.b16 %v6167
  %v6503 = vunpack.c.l.b16 %v6168
  %v6504 = vunpack.c.h.b16 %v6168
  %v6505 = vunpack.c.l.b16 %v6169
  %v6506 = vunpack.c.h.b16 %v6169
  %v6507 = vunpack.c.l.b16 %v6170
  %v6508 = vunpack.c.h.b16 %v6170
  %v6509 = vunpack.c.l.b16 %v6171
  %v6510 = vunpack.c.h.b16 %v6171
  %v6511 = vunpack.c.l.b16 %v6172
  %v6512 = vunpack.c.h.b16 %v6172
  %v6513 = vunpack.c.l.b16 %v6173
  %v6514 = vunpack.c.h.b16 %v6173
  %v6515 = vunpack.c.l.b16 %v6174
  %v6516 = vunpack.c.h.b16 %v6174
  %v6517 = vunpack.c.l.b16 %v6175
  %v6518 = vunpack.c.h.b16 %v6175
  %v6519 = vunpack.c.l.b16 %v6176
  %v6520 = vunpack.c.h.b16 %v6176
  %v6521 = vunpack.c.l.b16 %v6177
  %v6522 = vunpack.c.h.b16 %v6177
  %v6523 = vunpack.c.l.b16 %v6178
  %v6524 = vunpack.c.h.b16 %v6178
  %v6525 = vunpack.c.l.b16 %v6179
  %v6526 = vunpack.c.h.b16 %v6179
  %v6527 = vunpack.c.l.b16 %v6180
  %v6528 = vunpack.c.h.b16 %v6180
  %v6529 = vunpack.c.l.b16 %v6181
  %v6530 = vunpack.c.h.b16 %v6181
  %v6531 = vunpack.c.l.b16 %v6182
  %v6532 = vunpack.c.h.b16 %v6182
  %v6533 = vunpack.c.l.b16 %v6183
  %v6534 = vunpack.c.h.b16 %v6183
  %v6535 = vunpack.c.l.b16 %v6184
  %v6536 = vunpack.c.h.b16 %v6184
  %v6537 = vunpack.c.l.b16 %v6185
  %v6538 = vunpack.c.h.b16 %v6185
  %v6539 = vunpack.c.l.b16 %v6186
  %v6540 = vunpack.c.h.b16 %v6186
  %v6541 = vunpack.c.l.b16 %v6187
  %v6542 = vunpack.c.h.b16 %v6187
  %v6543 = vunpack.c.l.b16 %v6188
  %v6544 = vunpack.c.h.b16 %v6188
  %v6545 = vunpack.c.l.b16 %v6189
  %v6546 = vunpack.c.h.b16 %v6189
  %v6547 = vunpack.c.l.b16 %v6190
  %v6548 = vunpack.c.h.b16 %v6190
  %v6549 = vunpack.c.l.b16 %v6191
  %v6550 = vunpack.c.h.b16 %v6191
  %v6551 = vunpack.c.l.b16 %v6192
  %v6552 = vunpack.c.h.b16 %v6192
  %v6553 = vunpack.c.l.b16 %v6193
  %v6554 = vunpack.c.h.b16 %v6193
  %v6555 = vunpack.c.l.b16 %v6194
  %v6556 = vunpack.c.h.b16 %v6194
  %v6557 = vunpack.c.l.b16 %v6195
  %v6558 = vunpack.c.h.b16 %v6195
  %v6559 = vunpack.c.l.b16 %v6196
  %v6560 = vunpack.c.h.b16 %v6196
  %v6561 = vunpack.c.l.b16 %v6197
  %v6562 = vunpack.c.h.b16 %v6197
  %v6563 = vunpack.c.l.b16 %v6198
  %v6564 = vunpack.c.h.b16 %v6198
  %v6565 = vunpack.c.l.b16 %v6199
  %v6566 = vunpack.c.h.b16 %v6199
  %v6567 = vunpack.c.l.b16 %v6200
  %v6568 = vunpack.c.h.b16 %v6200
  %v6569 = vunpack.c.l.b16 %v6201
  %v6570 = vunpack.c.h.b16 %v6201
  %v6571 = vunpack.c.l.b16 %v6202
  %v6572 = vunpack.c.h.b16 %v6202
  %v6573 = vunpack.c.l.b16 %v6203
  %v6574 = vunpack.c.h.b16 %v6203
  %v6575 = vunpack.c.l.b16 %v6204
  %v6576 = vunpack.c.h.b16 %v6204
  %v6577 = vunpack.c.l.b16 %v6205
  %v6578 = vunpack.c.h.b16 %v6205
  %v6579 = vunpack.c.l.b16 %v6206
  %v6580 = vunpack.c.h.b16 %v6206
  %v6581 = vunpack.c.l.b16 %v6207
  %v6582 = vunpack.c.h.b16 %v6207
  %v6583 = vunpack.c.l.b16 %v6208
  %v6584 = vunpack.c.h.b16 %v6208
  %v6585 = vunpack.c.l.b16 %v6209
  %v6586 = vunpack.c.h.b16 %v6209
  %v6587 = vunpack.c.l.b16 %v6210
  %v6588 = vunpack.c.h.b16 %v6210
  %v6589 = vunpack.c.l.b16 %v6211
  %v6590 = vunpack.c.h.b16 %v6211
  %v6591 = vunpack.c.l.b16 %v6212
  %v6592 = vunpack.c.h.b16 %v6212
  %v6593 = vunpack.c.l.b16 %v6213
  %v6594 = vunpack.c.h.b16 %v6213
  %v6595 = vunpack.c.l.b16 %v6214
  %v6596 = vunpack.c.h.b16 %v6214
  %v6597 = vunpack.c.l.b16 %v6215
  %v6598 = vunpack.c.h.b16 %v6215
  %v6599 = vunpack.c.l.b16 %v6216
  %v6600 = vunpack.c.h.b16 %v6216
  %v6601 = vunpack.c.l.b16 %v6217
  %v6602 = vunpack.c.h.b16 %v6217
  %v6603 = vunpack.c.l.b16 %v6218
  %v6604 = vunpack.c.h.b16 %v6218
  %v6605 = vunpack.c.l.b16 %v6219
  %v6606 = vunpack.c.h.b16 %v6219
  %v6607 = vunpack.c.l.b16 %v6220
  %v6608 = vunpack.c.h.b16 %v6220
  %v6609 = vunpack.c.l.b16 %v6221
  %v6610 = vunpack.c.h.b16 %v6221
  %v6611 = vunpack.c.l.b16 %v6222
  %v6612 = vunpack.c.h.b16 %v6222
  %v6613 = vunpack.c.l.b16 %v6223
  %v6614 = vunpack.c.h.b16 %v6223
  %v6615 = vunpack.c.l.b16 %v6224
  %v6616 = vunpack.c.h.b16 %v6224
  %v6617 = vunpack.c.l.b16 %v6225
  %v6618 = vunpack.c.h.b16 %v6225
  %v6619 = vunpack.c.l.b16 %v6226
  %v6620 = vunpack.c.h.b16 %v6226
  %v6621 = vunpack.c.l.b16 %v6227
  %v6622 = vunpack.c.h.b16 %v6227
  %v6623 = vunpack.c.l.b16 %v6228
  %v6624 = vunpack.c.h.b16 %v6228
  %v6625 = vunpack.c.l.b16 %v6229
  %v6626 = vunpack.c.h.b16 %v6229
  %v6627 = vunpack.c.l.b16 %v6230
  %v6628 = vunpack.c.h.b16 %v6230
  %v6629 = vunpack.c.l.b16 %v6231
  %v6630 = vunpack.c.h.b16 %v6231
  %v6631 = vunpack.c.l.b16 %v6232
  %v6632 = vunpack.c.h.b16 %v6232
  %v6633 = vunpack.c.l.b16 %v6233
  %v6634 = vunpack.c.h.b16 %v6233
  %v6635 = vunpack.c.l.b16 %v6234
  %v6636 = vunpack.c.h.b16 %v6234
  %v6637 = vunpack.c.l.b16 %v6235
  %v6638 = vunpack.c.h.b16 %v6235
  %v6639 = vunpack.c.l.b16 %v6236
  %v6640 = vunpack.c.h.b16 %v6236
  %v6641 = vunpack.c.l.b16 %v6237
  %v6642 = vunpack.c.h.b16 %v6237
  %v6643 = vunpack.c.l.b16 %v6238
  %v6644 = vunpack.c.h.b16 %v6238
  %v6645 = vpack.c.b16 %v6393, %v6389
  %v6646 = vpack.c.b16 %v6394, %v6390
  %v6647 = vpack.c.b16 %v6395, %v6391
  %v6648 = vpack.c.b16 %v6396, %v6392
  %v6649 = vpack.c.b16 %v6401, %v6397
  %v6650 = vpack.c.b16 %v6402, %v6398
  %v6651 = vpack.c.b16 %v6403, %v6399
  %v6652 = vpack.c.b16 %v6404, %v6400
  %v6653 = vpack.c.b16 %v6409, %v6405
  %v6654 = vpack.c.b16 %v6410, %v6406
  %v6655 = vpack.c.b16 %v6411, %v6407
  %v6656 = vpack.c.b16 %v6412, %v6408
  %v6657 = vpack.c.b16 %v6417, %v6413
  %v6658 = vpack.c.b16 %v6418, %v6414
  %v6659 = vpack.c.b16 %v6419, %v6415
  %v6660 = vpack.c.b16 %v6420, %v6416
  %v6661 = vpack.c.b16 %v6425, %v6421
  %v6662 = vpack.c.b16 %v6426, %v6422
  %v6663 = vpack.c.b16 %v6427, %v6423
  %v6664 = vpack.c.b16 %v6428, %v6424
  %v6665 = vpack.c.b16 %v6433, %v6429
  %v6666 = vpack.c.b16 %v6434, %v6430
  %v6667 = vpack.c.b16 %v6435, %v6431
  %v6668 = vpack.c.b16 %v6436, %v6432
  %v6669 = vpack.c.b16 %v6441, %v6437
  %v6670 = vpack.c.b16 %v6442, %v6438
  %v6671 = vpack.c.b16 %v6443, %v6439
  %v6672 = vpack.c.b16 %v6444, %v6440
  %v6673 = vpack.c.b16 %v6449, %v6445
  %v6674 = vpack.c.b16 %v6450, %v6446
  %v6675 = vpack.c.b16 %v6451, %v6447
  %v6676 = vpack.c.b16 %v6452, %v6448
  %v6677 = vpack.c.b16 %v6457, %v6453
  %v6678 = vpack.c.b16 %v6458, %v6454
  %v6679 = vpack.c.b16 %v6459, %v6455
  %v6680 = vpack.c.b16 %v6460, %v6456
  %v6681 = vpack.c.b16 %v6465, %v6461
  %v6682 = vpack.c.b16 %v6466, %v6462
  %v6683 = vpack.c.b16 %v6467, %v6463
  %v6684 = vpack.c.b16 %v6468, %v6464
  %v6685 = vpack.c.b16 %v6473, %v6469
  %v6686 = vpack.c.b16 %v6474, %v6470
  %v6687 = vpack.c.b16 %v6475, %v6471
  %v6688 = vpack.c.b16 %v6476, %v6472
  %v6689 = vpack.c.b16 %v6481, %v6477
  %v6690 = vpack.c.b16 %v6482, %v6478
  %v6691 = vpack.c.b16 %v6483, %v6479
  %v6692 = vpack.c.b16 %v6484, %v6480
  %v6693 = vpack.c.b16 %v6489, %v6485
  %v6694 = vpack.c.b16 %v6490, %v6486
  %v6695 = vpack.c.b16 %v6491, %v6487
  %v6696 = vpack.c.b16 %v6492, %v6488
  %v6697 = vpack.c.b16 %v6497, %v6493
  %v6698 = vpack.c.b16 %v6498, %v6494
  %v6699 = vpack.c.b16 %v6499, %v6495
  %v6700 = vpack.c.b16 %v6500, %v6496
  %v6701 = vpack.c.b16 %v6505, %v6501
  %v6702 = vpack.c.b16 %v6506, %v6502
  %v6703 = vpack.c.b16 %v6507, %v6503
  %v6704 = vpack.c.b16 %v6508, %v6504
  %v6705 = vpack.c.b16 %v6513, %v6509
  %v6706 = vpack.c.b16 %v6514, %v6510
  %v6707 = vpack.c.b16 %v6515, %v6511
  %v6708 = vpack.c.b16 %v6516, %v6512
  %v6709 = vpack.c.b16 %v6521, %v6517
  %v6710 = vpack.c.b16 %v6522, %v6518
  %v6711 = vpack.c.b16 %v6523, %v6519
  %v6712 = vpack.c.b16 %v6524, %v6520
  %v6713 = vpack.c.b16 %v6529, %v6525
  %v6714 = vpack.c.b16 %v6530, %v6526
  %v6715 = vpack.c.b16 %v6531, %v6527
  %v6716 = vpack.c.b16 %v6532, %v6528
  %v6717 = vpack.c.b16 %v6537, %v6533
  %v6718 = vpack.c.b16 %v6538, %v6534
  %v6719 = vpack.c.b16 %v6539, %v6535
  %v6720 = vpack.c.b16 %v6540, %v6536
  %v6721 = vpack.c.b16 %v6545, %v6541
  %v6722 = vpack.c.b16 %v6546, %v6542
  %v6723 = vpack.c.b16 %v6547, %v6543
  %v6724 = vpack.c.b16 %v6548, %v6544
  %v6725 = vpack.c.b16 %v6553, %v6549
  %v6726 = vpack.c.b16 %v6554, %v6550
  %v6727 = vpack.c.b16 %v6555, %v6551
  %v6728 = vpack.c.b16 %v6556, %v6552
  %v6729 = vpack.c.b16 %v6561, %v6557
  %v6730 = vpack.c.b16 %v6562, %v6558
  %v6731 = vpack.c.b16 %v6563, %v6559
  %v6732 = vpack.c.b16 %v6564, %v6560
  %v6733 = vpack.c.b16 %v6569, %v6565
  %v6734 = vpack.c.b16 %v6570, %v6566
  %v6735 = vpack.c.b16 %v6571, %v6567
  %v6736 = vpack.c.b16 %v6572, %v6568
  %v6737 = vpack.c.b16 %v6577, %v6573
  %v6738 = vpack.c.b16 %v6578, %v6574
  %v6739 = vpack.c.b16 %v6579, %v6575
  %v6740 = vpack.c.b16 %v6580, %v6576
  %v6741 = vpack.c.b16 %v6585, %v6581
  %v6742 = vpack.c.b16 %v6586, %v6582
  %v6743 = vpack.c.b16 %v6587, %v6583
  %v6744 = vpack.c.b16 %v6588, %v6584
  %v6745 = vpack.c.b16 %v6593, %v6589
  %v6746 = vpack.c.b16 %v6594, %v6590
  %v6747 = vpack.c.b16 %v6595, %v6591
  %v6748 = vpack.c.b16 %v6596, %v6592
  %v6749 = vpack.c.b16 %v6601, %v6597
  %v6750 = vpack.c.b16 %v6602, %v6598
  %v6751 = vpack.c.b16 %v6603, %v6599
  %v6752 = vpack.c.b16 %v6604, %v6600
  %v6753 = vpack.c.b16 %v6609, %v6605
  %v6754 = vpack.c.b16 %v6610, %v6606
  %v6755 = vpack.c.b16 %v6611, %v6607
  %v6756 = vpack.c.b16 %v6612, %v6608
  %v6757 = vpack.c.b16 %v6617, %v6613
  %v6758 = vpack.c.b16 %v6618, %v6614
  %v6759 = vpack.c.b16 %v6619, %v6615
  %v6760 = vpack.c.b16 %v6620, %v6616
  %v6761 = vpack.c.b16 %v6625, %v6621
  %v6762 = vpack.c.b16 %v6626, %v6622
  %v6763 = vpack.c.b16 %v6627, %v6623
  %v6764 = vpack.c.b16 %v6628, %v6624
  %v6765 = vpack.c.b16 %v6633, %v6629
  %v6766 = vpack.c.b16 %v6634, %v6630
  %v6767 = vpack.c.b16 %v6635, %v6631
  %v6768 = vpack.c.b16 %v6636, %v6632
  %v6769 = vpack.c.b16 %v6641, %v6637
  %v6770 = vpack.c.b16 %v6642, %v6638
  %v6771 = vpack.c.b16 %v6643, %v6639
  %v6772 = vpack.c.b16 %v6644, %v6640
  %6901 = vmatprep.subr.bf16.mxu0 %v6674
  %6902 = vmatpush1.bf16.msra.mxu0 %v6673
  %6903 = vmatprep.subr.bf16.mxu0 %v6670
  %6904 = vmatpush1.bf16.msra.mxu0 %v6669
  %6905 = vmatprep.subr.bf16.mxu0 %v6666
  %6906 = vmatpush1.bf16.msra.mxu0 %v6665
  %6907 = vmatprep.subr.bf16.mxu0 %v6662
  %6908 = vmatpush1.bf16.msra.mxu0 %v6661
  %6909 = vmatprep.subr.bf16.mxu0 %v6658
  %6910 = vmatpush1.bf16.msra.mxu0 %v6657
  %6911 = vmatprep.subr.bf16.mxu0 %v6654
  %6912 = vmatpush1.bf16.msra.mxu0 %v6653
  %6913 = vmatprep.subr.bf16.mxu0 %v6650
  %6914 = vmatpush1.bf16.msra.mxu0 %v6649
  %6915 = vmatprep.subr.bf16.mxu0 %v6646
  %6916 = vmatpush1.bf16.msra.mxu0 %v6645
  %6917 = vmatprep.subr.bf16.mxu0 %v6706
  %6918 = vmatpush2.bf16.msra.mxu0 %v6705
  %6919 = vmatprep.subr.bf16.mxu0 %v6702
  %6920 = vmatpush2.bf16.msra.mxu0 %v6701
  %6921 = vmatprep.subr.bf16.mxu0 %v6698
  %6922 = vmatpush2.bf16.msra.mxu0 %v6697
  %6923 = vmatprep.subr.bf16.mxu0 %v6694
  %6924 = vmatpush2.bf16.msra.mxu0 %v6693
  %6925 = vmatprep.subr.bf16.mxu0 %v6690
  %6926 = vmatpush2.bf16.msra.mxu0 %v6689
  %6927 = vmatprep.subr.bf16.mxu0 %v6686
  %6928 = vmatpush2.bf16.msra.mxu0 %v6685
  %6929 = vmatprep.subr.bf16.mxu0 %v6682
  %6930 = vmatpush2.bf16.msra.mxu0 %v6681
  %6931 = vmatprep.subr.bf16.mxu0 %v6678
  %6932 = vmatpush2.bf16.msra.mxu0 %v6677
  %6933 = vmatprep.mubr.bf16.mxu0 %v6108
  %6934 = vmatmul.mubr.bf16.gmra.mxu0 %v6107
  %v6935 = vpop.f32.mrf.mxu0
  %v6936 = vadd.f32 %v6244, %v6935
  %v6937 = vpop.f32.mrf.mxu0
  %v6938 = vadd.f32 %v6248, %v6937
  %v6939 = vpop.f32.mrf.mxu0
  %v6940 = vpop.f32.mrf.mxu0
  %6941 = vdwg.mxu0
  %6942 = vmatprep.subr.bf16.mxu0 %v6738
  %6943 = vmatpush1.bf16.msra.mxu0 %v6737
  %6944 = vmatprep.subr.bf16.mxu0 %v6734
  %6945 = vmatpush1.bf16.msra.mxu0 %v6733
  %6946 = vmatprep.subr.bf16.mxu0 %v6730
  %6947 = vmatpush1.bf16.msra.mxu0 %v6729
  %6948 = vmatprep.subr.bf16.mxu0 %v6726
  %6949 = vmatpush1.bf16.msra.mxu0 %v6725
  %6950 = vmatprep.subr.bf16.mxu0 %v6722
  %6951 = vmatpush1.bf16.msra.mxu0 %v6721
  %6952 = vmatprep.subr.bf16.mxu0 %v6718
  %6953 = vmatpush1.bf16.msra.mxu0 %v6717
  %6954 = vmatprep.subr.bf16.mxu0 %v6714
  %6955 = vmatpush1.bf16.msra.mxu0 %v6713
  %6956 = vmatprep.subr.bf16.mxu0 %v6710
  %6957 = vmatpush1.bf16.msra.mxu0 %v6709
  %6958 = vmatprep.subr.bf16.mxu0 %v6770
  %6959 = vmatpush2.bf16.msra.mxu0 %v6769
  %6960 = vmatprep.subr.bf16.mxu0 %v6766
  %6961 = vmatpush2.bf16.msra.mxu0 %v6765
  %6962 = vmatprep.subr.bf16.mxu0 %v6762
  %6963 = vmatpush2.bf16.msra.mxu0 %v6761
  %6964 = vmatprep.subr.bf16.mxu0 %v6758
  %6965 = vmatpush2.bf16.msra.mxu0 %v6757
  %6966 = vmatprep.subr.bf16.mxu0 %v6754
  %6967 = vmatpush2.bf16.msra.mxu0 %v6753
  %6968 = vmatprep.subr.bf16.mxu0 %v6750
  %6969 = vmatpush2.bf16.msra.mxu0 %v6749
  %6970 = vmatprep.subr.bf16.mxu0 %v6746
  %6971 = vmatpush2.bf16.msra.mxu0 %v6745
  %6972 = vmatprep.subr.bf16.mxu0 %v6742
  %6973 = vmatpush2.bf16.msra.mxu0 %v6741
  %6974 = vmatprep.mubr.bf16.mxu0 %v6110
  %6975 = vmatmul.mubr.bf16.gmra.mxu0 %v6109
  %v6976 = vpop.f32.mrf.mxu0
  %v6977 = vadd.f32 %v6936, %v6976
  %v6978 = vpop.f32.mrf.mxu0
  %v6979 = vadd.f32 %v6938, %v6978
  %v6980 = vpop.f32.mrf.mxu0
  %v6981 = vpop.f32.mrf.mxu0
  %6982 = vdwg.mxu0
  %6983 = vmatprep.subr.bf16.mxu0 %v6676
  %6984 = vmatpush1.bf16.msra.mxu0 %v6675
  %6985 = vmatprep.subr.bf16.mxu0 %v6672
  %6986 = vmatpush1.bf16.msra.mxu0 %v6671
  %6987 = vmatprep.subr.bf16.mxu0 %v6668
  %6988 = vmatpush1.bf16.msra.mxu0 %v6667
  %6989 = vmatprep.subr.bf16.mxu0 %v6664
  %6990 = vmatpush1.bf16.msra.mxu0 %v6663
  %6991 = vmatprep.subr.bf16.mxu0 %v6660
  %6992 = vmatpush1.bf16.msra.mxu0 %v6659
  %6993 = vmatprep.subr.bf16.mxu0 %v6656
  %6994 = vmatpush1.bf16.msra.mxu0 %v6655
  %6995 = vmatprep.subr.bf16.mxu0 %v6652
  %6996 = vmatpush1.bf16.msra.mxu0 %v6651
  %6997 = vmatprep.subr.bf16.mxu0 %v6648
  %6998 = vmatpush1.bf16.msra.mxu0 %v6647
  %6999 = vmatprep.subr.bf16.mxu0 %v6708
  %7000 = vmatpush2.bf16.msra.mxu0 %v6707
  %7001 = vmatprep.subr.bf16.mxu0 %v6704
  %7002 = vmatpush2.bf16.msra.mxu0 %v6703
  %7003 = vmatprep.subr.bf16.mxu0 %v6700
  %7004 = vmatpush2.bf16.msra.mxu0 %v6699
  %7005 = vmatprep.subr.bf16.mxu0 %v6696
  %7006 = vmatpush2.bf16.msra.mxu0 %v6695
  %7007 = vmatprep.subr.bf16.mxu0 %v6692
  %7008 = vmatpush2.bf16.msra.mxu0 %v6691
  %7009 = vmatprep.subr.bf16.mxu0 %v6688
  %7010 = vmatpush2.bf16.msra.mxu0 %v6687
  %7011 = vmatprep.subr.bf16.mxu0 %v6684
  %7012 = vmatpush2.bf16.msra.mxu0 %v6683
  %7013 = vmatprep.subr.bf16.mxu0 %v6680
  %7014 = vmatpush2.bf16.msra.mxu0 %v6679
  %7015 = vmatprep.mubr.bf16.mxu0 %v6108
  %7016 = vmatmul.mubr.bf16.gmra.mxu0 %v6107
  %v7017 = vpop.f32.mrf.mxu0
  %v7018 = vadd.f32 %v6252, %v7017
  %v7019 = vpop.f32.mrf.mxu0
  %v7020 = vadd.f32 %v6256, %v7019
  %v7021 = vpop.f32.mrf.mxu0
  %v7022 = vpop.f32.mrf.mxu0
  %7023 = vdwg.mxu0
  %7024 = vmatprep.subr.bf16.mxu0 %v6740
  %7025 = vmatpush1.bf16.msra.mxu0 %v6739
  %7026 = vmatprep.subr.bf16.mxu0 %v6736
  %7027 = vmatpush1.bf16.msra.mxu0 %v6735
  %7028 = vmatprep.subr.bf16.mxu0 %v6732
  %7029 = vmatpush1.bf16.msra.mxu0 %v6731
  %7030 = vmatprep.subr.bf16.mxu0 %v6728
  %7031 = vmatpush1.bf16.msra.mxu0 %v6727
  %7032 = vmatprep.subr.bf16.mxu0 %v6724
  %7033 = vmatpush1.bf16.msra.mxu0 %v6723
  %7034 = vmatprep.subr.bf16.mxu0 %v6720
  %7035 = vmatpush1.bf16.msra.mxu0 %v6719
  %7036 = vmatprep.subr.bf16.mxu0 %v6716
  %7037 = vmatpush1.bf16.msra.mxu0 %v6715
  %7038 = vmatprep.subr.bf16.mxu0 %v6712
  %7039 = vmatpush1.bf16.msra.mxu0 %v6711
  %7040 = vmatprep.subr.bf16.mxu0 %v6772
  %7041 = vmatpush2.bf16.msra.mxu0 %v6771
  %7042 = vmatprep.subr.bf16.mxu0 %v6768
  %7043 = vmatpush2.bf16.msra.mxu0 %v6767
  %7044 = vmatprep.subr.bf16.mxu0 %v6764
  %7045 = vmatpush2.bf16.msra.mxu0 %v6763
  %7046 = vmatprep.subr.bf16.mxu0 %v6760
  %7047 = vmatpush2.bf16.msra.mxu0 %v6759
  %7048 = vmatprep.subr.bf16.mxu0 %v6756
  %7049 = vmatpush2.bf16.msra.mxu0 %v6755
  %7050 = vmatprep.subr.bf16.mxu0 %v6752
  %7051 = vmatpush2.bf16.msra.mxu0 %v6751
  %7052 = vmatprep.subr.bf16.mxu0 %v6748
  %7053 = vmatpush2.bf16.msra.mxu0 %v6747
  %7054 = vmatprep.subr.bf16.mxu0 %v6744
  %7055 = vmatpush2.bf16.msra.mxu0 %v6743
  %7056 = vmatprep.mubr.bf16.mxu0 %v6110
  %7057 = vmatmul.mubr.bf16.gmra.mxu0 %v6109
  %v7058 = vpop.f32.mrf.mxu0
  %v7059 = vadd.f32 %v7018, %v7058
  %v7060 = vpop.f32.mrf.mxu0
  %v7061 = vadd.f32 %v7020, %v7060
  %v7062 = vpop.f32.mrf.mxu0
  %v7063 = vpop.f32.mrf.mxu0
  %7064 = vdwg.mxu0
  %v7065 = vmax.f32 %v6977, 0.0
  %v7066 = vmax.f32 %v6979, 0.0
  %v7067 = vmax.f32 %v7059, 0.0
  %v7068 = vmax.f32 %v7061, 0.0
  %v7069 = vpack.c.bf16 %v7065, %v7065
  %v7070 = vpack.c.bf16 %v7066, %v7066
  %v7071 = vpack.c.bf16 %v7067, %v7067
  %v7072 = vpack.c.bf16 %v7068, %v7068
  %v7073 = vld [vmem:[%s7] sm:$0xf]
  %v7074 = vld [vmem:[%s7 + $0x4] sm:$0xf]
  %v7075 = vld [vmem:[%s7 + $0x8] sm:$0xf]
  %v7076 = vld [vmem:[%s7 + $0xc] sm:$0xf]
  %v7077 = vld [vmem:[%s7 + $0x10] sm:$0xf]
  %v7078 = vld [vmem:[%s7 + $0x14] sm:$0xf]
  %v7079 = vld [vmem:[%s7 + $0x18] sm:$0xf]
  %v7080 = vld [vmem:[%s7 + $0x1c] sm:$0xf]
  %v7081 = vld [vmem:[%s7 + $0x20] sm:$0xf]
  %v7082 = vld [vmem:[%s7 + $0x24] sm:$0xf]
  %v7083 = vld [vmem:[%s7 + $0x28] sm:$0xf]
  %v7084 = vld [vmem:[%s7 + $0x2c] sm:$0xf]
  %v7085 = vld [vmem:[%s7 + $0x30] sm:$0xf]
  %v7086 = vld [vmem:[%s7 + $0x34] sm:$0xf]
  %v7087 = vld [vmem:[%s7 + $0x38] sm:$0xf]
  %v7088 = vld [vmem:[%s7 + $0x3c] sm:$0xf]
  %v7089 = vld [vmem:[%s7 + $0x40] sm:$0xf]
  %v7090 = vld [vmem:[%s7 + $0x44] sm:$0xf]
  %v7091 = vld [vmem:[%s7 + $0x48] sm:$0xf]
  %v7092 = vld [vmem:[%s7 + $0x4c] sm:$0xf]
  %v7093 = vld [vmem:[%s7 + $0x50] sm:$0xf]
  %v7094 = vld [vmem:[%s7 + $0x54] sm:$0xf]
  %v7095 = vld [vmem:[%s7 + $0x58] sm:$0xf]
  %v7096 = vld [vmem:[%s7 + $0x5c] sm:$0xf]
  %v7097 = vld [vmem:[%s7 + $0x60] sm:$0xf]
  %v7098 = vld [vmem:[%s7 + $0x64] sm:$0xf]
  %v7099 = vld [vmem:[%s7 + $0x68] sm:$0xf]
  %v7100 = vld [vmem:[%s7 + $0x6c] sm:$0xf]
  %v7101 = vld [vmem:[%s7 + $0x70] sm:$0xf]
  %v7102 = vld [vmem:[%s7 + $0x74] sm:$0xf]
  %v7103 = vld [vmem:[%s7 + $0x78] sm:$0xf]
  %v7104 = vld [vmem:[%s7 + $0x7c] sm:$0xf]
  %v7105 = vld [vmem:[%s7 + $0x80] sm:$0xf]
  %v7106 = vld [vmem:[%s7 + $0x84] sm:$0xf]
  %v7107 = vld [vmem:[%s7 + $0x88] sm:$0xf]
  %v7108 = vld [vmem:[%s7 + $0x8c] sm:$0xf]
  %v7109 = vld [vmem:[%s7 + $0x90] sm:$0xf]
  %v7110 = vld [vmem:[%s7 + $0x94] sm:$0xf]
  %v7111 = vld [vmem:[%s7 + $0x98] sm:$0xf]
  %v7112 = vld [vmem:[%s7 + $0x9c] sm:$0xf]
  %v7113 = vld [vmem:[%s7 + $0xa0] sm:$0xf]
  %v7114 = vld [vmem:[%s7 + $0xa4] sm:$0xf]
  %v7115 = vld [vmem:[%s7 + $0xa8] sm:$0xf]
  %v7116 = vld [vmem:[%s7 + $0xac] sm:$0xf]
  %v7117 = vld [vmem:[%s7 + $0xb0] sm:$0xf]
  %v7118 = vld [vmem:[%s7 + $0xb4] sm:$0xf]
  %v7119 = vld [vmem:[%s7 + $0xb8] sm:$0xf]
  %v7120 = vld [vmem:[%s7 + $0xbc] sm:$0xf]
  %v7121 = vld [vmem:[%s7 + $0xc0] sm:$0xf]
  %v7122 = vld [vmem:[%s7 + $0xc4] sm:$0xf]
  %v7123 = vld [vmem:[%s7 + $0xc8] sm:$0xf]
  %v7124 = vld [vmem:[%s7 + $0xcc] sm:$0xf]
  %v7125 = vld [vmem:[%s7 + $0xd0] sm:$0xf]
  %v7126 = vld [vmem:[%s7 + $0xd4] sm:$0xf]
  %v7127 = vld [vmem:[%s7 + $0xd8] sm:$0xf]
  %v7128 = vld [vmem:[%s7 + $0xdc] sm:$0xf]
  %v7129 = vld [vmem:[%s7 + $0xe0] sm:$0xf]
  %v7130 = vld [vmem:[%s7 + $0xe4] sm:$0xf]
  %v7131 = vld [vmem:[%s7 + $0xe8] sm:$0xf]
  %v7132 = vld [vmem:[%s7 + $0xec] sm:$0xf]
  %v7133 = vld [vmem:[%s7 + $0xf0] sm:$0xf]
  %v7134 = vld [vmem:[%s7 + $0xf4] sm:$0xf]
  %v7135 = vld [vmem:[%s7 + $0xf8] sm:$0xf]
  %v7136 = vld [vmem:[%s7 + $0xfc] sm:$0xf]
  %v7137 = vld [vmem:[%s8] sm:$0x1]
  %v7139 = vlaneseq
  %v7140 = vshrl.u32 %v7139, 7
  %v7141 = vsub.s32 0, %v7140
  %v7142 = vrot.slane %v7137, %v7141
  %v7208 = vunpack.c.l.b16 %v7073
  %v7209 = vunpack.c.l.b16 %v7074
  %v7210 = vunpack.c.l.b16 %v7075
  %v7211 = vunpack.c.l.b16 %v7076
  %v7212 = vunpack.c.l.b16 %v7077
  %v7213 = vunpack.c.l.b16 %v7078
  %v7214 = vunpack.c.l.b16 %v7079
  %v7215 = vunpack.c.l.b16 %v7080
  %v7216 = vunpack.c.l.b16 %v7081
  %v7217 = vunpack.c.l.b16 %v7082
  %v7218 = vunpack.c.l.b16 %v7083
  %v7219 = vunpack.c.l.b16 %v7084
  %v7220 = vunpack.c.l.b16 %v7085
  %v7221 = vunpack.c.l.b16 %v7086
  %v7222 = vunpack.c.l.b16 %v7087
  %v7223 = vunpack.c.l.b16 %v7088
  %v7224 = vunpack.c.l.b16 %v7089
  %v7225 = vunpack.c.l.b16 %v7090
  %v7226 = vunpack.c.l.b16 %v7091
  %v7227 = vunpack.c.l.b16 %v7092
  %v7228 = vunpack.c.l.b16 %v7093
  %v7229 = vunpack.c.l.b16 %v7094
  %v7230 = vunpack.c.l.b16 %v7095
  %v7231 = vunpack.c.l.b16 %v7096
  %v7232 = vunpack.c.l.b16 %v7097
  %v7233 = vunpack.c.l.b16 %v7098
  %v7234 = vunpack.c.l.b16 %v7099
  %v7235 = vunpack.c.l.b16 %v7100
  %v7236 = vunpack.c.l.b16 %v7101
  %v7237 = vunpack.c.l.b16 %v7102
  %v7238 = vunpack.c.l.b16 %v7103
  %v7239 = vunpack.c.l.b16 %v7104
  %v7240 = vunpack.c.l.b16 %v7105
  %v7241 = vunpack.c.l.b16 %v7106
  %v7242 = vunpack.c.l.b16 %v7107
  %v7243 = vunpack.c.l.b16 %v7108
  %v7244 = vunpack.c.l.b16 %v7109
  %v7245 = vunpack.c.l.b16 %v7110
  %v7246 = vunpack.c.l.b16 %v7111
  %v7247 = vunpack.c.l.b16 %v7112
  %v7248 = vunpack.c.l.b16 %v7113
  %v7249 = vunpack.c.l.b16 %v7114
  %v7250 = vunpack.c.l.b16 %v7115
  %v7251 = vunpack.c.l.b16 %v7116
  %v7252 = vunpack.c.l.b16 %v7117
  %v7253 = vunpack.c.l.b16 %v7118
  %v7254 = vunpack.c.l.b16 %v7119
  %v7255 = vunpack.c.l.b16 %v7120
  %v7256 = vunpack.c.l.b16 %v7121
  %v7257 = vunpack.c.l.b16 %v7122
  %v7258 = vunpack.c.l.b16 %v7123
  %v7259 = vunpack.c.l.b16 %v7124
  %v7260 = vunpack.c.l.b16 %v7125
  %v7261 = vunpack.c.l.b16 %v7126
  %v7262 = vunpack.c.l.b16 %v7127
  %v7263 = vunpack.c.l.b16 %v7128
  %v7264 = vunpack.c.l.b16 %v7129
  %v7265 = vunpack.c.l.b16 %v7130
  %v7266 = vunpack.c.l.b16 %v7131
  %v7267 = vunpack.c.l.b16 %v7132
  %v7268 = vunpack.c.l.b16 %v7133
  %v7269 = vunpack.c.l.b16 %v7134
  %v7270 = vunpack.c.l.b16 %v7135
  %v7271 = vunpack.c.l.b16 %v7136
  %v7272 = vpack.c.b16 %v7209, %v7208
  %v7273 = vpack.c.b16 %v7211, %v7210
  %v7274 = vpack.c.b16 %v7213, %v7212
  %v7275 = vpack.c.b16 %v7215, %v7214
  %v7276 = vpack.c.b16 %v7217, %v7216
  %v7277 = vpack.c.b16 %v7219, %v7218
  %v7278 = vpack.c.b16 %v7221, %v7220
  %v7279 = vpack.c.b16 %v7223, %v7222
  %v7280 = vpack.c.b16 %v7225, %v7224
  %v7281 = vpack.c.b16 %v7227, %v7226
  %v7282 = vpack.c.b16 %v7229, %v7228
  %v7283 = vpack.c.b16 %v7231, %v7230
  %v7284 = vpack.c.b16 %v7233, %v7232
  %v7285 = vpack.c.b16 %v7235, %v7234
  %v7286 = vpack.c.b16 %v7237, %v7236
  %v7287 = vpack.c.b16 %v7239, %v7238
  %v7288 = vpack.c.b16 %v7241, %v7240
  %v7289 = vpack.c.b16 %v7243, %v7242
  %v7290 = vpack.c.b16 %v7245, %v7244
  %v7291 = vpack.c.b16 %v7247, %v7246
  %v7292 = vpack.c.b16 %v7249, %v7248
  %v7293 = vpack.c.b16 %v7251, %v7250
  %v7294 = vpack.c.b16 %v7253, %v7252
  %v7295 = vpack.c.b16 %v7255, %v7254
  %v7296 = vpack.c.b16 %v7257, %v7256
  %v7297 = vpack.c.b16 %v7259, %v7258
  %v7298 = vpack.c.b16 %v7261, %v7260
  %v7299 = vpack.c.b16 %v7263, %v7262
  %v7300 = vpack.c.b16 %v7265, %v7264
  %v7301 = vpack.c.b16 %v7267, %v7266
  %v7302 = vpack.c.b16 %v7269, %v7268
  %v7303 = vpack.c.b16 %v7271, %v7270
  %7336 = vmatprep.subr.bf16.mxu0 0
  %7337 = vmatpush1.bf16.msra.mxu0 %v7279
  %7338 = vmatprep.subr.bf16.mxu0 0
  %7339 = vmatpush1.bf16.msra.mxu0 %v7278
  %7340 = vmatprep.subr.bf16.mxu0 0
  %7341 = vmatpush1.bf16.msra.mxu0 %v7277
  %7342 = vmatprep.subr.bf16.mxu0 0
  %7343 = vmatpush1.bf16.msra.mxu0 %v7276
  %7344 = vmatprep.subr.bf16.mxu0 0
  %7345 = vmatpush1.bf16.msra.mxu0 %v7275
  %7346 = vmatprep.subr.bf16.mxu0 0
  %7347 = vmatpush1.bf16.msra.mxu0 %v7274
  %7348 = vmatprep.subr.bf16.mxu0 0
  %7349 = vmatpush1.bf16.msra.mxu0 %v7273
  %7350 = vmatprep.subr.bf16.mxu0 0
  %7351 = vmatpush1.bf16.msra.mxu0 %v7272
  %7352 = vmatprep.subr.bf16.mxu0 0
  %7353 = vmatpush2.bf16.msra.mxu0 %v7287
  %7354 = vmatprep.subr.bf16.mxu0 0
  %7355 = vmatpush2.bf16.msra.mxu0 %v7286
  %7356 = vmatprep.subr.bf16.mxu0 0
  %7357 = vmatpush2.bf16.msra.mxu0 %v7285
  %7358 = vmatprep.subr.bf16.mxu0 0
  %7359 = vmatpush2.bf16.msra.mxu0 %v7284
  %7360 = vmatprep.subr.bf16.mxu0 0
  %7361 = vmatpush2.bf16.msra.mxu0 %v7283
  %7362 = vmatprep.subr.bf16.mxu0 0
  %7363 = vmatpush2.bf16.msra.mxu0 %v7282
  %7364 = vmatprep.subr.bf16.mxu0 0
  %7365 = vmatpush2.bf16.msra.mxu0 %v7281
  %7366 = vmatprep.subr.bf16.mxu0 0
  %7367 = vmatpush2.bf16.msra.mxu0 %v7280
  %7368 = vmatprep.mubr.bf16.mxu0 %v7070
  %7369 = vmatmul.mubr.bf16.gmra.mxu0 %v7069
  %v7370 = vpop.f32.mrf.mxu0
  %v7371 = vadd.f32 %v7142, %v7370
  %v7372 = vpop.f32.mrf.mxu0
  %v7373 = vpop.f32.mrf.mxu0
  %v7374 = vpop.f32.mrf.mxu0
  %7375 = vdwg.mxu0
  %7376 = vmatprep.subr.bf16.mxu0 0
  %7377 = vmatpush1.bf16.msra.mxu0 %v7295
  %7378 = vmatprep.subr.bf16.mxu0 0
  %7379 = vmatpush1.bf16.msra.mxu0 %v7294
  %7380 = vmatprep.subr.bf16.mxu0 0
  %7381 = vmatpush1.bf16.msra.mxu0 %v7293
  %7382 = vmatprep.subr.bf16.mxu0 0
  %7383 = vmatpush1.bf16.msra.mxu0 %v7292
  %7384 = vmatprep.subr.bf16.mxu0 0
  %7385 = vmatpush1.bf16.msra.mxu0 %v7291
  %7386 = vmatprep.subr.bf16.mxu0 0
  %7387 = vmatpush1.bf16.msra.mxu0 %v7290
  %7388 = vmatprep.subr.bf16.mxu0 0
  %7389 = vmatpush1.bf16.msra.mxu0 %v7289
  %7390 = vmatprep.subr.bf16.mxu0 0
  %7391 = vmatpush1.bf16.msra.mxu0 %v7288
  %7392 = vmatprep.subr.bf16.mxu0 0
  %7393 = vmatpush2.bf16.msra.mxu0 %v7303
  %7394 = vmatprep.subr.bf16.mxu0 0
  %7395 = vmatpush2.bf16.msra.mxu0 %v7302
  %7396 = vmatprep.subr.bf16.mxu0 0
  %7397 = vmatpush2.bf16.msra.mxu0 %v7301
  %7398 = vmatprep.subr.bf16.mxu0 0
  %7399 = vmatpush2.bf16.msra.mxu0 %v7300
  %7400 = vmatprep.subr.bf16.mxu0 0
  %7401 = vmatpush2.bf16.msra.mxu0 %v7299
  %7402 = vmatprep.subr.bf16.mxu0 0
  %7403 = vmatpush2.bf16.msra.mxu0 %v7298
  %7404 = vmatprep.subr.bf16.mxu0 0
  %7405 = vmatpush2.bf16.msra.mxu0 %v7297
  %7406 = vmatprep.subr.bf16.mxu0 0
  %7407 = vmatpush2.bf16.msra.mxu0 %v7296
  %7408 = vmatprep.mubr.bf16.mxu0 %v7072
  %7409 = vmatmul.mubr.bf16.gmra.mxu0 %v7071
  %v7410 = vpop.f32.mrf.mxu0
  %v7411 = vadd.f32 %v7371, %v7410
  %v7412 = vpop.f32.mrf.mxu0
  %v7413 = vpop.f32.mrf.mxu0
  %v7414 = vpop.f32.mrf.mxu0
  %7415 = vdwg.mxu0
  %v7416 = vmax.f32 %v7411, 0.0
  %v7417 = vpack.c.bf16 %v7416, %v7416
  %v7418 = vld [vmem:[%s9] sm:$0xf]
  %v7419 = vld [vmem:[%s9 + $0x4] sm:$0xf]
  %v7420 = vld [vmem:[%s9 + $0x8] sm:$0xf]
  %v7421 = vld [vmem:[%s9 + $0xc] sm:$0xf]
  %v7422 = vld [vmem:[%s9 + $0x10] sm:$0xf]
  %v7423 = vld [vmem:[%s9 + $0x14] sm:$0xf]
  %v7424 = vld [vmem:[%s9 + $0x18] sm:$0xf]
  %v7425 = vld [vmem:[%s9 + $0x1c] sm:$0xf]
  %v7426 = vld [vmem:[%s9 + $0x20] sm:$0xf]
  %v7427 = vld [vmem:[%s9 + $0x24] sm:$0xf]
  %v7428 = vld [vmem:[%s9 + $0x28] sm:$0xf]
  %v7429 = vld [vmem:[%s9 + $0x2c] sm:$0xf]
  %v7430 = vld [vmem:[%s9 + $0x30] sm:$0xf]
  %v7431 = vld [vmem:[%s9 + $0x34] sm:$0xf]
  %v7432 = vld [vmem:[%s9 + $0x38] sm:$0xf]
  %v7433 = vld [vmem:[%s9 + $0x3c] sm:$0xf]
  %v7434 = vld [vmem:[%s10] sm:$0x1]
  %v7436 = vlaneseq
  %v7437 = vshrl.u32 %v7436, 7
  %v7438 = vsub.s32 0, %v7437
  %v7439 = vrot.slane %v7434, %v7438
  %v7457 = vunpack.c.l.b16 %v7418
  %v7458 = vunpack.c.l.b16 %v7419
  %v7459 = vunpack.c.l.b16 %v7420
  %v7460 = vunpack.c.l.b16 %v7421
  %v7461 = vunpack.c.l.b16 %v7422
  %v7462 = vunpack.c.l.b16 %v7423
  %v7463 = vunpack.c.l.b16 %v7424
  %v7464 = vunpack.c.l.b16 %v7425
  %v7465 = vunpack.c.l.b16 %v7426
  %v7466 = vunpack.c.l.b16 %v7427
  %v7467 = vunpack.c.l.b16 %v7428
  %v7468 = vunpack.c.l.b16 %v7429
  %v7469 = vunpack.c.l.b16 %v7430
  %v7470 = vunpack.c.l.b16 %v7431
  %v7471 = vunpack.c.l.b16 %v7432
  %v7472 = vunpack.c.l.b16 %v7433
  %v7473 = vpack.c.b16 %v7458, %v7457
  %v7474 = vpack.c.b16 %v7460, %v7459
  %v7475 = vpack.c.b16 %v7462, %v7461
  %v7476 = vpack.c.b16 %v7464, %v7463
  %v7477 = vpack.c.b16 %v7466, %v7465
  %v7478 = vpack.c.b16 %v7468, %v7467
  %v7479 = vpack.c.b16 %v7470, %v7469
  %v7480 = vpack.c.b16 %v7472, %v7471
  %7489 = vmatprep.subr.bf16.mxu0 0
  %7490 = vmatpush1.bf16.msra.mxu0 %v7480
  %7491 = vmatprep.subr.bf16.mxu0 0
  %7492 = vmatpush1.bf16.msra.mxu0 %v7479
  %7493 = vmatprep.subr.bf16.mxu0 0
  %7494 = vmatpush1.bf16.msra.mxu0 %v7478
  %7495 = vmatprep.subr.bf16.mxu0 0
  %7496 = vmatpush1.bf16.msra.mxu0 %v7477
  %7497 = vmatprep.subr.bf16.mxu0 0
  %7498 = vmatpush1.bf16.msra.mxu0 %v7476
  %7499 = vmatprep.subr.bf16.mxu0 0
  %7500 = vmatpush1.bf16.msra.mxu0 %v7475
  %7501 = vmatprep.subr.bf16.mxu0 0
  %7502 = vmatpush1.bf16.msra.mxu0 %v7474
  %7503 = vmatprep.subr.bf16.mxu0 0
  %7504 = vmatpush1.bf16.msra.mxu0 %v7473
  %7505 = vmatprep.subr.bf16.mxu0 0
  %7506 = vmatpush2.bf16.msra.mxu0 0
  %7507 = vmatprep.subr.bf16.mxu0 0
  %7508 = vmatpush2.bf16.msra.mxu0 0
  %7509 = vmatprep.subr.bf16.mxu0 0
  %7510 = vmatpush2.bf16.msra.mxu0 0
  %7511 = vmatprep.subr.bf16.mxu0 0
  %7512 = vmatpush2.bf16.msra.mxu0 0
  %7513 = vmatprep.subr.bf16.mxu0 0
  %7514 = vmatpush2.bf16.msra.mxu0 0
  %7515 = vmatprep.subr.bf16.mxu0 0
  %7516 = vmatpush2.bf16.msra.mxu0 0
  %7517 = vmatprep.subr.bf16.mxu0 0
  %7518 = vmatpush2.bf16.msra.mxu0 0
  %7519 = vmatprep.subr.bf16.mxu0 0
  %7520 = vmatpush2.bf16.msra.mxu0 0
  %7521 = vmatprep.mubr.bf16.mxu0 0
  %7522 = vmatmul.mubr.bf16.gmra.mxu0 %v7417
  %v7523 = vpop.f32.mrf.mxu0
  %v7524 = vadd.f32 %v7439, %v7523
  %v7525 = vpop.f32.mrf.mxu0
  %v7526 = vpop.f32.mrf.mxu0
  %v7527 = vpop.f32.mrf.mxu0
  %7528 = vdwg.mxu0
  %7529 = vst [vmem:[%s11] sm:$0xff] %v7524
  // Predicated region
  $region76: #{net_forward.1} parent=0 // pred_check
    _
  $region77: #{net_forward.1} parent=0 // pred_check_branch
    %7531 = sbr.rel (0) target = $region79
  $region78: #{net_forward.1} parent=0 // pred_region
    _
  $region79: #{net_forward.1} parent=0 // pred_fallthru
    _
  // Predicated region
  $region80: #{net_forward.1} parent=0 // pred_check
    _
  $region81: #{net_forward.1} parent=0 // pred_check_branch
    %7533 = sbr.rel (0) target = $region83
  $region82: #{net_forward.1} parent=0 // pred_region
    _
  $region83: #{net_forward.1} parent=0 // pred_fallthru
    _
  %7534 = vsyncmov [#allocation8]
  %s7535 = vpop.sfrf %7534
  %p7536 = scmp.eq.s32.totalorder %s7535, 0
  %p7537 = pneg %p7536
  %7539 = shalt.err (%p7537)

</llo_original>
